<compile_context>
chip_gen: v7x
topology: tpu7x:2x2x1
jax: 0.10.0
libtpu: 0.0.40
codegen_flags: <defaults>
</compile_context>

<pallas_src>
import functools

import jax
import jax.numpy as jnp
from jax import lax
from jax.experimental import pallas as pl
from jax.experimental.pallas import tpu as pltpu

NEG_SLOPE = 0.01  # PyTorch LeakyReLU default


# ----------------------------------------------------------------------------
# In-kernel building blocks.  Activations are Python lists of (H, W) f32
# planes (one per channel); everything is unrolled at trace time.
# ----------------------------------------------------------------------------
def _leaky(v):
    return jnp.where(v >= 0, v, NEG_SLOPE * v)


def _dotf(a, b):
    return jnp.dot(a, b, preferred_element_type=jnp.float32)


def _sel_matrix(rows, cols, fn):
    """Selection / interleave matrix M[r, c] = 1.0 where fn(r, c), else 0."""
    r = lax.broadcasted_iota(jnp.int32, (rows, cols), 0)
    c = lax.broadcasted_iota(jnp.int32, (rows, cols), 1)
    return fn(r, c).astype(jnp.float32)


def _pad_same(v):
    """Zero-pad a (H, W) plane by 1 on every side -> (H+2, W+2)."""
    H, W = v.shape
    zc = jnp.zeros((H, 1), jnp.float32)
    zr = jnp.zeros((1, W + 2), jnp.float32)
    vp = jnp.concatenate([zc, v, zc], axis=1)
    return jnp.concatenate([zr, vp, zr], axis=0)


def _conv3x3_same(chans, wget, bget, cout):
    """3x3 'same' conv as 9 scalar-broadcast FMAs per (out, in) channel pair."""
    H, W = chans[0].shape
    padded = [_pad_same(v) for v in chans]
    outs = []
    for o in range(cout):
        acc = jnp.full((H, W), bget(o), jnp.float32)
        for c, vp in enumerate(padded):
            for di in range(3):
                for dj in range(3):
                    acc = acc + wget(o, c, di, dj) * vp[di:di + H, dj:dj + W]
        outs.append(acc)
    return outs


def _downsample2(chans):
    """x[::2, ::2] per plane (== MaxPool2d(kernel_size=1, stride=2)) via
    selection matmuls."""
    H, W = chans[0].shape
    Ho, Wo = H // 2, W // 2
    SH = _sel_matrix(Ho, H, lambda r, c: c == 2 * r)   # picks even rows
    SW = _sel_matrix(W, Wo, lambda r, c: r == 2 * c)   # picks even cols
    return [_dotf(_dotf(SH, v), SW) for v in chans]


def _convtranspose3x3_s2(chans, wget, bget, cout):
    """ConvTranspose2d(k=3, stride=2, padding=1, output_padding=1), decomposed
    into 4 output-parity phases.  chans: list[Cin] of (H, W) -> list[cout] of
    (2H, 2W).  wget(c, o, kh, kw) indexes the PyTorch (Cin, Cout, 3, 3) weight."""
    H, W = chans[0].shape
    cin = len(chans)
    # One extra zero row (bottom) / column (right) for the +1 shifted taps.
    zc = jnp.zeros((H, 1), jnp.float32)
    zr = jnp.zeros((1, W + 1), jnp.float32)
    s01, s10, s11 = [], [], []
    for v in chans:
        vp = jnp.concatenate([jnp.concatenate([v, zc], axis=1), zr], axis=0)
        s01.append(vp[:H, 1:W + 1])        # x[i,   j+1]
        s10.append(vp[1:H + 1, :W])        # x[i+1, j  ]
        s11.append(vp[1:H + 1, 1:W + 1])   # x[i+1, j+1]
    # Interleave matrices (scatter phases back to even/odd rows & cols).
    EH = _sel_matrix(2 * H, H, lambda r, c: r == 2 * c)
    OH = _sel_matrix(2 * H, H, lambda r, c: r == 2 * c + 1)
    EW = _sel_matrix(W, 2 * W, lambda r, c: c == 2 * r)
    OW = _sel_matrix(W, 2 * W, lambda r, c: c == 2 * r + 1)
    outs = []
    for o in range(cout):
        bo = bget(o)
        yee = jnp.full((H, W), bo, jnp.float32)   # out[2i,   2j  ]
        yeo = jnp.full((H, W), bo, jnp.float32)   # out[2i,   2j+1]
        yoe = jnp.full((H, W), bo, jnp.float32)   # out[2i+1, 2j  ]
        yoo = jnp.full((H, W), bo, jnp.float32)   # out[2i+1, 2j+1]
        for c in range(cin):
            v = chans[c]
            yee = yee + wget(c, o, 1, 1) * v
            yeo = yeo + wget(c, o, 1, 2) * v + wget(c, o, 1, 0) * s01[c]
            yoe = yoe + wget(c, o, 2, 1) * v + wget(c, o, 0, 1) * s10[c]
            yoo = (yoo + wget(c, o, 2, 2) * v + wget(c, o, 2, 0) * s01[c]
                   + wget(c, o, 0, 2) * s10[c] + wget(c, o, 0, 0) * s11[c])
        even_rows = _dotf(yee, EW) + _dotf(yeo, OW)          # (H, 2W)
        odd_rows = _dotf(yoe, EW) + _dotf(yoo, OW)           # (H, 2W)
        outs.append(_dotf(EH, even_rows) + _dotf(OH, odd_rows))  # (2H, 2W)
    return outs


# ----------------------------------------------------------------------------
# Fused forward kernel: one grid step == one image of the batch.
# ----------------------------------------------------------------------------
def _fused_kernel(w_ref, b_ref, x_ref, out_ref, z_ref, *,
                  in_ch, enc_layers, dec_layers, final_layer):
    # x_ref: (1, in_ch, H, W) VMEM block; weights/biases flat in SMEM.
    chans = [x_ref[0, c] for c in range(in_ch)]

    # --- encoder: Conv2d('same') -> MaxPool2d(1, stride=2) -> LeakyReLU ------
    for (cin, cout, w_off, b_off) in enc_layers:
        def wget(o, c, di, dj, _w=w_off, _cin=cin):
            return w_ref[_w + ((o * _cin + c) * 3 + di) * 3 + dj]

        def bget(o, _b=b_off):
            return b_ref[_b + o]

        chans = _conv3x3_same(chans, wget, bget, cout)
        chans = _downsample2(chans)
        chans = [_leaky(v) for v in chans]

    # --- latent ---------------------------------------------------------------
    for c, v in enumerate(chans):
        z_ref[0, c] = v

    # --- decoder: ConvTranspose2d(stride=2) -> LeakyReLU -----------------------
    for (cin, cout, w_off, b_off) in dec_layers:
        def wget(c, o, kh, kw, _w=w_off, _cout=cout):
            return w_ref[_w + ((c * _cout + o) * 3 + kh) * 3 + kw]

        def bget(o, _b=b_off):
            return b_ref[_b + o]

        chans = _convtranspose3x3_s2(chans, wget, bget, cout)
        chans = [_leaky(v) for v in chans]

    # --- final Conv2d('same') -> Tanh ------------------------------------------
    (cin, cout, w_off, b_off) = final_layer

    def wgetf(o, c, di, dj, _w=w_off, _cin=cin):
        return w_ref[_w + ((o * _cin + c) * 3 + di) * 3 + dj]

    def bgetf(o, _b=b_off):
        return b_ref[_b + o]

    chans = _conv3x3_same(chans, wgetf, bgetf, cout)
    for c, v in enumerate(chans):
        out_ref[0, c] = jnp.tanh(v)


# ----------------------------------------------------------------------------
# Parameter packing + forward wrapper.
# ----------------------------------------------------------------------------
def _pack_params(params):
    enc, dec, final = params
    w_parts, b_parts = [], []
    enc_meta, dec_meta = [], []
    w_off = b_off = 0
    for (w, b) in enc:                       # Conv2d weight: (Cout, Cin, 3, 3)
        cout, cin = w.shape[0], w.shape[1]
        enc_meta.append((cin, cout, w_off, b_off))
        w_parts.append(w.reshape(-1)); b_parts.append(b)
        w_off += w.size; b_off += b.size
    for (w, b) in dec:                       # ConvTranspose2d weight: (Cin, Cout, 3, 3)
        cin, cout = w.shape[0], w.shape[1]
        dec_meta.append((cin, cout, w_off, b_off))
        w_parts.append(w.reshape(-1)); b_parts.append(b)
        w_off += w.size; b_off += b.size
    wf, bf = final
    cout, cin = wf.shape[0], wf.shape[1]
    final_meta = (cin, cout, w_off, b_off)
    w_parts.append(wf.reshape(-1)); b_parts.append(bf)
    w_flat = jnp.concatenate(w_parts).astype(jnp.float32)
    b_flat = jnp.concatenate(b_parts).astype(jnp.float32)
    return w_flat, b_flat, tuple(enc_meta), tuple(dec_meta), final_meta


def autoencoder_a3_forward(x, params):
    N, Cin, H, W = x.shape
    w_flat, b_flat, enc_meta, dec_meta, final_meta = _pack_params(params)
    n_enc = len(enc_meta)
    assert H % (2 ** n_enc) == 0 and W % (2 ** n_enc) == 0
    Cz = enc_meta[-1][1]
    Hz, Wz = H // (2 ** n_enc), W // (2 ** n_enc)
    Cout_final = final_meta[1]

    kernel = functools.partial(
        _fused_kernel, in_ch=Cin, enc_layers=enc_meta,
        dec_layers=dec_meta, final_layer=final_meta)

    out, z = pl.pallas_call(
        kernel,
        out_shape=(jax.ShapeDtypeStruct((N, Cout_final, H, W), jnp.float32),
                   jax.ShapeDtypeStruct((N, Cz, Hz, Wz), jnp.float32)),
        grid_spec=pltpu.PrefetchScalarGridSpec(
            num_scalar_prefetch=0,
            grid=(N,),
            in_specs=[
                pl.BlockSpec(memory_space=pltpu.MemorySpace.SMEM),  # weights
                pl.BlockSpec(memory_space=pltpu.MemorySpace.SMEM),  # biases
                pl.BlockSpec((1, Cin, H, W), lambda n: (n, 0, 0, 0)),
            ],
            out_specs=(
                pl.BlockSpec((1, Cout_final, H, W), lambda n: (n, 0, 0, 0)),
                pl.BlockSpec((1, Cz, Hz, Wz), lambda n: (n, 0, 0, 0)),
            ),
        ),
        compiler_params=pltpu.CompilerParams(
            dimension_semantics=("parallel",),          # 2 TCs on v7x get work
            vmem_limit_bytes=32 * 1024 * 1024),
    )(w_flat, b_flat, x)
    return out, z


# ----------------------------------------------------------------------------
# Parameters + pure-JAX (lax.conv) reference for verification.
# ----------------------------------------------------------------------------
def init_params(key, input_channels, num_layers):
    assert num_layers >= 2
    enc = []
    in_c, out_c = input_channels, 2
    for _ in range(num_layers):
        key, k1, k2 = jax.random.split(key, 3)
        enc.append((0.1 * jax.random.normal(k1, (out_c, in_c, 3, 3), jnp.float32),
                    0.1 * jax.random.normal(k2, (out_c,), jnp.float32)))
        in_c, out_c = out_c, out_c * 2
    dec = []
    out_c = in_c // 2
    for _ in range(num_layers):
        key, k1, k2 = jax.random.split(key, 3)
        # ConvTranspose2d weight layout: (Cin, Cout, kh, kw)
        dec.append((0.1 * jax.random.normal(k1, (in_c, out_c, 3, 3), jnp.float32),
                    0.1 * jax.random.normal(k2, (out_c,), jnp.float32)))
        in_c, out_c = out_c, out_c // 2
    key, k1, k2 = jax.random.split(key, 3)
    final = (0.1 * jax.random.normal(k1, (input_channels, in_c, 3, 3), jnp.float32),
             0.1 * jax.random.normal(k2, (input_channels,), jnp.float32))
    return enc, dec, final


def _ref_forward(x, params):
    enc, dec, final = params
    dn = ("NCHW", "OIHW", "NCHW")
    h = x
    for (w, b) in enc:
        h = lax.conv_general_dilated(h, w, (1, 1), "SAME", dimension_numbers=dn)
        h = h + b[None, :, None, None]
        h = h[:, :, ::2, ::2]                       # MaxPool2d(k=1, s=2)
        h = jnp.where(h >= 0, h, NEG_SLOPE * h)
    z = h
    for (w_t, b) in dec:
        w_conv = jnp.flip(w_t, axis=(2, 3)).transpose(1, 0, 2, 3)
        h = lax.conv_general_dilated(h, w_conv, (1, 1), ((1, 2), (1, 2)),
                                     lhs_dilation=(2, 2), dimension_numbers=dn)
        h = h + b[None, :, None, None]
        h = jnp.where(h >= 0, h, NEG_SLOPE * h)
    wf, bf = final
    h = lax.conv_general_dilated(h, wf, (1, 1), "SAME", dimension_numbers=dn)
    h = jnp.tanh(h + bf[None, :, None, None])
    return h, z


if __name__ == "__main__":
    key = jax.random.PRNGKey(0)
    key, xk = jax.random.split(key)
    input_channels, num_layers = 4, 2
    x = jax.random.normal(xk, (2, input_channels, 16, 16), jnp.float32)

    params = init_params(key, input_channels, num_layers)

    fwd = jax.jit(lambda xx: autoencoder_a3_forward(xx, params))
    out, z = fwd(x)
    jax.block_until_ready((out, z))

    assert out.shape == (2, 4, 16, 16), out.shape
    assert z.shape == (2, 4, 4, 4), z.shape

    ref_out, ref_z = _ref_forward(x, params)
    assert jnp.allclose(out, ref_out, atol=1e-4, rtol=1e-4)
    assert jnp.allclose(z, ref_z, atol=1e-4, rtol=1e-4)

    print("KERNEL_OK")
</pallas_src>

<mosaic_0001>
module attributes {stable_mosaic.version = 11 : i64} {
  func.func @_fused_kernel(%arg0: i32, %arg1: memref<270xf32, #tpu.memory_space<smem>>, %arg2: memref<13xf32, #tpu.memory_space<smem>>, %arg3: memref<1x4x16x16xf32, #tpu.memory_space<vmem>>, %arg4: memref<1x4x16x16xf32, #tpu.memory_space<vmem>>, %arg5: memref<1x4x4x4xf32, #tpu.memory_space<vmem>>) attributes {dimension_semantics = [#tpu.dimension_semantics<parallel>], iteration_bounds = array<i64: 2>, scalar_prefetch = 0 : i64, scratch_operands = 0 : i64, tpu.core_type = #tpu.core_type<tc>, window_params = [{transform_indices = @transform_0, window_bounds = array<i64: 270>}, {transform_indices = @transform_1, window_bounds = array<i64: 13>}, {transform_indices = @transform_2, window_bounds = array<i64: 1, 4, 16, 16>}, {transform_indices = @transform_3, window_bounds = array<i64: 1, 4, 16, 16>}, {transform_indices = @transform_4, window_bounds = array<i64: 1, 4, 4, 4>}]} {
    %c0 = arith.constant 0 : index
    %c0_0 = arith.constant 0 : index
    %c0_1 = arith.constant 0 : index
    %c0_2 = arith.constant 0 : index
    %0 = vector.load %arg3[%c0, %c0_0, %c0_1, %c0_2] : memref<1x4x16x16xf32, #tpu.memory_space<vmem>>, vector<1x1x16x16xf32>
    %1 = vector.shape_cast %0 : vector<1x1x16x16xf32> to vector<16x16xf32>
    %c0_3 = arith.constant 0 : index
    %c1 = arith.constant 1 : index
    %c0_4 = arith.constant 0 : index
    %c0_5 = arith.constant 0 : index
    %2 = vector.load %arg3[%c0_3, %c1, %c0_4, %c0_5] : memref<1x4x16x16xf32, #tpu.memory_space<vmem>>, vector<1x1x16x16xf32>
    %3 = vector.shape_cast %2 : vector<1x1x16x16xf32> to vector<16x16xf32>
    %c0_6 = arith.constant 0 : index
    %c2 = arith.constant 2 : index
    %c0_7 = arith.constant 0 : index
    %c0_8 = arith.constant 0 : index
    %4 = vector.load %arg3[%c0_6, %c2, %c0_7, %c0_8] : memref<1x4x16x16xf32, #tpu.memory_space<vmem>>, vector<1x1x16x16xf32>
    %5 = vector.shape_cast %4 : vector<1x1x16x16xf32> to vector<16x16xf32>
    %c0_9 = arith.constant 0 : index
    %c3 = arith.constant 3 : index
    %c0_10 = arith.constant 0 : index
    %c0_11 = arith.constant 0 : index
    %6 = vector.load %arg3[%c0_9, %c3, %c0_10, %c0_11] : memref<1x4x16x16xf32, #tpu.memory_space<vmem>>, vector<1x1x16x16xf32>
    %7 = vector.shape_cast %6 : vector<1x1x16x16xf32> to vector<16x16xf32>
    %cst = arith.constant 0.000000e+00 : f32
    %8 = vector.broadcast %cst : f32 to vector<16x1xf32>
    %cst_12 = arith.constant 0.000000e+00 : f32
    %9 = vector.broadcast %cst_12 : f32 to vector<1x18xf32>
    %10 = tpu.concatenate %8, %1, %8 in 1 : vector<16x1xf32>, vector<16x16xf32>, vector<16x1xf32> -> vector<16x18xf32>
    %11 = tpu.concatenate %9, %10, %9 in 0 : vector<1x18xf32>, vector<16x18xf32>, vector<1x18xf32> -> vector<18x18xf32>
    %cst_13 = arith.constant 0.000000e+00 : f32
    %12 = vector.broadcast %cst_13 : f32 to vector<16x1xf32>
    %cst_14 = arith.constant 0.000000e+00 : f32
    %13 = vector.broadcast %cst_14 : f32 to vector<1x18xf32>
    %14 = tpu.concatenate %12, %3, %12 in 1 : vector<16x1xf32>, vector<16x16xf32>, vector<16x1xf32> -> vector<16x18xf32>
    %15 = tpu.concatenate %13, %14, %13 in 0 : vector<1x18xf32>, vector<16x18xf32>, vector<1x18xf32> -> vector<18x18xf32>
    %cst_15 = arith.constant 0.000000e+00 : f32
    %16 = vector.broadcast %cst_15 : f32 to vector<16x1xf32>
    %cst_16 = arith.constant 0.000000e+00 : f32
    %17 = vector.broadcast %cst_16 : f32 to vector<1x18xf32>
    %18 = tpu.concatenate %16, %5, %16 in 1 : vector<16x1xf32>, vector<16x16xf32>, vector<16x1xf32> -> vector<16x18xf32>
    %19 = tpu.concatenate %17, %18, %17 in 0 : vector<1x18xf32>, vector<16x18xf32>, vector<1x18xf32> -> vector<18x18xf32>
    %cst_17 = arith.constant 0.000000e+00 : f32
    %20 = vector.broadcast %cst_17 : f32 to vector<16x1xf32>
    %cst_18 = arith.constant 0.000000e+00 : f32
    %21 = vector.broadcast %cst_18 : f32 to vector<1x18xf32>
    %22 = tpu.concatenate %20, %7, %20 in 1 : vector<16x1xf32>, vector<16x16xf32>, vector<16x1xf32> -> vector<16x18xf32>
    %23 = tpu.concatenate %21, %22, %21 in 0 : vector<1x18xf32>, vector<16x18xf32>, vector<1x18xf32> -> vector<18x18xf32>
    %c0_19 = arith.constant 0 : index
    %24 = memref.load %arg2[%c0_19] : memref<13xf32, #tpu.memory_space<smem>>
    %25 = vector.broadcast %24 : f32 to vector<16x16xf32>
    %c0_20 = arith.constant 0 : index
    %26 = memref.load %arg1[%c0_20] : memref<270xf32, #tpu.memory_space<smem>>
    %27 = vector.extract_strided_slice %11 {offsets = [0, 0], sizes = [16, 16], strides = [1, 1]} : vector<18x18xf32> to vector<16x16xf32>
    %28 = vector.broadcast %26 : f32 to vector<16x16xf32>
    %29 = arith.mulf %28, %27 : vector<16x16xf32>
    %30 = arith.addf %25, %29 : vector<16x16xf32>
    %c1_21 = arith.constant 1 : index
    %31 = memref.load %arg1[%c1_21] : memref<270xf32, #tpu.memory_space<smem>>
    %32 = vector.extract_strided_slice %11 {offsets = [0, 1], sizes = [16, 16], strides = [1, 1]} : vector<18x18xf32> to vector<16x16xf32>
    %33 = vector.broadcast %31 : f32 to vector<16x16xf32>
    %34 = arith.mulf %33, %32 : vector<16x16xf32>
    %35 = arith.addf %30, %34 : vector<16x16xf32>
    %c2_22 = arith.constant 2 : index
    %36 = memref.load %arg1[%c2_22] : memref<270xf32, #tpu.memory_space<smem>>
    %37 = vector.extract_strided_slice %11 {offsets = [0, 2], sizes = [16, 16], strides = [1, 1]} : vector<18x18xf32> to vector<16x16xf32>
    %38 = vector.broadcast %36 : f32 to vector<16x16xf32>
    %39 = arith.mulf %38, %37 : vector<16x16xf32>
    %40 = arith.addf %35, %39 : vector<16x16xf32>
    %c3_23 = arith.constant 3 : index
    %41 = memref.load %arg1[%c3_23] : memref<270xf32, #tpu.memory_space<smem>>
    %42 = vector.extract_strided_slice %11 {offsets = [1, 0], sizes = [16, 16], strides = [1, 1]} : vector<18x18xf32> to vector<16x16xf32>
    %43 = vector.broadcast %41 : f32 to vector<16x16xf32>
    %44 = arith.mulf %43, %42 : vector<16x16xf32>
    %45 = arith.addf %40, %44 : vector<16x16xf32>
    %c4 = arith.constant 4 : index
    %46 = memref.load %arg1[%c4] : memref<270xf32, #tpu.memory_space<smem>>
    %47 = vector.extract_strided_slice %11 {offsets = [1, 1], sizes = [16, 16], strides = [1, 1]} : vector<18x18xf32> to vector<16x16xf32>
    %48 = vector.broadcast %46 : f32 to vector<16x16xf32>
    %49 = arith.mulf %48, %47 : vector<16x16xf32>
    %50 = arith.addf %45, %49 : vector<16x16xf32>
    %c5 = arith.constant 5 : index
    %51 = memref.load %arg1[%c5] : memref<270xf32, #tpu.memory_space<smem>>
    %52 = vector.extract_strided_slice %11 {offsets = [1, 2], sizes = [16, 16], strides = [1, 1]} : vector<18x18xf32> to vector<16x16xf32>
    %53 = vector.broadcast %51 : f32 to vector<16x16xf32>
    %54 = arith.mulf %53, %52 : vector<16x16xf32>
    %55 = arith.addf %50, %54 : vector<16x16xf32>
    %c6 = arith.constant 6 : index
    %56 = memref.load %arg1[%c6] : memref<270xf32, #tpu.memory_space<smem>>
    %57 = vector.extract_strided_slice %11 {offsets = [2, 0], sizes = [16, 16], strides = [1, 1]} : vector<18x18xf32> to vector<16x16xf32>
    %58 = vector.broadcast %56 : f32 to vector<16x16xf32>
    %59 = arith.mulf %58, %57 : vector<16x16xf32>
    %60 = arith.addf %55, %59 : vector<16x16xf32>
    %c7 = arith.constant 7 : index
    %61 = memref.load %arg1[%c7] : memref<270xf32, #tpu.memory_space<smem>>
    %62 = vector.extract_strided_slice %11 {offsets = [2, 1], sizes = [16, 16], strides = [1, 1]} : vector<18x18xf32> to vector<16x16xf32>
    %63 = vector.broadcast %61 : f32 to vector<16x16xf32>
    %64 = arith.mulf %63, %62 : vector<16x16xf32>
    %65 = arith.addf %60, %64 : vector<16x16xf32>
    %c8 = arith.constant 8 : index
    %66 = memref.load %arg1[%c8] : memref<270xf32, #tpu.memory_space<smem>>
    %67 = vector.extract_strided_slice %11 {offsets = [2, 2], sizes = [16, 16], strides = [1, 1]} : vector<18x18xf32> to vector<16x16xf32>
    %68 = vector.broadcast %66 : f32 to vector<16x16xf32>
    %69 = arith.mulf %68, %67 : vector<16x16xf32>
    %70 = arith.addf %65, %69 : vector<16x16xf32>
    %c9 = arith.constant 9 : index
    %71 = memref.load %arg1[%c9] : memref<270xf32, #tpu.memory_space<smem>>
    %72 = vector.extract_strided_slice %15 {offsets = [0, 0], sizes = [16, 16], strides = [1, 1]} : vector<18x18xf32> to vector<16x16xf32>
    %73 = vector.broadcast %71 : f32 to vector<16x16xf32>
    %74 = arith.mulf %73, %72 : vector<16x16xf32>
    %75 = arith.addf %70, %74 : vector<16x16xf32>
    %c10 = arith.constant 10 : index
    %76 = memref.load %arg1[%c10] : memref<270xf32, #tpu.memory_space<smem>>
    %77 = vector.extract_strided_slice %15 {offsets = [0, 1], sizes = [16, 16], strides = [1, 1]} : vector<18x18xf32> to vector<16x16xf32>
    %78 = vector.broadcast %76 : f32 to vector<16x16xf32>
    %79 = arith.mulf %78, %77 : vector<16x16xf32>
    %80 = arith.addf %75, %79 : vector<16x16xf32>
    %c11 = arith.constant 11 : index
    %81 = memref.load %arg1[%c11] : memref<270xf32, #tpu.memory_space<smem>>
    %82 = vector.extract_strided_slice %15 {offsets = [0, 2], sizes = [16, 16], strides = [1, 1]} : vector<18x18xf32> to vector<16x16xf32>
    %83 = vector.broadcast %81 : f32 to vector<16x16xf32>
    %84 = arith.mulf %83, %82 : vector<16x16xf32>
    %85 = arith.addf %80, %84 : vector<16x16xf32>
    %c12 = arith.constant 12 : index
    %86 = memref.load %arg1[%c12] : memref<270xf32, #tpu.memory_space<smem>>
    %87 = vector.extract_strided_slice %15 {offsets = [1, 0], sizes = [16, 16], strides = [1, 1]} : vector<18x18xf32> to vector<16x16xf32>
    %88 = vector.broadcast %86 : f32 to vector<16x16xf32>
    %89 = arith.mulf %88, %87 : vector<16x16xf32>
    %90 = arith.addf %85, %89 : vector<16x16xf32>
    %c13 = arith.constant 13 : index
    %91 = memref.load %arg1[%c13] : memref<270xf32, #tpu.memory_space<smem>>
    %92 = vector.extract_strided_slice %15 {offsets = [1, 1], sizes = [16, 16], strides = [1, 1]} : vector<18x18xf32> to vector<16x16xf32>
    %93 = vector.broadcast %91 : f32 to vector<16x16xf32>
    %94 = arith.mulf %93, %92 : vector<16x16xf32>
    %95 = arith.addf %90, %94 : vector<16x16xf32>
    %c14 = arith.constant 14 : index
    %96 = memref.load %arg1[%c14] : memref<270xf32, #tpu.memory_space<smem>>
    %97 = vector.extract_strided_slice %15 {offsets = [1, 2], sizes = [16, 16], strides = [1, 1]} : vector<18x18xf32> to vector<16x16xf32>
    %98 = vector.broadcast %96 : f32 to vector<16x16xf32>
    %99 = arith.mulf %98, %97 : vector<16x16xf32>
    %100 = arith.addf %95, %99 : vector<16x16xf32>
    %c15 = arith.constant 15 : index
    %101 = memref.load %arg1[%c15] : memref<270xf32, #tpu.memory_space<smem>>
    %102 = vector.extract_strided_slice %15 {offsets = [2, 0], sizes = [16, 16], strides = [1, 1]} : vector<18x18xf32> to vector<16x16xf32>
    %103 = vector.broadcast %101 : f32 to vector<16x16xf32>
    %104 = arith.mulf %103, %102 : vector<16x16xf32>
    %105 = arith.addf %100, %104 : vector<16x16xf32>
    %c16 = arith.constant 16 : index
    %106 = memref.load %arg1[%c16] : memref<270xf32, #tpu.memory_space<smem>>
    %107 = vector.extract_strided_slice %15 {offsets = [2, 1], sizes = [16, 16], strides = [1, 1]} : vector<18x18xf32> to vector<16x16xf32>
    %108 = vector.broadcast %106 : f32 to vector<16x16xf32>
    %109 = arith.mulf %108, %107 : vector<16x16xf32>
    %110 = arith.addf %105, %109 : vector<16x16xf32>
    %c17 = arith.constant 17 : index
    %111 = memref.load %arg1[%c17] : memref<270xf32, #tpu.memory_space<smem>>
    %112 = vector.extract_strided_slice %15 {offsets = [2, 2], sizes = [16, 16], strides = [1, 1]} : vector<18x18xf32> to vector<16x16xf32>
    %113 = vector.broadcast %111 : f32 to vector<16x16xf32>
    %114 = arith.mulf %113, %112 : vector<16x16xf32>
    %115 = arith.addf %110, %114 : vector<16x16xf32>
    %c18 = arith.constant 18 : index
    %116 = memref.load %arg1[%c18] : memref<270xf32, #tpu.memory_space<smem>>
    %117 = vector.extract_strided_slice %19 {offsets = [0, 0], sizes = [16, 16], strides = [1, 1]} : vector<18x18xf32> to vector<16x16xf32>
    %118 = vector.broadcast %116 : f32 to vector<16x16xf32>
    %119 = arith.mulf %118, %117 : vector<16x16xf32>
    %120 = arith.addf %115, %119 : vector<16x16xf32>
    %c19 = arith.constant 19 : index
    %121 = memref.load %arg1[%c19] : memref<270xf32, #tpu.memory_space<smem>>
    %122 = vector.extract_strided_slice %19 {offsets = [0, 1], sizes = [16, 16], strides = [1, 1]} : vector<18x18xf32> to vector<16x16xf32>
    %123 = vector.broadcast %121 : f32 to vector<16x16xf32>
    %124 = arith.mulf %123, %122 : vector<16x16xf32>
    %125 = arith.addf %120, %124 : vector<16x16xf32>
    %c20 = arith.constant 20 : index
    %126 = memref.load %arg1[%c20] : memref<270xf32, #tpu.memory_space<smem>>
    %127 = vector.extract_strided_slice %19 {offsets = [0, 2], sizes = [16, 16], strides = [1, 1]} : vector<18x18xf32> to vector<16x16xf32>
    %128 = vector.broadcast %126 : f32 to vector<16x16xf32>
    %129 = arith.mulf %128, %127 : vector<16x16xf32>
    %130 = arith.addf %125, %129 : vector<16x16xf32>
    %c21 = arith.constant 21 : index
    %131 = memref.load %arg1[%c21] : memref<270xf32, #tpu.memory_space<smem>>
    %132 = vector.extract_strided_slice %19 {offsets = [1, 0], sizes = [16, 16], strides = [1, 1]} : vector<18x18xf32> to vector<16x16xf32>
    %133 = vector.broadcast %131 : f32 to vector<16x16xf32>
    %134 = arith.mulf %133, %132 : vector<16x16xf32>
    %135 = arith.addf %130, %134 : vector<16x16xf32>
    %c22 = arith.constant 22 : index
    %136 = memref.load %arg1[%c22] : memref<270xf32, #tpu.memory_space<smem>>
    %137 = vector.extract_strided_slice %19 {offsets = [1, 1], sizes = [16, 16], strides = [1, 1]} : vector<18x18xf32> to vector<16x16xf32>
    %138 = vector.broadcast %136 : f32 to vector<16x16xf32>
    %139 = arith.mulf %138, %137 : vector<16x16xf32>
    %140 = arith.addf %135, %139 : vector<16x16xf32>
    %c23 = arith.constant 23 : index
    %141 = memref.load %arg1[%c23] : memref<270xf32, #tpu.memory_space<smem>>
    %142 = vector.extract_strided_slice %19 {offsets = [1, 2], sizes = [16, 16], strides = [1, 1]} : vector<18x18xf32> to vector<16x16xf32>
    %143 = vector.broadcast %141 : f32 to vector<16x16xf32>
    %144 = arith.mulf %143, %142 : vector<16x16xf32>
    %145 = arith.addf %140, %144 : vector<16x16xf32>
    %c24 = arith.constant 24 : index
    %146 = memref.load %arg1[%c24] : memref<270xf32, #tpu.memory_space<smem>>
    %147 = vector.extract_strided_slice %19 {offsets = [2, 0], sizes = [16, 16], strides = [1, 1]} : vector<18x18xf32> to vector<16x16xf32>
    %148 = vector.broadcast %146 : f32 to vector<16x16xf32>
    %149 = arith.mulf %148, %147 : vector<16x16xf32>
    %150 = arith.addf %145, %149 : vector<16x16xf32>
    %c25 = arith.constant 25 : index
    %151 = memref.load %arg1[%c25] : memref<270xf32, #tpu.memory_space<smem>>
    %152 = vector.extract_strided_slice %19 {offsets = [2, 1], sizes = [16, 16], strides = [1, 1]} : vector<18x18xf32> to vector<16x16xf32>
    %153 = vector.broadcast %151 : f32 to vector<16x16xf32>
    %154 = arith.mulf %153, %152 : vector<16x16xf32>
    %155 = arith.addf %150, %154 : vector<16x16xf32>
    %c26 = arith.constant 26 : index
    %156 = memref.load %arg1[%c26] : memref<270xf32, #tpu.memory_space<smem>>
    %157 = vector.extract_strided_slice %19 {offsets = [2, 2], sizes = [16, 16], strides = [1, 1]} : vector<18x18xf32> to vector<16x16xf32>
    %158 = vector.broadcast %156 : f32 to vector<16x16xf32>
    %159 = arith.mulf %158, %157 : vector<16x16xf32>
    %160 = arith.addf %155, %159 : vector<16x16xf32>
    %c27 = arith.constant 27 : index
    %161 = memref.load %arg1[%c27] : memref<270xf32, #tpu.memory_space<smem>>
    %162 = vector.extract_strided_slice %23 {offsets = [0, 0], sizes = [16, 16], strides = [1, 1]} : vector<18x18xf32> to vector<16x16xf32>
    %163 = vector.broadcast %161 : f32 to vector<16x16xf32>
    %164 = arith.mulf %163, %162 : vector<16x16xf32>
    %165 = arith.addf %160, %164 : vector<16x16xf32>
    %c28 = arith.constant 28 : index
    %166 = memref.load %arg1[%c28] : memref<270xf32, #tpu.memory_space<smem>>
    %167 = vector.extract_strided_slice %23 {offsets = [0, 1], sizes = [16, 16], strides = [1, 1]} : vector<18x18xf32> to vector<16x16xf32>
    %168 = vector.broadcast %166 : f32 to vector<16x16xf32>
    %169 = arith.mulf %168, %167 : vector<16x16xf32>
    %170 = arith.addf %165, %169 : vector<16x16xf32>
    %c29 = arith.constant 29 : index
    %171 = memref.load %arg1[%c29] : memref<270xf32, #tpu.memory_space<smem>>
    %172 = vector.extract_strided_slice %23 {offsets = [0, 2], sizes = [16, 16], strides = [1, 1]} : vector<18x18xf32> to vector<16x16xf32>
    %173 = vector.broadcast %171 : f32 to vector<16x16xf32>
    %174 = arith.mulf %173, %172 : vector<16x16xf32>
    %175 = arith.addf %170, %174 : vector<16x16xf32>
    %c30 = arith.constant 30 : index
    %176 = memref.load %arg1[%c30] : memref<270xf32, #tpu.memory_space<smem>>
    %177 = vector.extract_strided_slice %23 {offsets = [1, 0], sizes = [16, 16], strides = [1, 1]} : vector<18x18xf32> to vector<16x16xf32>
    %178 = vector.broadcast %176 : f32 to vector<16x16xf32>
    %179 = arith.mulf %178, %177 : vector<16x16xf32>
    %180 = arith.addf %175, %179 : vector<16x16xf32>
    %c31 = arith.constant 31 : index
    %181 = memref.load %arg1[%c31] : memref<270xf32, #tpu.memory_space<smem>>
    %182 = vector.extract_strided_slice %23 {offsets = [1, 1], sizes = [16, 16], strides = [1, 1]} : vector<18x18xf32> to vector<16x16xf32>
    %183 = vector.broadcast %181 : f32 to vector<16x16xf32>
    %184 = arith.mulf %183, %182 : vector<16x16xf32>
    %185 = arith.addf %180, %184 : vector<16x16xf32>
    %c32 = arith.constant 32 : index
    %186 = memref.load %arg1[%c32] : memref<270xf32, #tpu.memory_space<smem>>
    %187 = vector.extract_strided_slice %23 {offsets = [1, 2], sizes = [16, 16], strides = [1, 1]} : vector<18x18xf32> to vector<16x16xf32>
    %188 = vector.broadcast %186 : f32 to vector<16x16xf32>
    %189 = arith.mulf %188, %187 : vector<16x16xf32>
    %190 = arith.addf %185, %189 : vector<16x16xf32>
    %c33 = arith.constant 33 : index
    %191 = memref.load %arg1[%c33] : memref<270xf32, #tpu.memory_space<smem>>
    %192 = vector.extract_strided_slice %23 {offsets = [2, 0], sizes = [16, 16], strides = [1, 1]} : vector<18x18xf32> to vector<16x16xf32>
    %193 = vector.broadcast %191 : f32 to vector<16x16xf32>
    %194 = arith.mulf %193, %192 : vector<16x16xf32>
    %195 = arith.addf %190, %194 : vector<16x16xf32>
    %c34 = arith.constant 34 : index
    %196 = memref.load %arg1[%c34] : memref<270xf32, #tpu.memory_space<smem>>
    %197 = vector.extract_strided_slice %23 {offsets = [2, 1], sizes = [16, 16], strides = [1, 1]} : vector<18x18xf32> to vector<16x16xf32>
    %198 = vector.broadcast %196 : f32 to vector<16x16xf32>
    %199 = arith.mulf %198, %197 : vector<16x16xf32>
    %200 = arith.addf %195, %199 : vector<16x16xf32>
    %c35 = arith.constant 35 : index
    %201 = memref.load %arg1[%c35] : memref<270xf32, #tpu.memory_space<smem>>
    %202 = vector.extract_strided_slice %23 {offsets = [2, 2], sizes = [16, 16], strides = [1, 1]} : vector<18x18xf32> to vector<16x16xf32>
    %203 = vector.broadcast %201 : f32 to vector<16x16xf32>
    %204 = arith.mulf %203, %202 : vector<16x16xf32>
    %205 = arith.addf %200, %204 : vector<16x16xf32>
    %c1_24 = arith.constant 1 : index
    %206 = memref.load %arg2[%c1_24] : memref<13xf32, #tpu.memory_space<smem>>
    %207 = vector.broadcast %206 : f32 to vector<16x16xf32>
    %c36 = arith.constant 36 : index
    %208 = memref.load %arg1[%c36] : memref<270xf32, #tpu.memory_space<smem>>
    %209 = vector.extract_strided_slice %11 {offsets = [0, 0], sizes = [16, 16], strides = [1, 1]} : vector<18x18xf32> to vector<16x16xf32>
    %210 = vector.broadcast %208 : f32 to vector<16x16xf32>
    %211 = arith.mulf %210, %209 : vector<16x16xf32>
    %212 = arith.addf %207, %211 : vector<16x16xf32>
    %c37 = arith.constant 37 : index
    %213 = memref.load %arg1[%c37] : memref<270xf32, #tpu.memory_space<smem>>
    %214 = vector.extract_strided_slice %11 {offsets = [0, 1], sizes = [16, 16], strides = [1, 1]} : vector<18x18xf32> to vector<16x16xf32>
    %215 = vector.broadcast %213 : f32 to vector<16x16xf32>
    %216 = arith.mulf %215, %214 : vector<16x16xf32>
    %217 = arith.addf %212, %216 : vector<16x16xf32>
    %c38 = arith.constant 38 : index
    %218 = memref.load %arg1[%c38] : memref<270xf32, #tpu.memory_space<smem>>
    %219 = vector.extract_strided_slice %11 {offsets = [0, 2], sizes = [16, 16], strides = [1, 1]} : vector<18x18xf32> to vector<16x16xf32>
    %220 = vector.broadcast %218 : f32 to vector<16x16xf32>
    %221 = arith.mulf %220, %219 : vector<16x16xf32>
    %222 = arith.addf %217, %221 : vector<16x16xf32>
    %c39 = arith.constant 39 : index
    %223 = memref.load %arg1[%c39] : memref<270xf32, #tpu.memory_space<smem>>
    %224 = vector.extract_strided_slice %11 {offsets = [1, 0], sizes = [16, 16], strides = [1, 1]} : vector<18x18xf32> to vector<16x16xf32>
    %225 = vector.broadcast %223 : f32 to vector<16x16xf32>
    %226 = arith.mulf %225, %224 : vector<16x16xf32>
    %227 = arith.addf %222, %226 : vector<16x16xf32>
    %c40 = arith.constant 40 : index
    %228 = memref.load %arg1[%c40] : memref<270xf32, #tpu.memory_space<smem>>
    %229 = vector.extract_strided_slice %11 {offsets = [1, 1], sizes = [16, 16], strides = [1, 1]} : vector<18x18xf32> to vector<16x16xf32>
    %230 = vector.broadcast %228 : f32 to vector<16x16xf32>
    %231 = arith.mulf %230, %229 : vector<16x16xf32>
    %232 = arith.addf %227, %231 : vector<16x16xf32>
    %c41 = arith.constant 41 : index
    %233 = memref.load %arg1[%c41] : memref<270xf32, #tpu.memory_space<smem>>
    %234 = vector.extract_strided_slice %11 {offsets = [1, 2], sizes = [16, 16], strides = [1, 1]} : vector<18x18xf32> to vector<16x16xf32>
    %235 = vector.broadcast %233 : f32 to vector<16x16xf32>
    %236 = arith.mulf %235, %234 : vector<16x16xf32>
    %237 = arith.addf %232, %236 : vector<16x16xf32>
    %c42 = arith.constant 42 : index
    %238 = memref.load %arg1[%c42] : memref<270xf32, #tpu.memory_space<smem>>
    %239 = vector.extract_strided_slice %11 {offsets = [2, 0], sizes = [16, 16], strides = [1, 1]} : vector<18x18xf32> to vector<16x16xf32>
    %240 = vector.broadcast %238 : f32 to vector<16x16xf32>
    %241 = arith.mulf %240, %239 : vector<16x16xf32>
    %242 = arith.addf %237, %241 : vector<16x16xf32>
    %c43 = arith.constant 43 : index
    %243 = memref.load %arg1[%c43] : memref<270xf32, #tpu.memory_space<smem>>
    %244 = vector.extract_strided_slice %11 {offsets = [2, 1], sizes = [16, 16], strides = [1, 1]} : vector<18x18xf32> to vector<16x16xf32>
    %245 = vector.broadcast %243 : f32 to vector<16x16xf32>
    %246 = arith.mulf %245, %244 : vector<16x16xf32>
    %247 = arith.addf %242, %246 : vector<16x16xf32>
    %c44 = arith.constant 44 : index
    %248 = memref.load %arg1[%c44] : memref<270xf32, #tpu.memory_space<smem>>
    %249 = vector.extract_strided_slice %11 {offsets = [2, 2], sizes = [16, 16], strides = [1, 1]} : vector<18x18xf32> to vector<16x16xf32>
    %250 = vector.broadcast %248 : f32 to vector<16x16xf32>
    %251 = arith.mulf %250, %249 : vector<16x16xf32>
    %252 = arith.addf %247, %251 : vector<16x16xf32>
    %c45 = arith.constant 45 : index
    %253 = memref.load %arg1[%c45] : memref<270xf32, #tpu.memory_space<smem>>
    %254 = vector.extract_strided_slice %15 {offsets = [0, 0], sizes = [16, 16], strides = [1, 1]} : vector<18x18xf32> to vector<16x16xf32>
    %255 = vector.broadcast %253 : f32 to vector<16x16xf32>
    %256 = arith.mulf %255, %254 : vector<16x16xf32>
    %257 = arith.addf %252, %256 : vector<16x16xf32>
    %c46 = arith.constant 46 : index
    %258 = memref.load %arg1[%c46] : memref<270xf32, #tpu.memory_space<smem>>
    %259 = vector.extract_strided_slice %15 {offsets = [0, 1], sizes = [16, 16], strides = [1, 1]} : vector<18x18xf32> to vector<16x16xf32>
    %260 = vector.broadcast %258 : f32 to vector<16x16xf32>
    %261 = arith.mulf %260, %259 : vector<16x16xf32>
    %262 = arith.addf %257, %261 : vector<16x16xf32>
    %c47 = arith.constant 47 : index
    %263 = memref.load %arg1[%c47] : memref<270xf32, #tpu.memory_space<smem>>
    %264 = vector.extract_strided_slice %15 {offsets = [0, 2], sizes = [16, 16], strides = [1, 1]} : vector<18x18xf32> to vector<16x16xf32>
    %265 = vector.broadcast %263 : f32 to vector<16x16xf32>
    %266 = arith.mulf %265, %264 : vector<16x16xf32>
    %267 = arith.addf %262, %266 : vector<16x16xf32>
    %c48 = arith.constant 48 : index
    %268 = memref.load %arg1[%c48] : memref<270xf32, #tpu.memory_space<smem>>
    %269 = vector.extract_strided_slice %15 {offsets = [1, 0], sizes = [16, 16], strides = [1, 1]} : vector<18x18xf32> to vector<16x16xf32>
    %270 = vector.broadcast %268 : f32 to vector<16x16xf32>
    %271 = arith.mulf %270, %269 : vector<16x16xf32>
    %272 = arith.addf %267, %271 : vector<16x16xf32>
    %c49 = arith.constant 49 : index
    %273 = memref.load %arg1[%c49] : memref<270xf32, #tpu.memory_space<smem>>
    %274 = vector.extract_strided_slice %15 {offsets = [1, 1], sizes = [16, 16], strides = [1, 1]} : vector<18x18xf32> to vector<16x16xf32>
    %275 = vector.broadcast %273 : f32 to vector<16x16xf32>
    %276 = arith.mulf %275, %274 : vector<16x16xf32>
    %277 = arith.addf %272, %276 : vector<16x16xf32>
    %c50 = arith.constant 50 : index
    %278 = memref.load %arg1[%c50] : memref<270xf32, #tpu.memory_space<smem>>
    %279 = vector.extract_strided_slice %15 {offsets = [1, 2], sizes = [16, 16], strides = [1, 1]} : vector<18x18xf32> to vector<16x16xf32>
    %280 = vector.broadcast %278 : f32 to vector<16x16xf32>
    %281 = arith.mulf %280, %279 : vector<16x16xf32>
    %282 = arith.addf %277, %281 : vector<16x16xf32>
    %c51 = arith.constant 51 : index
    %283 = memref.load %arg1[%c51] : memref<270xf32, #tpu.memory_space<smem>>
    %284 = vector.extract_strided_slice %15 {offsets = [2, 0], sizes = [16, 16], strides = [1, 1]} : vector<18x18xf32> to vector<16x16xf32>
    %285 = vector.broadcast %283 : f32 to vector<16x16xf32>
    %286 = arith.mulf %285, %284 : vector<16x16xf32>
    %287 = arith.addf %282, %286 : vector<16x16xf32>
    %c52 = arith.constant 52 : index
    %288 = memref.load %arg1[%c52] : memref<270xf32, #tpu.memory_space<smem>>
    %289 = vector.extract_strided_slice %15 {offsets = [2, 1], sizes = [16, 16], strides = [1, 1]} : vector<18x18xf32> to vector<16x16xf32>
    %290 = vector.broadcast %288 : f32 to vector<16x16xf32>
    %291 = arith.mulf %290, %289 : vector<16x16xf32>
    %292 = arith.addf %287, %291 : vector<16x16xf32>
    %c53 = arith.constant 53 : index
    %293 = memref.load %arg1[%c53] : memref<270xf32, #tpu.memory_space<smem>>
    %294 = vector.extract_strided_slice %15 {offsets = [2, 2], sizes = [16, 16], strides = [1, 1]} : vector<18x18xf32> to vector<16x16xf32>
    %295 = vector.broadcast %293 : f32 to vector<16x16xf32>
    %296 = arith.mulf %295, %294 : vector<16x16xf32>
    %297 = arith.addf %292, %296 : vector<16x16xf32>
    %c54 = arith.constant 54 : index
    %298 = memref.load %arg1[%c54] : memref<270xf32, #tpu.memory_space<smem>>
    %299 = vector.extract_strided_slice %19 {offsets = [0, 0], sizes = [16, 16], strides = [1, 1]} : vector<18x18xf32> to vector<16x16xf32>
    %300 = vector.broadcast %298 : f32 to vector<16x16xf32>
    %301 = arith.mulf %300, %299 : vector<16x16xf32>
    %302 = arith.addf %297, %301 : vector<16x16xf32>
    %c55 = arith.constant 55 : index
    %303 = memref.load %arg1[%c55] : memref<270xf32, #tpu.memory_space<smem>>
    %304 = vector.extract_strided_slice %19 {offsets = [0, 1], sizes = [16, 16], strides = [1, 1]} : vector<18x18xf32> to vector<16x16xf32>
    %305 = vector.broadcast %303 : f32 to vector<16x16xf32>
    %306 = arith.mulf %305, %304 : vector<16x16xf32>
    %307 = arith.addf %302, %306 : vector<16x16xf32>
    %c56 = arith.constant 56 : index
    %308 = memref.load %arg1[%c56] : memref<270xf32, #tpu.memory_space<smem>>
    %309 = vector.extract_strided_slice %19 {offsets = [0, 2], sizes = [16, 16], strides = [1, 1]} : vector<18x18xf32> to vector<16x16xf32>
    %310 = vector.broadcast %308 : f32 to vector<16x16xf32>
    %311 = arith.mulf %310, %309 : vector<16x16xf32>
    %312 = arith.addf %307, %311 : vector<16x16xf32>
    %c57 = arith.constant 57 : index
    %313 = memref.load %arg1[%c57] : memref<270xf32, #tpu.memory_space<smem>>
    %314 = vector.extract_strided_slice %19 {offsets = [1, 0], sizes = [16, 16], strides = [1, 1]} : vector<18x18xf32> to vector<16x16xf32>
    %315 = vector.broadcast %313 : f32 to vector<16x16xf32>
    %316 = arith.mulf %315, %314 : vector<16x16xf32>
    %317 = arith.addf %312, %316 : vector<16x16xf32>
    %c58 = arith.constant 58 : index
    %318 = memref.load %arg1[%c58] : memref<270xf32, #tpu.memory_space<smem>>
    %319 = vector.extract_strided_slice %19 {offsets = [1, 1], sizes = [16, 16], strides = [1, 1]} : vector<18x18xf32> to vector<16x16xf32>
    %320 = vector.broadcast %318 : f32 to vector<16x16xf32>
    %321 = arith.mulf %320, %319 : vector<16x16xf32>
    %322 = arith.addf %317, %321 : vector<16x16xf32>
    %c59 = arith.constant 59 : index
    %323 = memref.load %arg1[%c59] : memref<270xf32, #tpu.memory_space<smem>>
    %324 = vector.extract_strided_slice %19 {offsets = [1, 2], sizes = [16, 16], strides = [1, 1]} : vector<18x18xf32> to vector<16x16xf32>
    %325 = vector.broadcast %323 : f32 to vector<16x16xf32>
    %326 = arith.mulf %325, %324 : vector<16x16xf32>
    %327 = arith.addf %322, %326 : vector<16x16xf32>
    %c60 = arith.constant 60 : index
    %328 = memref.load %arg1[%c60] : memref<270xf32, #tpu.memory_space<smem>>
    %329 = vector.extract_strided_slice %19 {offsets = [2, 0], sizes = [16, 16], strides = [1, 1]} : vector<18x18xf32> to vector<16x16xf32>
    %330 = vector.broadcast %328 : f32 to vector<16x16xf32>
    %331 = arith.mulf %330, %329 : vector<16x16xf32>
    %332 = arith.addf %327, %331 : vector<16x16xf32>
    %c61 = arith.constant 61 : index
    %333 = memref.load %arg1[%c61] : memref<270xf32, #tpu.memory_space<smem>>
    %334 = vector.extract_strided_slice %19 {offsets = [2, 1], sizes = [16, 16], strides = [1, 1]} : vector<18x18xf32> to vector<16x16xf32>
    %335 = vector.broadcast %333 : f32 to vector<16x16xf32>
    %336 = arith.mulf %335, %334 : vector<16x16xf32>
    %337 = arith.addf %332, %336 : vector<16x16xf32>
    %c62 = arith.constant 62 : index
    %338 = memref.load %arg1[%c62] : memref<270xf32, #tpu.memory_space<smem>>
    %339 = vector.extract_strided_slice %19 {offsets = [2, 2], sizes = [16, 16], strides = [1, 1]} : vector<18x18xf32> to vector<16x16xf32>
    %340 = vector.broadcast %338 : f32 to vector<16x16xf32>
    %341 = arith.mulf %340, %339 : vector<16x16xf32>
    %342 = arith.addf %337, %341 : vector<16x16xf32>
    %c63 = arith.constant 63 : index
    %343 = memref.load %arg1[%c63] : memref<270xf32, #tpu.memory_space<smem>>
    %344 = vector.extract_strided_slice %23 {offsets = [0, 0], sizes = [16, 16], strides = [1, 1]} : vector<18x18xf32> to vector<16x16xf32>
    %345 = vector.broadcast %343 : f32 to vector<16x16xf32>
    %346 = arith.mulf %345, %344 : vector<16x16xf32>
    %347 = arith.addf %342, %346 : vector<16x16xf32>
    %c64 = arith.constant 64 : index
    %348 = memref.load %arg1[%c64] : memref<270xf32, #tpu.memory_space<smem>>
    %349 = vector.extract_strided_slice %23 {offsets = [0, 1], sizes = [16, 16], strides = [1, 1]} : vector<18x18xf32> to vector<16x16xf32>
    %350 = vector.broadcast %348 : f32 to vector<16x16xf32>
    %351 = arith.mulf %350, %349 : vector<16x16xf32>
    %352 = arith.addf %347, %351 : vector<16x16xf32>
    %c65 = arith.constant 65 : index
    %353 = memref.load %arg1[%c65] : memref<270xf32, #tpu.memory_space<smem>>
    %354 = vector.extract_strided_slice %23 {offsets = [0, 2], sizes = [16, 16], strides = [1, 1]} : vector<18x18xf32> to vector<16x16xf32>
    %355 = vector.broadcast %353 : f32 to vector<16x16xf32>
    %356 = arith.mulf %355, %354 : vector<16x16xf32>
    %357 = arith.addf %352, %356 : vector<16x16xf32>
    %c66 = arith.constant 66 : index
    %358 = memref.load %arg1[%c66] : memref<270xf32, #tpu.memory_space<smem>>
    %359 = vector.extract_strided_slice %23 {offsets = [1, 0], sizes = [16, 16], strides = [1, 1]} : vector<18x18xf32> to vector<16x16xf32>
    %360 = vector.broadcast %358 : f32 to vector<16x16xf32>
    %361 = arith.mulf %360, %359 : vector<16x16xf32>
    %362 = arith.addf %357, %361 : vector<16x16xf32>
    %c67 = arith.constant 67 : index
    %363 = memref.load %arg1[%c67] : memref<270xf32, #tpu.memory_space<smem>>
    %364 = vector.extract_strided_slice %23 {offsets = [1, 1], sizes = [16, 16], strides = [1, 1]} : vector<18x18xf32> to vector<16x16xf32>
    %365 = vector.broadcast %363 : f32 to vector<16x16xf32>
    %366 = arith.mulf %365, %364 : vector<16x16xf32>
    %367 = arith.addf %362, %366 : vector<16x16xf32>
    %c68 = arith.constant 68 : index
    %368 = memref.load %arg1[%c68] : memref<270xf32, #tpu.memory_space<smem>>
    %369 = vector.extract_strided_slice %23 {offsets = [1, 2], sizes = [16, 16], strides = [1, 1]} : vector<18x18xf32> to vector<16x16xf32>
    %370 = vector.broadcast %368 : f32 to vector<16x16xf32>
    %371 = arith.mulf %370, %369 : vector<16x16xf32>
    %372 = arith.addf %367, %371 : vector<16x16xf32>
    %c69 = arith.constant 69 : index
    %373 = memref.load %arg1[%c69] : memref<270xf32, #tpu.memory_space<smem>>
    %374 = vector.extract_strided_slice %23 {offsets = [2, 0], sizes = [16, 16], strides = [1, 1]} : vector<18x18xf32> to vector<16x16xf32>
    %375 = vector.broadcast %373 : f32 to vector<16x16xf32>
    %376 = arith.mulf %375, %374 : vector<16x16xf32>
    %377 = arith.addf %372, %376 : vector<16x16xf32>
    %c70 = arith.constant 70 : index
    %378 = memref.load %arg1[%c70] : memref<270xf32, #tpu.memory_space<smem>>
    %379 = vector.extract_strided_slice %23 {offsets = [2, 1], sizes = [16, 16], strides = [1, 1]} : vector<18x18xf32> to vector<16x16xf32>
    %380 = vector.broadcast %378 : f32 to vector<16x16xf32>
    %381 = arith.mulf %380, %379 : vector<16x16xf32>
    %382 = arith.addf %377, %381 : vector<16x16xf32>
    %c71 = arith.constant 71 : index
    %383 = memref.load %arg1[%c71] : memref<270xf32, #tpu.memory_space<smem>>
    %384 = vector.extract_strided_slice %23 {offsets = [2, 2], sizes = [16, 16], strides = [1, 1]} : vector<18x18xf32> to vector<16x16xf32>
    %385 = vector.broadcast %383 : f32 to vector<16x16xf32>
    %386 = arith.mulf %385, %384 : vector<16x16xf32>
    %387 = arith.addf %382, %386 : vector<16x16xf32>
    %388 = tpu.iota {dimensions = array<i32: 0>} : vector<8x16xi32>
    %389 = tpu.iota {dimensions = array<i32: 1>} : vector<8x16xi32>
    %c2_i32 = arith.constant 2 : i32
    %390 = vector.broadcast %c2_i32 : i32 to vector<8x16xi32>
    %391 = arith.muli %390, %388 : vector<8x16xi32>
    %392 = arith.cmpi eq, %389, %391 : vector<8x16xi32>
    %393 = arith.extui %392 : vector<8x16xi1> to vector<8x16xi32>
    %394 = arith.sitofp %393 : vector<8x16xi32> to vector<8x16xf32>
    %395 = tpu.iota {dimensions = array<i32: 0>} : vector<16x8xi32>
    %396 = tpu.iota {dimensions = array<i32: 1>} : vector<16x8xi32>
    %c2_i32_25 = arith.constant 2 : i32
    %397 = vector.broadcast %c2_i32_25 : i32 to vector<16x8xi32>
    %398 = arith.muli %397, %396 : vector<16x8xi32>
    %399 = arith.cmpi eq, %395, %398 : vector<16x8xi32>
    %400 = arith.extui %399 : vector<16x8xi1> to vector<16x8xi32>
    %401 = arith.sitofp %400 : vector<16x8xi32> to vector<16x8xf32>
    %cst_26 = arith.constant dense<0.000000e+00> : vector<8x16xf32>
    %402 = tpu.matmul %394, %205, %cst_26 {dimension_numbers = #tpu.dot_dimension_numbers<[1], [0], [0], [1], [0, 0, 1, 1], [], []>} : vector<8x16xf32>, vector<16x16xf32>, vector<8x16xf32> -> vector<8x16xf32>
    %cst_27 = arith.constant dense<0.000000e+00> : vector<8x8xf32>
    %403 = tpu.matmul %402, %401, %cst_27 {dimension_numbers = #tpu.dot_dimension_numbers<[1], [0], [0], [1], [0, 0, 1, 1], [], []>} : vector<8x16xf32>, vector<16x8xf32>, vector<8x8xf32> -> vector<8x8xf32>
    %cst_28 = arith.constant dense<0.000000e+00> : vector<8x16xf32>
    %404 = tpu.matmul %394, %387, %cst_28 {dimension_numbers = #tpu.dot_dimension_numbers<[1], [0], [0], [1], [0, 0, 1, 1], [], []>} : vector<8x16xf32>, vector<16x16xf32>, vector<8x16xf32> -> vector<8x16xf32>
    %cst_29 = arith.constant dense<0.000000e+00> : vector<8x8xf32>
    %405 = tpu.matmul %404, %401, %cst_29 {dimension_numbers = #tpu.dot_dimension_numbers<[1], [0], [0], [1], [0, 0, 1, 1], [], []>} : vector<8x16xf32>, vector<16x8xf32>, vector<8x8xf32> -> vector<8x8xf32>
    %cst_30 = arith.constant 0.000000e+00 : f32
    %406 = vector.broadcast %cst_30 : f32 to vector<8x8xf32>
    %407 = arith.cmpf oge, %403, %406 : vector<8x8xf32>
    %cst_31 = arith.constant 0.00999999977 : f32
    %408 = vector.broadcast %cst_31 : f32 to vector<8x8xf32>
    %409 = arith.mulf %408, %403 : vector<8x8xf32>
    %410 = arith.select %407, %403, %409 : vector<8x8xi1>, vector<8x8xf32>
    %cst_32 = arith.constant 0.000000e+00 : f32
    %411 = vector.broadcast %cst_32 : f32 to vector<8x8xf32>
    %412 = arith.cmpf oge, %405, %411 : vector<8x8xf32>
    %cst_33 = arith.constant 0.00999999977 : f32
    %413 = vector.broadcast %cst_33 : f32 to vector<8x8xf32>
    %414 = arith.mulf %413, %405 : vector<8x8xf32>
    %415 = arith.select %412, %405, %414 : vector<8x8xi1>, vector<8x8xf32>
    %cst_34 = arith.constant 0.000000e+00 : f32
    %416 = vector.broadcast %cst_34 : f32 to vector<8x1xf32>
    %cst_35 = arith.constant 0.000000e+00 : f32
    %417 = vector.broadcast %cst_35 : f32 to vector<1x10xf32>
    %418 = tpu.concatenate %416, %410, %416 in 1 : vector<8x1xf32>, vector<8x8xf32>, vector<8x1xf32> -> vector<8x10xf32>
    %419 = tpu.concatenate %417, %418, %417 in 0 : vector<1x10xf32>, vector<8x10xf32>, vector<1x10xf32> -> vector<10x10xf32>
    %cst_36 = arith.constant 0.000000e+00 : f32
    %420 = vector.broadcast %cst_36 : f32 to vector<8x1xf32>
    %cst_37 = arith.constant 0.000000e+00 : f32
    %421 = vector.broadcast %cst_37 : f32 to vector<1x10xf32>
    %422 = tpu.concatenate %420, %415, %420 in 1 : vector<8x1xf32>, vector<8x8xf32>, vector<8x1xf32> -> vector<8x10xf32>
    %423 = tpu.concatenate %421, %422, %421 in 0 : vector<1x10xf32>, vector<8x10xf32>, vector<1x10xf32> -> vector<10x10xf32>
    %c2_38 = arith.constant 2 : index
    %424 = memref.load %arg2[%c2_38] : memref<13xf32, #tpu.memory_space<smem>>
    %425 = vector.broadcast %424 : f32 to vector<8x8xf32>
    %c72 = arith.constant 72 : index
    %426 = memref.load %arg1[%c72] : memref<270xf32, #tpu.memory_space<smem>>
    %427 = vector.extract_strided_slice %419 {offsets = [0, 0], sizes = [8, 8], strides = [1, 1]} : vector<10x10xf32> to vector<8x8xf32>
    %428 = vector.broadcast %426 : f32 to vector<8x8xf32>
    %429 = arith.mulf %428, %427 : vector<8x8xf32>
    %430 = arith.addf %425, %429 : vector<8x8xf32>
    %c73 = arith.constant 73 : index
    %431 = memref.load %arg1[%c73] : memref<270xf32, #tpu.memory_space<smem>>
    %432 = vector.extract_strided_slice %419 {offsets = [0, 1], sizes = [8, 8], strides = [1, 1]} : vector<10x10xf32> to vector<8x8xf32>
    %433 = vector.broadcast %431 : f32 to vector<8x8xf32>
    %434 = arith.mulf %433, %432 : vector<8x8xf32>
    %435 = arith.addf %430, %434 : vector<8x8xf32>
    %c74 = arith.constant 74 : index
    %436 = memref.load %arg1[%c74] : memref<270xf32, #tpu.memory_space<smem>>
    %437 = vector.extract_strided_slice %419 {offsets = [0, 2], sizes = [8, 8], strides = [1, 1]} : vector<10x10xf32> to vector<8x8xf32>
    %438 = vector.broadcast %436 : f32 to vector<8x8xf32>
    %439 = arith.mulf %438, %437 : vector<8x8xf32>
    %440 = arith.addf %435, %439 : vector<8x8xf32>
    %c75 = arith.constant 75 : index
    %441 = memref.load %arg1[%c75] : memref<270xf32, #tpu.memory_space<smem>>
    %442 = vector.extract_strided_slice %419 {offsets = [1, 0], sizes = [8, 8], strides = [1, 1]} : vector<10x10xf32> to vector<8x8xf32>
    %443 = vector.broadcast %441 : f32 to vector<8x8xf32>
    %444 = arith.mulf %443, %442 : vector<8x8xf32>
    %445 = arith.addf %440, %444 : vector<8x8xf32>
    %c76 = arith.constant 76 : index
    %446 = memref.load %arg1[%c76] : memref<270xf32, #tpu.memory_space<smem>>
    %447 = vector.extract_strided_slice %419 {offsets = [1, 1], sizes = [8, 8], strides = [1, 1]} : vector<10x10xf32> to vector<8x8xf32>
    %448 = vector.broadcast %446 : f32 to vector<8x8xf32>
    %449 = arith.mulf %448, %447 : vector<8x8xf32>
    %450 = arith.addf %445, %449 : vector<8x8xf32>
    %c77 = arith.constant 77 : index
    %451 = memref.load %arg1[%c77] : memref<270xf32, #tpu.memory_space<smem>>
    %452 = vector.extract_strided_slice %419 {offsets = [1, 2], sizes = [8, 8], strides = [1, 1]} : vector<10x10xf32> to vector<8x8xf32>
    %453 = vector.broadcast %451 : f32 to vector<8x8xf32>
    %454 = arith.mulf %453, %452 : vector<8x8xf32>
    %455 = arith.addf %450, %454 : vector<8x8xf32>
    %c78 = arith.constant 78 : index
    %456 = memref.load %arg1[%c78] : memref<270xf32, #tpu.memory_space<smem>>
    %457 = vector.extract_strided_slice %419 {offsets = [2, 0], sizes = [8, 8], strides = [1, 1]} : vector<10x10xf32> to vector<8x8xf32>
    %458 = vector.broadcast %456 : f32 to vector<8x8xf32>
    %459 = arith.mulf %458, %457 : vector<8x8xf32>
    %460 = arith.addf %455, %459 : vector<8x8xf32>
    %c79 = arith.constant 79 : index
    %461 = memref.load %arg1[%c79] : memref<270xf32, #tpu.memory_space<smem>>
    %462 = vector.extract_strided_slice %419 {offsets = [2, 1], sizes = [8, 8], strides = [1, 1]} : vector<10x10xf32> to vector<8x8xf32>
    %463 = vector.broadcast %461 : f32 to vector<8x8xf32>
    %464 = arith.mulf %463, %462 : vector<8x8xf32>
    %465 = arith.addf %460, %464 : vector<8x8xf32>
    %c80 = arith.constant 80 : index
    %466 = memref.load %arg1[%c80] : memref<270xf32, #tpu.memory_space<smem>>
    %467 = vector.extract_strided_slice %419 {offsets = [2, 2], sizes = [8, 8], strides = [1, 1]} : vector<10x10xf32> to vector<8x8xf32>
    %468 = vector.broadcast %466 : f32 to vector<8x8xf32>
    %469 = arith.mulf %468, %467 : vector<8x8xf32>
    %470 = arith.addf %465, %469 : vector<8x8xf32>
    %c81 = arith.constant 81 : index
    %471 = memref.load %arg1[%c81] : memref<270xf32, #tpu.memory_space<smem>>
    %472 = vector.extract_strided_slice %423 {offsets = [0, 0], sizes = [8, 8], strides = [1, 1]} : vector<10x10xf32> to vector<8x8xf32>
    %473 = vector.broadcast %471 : f32 to vector<8x8xf32>
    %474 = arith.mulf %473, %472 : vector<8x8xf32>
    %475 = arith.addf %470, %474 : vector<8x8xf32>
    %c82 = arith.constant 82 : index
    %476 = memref.load %arg1[%c82] : memref<270xf32, #tpu.memory_space<smem>>
    %477 = vector.extract_strided_slice %423 {offsets = [0, 1], sizes = [8, 8], strides = [1, 1]} : vector<10x10xf32> to vector<8x8xf32>
    %478 = vector.broadcast %476 : f32 to vector<8x8xf32>
    %479 = arith.mulf %478, %477 : vector<8x8xf32>
    %480 = arith.addf %475, %479 : vector<8x8xf32>
    %c83 = arith.constant 83 : index
    %481 = memref.load %arg1[%c83] : memref<270xf32, #tpu.memory_space<smem>>
    %482 = vector.extract_strided_slice %423 {offsets = [0, 2], sizes = [8, 8], strides = [1, 1]} : vector<10x10xf32> to vector<8x8xf32>
    %483 = vector.broadcast %481 : f32 to vector<8x8xf32>
    %484 = arith.mulf %483, %482 : vector<8x8xf32>
    %485 = arith.addf %480, %484 : vector<8x8xf32>
    %c84 = arith.constant 84 : index
    %486 = memref.load %arg1[%c84] : memref<270xf32, #tpu.memory_space<smem>>
    %487 = vector.extract_strided_slice %423 {offsets = [1, 0], sizes = [8, 8], strides = [1, 1]} : vector<10x10xf32> to vector<8x8xf32>
    %488 = vector.broadcast %486 : f32 to vector<8x8xf32>
    %489 = arith.mulf %488, %487 : vector<8x8xf32>
    %490 = arith.addf %485, %489 : vector<8x8xf32>
    %c85 = arith.constant 85 : index
    %491 = memref.load %arg1[%c85] : memref<270xf32, #tpu.memory_space<smem>>
    %492 = vector.extract_strided_slice %423 {offsets = [1, 1], sizes = [8, 8], strides = [1, 1]} : vector<10x10xf32> to vector<8x8xf32>
    %493 = vector.broadcast %491 : f32 to vector<8x8xf32>
    %494 = arith.mulf %493, %492 : vector<8x8xf32>
    %495 = arith.addf %490, %494 : vector<8x8xf32>
    %c86 = arith.constant 86 : index
    %496 = memref.load %arg1[%c86] : memref<270xf32, #tpu.memory_space<smem>>
    %497 = vector.extract_strided_slice %423 {offsets = [1, 2], sizes = [8, 8], strides = [1, 1]} : vector<10x10xf32> to vector<8x8xf32>
    %498 = vector.broadcast %496 : f32 to vector<8x8xf32>
    %499 = arith.mulf %498, %497 : vector<8x8xf32>
    %500 = arith.addf %495, %499 : vector<8x8xf32>
    %c87 = arith.constant 87 : index
    %501 = memref.load %arg1[%c87] : memref<270xf32, #tpu.memory_space<smem>>
    %502 = vector.extract_strided_slice %423 {offsets = [2, 0], sizes = [8, 8], strides = [1, 1]} : vector<10x10xf32> to vector<8x8xf32>
    %503 = vector.broadcast %501 : f32 to vector<8x8xf32>
    %504 = arith.mulf %503, %502 : vector<8x8xf32>
    %505 = arith.addf %500, %504 : vector<8x8xf32>
    %c88 = arith.constant 88 : index
    %506 = memref.load %arg1[%c88] : memref<270xf32, #tpu.memory_space<smem>>
    %507 = vector.extract_strided_slice %423 {offsets = [2, 1], sizes = [8, 8], strides = [1, 1]} : vector<10x10xf32> to vector<8x8xf32>
    %508 = vector.broadcast %506 : f32 to vector<8x8xf32>
    %509 = arith.mulf %508, %507 : vector<8x8xf32>
    %510 = arith.addf %505, %509 : vector<8x8xf32>
    %c89 = arith.constant 89 : index
    %511 = memref.load %arg1[%c89] : memref<270xf32, #tpu.memory_space<smem>>
    %512 = vector.extract_strided_slice %423 {offsets = [2, 2], sizes = [8, 8], strides = [1, 1]} : vector<10x10xf32> to vector<8x8xf32>
    %513 = vector.broadcast %511 : f32 to vector<8x8xf32>
    %514 = arith.mulf %513, %512 : vector<8x8xf32>
    %515 = arith.addf %510, %514 : vector<8x8xf32>
    %c3_39 = arith.constant 3 : index
    %516 = memref.load %arg2[%c3_39] : memref<13xf32, #tpu.memory_space<smem>>
    %517 = vector.broadcast %516 : f32 to vector<8x8xf32>
    %c90 = arith.constant 90 : index
    %518 = memref.load %arg1[%c90] : memref<270xf32, #tpu.memory_space<smem>>
    %519 = vector.extract_strided_slice %419 {offsets = [0, 0], sizes = [8, 8], strides = [1, 1]} : vector<10x10xf32> to vector<8x8xf32>
    %520 = vector.broadcast %518 : f32 to vector<8x8xf32>
    %521 = arith.mulf %520, %519 : vector<8x8xf32>
    %522 = arith.addf %517, %521 : vector<8x8xf32>
    %c91 = arith.constant 91 : index
    %523 = memref.load %arg1[%c91] : memref<270xf32, #tpu.memory_space<smem>>
    %524 = vector.extract_strided_slice %419 {offsets = [0, 1], sizes = [8, 8], strides = [1, 1]} : vector<10x10xf32> to vector<8x8xf32>
    %525 = vector.broadcast %523 : f32 to vector<8x8xf32>
    %526 = arith.mulf %525, %524 : vector<8x8xf32>
    %527 = arith.addf %522, %526 : vector<8x8xf32>
    %c92 = arith.constant 92 : index
    %528 = memref.load %arg1[%c92] : memref<270xf32, #tpu.memory_space<smem>>
    %529 = vector.extract_strided_slice %419 {offsets = [0, 2], sizes = [8, 8], strides = [1, 1]} : vector<10x10xf32> to vector<8x8xf32>
    %530 = vector.broadcast %528 : f32 to vector<8x8xf32>
    %531 = arith.mulf %530, %529 : vector<8x8xf32>
    %532 = arith.addf %527, %531 : vector<8x8xf32>
    %c93 = arith.constant 93 : index
    %533 = memref.load %arg1[%c93] : memref<270xf32, #tpu.memory_space<smem>>
    %534 = vector.extract_strided_slice %419 {offsets = [1, 0], sizes = [8, 8], strides = [1, 1]} : vector<10x10xf32> to vector<8x8xf32>
    %535 = vector.broadcast %533 : f32 to vector<8x8xf32>
    %536 = arith.mulf %535, %534 : vector<8x8xf32>
    %537 = arith.addf %532, %536 : vector<8x8xf32>
    %c94 = arith.constant 94 : index
    %538 = memref.load %arg1[%c94] : memref<270xf32, #tpu.memory_space<smem>>
    %539 = vector.extract_strided_slice %419 {offsets = [1, 1], sizes = [8, 8], strides = [1, 1]} : vector<10x10xf32> to vector<8x8xf32>
    %540 = vector.broadcast %538 : f32 to vector<8x8xf32>
    %541 = arith.mulf %540, %539 : vector<8x8xf32>
    %542 = arith.addf %537, %541 : vector<8x8xf32>
    %c95 = arith.constant 95 : index
    %543 = memref.load %arg1[%c95] : memref<270xf32, #tpu.memory_space<smem>>
    %544 = vector.extract_strided_slice %419 {offsets = [1, 2], sizes = [8, 8], strides = [1, 1]} : vector<10x10xf32> to vector<8x8xf32>
    %545 = vector.broadcast %543 : f32 to vector<8x8xf32>
    %546 = arith.mulf %545, %544 : vector<8x8xf32>
    %547 = arith.addf %542, %546 : vector<8x8xf32>
    %c96 = arith.constant 96 : index
    %548 = memref.load %arg1[%c96] : memref<270xf32, #tpu.memory_space<smem>>
    %549 = vector.extract_strided_slice %419 {offsets = [2, 0], sizes = [8, 8], strides = [1, 1]} : vector<10x10xf32> to vector<8x8xf32>
    %550 = vector.broadcast %548 : f32 to vector<8x8xf32>
    %551 = arith.mulf %550, %549 : vector<8x8xf32>
    %552 = arith.addf %547, %551 : vector<8x8xf32>
    %c97 = arith.constant 97 : index
    %553 = memref.load %arg1[%c97] : memref<270xf32, #tpu.memory_space<smem>>
    %554 = vector.extract_strided_slice %419 {offsets = [2, 1], sizes = [8, 8], strides = [1, 1]} : vector<10x10xf32> to vector<8x8xf32>
    %555 = vector.broadcast %553 : f32 to vector<8x8xf32>
    %556 = arith.mulf %555, %554 : vector<8x8xf32>
    %557 = arith.addf %552, %556 : vector<8x8xf32>
    %c98 = arith.constant 98 : index
    %558 = memref.load %arg1[%c98] : memref<270xf32, #tpu.memory_space<smem>>
    %559 = vector.extract_strided_slice %419 {offsets = [2, 2], sizes = [8, 8], strides = [1, 1]} : vector<10x10xf32> to vector<8x8xf32>
    %560 = vector.broadcast %558 : f32 to vector<8x8xf32>
    %561 = arith.mulf %560, %559 : vector<8x8xf32>
    %562 = arith.addf %557, %561 : vector<8x8xf32>
    %c99 = arith.constant 99 : index
    %563 = memref.load %arg1[%c99] : memref<270xf32, #tpu.memory_space<smem>>
    %564 = vector.extract_strided_slice %423 {offsets = [0, 0], sizes = [8, 8], strides = [1, 1]} : vector<10x10xf32> to vector<8x8xf32>
    %565 = vector.broadcast %563 : f32 to vector<8x8xf32>
    %566 = arith.mulf %565, %564 : vector<8x8xf32>
    %567 = arith.addf %562, %566 : vector<8x8xf32>
    %c100 = arith.constant 100 : index
    %568 = memref.load %arg1[%c100] : memref<270xf32, #tpu.memory_space<smem>>
    %569 = vector.extract_strided_slice %423 {offsets = [0, 1], sizes = [8, 8], strides = [1, 1]} : vector<10x10xf32> to vector<8x8xf32>
    %570 = vector.broadcast %568 : f32 to vector<8x8xf32>
    %571 = arith.mulf %570, %569 : vector<8x8xf32>
    %572 = arith.addf %567, %571 : vector<8x8xf32>
    %c101 = arith.constant 101 : index
    %573 = memref.load %arg1[%c101] : memref<270xf32, #tpu.memory_space<smem>>
    %574 = vector.extract_strided_slice %423 {offsets = [0, 2], sizes = [8, 8], strides = [1, 1]} : vector<10x10xf32> to vector<8x8xf32>
    %575 = vector.broadcast %573 : f32 to vector<8x8xf32>
    %576 = arith.mulf %575, %574 : vector<8x8xf32>
    %577 = arith.addf %572, %576 : vector<8x8xf32>
    %c102 = arith.constant 102 : index
    %578 = memref.load %arg1[%c102] : memref<270xf32, #tpu.memory_space<smem>>
    %579 = vector.extract_strided_slice %423 {offsets = [1, 0], sizes = [8, 8], strides = [1, 1]} : vector<10x10xf32> to vector<8x8xf32>
    %580 = vector.broadcast %578 : f32 to vector<8x8xf32>
    %581 = arith.mulf %580, %579 : vector<8x8xf32>
    %582 = arith.addf %577, %581 : vector<8x8xf32>
    %c103 = arith.constant 103 : index
    %583 = memref.load %arg1[%c103] : memref<270xf32, #tpu.memory_space<smem>>
    %584 = vector.extract_strided_slice %423 {offsets = [1, 1], sizes = [8, 8], strides = [1, 1]} : vector<10x10xf32> to vector<8x8xf32>
    %585 = vector.broadcast %583 : f32 to vector<8x8xf32>
    %586 = arith.mulf %585, %584 : vector<8x8xf32>
    %587 = arith.addf %582, %586 : vector<8x8xf32>
    %c104 = arith.constant 104 : index
    %588 = memref.load %arg1[%c104] : memref<270xf32, #tpu.memory_space<smem>>
    %589 = vector.extract_strided_slice %423 {offsets = [1, 2], sizes = [8, 8], strides = [1, 1]} : vector<10x10xf32> to vector<8x8xf32>
    %590 = vector.broadcast %588 : f32 to vector<8x8xf32>
    %591 = arith.mulf %590, %589 : vector<8x8xf32>
    %592 = arith.addf %587, %591 : vector<8x8xf32>
    %c105 = arith.constant 105 : index
    %593 = memref.load %arg1[%c105] : memref<270xf32, #tpu.memory_space<smem>>
    %594 = vector.extract_strided_slice %423 {offsets = [2, 0], sizes = [8, 8], strides = [1, 1]} : vector<10x10xf32> to vector<8x8xf32>
    %595 = vector.broadcast %593 : f32 to vector<8x8xf32>
    %596 = arith.mulf %595, %594 : vector<8x8xf32>
    %597 = arith.addf %592, %596 : vector<8x8xf32>
    %c106 = arith.constant 106 : index
    %598 = memref.load %arg1[%c106] : memref<270xf32, #tpu.memory_space<smem>>
    %599 = vector.extract_strided_slice %423 {offsets = [2, 1], sizes = [8, 8], strides = [1, 1]} : vector<10x10xf32> to vector<8x8xf32>
    %600 = vector.broadcast %598 : f32 to vector<8x8xf32>
    %601 = arith.mulf %600, %599 : vector<8x8xf32>
    %602 = arith.addf %597, %601 : vector<8x8xf32>
    %c107 = arith.constant 107 : index
    %603 = memref.load %arg1[%c107] : memref<270xf32, #tpu.memory_space<smem>>
    %604 = vector.extract_strided_slice %423 {offsets = [2, 2], sizes = [8, 8], strides = [1, 1]} : vector<10x10xf32> to vector<8x8xf32>
    %605 = vector.broadcast %603 : f32 to vector<8x8xf32>
    %606 = arith.mulf %605, %604 : vector<8x8xf32>
    %607 = arith.addf %602, %606 : vector<8x8xf32>
    %c4_40 = arith.constant 4 : index
    %608 = memref.load %arg2[%c4_40] : memref<13xf32, #tpu.memory_space<smem>>
    %609 = vector.broadcast %608 : f32 to vector<8x8xf32>
    %c108 = arith.constant 108 : index
    %610 = memref.load %arg1[%c108] : memref<270xf32, #tpu.memory_space<smem>>
    %611 = vector.extract_strided_slice %419 {offsets = [0, 0], sizes = [8, 8], strides = [1, 1]} : vector<10x10xf32> to vector<8x8xf32>
    %612 = vector.broadcast %610 : f32 to vector<8x8xf32>
    %613 = arith.mulf %612, %611 : vector<8x8xf32>
    %614 = arith.addf %609, %613 : vector<8x8xf32>
    %c109 = arith.constant 109 : index
    %615 = memref.load %arg1[%c109] : memref<270xf32, #tpu.memory_space<smem>>
    %616 = vector.extract_strided_slice %419 {offsets = [0, 1], sizes = [8, 8], strides = [1, 1]} : vector<10x10xf32> to vector<8x8xf32>
    %617 = vector.broadcast %615 : f32 to vector<8x8xf32>
    %618 = arith.mulf %617, %616 : vector<8x8xf32>
    %619 = arith.addf %614, %618 : vector<8x8xf32>
    %c110 = arith.constant 110 : index
    %620 = memref.load %arg1[%c110] : memref<270xf32, #tpu.memory_space<smem>>
    %621 = vector.extract_strided_slice %419 {offsets = [0, 2], sizes = [8, 8], strides = [1, 1]} : vector<10x10xf32> to vector<8x8xf32>
    %622 = vector.broadcast %620 : f32 to vector<8x8xf32>
    %623 = arith.mulf %622, %621 : vector<8x8xf32>
    %624 = arith.addf %619, %623 : vector<8x8xf32>
    %c111 = arith.constant 111 : index
    %625 = memref.load %arg1[%c111] : memref<270xf32, #tpu.memory_space<smem>>
    %626 = vector.extract_strided_slice %419 {offsets = [1, 0], sizes = [8, 8], strides = [1, 1]} : vector<10x10xf32> to vector<8x8xf32>
    %627 = vector.broadcast %625 : f32 to vector<8x8xf32>
    %628 = arith.mulf %627, %626 : vector<8x8xf32>
    %629 = arith.addf %624, %628 : vector<8x8xf32>
    %c112 = arith.constant 112 : index
    %630 = memref.load %arg1[%c112] : memref<270xf32, #tpu.memory_space<smem>>
    %631 = vector.extract_strided_slice %419 {offsets = [1, 1], sizes = [8, 8], strides = [1, 1]} : vector<10x10xf32> to vector<8x8xf32>
    %632 = vector.broadcast %630 : f32 to vector<8x8xf32>
    %633 = arith.mulf %632, %631 : vector<8x8xf32>
    %634 = arith.addf %629, %633 : vector<8x8xf32>
    %c113 = arith.constant 113 : index
    %635 = memref.load %arg1[%c113] : memref<270xf32, #tpu.memory_space<smem>>
    %636 = vector.extract_strided_slice %419 {offsets = [1, 2], sizes = [8, 8], strides = [1, 1]} : vector<10x10xf32> to vector<8x8xf32>
    %637 = vector.broadcast %635 : f32 to vector<8x8xf32>
    %638 = arith.mulf %637, %636 : vector<8x8xf32>
    %639 = arith.addf %634, %638 : vector<8x8xf32>
    %c114 = arith.constant 114 : index
    %640 = memref.load %arg1[%c114] : memref<270xf32, #tpu.memory_space<smem>>
    %641 = vector.extract_strided_slice %419 {offsets = [2, 0], sizes = [8, 8], strides = [1, 1]} : vector<10x10xf32> to vector<8x8xf32>
    %642 = vector.broadcast %640 : f32 to vector<8x8xf32>
    %643 = arith.mulf %642, %641 : vector<8x8xf32>
    %644 = arith.addf %639, %643 : vector<8x8xf32>
    %c115 = arith.constant 115 : index
    %645 = memref.load %arg1[%c115] : memref<270xf32, #tpu.memory_space<smem>>
    %646 = vector.extract_strided_slice %419 {offsets = [2, 1], sizes = [8, 8], strides = [1, 1]} : vector<10x10xf32> to vector<8x8xf32>
    %647 = vector.broadcast %645 : f32 to vector<8x8xf32>
    %648 = arith.mulf %647, %646 : vector<8x8xf32>
    %649 = arith.addf %644, %648 : vector<8x8xf32>
    %c116 = arith.constant 116 : index
    %650 = memref.load %arg1[%c116] : memref<270xf32, #tpu.memory_space<smem>>
    %651 = vector.extract_strided_slice %419 {offsets = [2, 2], sizes = [8, 8], strides = [1, 1]} : vector<10x10xf32> to vector<8x8xf32>
    %652 = vector.broadcast %650 : f32 to vector<8x8xf32>
    %653 = arith.mulf %652, %651 : vector<8x8xf32>
    %654 = arith.addf %649, %653 : vector<8x8xf32>
    %c117 = arith.constant 117 : index
    %655 = memref.load %arg1[%c117] : memref<270xf32, #tpu.memory_space<smem>>
    %656 = vector.extract_strided_slice %423 {offsets = [0, 0], sizes = [8, 8], strides = [1, 1]} : vector<10x10xf32> to vector<8x8xf32>
    %657 = vector.broadcast %655 : f32 to vector<8x8xf32>
    %658 = arith.mulf %657, %656 : vector<8x8xf32>
    %659 = arith.addf %654, %658 : vector<8x8xf32>
    %c118 = arith.constant 118 : index
    %660 = memref.load %arg1[%c118] : memref<270xf32, #tpu.memory_space<smem>>
    %661 = vector.extract_strided_slice %423 {offsets = [0, 1], sizes = [8, 8], strides = [1, 1]} : vector<10x10xf32> to vector<8x8xf32>
    %662 = vector.broadcast %660 : f32 to vector<8x8xf32>
    %663 = arith.mulf %662, %661 : vector<8x8xf32>
    %664 = arith.addf %659, %663 : vector<8x8xf32>
    %c119 = arith.constant 119 : index
    %665 = memref.load %arg1[%c119] : memref<270xf32, #tpu.memory_space<smem>>
    %666 = vector.extract_strided_slice %423 {offsets = [0, 2], sizes = [8, 8], strides = [1, 1]} : vector<10x10xf32> to vector<8x8xf32>
    %667 = vector.broadcast %665 : f32 to vector<8x8xf32>
    %668 = arith.mulf %667, %666 : vector<8x8xf32>
    %669 = arith.addf %664, %668 : vector<8x8xf32>
    %c120 = arith.constant 120 : index
    %670 = memref.load %arg1[%c120] : memref<270xf32, #tpu.memory_space<smem>>
    %671 = vector.extract_strided_slice %423 {offsets = [1, 0], sizes = [8, 8], strides = [1, 1]} : vector<10x10xf32> to vector<8x8xf32>
    %672 = vector.broadcast %670 : f32 to vector<8x8xf32>
    %673 = arith.mulf %672, %671 : vector<8x8xf32>
    %674 = arith.addf %669, %673 : vector<8x8xf32>
    %c121 = arith.constant 121 : index
    %675 = memref.load %arg1[%c121] : memref<270xf32, #tpu.memory_space<smem>>
    %676 = vector.extract_strided_slice %423 {offsets = [1, 1], sizes = [8, 8], strides = [1, 1]} : vector<10x10xf32> to vector<8x8xf32>
    %677 = vector.broadcast %675 : f32 to vector<8x8xf32>
    %678 = arith.mulf %677, %676 : vector<8x8xf32>
    %679 = arith.addf %674, %678 : vector<8x8xf32>
    %c122 = arith.constant 122 : index
    %680 = memref.load %arg1[%c122] : memref<270xf32, #tpu.memory_space<smem>>
    %681 = vector.extract_strided_slice %423 {offsets = [1, 2], sizes = [8, 8], strides = [1, 1]} : vector<10x10xf32> to vector<8x8xf32>
    %682 = vector.broadcast %680 : f32 to vector<8x8xf32>
    %683 = arith.mulf %682, %681 : vector<8x8xf32>
    %684 = arith.addf %679, %683 : vector<8x8xf32>
    %c123 = arith.constant 123 : index
    %685 = memref.load %arg1[%c123] : memref<270xf32, #tpu.memory_space<smem>>
    %686 = vector.extract_strided_slice %423 {offsets = [2, 0], sizes = [8, 8], strides = [1, 1]} : vector<10x10xf32> to vector<8x8xf32>
    %687 = vector.broadcast %685 : f32 to vector<8x8xf32>
    %688 = arith.mulf %687, %686 : vector<8x8xf32>
    %689 = arith.addf %684, %688 : vector<8x8xf32>
    %c124 = arith.constant 124 : index
    %690 = memref.load %arg1[%c124] : memref<270xf32, #tpu.memory_space<smem>>
    %691 = vector.extract_strided_slice %423 {offsets = [2, 1], sizes = [8, 8], strides = [1, 1]} : vector<10x10xf32> to vector<8x8xf32>
    %692 = vector.broadcast %690 : f32 to vector<8x8xf32>
    %693 = arith.mulf %692, %691 : vector<8x8xf32>
    %694 = arith.addf %689, %693 : vector<8x8xf32>
    %c125 = arith.constant 125 : index
    %695 = memref.load %arg1[%c125] : memref<270xf32, #tpu.memory_space<smem>>
    %696 = vector.extract_strided_slice %423 {offsets = [2, 2], sizes = [8, 8], strides = [1, 1]} : vector<10x10xf32> to vector<8x8xf32>
    %697 = vector.broadcast %695 : f32 to vector<8x8xf32>
    %698 = arith.mulf %697, %696 : vector<8x8xf32>
    %699 = arith.addf %694, %698 : vector<8x8xf32>
    %c5_41 = arith.constant 5 : index
    %700 = memref.load %arg2[%c5_41] : memref<13xf32, #tpu.memory_space<smem>>
    %701 = vector.broadcast %700 : f32 to vector<8x8xf32>
    %c126 = arith.constant 126 : index
    %702 = memref.load %arg1[%c126] : memref<270xf32, #tpu.memory_space<smem>>
    %703 = vector.extract_strided_slice %419 {offsets = [0, 0], sizes = [8, 8], strides = [1, 1]} : vector<10x10xf32> to vector<8x8xf32>
    %704 = vector.broadcast %702 : f32 to vector<8x8xf32>
    %705 = arith.mulf %704, %703 : vector<8x8xf32>
    %706 = arith.addf %701, %705 : vector<8x8xf32>
    %c127 = arith.constant 127 : index
    %707 = memref.load %arg1[%c127] : memref<270xf32, #tpu.memory_space<smem>>
    %708 = vector.extract_strided_slice %419 {offsets = [0, 1], sizes = [8, 8], strides = [1, 1]} : vector<10x10xf32> to vector<8x8xf32>
    %709 = vector.broadcast %707 : f32 to vector<8x8xf32>
    %710 = arith.mulf %709, %708 : vector<8x8xf32>
    %711 = arith.addf %706, %710 : vector<8x8xf32>
    %c128 = arith.constant 128 : index
    %712 = memref.load %arg1[%c128] : memref<270xf32, #tpu.memory_space<smem>>
    %713 = vector.extract_strided_slice %419 {offsets = [0, 2], sizes = [8, 8], strides = [1, 1]} : vector<10x10xf32> to vector<8x8xf32>
    %714 = vector.broadcast %712 : f32 to vector<8x8xf32>
    %715 = arith.mulf %714, %713 : vector<8x8xf32>
    %716 = arith.addf %711, %715 : vector<8x8xf32>
    %c129 = arith.constant 129 : index
    %717 = memref.load %arg1[%c129] : memref<270xf32, #tpu.memory_space<smem>>
    %718 = vector.extract_strided_slice %419 {offsets = [1, 0], sizes = [8, 8], strides = [1, 1]} : vector<10x10xf32> to vector<8x8xf32>
    %719 = vector.broadcast %717 : f32 to vector<8x8xf32>
    %720 = arith.mulf %719, %718 : vector<8x8xf32>
    %721 = arith.addf %716, %720 : vector<8x8xf32>
    %c130 = arith.constant 130 : index
    %722 = memref.load %arg1[%c130] : memref<270xf32, #tpu.memory_space<smem>>
    %723 = vector.extract_strided_slice %419 {offsets = [1, 1], sizes = [8, 8], strides = [1, 1]} : vector<10x10xf32> to vector<8x8xf32>
    %724 = vector.broadcast %722 : f32 to vector<8x8xf32>
    %725 = arith.mulf %724, %723 : vector<8x8xf32>
    %726 = arith.addf %721, %725 : vector<8x8xf32>
    %c131 = arith.constant 131 : index
    %727 = memref.load %arg1[%c131] : memref<270xf32, #tpu.memory_space<smem>>
    %728 = vector.extract_strided_slice %419 {offsets = [1, 2], sizes = [8, 8], strides = [1, 1]} : vector<10x10xf32> to vector<8x8xf32>
    %729 = vector.broadcast %727 : f32 to vector<8x8xf32>
    %730 = arith.mulf %729, %728 : vector<8x8xf32>
    %731 = arith.addf %726, %730 : vector<8x8xf32>
    %c132 = arith.constant 132 : index
    %732 = memref.load %arg1[%c132] : memref<270xf32, #tpu.memory_space<smem>>
    %733 = vector.extract_strided_slice %419 {offsets = [2, 0], sizes = [8, 8], strides = [1, 1]} : vector<10x10xf32> to vector<8x8xf32>
    %734 = vector.broadcast %732 : f32 to vector<8x8xf32>
    %735 = arith.mulf %734, %733 : vector<8x8xf32>
    %736 = arith.addf %731, %735 : vector<8x8xf32>
    %c133 = arith.constant 133 : index
    %737 = memref.load %arg1[%c133] : memref<270xf32, #tpu.memory_space<smem>>
    %738 = vector.extract_strided_slice %419 {offsets = [2, 1], sizes = [8, 8], strides = [1, 1]} : vector<10x10xf32> to vector<8x8xf32>
    %739 = vector.broadcast %737 : f32 to vector<8x8xf32>
    %740 = arith.mulf %739, %738 : vector<8x8xf32>
    %741 = arith.addf %736, %740 : vector<8x8xf32>
    %c134 = arith.constant 134 : index
    %742 = memref.load %arg1[%c134] : memref<270xf32, #tpu.memory_space<smem>>
    %743 = vector.extract_strided_slice %419 {offsets = [2, 2], sizes = [8, 8], strides = [1, 1]} : vector<10x10xf32> to vector<8x8xf32>
    %744 = vector.broadcast %742 : f32 to vector<8x8xf32>
    %745 = arith.mulf %744, %743 : vector<8x8xf32>
    %746 = arith.addf %741, %745 : vector<8x8xf32>
    %c135 = arith.constant 135 : index
    %747 = memref.load %arg1[%c135] : memref<270xf32, #tpu.memory_space<smem>>
    %748 = vector.extract_strided_slice %423 {offsets = [0, 0], sizes = [8, 8], strides = [1, 1]} : vector<10x10xf32> to vector<8x8xf32>
    %749 = vector.broadcast %747 : f32 to vector<8x8xf32>
    %750 = arith.mulf %749, %748 : vector<8x8xf32>
    %751 = arith.addf %746, %750 : vector<8x8xf32>
    %c136 = arith.constant 136 : index
    %752 = memref.load %arg1[%c136] : memref<270xf32, #tpu.memory_space<smem>>
    %753 = vector.extract_strided_slice %423 {offsets = [0, 1], sizes = [8, 8], strides = [1, 1]} : vector<10x10xf32> to vector<8x8xf32>
    %754 = vector.broadcast %752 : f32 to vector<8x8xf32>
    %755 = arith.mulf %754, %753 : vector<8x8xf32>
    %756 = arith.addf %751, %755 : vector<8x8xf32>
    %c137 = arith.constant 137 : index
    %757 = memref.load %arg1[%c137] : memref<270xf32, #tpu.memory_space<smem>>
    %758 = vector.extract_strided_slice %423 {offsets = [0, 2], sizes = [8, 8], strides = [1, 1]} : vector<10x10xf32> to vector<8x8xf32>
    %759 = vector.broadcast %757 : f32 to vector<8x8xf32>
    %760 = arith.mulf %759, %758 : vector<8x8xf32>
    %761 = arith.addf %756, %760 : vector<8x8xf32>
    %c138 = arith.constant 138 : index
    %762 = memref.load %arg1[%c138] : memref<270xf32, #tpu.memory_space<smem>>
    %763 = vector.extract_strided_slice %423 {offsets = [1, 0], sizes = [8, 8], strides = [1, 1]} : vector<10x10xf32> to vector<8x8xf32>
    %764 = vector.broadcast %762 : f32 to vector<8x8xf32>
    %765 = arith.mulf %764, %763 : vector<8x8xf32>
    %766 = arith.addf %761, %765 : vector<8x8xf32>
    %c139 = arith.constant 139 : index
    %767 = memref.load %arg1[%c139] : memref<270xf32, #tpu.memory_space<smem>>
    %768 = vector.extract_strided_slice %423 {offsets = [1, 1], sizes = [8, 8], strides = [1, 1]} : vector<10x10xf32> to vector<8x8xf32>
    %769 = vector.broadcast %767 : f32 to vector<8x8xf32>
    %770 = arith.mulf %769, %768 : vector<8x8xf32>
    %771 = arith.addf %766, %770 : vector<8x8xf32>
    %c140 = arith.constant 140 : index
    %772 = memref.load %arg1[%c140] : memref<270xf32, #tpu.memory_space<smem>>
    %773 = vector.extract_strided_slice %423 {offsets = [1, 2], sizes = [8, 8], strides = [1, 1]} : vector<10x10xf32> to vector<8x8xf32>
    %774 = vector.broadcast %772 : f32 to vector<8x8xf32>
    %775 = arith.mulf %774, %773 : vector<8x8xf32>
    %776 = arith.addf %771, %775 : vector<8x8xf32>
    %c141 = arith.constant 141 : index
    %777 = memref.load %arg1[%c141] : memref<270xf32, #tpu.memory_space<smem>>
    %778 = vector.extract_strided_slice %423 {offsets = [2, 0], sizes = [8, 8], strides = [1, 1]} : vector<10x10xf32> to vector<8x8xf32>
    %779 = vector.broadcast %777 : f32 to vector<8x8xf32>
    %780 = arith.mulf %779, %778 : vector<8x8xf32>
    %781 = arith.addf %776, %780 : vector<8x8xf32>
    %c142 = arith.constant 142 : index
    %782 = memref.load %arg1[%c142] : memref<270xf32, #tpu.memory_space<smem>>
    %783 = vector.extract_strided_slice %423 {offsets = [2, 1], sizes = [8, 8], strides = [1, 1]} : vector<10x10xf32> to vector<8x8xf32>
    %784 = vector.broadcast %782 : f32 to vector<8x8xf32>
    %785 = arith.mulf %784, %783 : vector<8x8xf32>
    %786 = arith.addf %781, %785 : vector<8x8xf32>
    %c143 = arith.constant 143 : index
    %787 = memref.load %arg1[%c143] : memref<270xf32, #tpu.memory_space<smem>>
    %788 = vector.extract_strided_slice %423 {offsets = [2, 2], sizes = [8, 8], strides = [1, 1]} : vector<10x10xf32> to vector<8x8xf32>
    %789 = vector.broadcast %787 : f32 to vector<8x8xf32>
    %790 = arith.mulf %789, %788 : vector<8x8xf32>
    %791 = arith.addf %786, %790 : vector<8x8xf32>
    %792 = tpu.iota {dimensions = array<i32: 0>} : vector<4x8xi32>
    %793 = tpu.iota {dimensions = array<i32: 1>} : vector<4x8xi32>
    %c2_i32_42 = arith.constant 2 : i32
    %794 = vector.broadcast %c2_i32_42 : i32 to vector<4x8xi32>
    %795 = arith.muli %794, %792 : vector<4x8xi32>
    %796 = arith.cmpi eq, %793, %795 : vector<4x8xi32>
    %797 = arith.extui %796 : vector<4x8xi1> to vector<4x8xi32>
    %798 = arith.sitofp %797 : vector<4x8xi32> to vector<4x8xf32>
    %799 = tpu.iota {dimensions = array<i32: 0>} : vector<8x4xi32>
    %800 = tpu.iota {dimensions = array<i32: 1>} : vector<8x4xi32>
    %c2_i32_43 = arith.constant 2 : i32
    %801 = vector.broadcast %c2_i32_43 : i32 to vector<8x4xi32>
    %802 = arith.muli %801, %800 : vector<8x4xi32>
    %803 = arith.cmpi eq, %799, %802 : vector<8x4xi32>
    %804 = arith.extui %803 : vector<8x4xi1> to vector<8x4xi32>
    %805 = arith.sitofp %804 : vector<8x4xi32> to vector<8x4xf32>
    %cst_44 = arith.constant dense<0.000000e+00> : vector<4x8xf32>
    %806 = tpu.matmul %798, %515, %cst_44 {dimension_numbers = #tpu.dot_dimension_numbers<[1], [0], [0], [1], [0, 0, 1, 1], [], []>} : vector<4x8xf32>, vector<8x8xf32>, vector<4x8xf32> -> vector<4x8xf32>
    %cst_45 = arith.constant dense<0.000000e+00> : vector<4x4xf32>
    %807 = tpu.matmul %806, %805, %cst_45 {dimension_numbers = #tpu.dot_dimension_numbers<[1], [0], [0], [1], [0, 0, 1, 1], [], []>} : vector<4x8xf32>, vector<8x4xf32>, vector<4x4xf32> -> vector<4x4xf32>
    %cst_46 = arith.constant dense<0.000000e+00> : vector<4x8xf32>
    %808 = tpu.matmul %798, %607, %cst_46 {dimension_numbers = #tpu.dot_dimension_numbers<[1], [0], [0], [1], [0, 0, 1, 1], [], []>} : vector<4x8xf32>, vector<8x8xf32>, vector<4x8xf32> -> vector<4x8xf32>
    %cst_47 = arith.constant dense<0.000000e+00> : vector<4x4xf32>
    %809 = tpu.matmul %808, %805, %cst_47 {dimension_numbers = #tpu.dot_dimension_numbers<[1], [0], [0], [1], [0, 0, 1, 1], [], []>} : vector<4x8xf32>, vector<8x4xf32>, vector<4x4xf32> -> vector<4x4xf32>
    %cst_48 = arith.constant dense<0.000000e+00> : vector<4x8xf32>
    %810 = tpu.matmul %798, %699, %cst_48 {dimension_numbers = #tpu.dot_dimension_numbers<[1], [0], [0], [1], [0, 0, 1, 1], [], []>} : vector<4x8xf32>, vector<8x8xf32>, vector<4x8xf32> -> vector<4x8xf32>
    %cst_49 = arith.constant dense<0.000000e+00> : vector<4x4xf32>
    %811 = tpu.matmul %810, %805, %cst_49 {dimension_numbers = #tpu.dot_dimension_numbers<[1], [0], [0], [1], [0, 0, 1, 1], [], []>} : vector<4x8xf32>, vector<8x4xf32>, vector<4x4xf32> -> vector<4x4xf32>
    %cst_50 = arith.constant dense<0.000000e+00> : vector<4x8xf32>
    %812 = tpu.matmul %798, %791, %cst_50 {dimension_numbers = #tpu.dot_dimension_numbers<[1], [0], [0], [1], [0, 0, 1, 1], [], []>} : vector<4x8xf32>, vector<8x8xf32>, vector<4x8xf32> -> vector<4x8xf32>
    %cst_51 = arith.constant dense<0.000000e+00> : vector<4x4xf32>
    %813 = tpu.matmul %812, %805, %cst_51 {dimension_numbers = #tpu.dot_dimension_numbers<[1], [0], [0], [1], [0, 0, 1, 1], [], []>} : vector<4x8xf32>, vector<8x4xf32>, vector<4x4xf32> -> vector<4x4xf32>
    %cst_52 = arith.constant 0.000000e+00 : f32
    %814 = vector.broadcast %cst_52 : f32 to vector<4x4xf32>
    %815 = arith.cmpf oge, %807, %814 : vector<4x4xf32>
    %cst_53 = arith.constant 0.00999999977 : f32
    %816 = vector.broadcast %cst_53 : f32 to vector<4x4xf32>
    %817 = arith.mulf %816, %807 : vector<4x4xf32>
    %818 = arith.select %815, %807, %817 : vector<4x4xi1>, vector<4x4xf32>
    %cst_54 = arith.constant 0.000000e+00 : f32
    %819 = vector.broadcast %cst_54 : f32 to vector<4x4xf32>
    %820 = arith.cmpf oge, %809, %819 : vector<4x4xf32>
    %cst_55 = arith.constant 0.00999999977 : f32
    %821 = vector.broadcast %cst_55 : f32 to vector<4x4xf32>
    %822 = arith.mulf %821, %809 : vector<4x4xf32>
    %823 = arith.select %820, %809, %822 : vector<4x4xi1>, vector<4x4xf32>
    %cst_56 = arith.constant 0.000000e+00 : f32
    %824 = vector.broadcast %cst_56 : f32 to vector<4x4xf32>
    %825 = arith.cmpf oge, %811, %824 : vector<4x4xf32>
    %cst_57 = arith.constant 0.00999999977 : f32
    %826 = vector.broadcast %cst_57 : f32 to vector<4x4xf32>
    %827 = arith.mulf %826, %811 : vector<4x4xf32>
    %828 = arith.select %825, %811, %827 : vector<4x4xi1>, vector<4x4xf32>
    %cst_58 = arith.constant 0.000000e+00 : f32
    %829 = vector.broadcast %cst_58 : f32 to vector<4x4xf32>
    %830 = arith.cmpf oge, %813, %829 : vector<4x4xf32>
    %cst_59 = arith.constant 0.00999999977 : f32
    %831 = vector.broadcast %cst_59 : f32 to vector<4x4xf32>
    %832 = arith.mulf %831, %813 : vector<4x4xf32>
    %833 = arith.select %830, %813, %832 : vector<4x4xi1>, vector<4x4xf32>
    %c0_60 = arith.constant 0 : index
    %c0_61 = arith.constant 0 : index
    %c0_62 = arith.constant 0 : index
    %c0_63 = arith.constant 0 : index
    %834 = vector.load %arg5[%c0_60, %c0_61, %c0_62, %c0_63] : memref<1x4x4x4xf32, #tpu.memory_space<vmem>>, vector<1x1x4x4xf32>
    %835 = vector.shape_cast %834 : vector<1x1x4x4xf32> to vector<4x4xf32>
    %836 = vector.shape_cast %818 : vector<4x4xf32> to vector<1x1x4x4xf32>
    tpu.vector_store %arg5[%c0_60, %c0_61, %c0_62, %c0_63], %836 {strides = array<i32>} : memref<1x4x4x4xf32, #tpu.memory_space<vmem>>, vector<1x1x4x4xf32>,
    %c0_64 = arith.constant 0 : index
    %c1_65 = arith.constant 1 : index
    %c0_66 = arith.constant 0 : index
    %c0_67 = arith.constant 0 : index
    %837 = vector.load %arg5[%c0_64, %c1_65, %c0_66, %c0_67] : memref<1x4x4x4xf32, #tpu.memory_space<vmem>>, vector<1x1x4x4xf32>
    %838 = vector.shape_cast %837 : vector<1x1x4x4xf32> to vector<4x4xf32>
    %839 = vector.shape_cast %823 : vector<4x4xf32> to vector<1x1x4x4xf32>
    tpu.vector_store %arg5[%c0_64, %c1_65, %c0_66, %c0_67], %839 {strides = array<i32>} : memref<1x4x4x4xf32, #tpu.memory_space<vmem>>, vector<1x1x4x4xf32>,
    %c0_68 = arith.constant 0 : index
    %c2_69 = arith.constant 2 : index
    %c0_70 = arith.constant 0 : index
    %c0_71 = arith.constant 0 : index
    %840 = vector.load %arg5[%c0_68, %c2_69, %c0_70, %c0_71] : memref<1x4x4x4xf32, #tpu.memory_space<vmem>>, vector<1x1x4x4xf32>
    %841 = vector.shape_cast %840 : vector<1x1x4x4xf32> to vector<4x4xf32>
    %842 = vector.shape_cast %828 : vector<4x4xf32> to vector<1x1x4x4xf32>
    tpu.vector_store %arg5[%c0_68, %c2_69, %c0_70, %c0_71], %842 {strides = array<i32>} : memref<1x4x4x4xf32, #tpu.memory_space<vmem>>, vector<1x1x4x4xf32>,
    %c0_72 = arith.constant 0 : index
    %c3_73 = arith.constant 3 : index
    %c0_74 = arith.constant 0 : index
    %c0_75 = arith.constant 0 : index
    %843 = vector.load %arg5[%c0_72, %c3_73, %c0_74, %c0_75] : memref<1x4x4x4xf32, #tpu.memory_space<vmem>>, vector<1x1x4x4xf32>
    %844 = vector.shape_cast %843 : vector<1x1x4x4xf32> to vector<4x4xf32>
    %845 = vector.shape_cast %833 : vector<4x4xf32> to vector<1x1x4x4xf32>
    tpu.vector_store %arg5[%c0_72, %c3_73, %c0_74, %c0_75], %845 {strides = array<i32>} : memref<1x4x4x4xf32, #tpu.memory_space<vmem>>, vector<1x1x4x4xf32>,
    %cst_76 = arith.constant 0.000000e+00 : f32
    %846 = vector.broadcast %cst_76 : f32 to vector<4x1xf32>
    %cst_77 = arith.constant 0.000000e+00 : f32
    %847 = vector.broadcast %cst_77 : f32 to vector<1x5xf32>
    %848 = tpu.concatenate %818, %846 in 1 : vector<4x4xf32>, vector<4x1xf32> -> vector<4x5xf32>
    %849 = tpu.concatenate %848, %847 in 0 : vector<4x5xf32>, vector<1x5xf32> -> vector<5x5xf32>
    %850 = vector.extract_strided_slice %849 {offsets = [0, 1], sizes = [4, 4], strides = [1, 1]} : vector<5x5xf32> to vector<4x4xf32>
    %851 = vector.extract_strided_slice %849 {offsets = [1, 0], sizes = [4, 4], strides = [1, 1]} : vector<5x5xf32> to vector<4x4xf32>
    %852 = vector.extract_strided_slice %849 {offsets = [1, 1], sizes = [4, 4], strides = [1, 1]} : vector<5x5xf32> to vector<4x4xf32>
    %853 = tpu.concatenate %823, %846 in 1 : vector<4x4xf32>, vector<4x1xf32> -> vector<4x5xf32>
    %854 = tpu.concatenate %853, %847 in 0 : vector<4x5xf32>, vector<1x5xf32> -> vector<5x5xf32>
    %855 = vector.extract_strided_slice %854 {offsets = [0, 1], sizes = [4, 4], strides = [1, 1]} : vector<5x5xf32> to vector<4x4xf32>
    %856 = vector.extract_strided_slice %854 {offsets = [1, 0], sizes = [4, 4], strides = [1, 1]} : vector<5x5xf32> to vector<4x4xf32>
    %857 = vector.extract_strided_slice %854 {offsets = [1, 1], sizes = [4, 4], strides = [1, 1]} : vector<5x5xf32> to vector<4x4xf32>
    %858 = tpu.concatenate %828, %846 in 1 : vector<4x4xf32>, vector<4x1xf32> -> vector<4x5xf32>
    %859 = tpu.concatenate %858, %847 in 0 : vector<4x5xf32>, vector<1x5xf32> -> vector<5x5xf32>
    %860 = vector.extract_strided_slice %859 {offsets = [0, 1], sizes = [4, 4], strides = [1, 1]} : vector<5x5xf32> to vector<4x4xf32>
    %861 = vector.extract_strided_slice %859 {offsets = [1, 0], sizes = [4, 4], strides = [1, 1]} : vector<5x5xf32> to vector<4x4xf32>
    %862 = vector.extract_strided_slice %859 {offsets = [1, 1], sizes = [4, 4], strides = [1, 1]} : vector<5x5xf32> to vector<4x4xf32>
    %863 = tpu.concatenate %833, %846 in 1 : vector<4x4xf32>, vector<4x1xf32> -> vector<4x5xf32>
    %864 = tpu.concatenate %863, %847 in 0 : vector<4x5xf32>, vector<1x5xf32> -> vector<5x5xf32>
    %865 = vector.extract_strided_slice %864 {offsets = [0, 1], sizes = [4, 4], strides = [1, 1]} : vector<5x5xf32> to vector<4x4xf32>
    %866 = vector.extract_strided_slice %864 {offsets = [1, 0], sizes = [4, 4], strides = [1, 1]} : vector<5x5xf32> to vector<4x4xf32>
    %867 = vector.extract_strided_slice %864 {offsets = [1, 1], sizes = [4, 4], strides = [1, 1]} : vector<5x5xf32> to vector<4x4xf32>
    %868 = tpu.iota {dimensions = array<i32: 0>} : vector<8x4xi32>
    %869 = tpu.iota {dimensions = array<i32: 1>} : vector<8x4xi32>
    %c2_i32_78 = arith.constant 2 : i32
    %870 = vector.broadcast %c2_i32_78 : i32 to vector<8x4xi32>
    %871 = arith.muli %870, %869 : vector<8x4xi32>
    %872 = arith.cmpi eq, %868, %871 : vector<8x4xi32>
    %873 = arith.extui %872 : vector<8x4xi1> to vector<8x4xi32>
    %874 = arith.sitofp %873 : vector<8x4xi32> to vector<8x4xf32>
    %875 = tpu.iota {dimensions = array<i32: 0>} : vector<8x4xi32>
    %876 = tpu.iota {dimensions = array<i32: 1>} : vector<8x4xi32>
    %c2_i32_79 = arith.constant 2 : i32
    %877 = vector.broadcast %c2_i32_79 : i32 to vector<8x4xi32>
    %878 = arith.muli %877, %876 : vector<8x4xi32>
    %c1_i32 = arith.constant 1 : i32
    %879 = vector.broadcast %c1_i32 : i32 to vector<8x4xi32>
    %880 = arith.addi %878, %879 : vector<8x4xi32>
    %881 = arith.cmpi eq, %875, %880 : vector<8x4xi32>
    %882 = arith.extui %881 : vector<8x4xi1> to vector<8x4xi32>
    %883 = arith.sitofp %882 : vector<8x4xi32> to vector<8x4xf32>
    %884 = tpu.iota {dimensions = array<i32: 0>} : vector<4x8xi32>
    %885 = tpu.iota {dimensions = array<i32: 1>} : vector<4x8xi32>
    %c2_i32_80 = arith.constant 2 : i32
    %886 = vector.broadcast %c2_i32_80 : i32 to vector<4x8xi32>
    %887 = arith.muli %886, %884 : vector<4x8xi32>
    %888 = arith.cmpi eq, %885, %887 : vector<4x8xi32>
    %889 = arith.extui %888 : vector<4x8xi1> to vector<4x8xi32>
    %890 = arith.sitofp %889 : vector<4x8xi32> to vector<4x8xf32>
    %891 = tpu.iota {dimensions = array<i32: 0>} : vector<4x8xi32>
    %892 = tpu.iota {dimensions = array<i32: 1>} : vector<4x8xi32>
    %c2_i32_81 = arith.constant 2 : i32
    %893 = vector.broadcast %c2_i32_81 : i32 to vector<4x8xi32>
    %894 = arith.muli %893, %891 : vector<4x8xi32>
    %c1_i32_82 = arith.constant 1 : i32
    %895 = vector.broadcast %c1_i32_82 : i32 to vector<4x8xi32>
    %896 = arith.addi %894, %895 : vector<4x8xi32>
    %897 = arith.cmpi eq, %892, %896 : vector<4x8xi32>
    %898 = arith.extui %897 : vector<4x8xi1> to vector<4x8xi32>
    %899 = arith.sitofp %898 : vector<4x8xi32> to vector<4x8xf32>
    %c6_83 = arith.constant 6 : index
    %900 = memref.load %arg2[%c6_83] : memref<13xf32, #tpu.memory_space<smem>>
    %901 = vector.broadcast %900 : f32 to vector<4x4xf32>
    %902 = vector.broadcast %900 : f32 to vector<4x4xf32>
    %903 = vector.broadcast %900 : f32 to vector<4x4xf32>
    %904 = vector.broadcast %900 : f32 to vector<4x4xf32>
    %c148 = arith.constant 148 : index
    %905 = memref.load %arg1[%c148] : memref<270xf32, #tpu.memory_space<smem>>
    %906 = vector.broadcast %905 : f32 to vector<4x4xf32>
    %907 = arith.mulf %906, %818 : vector<4x4xf32>
    %908 = arith.addf %901, %907 : vector<4x4xf32>
    %c149 = arith.constant 149 : index
    %909 = memref.load %arg1[%c149] : memref<270xf32, #tpu.memory_space<smem>>
    %910 = vector.broadcast %909 : f32 to vector<4x4xf32>
    %911 = arith.mulf %910, %818 : vector<4x4xf32>
    %912 = arith.addf %902, %911 : vector<4x4xf32>
    %c147 = arith.constant 147 : index
    %913 = memref.load %arg1[%c147] : memref<270xf32, #tpu.memory_space<smem>>
    %914 = vector.broadcast %913 : f32 to vector<4x4xf32>
    %915 = arith.mulf %914, %850 : vector<4x4xf32>
    %916 = arith.addf %912, %915 : vector<4x4xf32>
    %c151 = arith.constant 151 : index
    %917 = memref.load %arg1[%c151] : memref<270xf32, #tpu.memory_space<smem>>
    %918 = vector.broadcast %917 : f32 to vector<4x4xf32>
    %919 = arith.mulf %918, %818 : vector<4x4xf32>
    %920 = arith.addf %903, %919 : vector<4x4xf32>
    %c145 = arith.constant 145 : index
    %921 = memref.load %arg1[%c145] : memref<270xf32, #tpu.memory_space<smem>>
    %922 = vector.broadcast %921 : f32 to vector<4x4xf32>
    %923 = arith.mulf %922, %851 : vector<4x4xf32>
    %924 = arith.addf %920, %923 : vector<4x4xf32>
    %c152 = arith.constant 152 : index
    %925 = memref.load %arg1[%c152] : memref<270xf32, #tpu.memory_space<smem>>
    %926 = vector.broadcast %925 : f32 to vector<4x4xf32>
    %927 = arith.mulf %926, %818 : vector<4x4xf32>
    %928 = arith.addf %904, %927 : vector<4x4xf32>
    %c150 = arith.constant 150 : index
    %929 = memref.load %arg1[%c150] : memref<270xf32, #tpu.memory_space<smem>>
    %930 = vector.broadcast %929 : f32 to vector<4x4xf32>
    %931 = arith.mulf %930, %850 : vector<4x4xf32>
    %932 = arith.addf %928, %931 : vector<4x4xf32>
    %c146 = arith.constant 146 : index
    %933 = memref.load %arg1[%c146] : memref<270xf32, #tpu.memory_space<smem>>
    %934 = vector.broadcast %933 : f32 to vector<4x4xf32>
    %935 = arith.mulf %934, %851 : vector<4x4xf32>
    %936 = arith.addf %932, %935 : vector<4x4xf32>
    %c144 = arith.constant 144 : index
    %937 = memref.load %arg1[%c144] : memref<270xf32, #tpu.memory_space<smem>>
    %938 = vector.broadcast %937 : f32 to vector<4x4xf32>
    %939 = arith.mulf %938, %852 : vector<4x4xf32>
    %940 = arith.addf %936, %939 : vector<4x4xf32>
    %c166 = arith.constant 166 : index
    %941 = memref.load %arg1[%c166] : memref<270xf32, #tpu.memory_space<smem>>
    %942 = vector.broadcast %941 : f32 to vector<4x4xf32>
    %943 = arith.mulf %942, %823 : vector<4x4xf32>
    %944 = arith.addf %908, %943 : vector<4x4xf32>
    %c167 = arith.constant 167 : index
    %945 = memref.load %arg1[%c167] : memref<270xf32, #tpu.memory_space<smem>>
    %946 = vector.broadcast %945 : f32 to vector<4x4xf32>
    %947 = arith.mulf %946, %823 : vector<4x4xf32>
    %948 = arith.addf %916, %947 : vector<4x4xf32>
    %c165 = arith.constant 165 : index
    %949 = memref.load %arg1[%c165] : memref<270xf32, #tpu.memory_space<smem>>
    %950 = vector.broadcast %949 : f32 to vector<4x4xf32>
    %951 = arith.mulf %950, %855 : vector<4x4xf32>
    %952 = arith.addf %948, %951 : vector<4x4xf32>
    %c169 = arith.constant 169 : index
    %953 = memref.load %arg1[%c169] : memref<270xf32, #tpu.memory_space<smem>>
    %954 = vector.broadcast %953 : f32 to vector<4x4xf32>
    %955 = arith.mulf %954, %823 : vector<4x4xf32>
    %956 = arith.addf %924, %955 : vector<4x4xf32>
    %c163 = arith.constant 163 : index
    %957 = memref.load %arg1[%c163] : memref<270xf32, #tpu.memory_space<smem>>
    %958 = vector.broadcast %957 : f32 to vector<4x4xf32>
    %959 = arith.mulf %958, %856 : vector<4x4xf32>
    %960 = arith.addf %956, %959 : vector<4x4xf32>
    %c170 = arith.constant 170 : index
    %961 = memref.load %arg1[%c170] : memref<270xf32, #tpu.memory_space<smem>>
    %962 = vector.broadcast %961 : f32 to vector<4x4xf32>
    %963 = arith.mulf %962, %823 : vector<4x4xf32>
    %964 = arith.addf %940, %963 : vector<4x4xf32>
    %c168 = arith.constant 168 : index
    %965 = memref.load %arg1[%c168] : memref<270xf32, #tpu.memory_space<smem>>
    %966 = vector.broadcast %965 : f32 to vector<4x4xf32>
    %967 = arith.mulf %966, %855 : vector<4x4xf32>
    %968 = arith.addf %964, %967 : vector<4x4xf32>
    %c164 = arith.constant 164 : index
    %969 = memref.load %arg1[%c164] : memref<270xf32, #tpu.memory_space<smem>>
    %970 = vector.broadcast %969 : f32 to vector<4x4xf32>
    %971 = arith.mulf %970, %856 : vector<4x4xf32>
    %972 = arith.addf %968, %971 : vector<4x4xf32>
    %c162 = arith.constant 162 : index
    %973 = memref.load %arg1[%c162] : memref<270xf32, #tpu.memory_space<smem>>
    %974 = vector.broadcast %973 : f32 to vector<4x4xf32>
    %975 = arith.mulf %974, %857 : vector<4x4xf32>
    %976 = arith.addf %972, %975 : vector<4x4xf32>
    %c184 = arith.constant 184 : index
    %977 = memref.load %arg1[%c184] : memref<270xf32, #tpu.memory_space<smem>>
    %978 = vector.broadcast %977 : f32 to vector<4x4xf32>
    %979 = arith.mulf %978, %828 : vector<4x4xf32>
    %980 = arith.addf %944, %979 : vector<4x4xf32>
    %c185 = arith.constant 185 : index
    %981 = memref.load %arg1[%c185] : memref<270xf32, #tpu.memory_space<smem>>
    %982 = vector.broadcast %981 : f32 to vector<4x4xf32>
    %983 = arith.mulf %982, %828 : vector<4x4xf32>
    %984 = arith.addf %952, %983 : vector<4x4xf32>
    %c183 = arith.constant 183 : index
    %985 = memref.load %arg1[%c183] : memref<270xf32, #tpu.memory_space<smem>>
    %986 = vector.broadcast %985 : f32 to vector<4x4xf32>
    %987 = arith.mulf %986, %860 : vector<4x4xf32>
    %988 = arith.addf %984, %987 : vector<4x4xf32>
    %c187 = arith.constant 187 : index
    %989 = memref.load %arg1[%c187] : memref<270xf32, #tpu.memory_space<smem>>
    %990 = vector.broadcast %989 : f32 to vector<4x4xf32>
    %991 = arith.mulf %990, %828 : vector<4x4xf32>
    %992 = arith.addf %960, %991 : vector<4x4xf32>
    %c181 = arith.constant 181 : index
    %993 = memref.load %arg1[%c181] : memref<270xf32, #tpu.memory_space<smem>>
    %994 = vector.broadcast %993 : f32 to vector<4x4xf32>
    %995 = arith.mulf %994, %861 : vector<4x4xf32>
    %996 = arith.addf %992, %995 : vector<4x4xf32>
    %c188 = arith.constant 188 : index
    %997 = memref.load %arg1[%c188] : memref<270xf32, #tpu.memory_space<smem>>
    %998 = vector.broadcast %997 : f32 to vector<4x4xf32>
    %999 = arith.mulf %998, %828 : vector<4x4xf32>
    %1000 = arith.addf %976, %999 : vector<4x4xf32>
    %c186 = arith.constant 186 : index
    %1001 = memref.load %arg1[%c186] : memref<270xf32, #tpu.memory_space<smem>>
    %1002 = vector.broadcast %1001 : f32 to vector<4x4xf32>
    %1003 = arith.mulf %1002, %860 : vector<4x4xf32>
    %1004 = arith.addf %1000, %1003 : vector<4x4xf32>
    %c182 = arith.constant 182 : index
    %1005 = memref.load %arg1[%c182] : memref<270xf32, #tpu.memory_space<smem>>
    %1006 = vector.broadcast %1005 : f32 to vector<4x4xf32>
    %1007 = arith.mulf %1006, %861 : vector<4x4xf32>
    %1008 = arith.addf %1004, %1007 : vector<4x4xf32>
    %c180 = arith.constant 180 : index
    %1009 = memref.load %arg1[%c180] : memref<270xf32, #tpu.memory_space<smem>>
    %1010 = vector.broadcast %1009 : f32 to vector<4x4xf32>
    %1011 = arith.mulf %1010, %862 : vector<4x4xf32>
    %1012 = arith.addf %1008, %1011 : vector<4x4xf32>
    %c202 = arith.constant 202 : index
    %1013 = memref.load %arg1[%c202] : memref<270xf32, #tpu.memory_space<smem>>
    %1014 = vector.broadcast %1013 : f32 to vector<4x4xf32>
    %1015 = arith.mulf %1014, %833 : vector<4x4xf32>
    %1016 = arith.addf %980, %1015 : vector<4x4xf32>
    %c203 = arith.constant 203 : index
    %1017 = memref.load %arg1[%c203] : memref<270xf32, #tpu.memory_space<smem>>
    %1018 = vector.broadcast %1017 : f32 to vector<4x4xf32>
    %1019 = arith.mulf %1018, %833 : vector<4x4xf32>
    %1020 = arith.addf %988, %1019 : vector<4x4xf32>
    %c201 = arith.constant 201 : index
    %1021 = memref.load %arg1[%c201] : memref<270xf32, #tpu.memory_space<smem>>
    %1022 = vector.broadcast %1021 : f32 to vector<4x4xf32>
    %1023 = arith.mulf %1022, %865 : vector<4x4xf32>
    %1024 = arith.addf %1020, %1023 : vector<4x4xf32>
    %c205 = arith.constant 205 : index
    %1025 = memref.load %arg1[%c205] : memref<270xf32, #tpu.memory_space<smem>>
    %1026 = vector.broadcast %1025 : f32 to vector<4x4xf32>
    %1027 = arith.mulf %1026, %833 : vector<4x4xf32>
    %1028 = arith.addf %996, %1027 : vector<4x4xf32>
    %c199 = arith.constant 199 : index
    %1029 = memref.load %arg1[%c199] : memref<270xf32, #tpu.memory_space<smem>>
    %1030 = vector.broadcast %1029 : f32 to vector<4x4xf32>
    %1031 = arith.mulf %1030, %866 : vector<4x4xf32>
    %1032 = arith.addf %1028, %1031 : vector<4x4xf32>
    %c206 = arith.constant 206 : index
    %1033 = memref.load %arg1[%c206] : memref<270xf32, #tpu.memory_space<smem>>
    %1034 = vector.broadcast %1033 : f32 to vector<4x4xf32>
    %1035 = arith.mulf %1034, %833 : vector<4x4xf32>
    %1036 = arith.addf %1012, %1035 : vector<4x4xf32>
    %c204 = arith.constant 204 : index
    %1037 = memref.load %arg1[%c204] : memref<270xf32, #tpu.memory_space<smem>>
    %1038 = vector.broadcast %1037 : f32 to vector<4x4xf32>
    %1039 = arith.mulf %1038, %865 : vector<4x4xf32>
    %1040 = arith.addf %1036, %1039 : vector<4x4xf32>
    %c200 = arith.constant 200 : index
    %1041 = memref.load %arg1[%c200] : memref<270xf32, #tpu.memory_space<smem>>
    %1042 = vector.broadcast %1041 : f32 to vector<4x4xf32>
    %1043 = arith.mulf %1042, %866 : vector<4x4xf32>
    %1044 = arith.addf %1040, %1043 : vector<4x4xf32>
    %c198 = arith.constant 198 : index
    %1045 = memref.load %arg1[%c198] : memref<270xf32, #tpu.memory_space<smem>>
    %1046 = vector.broadcast %1045 : f32 to vector<4x4xf32>
    %1047 = arith.mulf %1046, %867 : vector<4x4xf32>
    %1048 = arith.addf %1044, %1047 : vector<4x4xf32>
    %cst_84 = arith.constant dense<0.000000e+00> : vector<4x8xf32>
    %1049 = tpu.matmul %1016, %890, %cst_84 {dimension_numbers = #tpu.dot_dimension_numbers<[1], [0], [0], [1], [0, 0, 1, 1], [], []>} : vector<4x4xf32>, vector<4x8xf32>, vector<4x8xf32> -> vector<4x8xf32>
    %cst_85 = arith.constant dense<0.000000e+00> : vector<4x8xf32>
    %1050 = tpu.matmul %1024, %899, %cst_85 {dimension_numbers = #tpu.dot_dimension_numbers<[1], [0], [0], [1], [0, 0, 1, 1], [], []>} : vector<4x4xf32>, vector<4x8xf32>, vector<4x8xf32> -> vector<4x8xf32>
    %1051 = arith.addf %1049, %1050 : vector<4x8xf32>
    %cst_86 = arith.constant dense<0.000000e+00> : vector<4x8xf32>
    %1052 = tpu.matmul %1032, %890, %cst_86 {dimension_numbers = #tpu.dot_dimension_numbers<[1], [0], [0], [1], [0, 0, 1, 1], [], []>} : vector<4x4xf32>, vector<4x8xf32>, vector<4x8xf32> -> vector<4x8xf32>
    %cst_87 = arith.constant dense<0.000000e+00> : vector<4x8xf32>
    %1053 = tpu.matmul %1048, %899, %cst_87 {dimension_numbers = #tpu.dot_dimension_numbers<[1], [0], [0], [1], [0, 0, 1, 1], [], []>} : vector<4x4xf32>, vector<4x8xf32>, vector<4x8xf32> -> vector<4x8xf32>
    %1054 = arith.addf %1052, %1053 : vector<4x8xf32>
    %cst_88 = arith.constant dense<0.000000e+00> : vector<8x8xf32>
    %1055 = tpu.matmul %874, %1051, %cst_88 {dimension_numbers = #tpu.dot_dimension_numbers<[1], [0], [0], [1], [0, 0, 1, 1], [], []>} : vector<8x4xf32>, vector<4x8xf32>, vector<8x8xf32> -> vector<8x8xf32>
    %cst_89 = arith.constant dense<0.000000e+00> : vector<8x8xf32>
    %1056 = tpu.matmul %883, %1054, %cst_89 {dimension_numbers = #tpu.dot_dimension_numbers<[1], [0], [0], [1], [0, 0, 1, 1], [], []>} : vector<8x4xf32>, vector<4x8xf32>, vector<8x8xf32> -> vector<8x8xf32>
    %1057 = arith.addf %1055, %1056 : vector<8x8xf32>
    %c7_90 = arith.constant 7 : index
    %1058 = memref.load %arg2[%c7_90] : memref<13xf32, #tpu.memory_space<smem>>
    %1059 = vector.broadcast %1058 : f32 to vector<4x4xf32>
    %1060 = vector.broadcast %1058 : f32 to vector<4x4xf32>
    %1061 = vector.broadcast %1058 : f32 to vector<4x4xf32>
    %1062 = vector.broadcast %1058 : f32 to vector<4x4xf32>
    %c157 = arith.constant 157 : index
    %1063 = memref.load %arg1[%c157] : memref<270xf32, #tpu.memory_space<smem>>
    %1064 = vector.broadcast %1063 : f32 to vector<4x4xf32>
    %1065 = arith.mulf %1064, %818 : vector<4x4xf32>
    %1066 = arith.addf %1059, %1065 : vector<4x4xf32>
    %c158 = arith.constant 158 : index
    %1067 = memref.load %arg1[%c158] : memref<270xf32, #tpu.memory_space<smem>>
    %1068 = vector.broadcast %1067 : f32 to vector<4x4xf32>
    %1069 = arith.mulf %1068, %818 : vector<4x4xf32>
    %1070 = arith.addf %1060, %1069 : vector<4x4xf32>
    %c156 = arith.constant 156 : index
    %1071 = memref.load %arg1[%c156] : memref<270xf32, #tpu.memory_space<smem>>
    %1072 = vector.broadcast %1071 : f32 to vector<4x4xf32>
    %1073 = arith.mulf %1072, %850 : vector<4x4xf32>
    %1074 = arith.addf %1070, %1073 : vector<4x4xf32>
    %c160 = arith.constant 160 : index
    %1075 = memref.load %arg1[%c160] : memref<270xf32, #tpu.memory_space<smem>>
    %1076 = vector.broadcast %1075 : f32 to vector<4x4xf32>
    %1077 = arith.mulf %1076, %818 : vector<4x4xf32>
    %1078 = arith.addf %1061, %1077 : vector<4x4xf32>
    %c154 = arith.constant 154 : index
    %1079 = memref.load %arg1[%c154] : memref<270xf32, #tpu.memory_space<smem>>
    %1080 = vector.broadcast %1079 : f32 to vector<4x4xf32>
    %1081 = arith.mulf %1080, %851 : vector<4x4xf32>
    %1082 = arith.addf %1078, %1081 : vector<4x4xf32>
    %c161 = arith.constant 161 : index
    %1083 = memref.load %arg1[%c161] : memref<270xf32, #tpu.memory_space<smem>>
    %1084 = vector.broadcast %1083 : f32 to vector<4x4xf32>
    %1085 = arith.mulf %1084, %818 : vector<4x4xf32>
    %1086 = arith.addf %1062, %1085 : vector<4x4xf32>
    %c159 = arith.constant 159 : index
    %1087 = memref.load %arg1[%c159] : memref<270xf32, #tpu.memory_space<smem>>
    %1088 = vector.broadcast %1087 : f32 to vector<4x4xf32>
    %1089 = arith.mulf %1088, %850 : vector<4x4xf32>
    %1090 = arith.addf %1086, %1089 : vector<4x4xf32>
    %c155 = arith.constant 155 : index
    %1091 = memref.load %arg1[%c155] : memref<270xf32, #tpu.memory_space<smem>>
    %1092 = vector.broadcast %1091 : f32 to vector<4x4xf32>
    %1093 = arith.mulf %1092, %851 : vector<4x4xf32>
    %1094 = arith.addf %1090, %1093 : vector<4x4xf32>
    %c153 = arith.constant 153 : index
    %1095 = memref.load %arg1[%c153] : memref<270xf32, #tpu.memory_space<smem>>
    %1096 = vector.broadcast %1095 : f32 to vector<4x4xf32>
    %1097 = arith.mulf %1096, %852 : vector<4x4xf32>
    %1098 = arith.addf %1094, %1097 : vector<4x4xf32>
    %c175 = arith.constant 175 : index
    %1099 = memref.load %arg1[%c175] : memref<270xf32, #tpu.memory_space<smem>>
    %1100 = vector.broadcast %1099 : f32 to vector<4x4xf32>
    %1101 = arith.mulf %1100, %823 : vector<4x4xf32>
    %1102 = arith.addf %1066, %1101 : vector<4x4xf32>
    %c176 = arith.constant 176 : index
    %1103 = memref.load %arg1[%c176] : memref<270xf32, #tpu.memory_space<smem>>
    %1104 = vector.broadcast %1103 : f32 to vector<4x4xf32>
    %1105 = arith.mulf %1104, %823 : vector<4x4xf32>
    %1106 = arith.addf %1074, %1105 : vector<4x4xf32>
    %c174 = arith.constant 174 : index
    %1107 = memref.load %arg1[%c174] : memref<270xf32, #tpu.memory_space<smem>>
    %1108 = vector.broadcast %1107 : f32 to vector<4x4xf32>
    %1109 = arith.mulf %1108, %855 : vector<4x4xf32>
    %1110 = arith.addf %1106, %1109 : vector<4x4xf32>
    %c178 = arith.constant 178 : index
    %1111 = memref.load %arg1[%c178] : memref<270xf32, #tpu.memory_space<smem>>
    %1112 = vector.broadcast %1111 : f32 to vector<4x4xf32>
    %1113 = arith.mulf %1112, %823 : vector<4x4xf32>
    %1114 = arith.addf %1082, %1113 : vector<4x4xf32>
    %c172 = arith.constant 172 : index
    %1115 = memref.load %arg1[%c172] : memref<270xf32, #tpu.memory_space<smem>>
    %1116 = vector.broadcast %1115 : f32 to vector<4x4xf32>
    %1117 = arith.mulf %1116, %856 : vector<4x4xf32>
    %1118 = arith.addf %1114, %1117 : vector<4x4xf32>
    %c179 = arith.constant 179 : index
    %1119 = memref.load %arg1[%c179] : memref<270xf32, #tpu.memory_space<smem>>
    %1120 = vector.broadcast %1119 : f32 to vector<4x4xf32>
    %1121 = arith.mulf %1120, %823 : vector<4x4xf32>
    %1122 = arith.addf %1098, %1121 : vector<4x4xf32>
    %c177 = arith.constant 177 : index
    %1123 = memref.load %arg1[%c177] : memref<270xf32, #tpu.memory_space<smem>>
    %1124 = vector.broadcast %1123 : f32 to vector<4x4xf32>
    %1125 = arith.mulf %1124, %855 : vector<4x4xf32>
    %1126 = arith.addf %1122, %1125 : vector<4x4xf32>
    %c173 = arith.constant 173 : index
    %1127 = memref.load %arg1[%c173] : memref<270xf32, #tpu.memory_space<smem>>
    %1128 = vector.broadcast %1127 : f32 to vector<4x4xf32>
    %1129 = arith.mulf %1128, %856 : vector<4x4xf32>
    %1130 = arith.addf %1126, %1129 : vector<4x4xf32>
    %c171 = arith.constant 171 : index
    %1131 = memref.load %arg1[%c171] : memref<270xf32, #tpu.memory_space<smem>>
    %1132 = vector.broadcast %1131 : f32 to vector<4x4xf32>
    %1133 = arith.mulf %1132, %857 : vector<4x4xf32>
    %1134 = arith.addf %1130, %1133 : vector<4x4xf32>
    %c193 = arith.constant 193 : index
    %1135 = memref.load %arg1[%c193] : memref<270xf32, #tpu.memory_space<smem>>
    %1136 = vector.broadcast %1135 : f32 to vector<4x4xf32>
    %1137 = arith.mulf %1136, %828 : vector<4x4xf32>
    %1138 = arith.addf %1102, %1137 : vector<4x4xf32>
    %c194 = arith.constant 194 : index
    %1139 = memref.load %arg1[%c194] : memref<270xf32, #tpu.memory_space<smem>>
    %1140 = vector.broadcast %1139 : f32 to vector<4x4xf32>
    %1141 = arith.mulf %1140, %828 : vector<4x4xf32>
    %1142 = arith.addf %1110, %1141 : vector<4x4xf32>
    %c192 = arith.constant 192 : index
    %1143 = memref.load %arg1[%c192] : memref<270xf32, #tpu.memory_space<smem>>
    %1144 = vector.broadcast %1143 : f32 to vector<4x4xf32>
    %1145 = arith.mulf %1144, %860 : vector<4x4xf32>
    %1146 = arith.addf %1142, %1145 : vector<4x4xf32>
    %c196 = arith.constant 196 : index
    %1147 = memref.load %arg1[%c196] : memref<270xf32, #tpu.memory_space<smem>>
    %1148 = vector.broadcast %1147 : f32 to vector<4x4xf32>
    %1149 = arith.mulf %1148, %828 : vector<4x4xf32>
    %1150 = arith.addf %1118, %1149 : vector<4x4xf32>
    %c190 = arith.constant 190 : index
    %1151 = memref.load %arg1[%c190] : memref<270xf32, #tpu.memory_space<smem>>
    %1152 = vector.broadcast %1151 : f32 to vector<4x4xf32>
    %1153 = arith.mulf %1152, %861 : vector<4x4xf32>
    %1154 = arith.addf %1150, %1153 : vector<4x4xf32>
    %c197 = arith.constant 197 : index
    %1155 = memref.load %arg1[%c197] : memref<270xf32, #tpu.memory_space<smem>>
    %1156 = vector.broadcast %1155 : f32 to vector<4x4xf32>
    %1157 = arith.mulf %1156, %828 : vector<4x4xf32>
    %1158 = arith.addf %1134, %1157 : vector<4x4xf32>
    %c195 = arith.constant 195 : index
    %1159 = memref.load %arg1[%c195] : memref<270xf32, #tpu.memory_space<smem>>
    %1160 = vector.broadcast %1159 : f32 to vector<4x4xf32>
    %1161 = arith.mulf %1160, %860 : vector<4x4xf32>
    %1162 = arith.addf %1158, %1161 : vector<4x4xf32>
    %c191 = arith.constant 191 : index
    %1163 = memref.load %arg1[%c191] : memref<270xf32, #tpu.memory_space<smem>>
    %1164 = vector.broadcast %1163 : f32 to vector<4x4xf32>
    %1165 = arith.mulf %1164, %861 : vector<4x4xf32>
    %1166 = arith.addf %1162, %1165 : vector<4x4xf32>
    %c189 = arith.constant 189 : index
    %1167 = memref.load %arg1[%c189] : memref<270xf32, #tpu.memory_space<smem>>
    %1168 = vector.broadcast %1167 : f32 to vector<4x4xf32>
    %1169 = arith.mulf %1168, %862 : vector<4x4xf32>
    %1170 = arith.addf %1166, %1169 : vector<4x4xf32>
    %c211 = arith.constant 211 : index
    %1171 = memref.load %arg1[%c211] : memref<270xf32, #tpu.memory_space<smem>>
    %1172 = vector.broadcast %1171 : f32 to vector<4x4xf32>
    %1173 = arith.mulf %1172, %833 : vector<4x4xf32>
    %1174 = arith.addf %1138, %1173 : vector<4x4xf32>
    %c212 = arith.constant 212 : index
    %1175 = memref.load %arg1[%c212] : memref<270xf32, #tpu.memory_space<smem>>
    %1176 = vector.broadcast %1175 : f32 to vector<4x4xf32>
    %1177 = arith.mulf %1176, %833 : vector<4x4xf32>
    %1178 = arith.addf %1146, %1177 : vector<4x4xf32>
    %c210 = arith.constant 210 : index
    %1179 = memref.load %arg1[%c210] : memref<270xf32, #tpu.memory_space<smem>>
    %1180 = vector.broadcast %1179 : f32 to vector<4x4xf32>
    %1181 = arith.mulf %1180, %865 : vector<4x4xf32>
    %1182 = arith.addf %1178, %1181 : vector<4x4xf32>
    %c214 = arith.constant 214 : index
    %1183 = memref.load %arg1[%c214] : memref<270xf32, #tpu.memory_space<smem>>
    %1184 = vector.broadcast %1183 : f32 to vector<4x4xf32>
    %1185 = arith.mulf %1184, %833 : vector<4x4xf32>
    %1186 = arith.addf %1154, %1185 : vector<4x4xf32>
    %c208 = arith.constant 208 : index
    %1187 = memref.load %arg1[%c208] : memref<270xf32, #tpu.memory_space<smem>>
    %1188 = vector.broadcast %1187 : f32 to vector<4x4xf32>
    %1189 = arith.mulf %1188, %866 : vector<4x4xf32>
    %1190 = arith.addf %1186, %1189 : vector<4x4xf32>
    %c215 = arith.constant 215 : index
    %1191 = memref.load %arg1[%c215] : memref<270xf32, #tpu.memory_space<smem>>
    %1192 = vector.broadcast %1191 : f32 to vector<4x4xf32>
    %1193 = arith.mulf %1192, %833 : vector<4x4xf32>
    %1194 = arith.addf %1170, %1193 : vector<4x4xf32>
    %c213 = arith.constant 213 : index
    %1195 = memref.load %arg1[%c213] : memref<270xf32, #tpu.memory_space<smem>>
    %1196 = vector.broadcast %1195 : f32 to vector<4x4xf32>
    %1197 = arith.mulf %1196, %865 : vector<4x4xf32>
    %1198 = arith.addf %1194, %1197 : vector<4x4xf32>
    %c209 = arith.constant 209 : index
    %1199 = memref.load %arg1[%c209] : memref<270xf32, #tpu.memory_space<smem>>
    %1200 = vector.broadcast %1199 : f32 to vector<4x4xf32>
    %1201 = arith.mulf %1200, %866 : vector<4x4xf32>
    %1202 = arith.addf %1198, %1201 : vector<4x4xf32>
    %c207 = arith.constant 207 : index
    %1203 = memref.load %arg1[%c207] : memref<270xf32, #tpu.memory_space<smem>>
    %1204 = vector.broadcast %1203 : f32 to vector<4x4xf32>
    %1205 = arith.mulf %1204, %867 : vector<4x4xf32>
    %1206 = arith.addf %1202, %1205 : vector<4x4xf32>
    %cst_91 = arith.constant dense<0.000000e+00> : vector<4x8xf32>
    %1207 = tpu.matmul %1174, %890, %cst_91 {dimension_numbers = #tpu.dot_dimension_numbers<[1], [0], [0], [1], [0, 0, 1, 1], [], []>} : vector<4x4xf32>, vector<4x8xf32>, vector<4x8xf32> -> vector<4x8xf32>
    %cst_92 = arith.constant dense<0.000000e+00> : vector<4x8xf32>
    %1208 = tpu.matmul %1182, %899, %cst_92 {dimension_numbers = #tpu.dot_dimension_numbers<[1], [0], [0], [1], [0, 0, 1, 1], [], []>} : vector<4x4xf32>, vector<4x8xf32>, vector<4x8xf32> -> vector<4x8xf32>
    %1209 = arith.addf %1207, %1208 : vector<4x8xf32>
    %cst_93 = arith.constant dense<0.000000e+00> : vector<4x8xf32>
    %1210 = tpu.matmul %1190, %890, %cst_93 {dimension_numbers = #tpu.dot_dimension_numbers<[1], [0], [0], [1], [0, 0, 1, 1], [], []>} : vector<4x4xf32>, vector<4x8xf32>, vector<4x8xf32> -> vector<4x8xf32>
    %cst_94 = arith.constant dense<0.000000e+00> : vector<4x8xf32>
    %1211 = tpu.matmul %1206, %899, %cst_94 {dimension_numbers = #tpu.dot_dimension_numbers<[1], [0], [0], [1], [0, 0, 1, 1], [], []>} : vector<4x4xf32>, vector<4x8xf32>, vector<4x8xf32> -> vector<4x8xf32>
    %1212 = arith.addf %1210, %1211 : vector<4x8xf32>
    %cst_95 = arith.constant dense<0.000000e+00> : vector<8x8xf32>
    %1213 = tpu.matmul %874, %1209, %cst_95 {dimension_numbers = #tpu.dot_dimension_numbers<[1], [0], [0], [1], [0, 0, 1, 1], [], []>} : vector<8x4xf32>, vector<4x8xf32>, vector<8x8xf32> -> vector<8x8xf32>
    %cst_96 = arith.constant dense<0.000000e+00> : vector<8x8xf32>
    %1214 = tpu.matmul %883, %1212, %cst_96 {dimension_numbers = #tpu.dot_dimension_numbers<[1], [0], [0], [1], [0, 0, 1, 1], [], []>} : vector<8x4xf32>, vector<4x8xf32>, vector<8x8xf32> -> vector<8x8xf32>
    %1215 = arith.addf %1213, %1214 : vector<8x8xf32>
    %cst_97 = arith.constant 0.000000e+00 : f32
    %1216 = vector.broadcast %cst_97 : f32 to vector<8x8xf32>
    %1217 = arith.cmpf oge, %1057, %1216 : vector<8x8xf32>
    %cst_98 = arith.constant 0.00999999977 : f32
    %1218 = vector.broadcast %cst_98 : f32 to vector<8x8xf32>
    %1219 = arith.mulf %1218, %1057 : vector<8x8xf32>
    %1220 = arith.select %1217, %1057, %1219 : vector<8x8xi1>, vector<8x8xf32>
    %cst_99 = arith.constant 0.000000e+00 : f32
    %1221 = vector.broadcast %cst_99 : f32 to vector<8x8xf32>
    %1222 = arith.cmpf oge, %1215, %1221 : vector<8x8xf32>
    %cst_100 = arith.constant 0.00999999977 : f32
    %1223 = vector.broadcast %cst_100 : f32 to vector<8x8xf32>
    %1224 = arith.mulf %1223, %1215 : vector<8x8xf32>
    %1225 = arith.select %1222, %1215, %1224 : vector<8x8xi1>, vector<8x8xf32>
    %cst_101 = arith.constant 0.000000e+00 : f32
    %1226 = vector.broadcast %cst_101 : f32 to vector<8x1xf32>
    %cst_102 = arith.constant 0.000000e+00 : f32
    %1227 = vector.broadcast %cst_102 : f32 to vector<1x9xf32>
    %1228 = tpu.concatenate %1220, %1226 in 1 : vector<8x8xf32>, vector<8x1xf32> -> vector<8x9xf32>
    %1229 = tpu.concatenate %1228, %1227 in 0 : vector<8x9xf32>, vector<1x9xf32> -> vector<9x9xf32>
    %1230 = vector.extract_strided_slice %1229 {offsets = [0, 1], sizes = [8, 8], strides = [1, 1]} : vector<9x9xf32> to vector<8x8xf32>
    %1231 = vector.extract_strided_slice %1229 {offsets = [1, 0], sizes = [8, 8], strides = [1, 1]} : vector<9x9xf32> to vector<8x8xf32>
    %1232 = vector.extract_strided_slice %1229 {offsets = [1, 1], sizes = [8, 8], strides = [1, 1]} : vector<9x9xf32> to vector<8x8xf32>
    %1233 = tpu.concatenate %1225, %1226 in 1 : vector<8x8xf32>, vector<8x1xf32> -> vector<8x9xf32>
    %1234 = tpu.concatenate %1233, %1227 in 0 : vector<8x9xf32>, vector<1x9xf32> -> vector<9x9xf32>
    %1235 = vector.extract_strided_slice %1234 {offsets = [0, 1], sizes = [8, 8], strides = [1, 1]} : vector<9x9xf32> to vector<8x8xf32>
    %1236 = vector.extract_strided_slice %1234 {offsets = [1, 0], sizes = [8, 8], strides = [1, 1]} : vector<9x9xf32> to vector<8x8xf32>
    %1237 = vector.extract_strided_slice %1234 {offsets = [1, 1], sizes = [8, 8], strides = [1, 1]} : vector<9x9xf32> to vector<8x8xf32>
    %1238 = tpu.iota {dimensions = array<i32: 0>} : vector<16x8xi32>
    %1239 = tpu.iota {dimensions = array<i32: 1>} : vector<16x8xi32>
    %c2_i32_103 = arith.constant 2 : i32
    %1240 = vector.broadcast %c2_i32_103 : i32 to vector<16x8xi32>
    %1241 = arith.muli %1240, %1239 : vector<16x8xi32>
    %1242 = arith.cmpi eq, %1238, %1241 : vector<16x8xi32>
    %1243 = arith.extui %1242 : vector<16x8xi1> to vector<16x8xi32>
    %1244 = arith.sitofp %1243 : vector<16x8xi32> to vector<16x8xf32>
    %1245 = tpu.iota {dimensions = array<i32: 0>} : vector<16x8xi32>
    %1246 = tpu.iota {dimensions = array<i32: 1>} : vector<16x8xi32>
    %c2_i32_104 = arith.constant 2 : i32
    %1247 = vector.broadcast %c2_i32_104 : i32 to vector<16x8xi32>
    %1248 = arith.muli %1247, %1246 : vector<16x8xi32>
    %c1_i32_105 = arith.constant 1 : i32
    %1249 = vector.broadcast %c1_i32_105 : i32 to vector<16x8xi32>
    %1250 = arith.addi %1248, %1249 : vector<16x8xi32>
    %1251 = arith.cmpi eq, %1245, %1250 : vector<16x8xi32>
    %1252 = arith.extui %1251 : vector<16x8xi1> to vector<16x8xi32>
    %1253 = arith.sitofp %1252 : vector<16x8xi32> to vector<16x8xf32>
    %1254 = tpu.iota {dimensions = array<i32: 0>} : vector<8x16xi32>
    %1255 = tpu.iota {dimensions = array<i32: 1>} : vector<8x16xi32>
    %c2_i32_106 = arith.constant 2 : i32
    %1256 = vector.broadcast %c2_i32_106 : i32 to vector<8x16xi32>
    %1257 = arith.muli %1256, %1254 : vector<8x16xi32>
    %1258 = arith.cmpi eq, %1255, %1257 : vector<8x16xi32>
    %1259 = arith.extui %1258 : vector<8x16xi1> to vector<8x16xi32>
    %1260 = arith.sitofp %1259 : vector<8x16xi32> to vector<8x16xf32>
    %1261 = tpu.iota {dimensions = array<i32: 0>} : vector<8x16xi32>
    %1262 = tpu.iota {dimensions = array<i32: 1>} : vector<8x16xi32>
    %c2_i32_107 = arith.constant 2 : i32
    %1263 = vector.broadcast %c2_i32_107 : i32 to vector<8x16xi32>
    %1264 = arith.muli %1263, %1261 : vector<8x16xi32>
    %c1_i32_108 = arith.constant 1 : i32
    %1265 = vector.broadcast %c1_i32_108 : i32 to vector<8x16xi32>
    %1266 = arith.addi %1264, %1265 : vector<8x16xi32>
    %1267 = arith.cmpi eq, %1262, %1266 : vector<8x16xi32>
    %1268 = arith.extui %1267 : vector<8x16xi1> to vector<8x16xi32>
    %1269 = arith.sitofp %1268 : vector<8x16xi32> to vector<8x16xf32>
    %c8_109 = arith.constant 8 : index
    %1270 = memref.load %arg2[%c8_109] : memref<13xf32, #tpu.memory_space<smem>>
    %1271 = vector.broadcast %1270 : f32 to vector<8x8xf32>
    %1272 = vector.broadcast %1270 : f32 to vector<8x8xf32>
    %1273 = vector.broadcast %1270 : f32 to vector<8x8xf32>
    %1274 = vector.broadcast %1270 : f32 to vector<8x8xf32>
    %c220 = arith.constant 220 : index
    %1275 = memref.load %arg1[%c220] : memref<270xf32, #tpu.memory_space<smem>>
    %1276 = vector.broadcast %1275 : f32 to vector<8x8xf32>
    %1277 = arith.mulf %1276, %1220 : vector<8x8xf32>
    %1278 = arith.addf %1271, %1277 : vector<8x8xf32>
    %c221 = arith.constant 221 : index
    %1279 = memref.load %arg1[%c221] : memref<270xf32, #tpu.memory_space<smem>>
    %1280 = vector.broadcast %1279 : f32 to vector<8x8xf32>
    %1281 = arith.mulf %1280, %1220 : vector<8x8xf32>
    %1282 = arith.addf %1272, %1281 : vector<8x8xf32>
    %c219 = arith.constant 219 : index
    %1283 = memref.load %arg1[%c219] : memref<270xf32, #tpu.memory_space<smem>>
    %1284 = vector.broadcast %1283 : f32 to vector<8x8xf32>
    %1285 = arith.mulf %1284, %1230 : vector<8x8xf32>
    %1286 = arith.addf %1282, %1285 : vector<8x8xf32>
    %c223 = arith.constant 223 : index
    %1287 = memref.load %arg1[%c223] : memref<270xf32, #tpu.memory_space<smem>>
    %1288 = vector.broadcast %1287 : f32 to vector<8x8xf32>
    %1289 = arith.mulf %1288, %1220 : vector<8x8xf32>
    %1290 = arith.addf %1273, %1289 : vector<8x8xf32>
    %c217 = arith.constant 217 : index
    %1291 = memref.load %arg1[%c217] : memref<270xf32, #tpu.memory_space<smem>>
    %1292 = vector.broadcast %1291 : f32 to vector<8x8xf32>
    %1293 = arith.mulf %1292, %1231 : vector<8x8xf32>
    %1294 = arith.addf %1290, %1293 : vector<8x8xf32>
    %c224 = arith.constant 224 : index
    %1295 = memref.load %arg1[%c224] : memref<270xf32, #tpu.memory_space<smem>>
    %1296 = vector.broadcast %1295 : f32 to vector<8x8xf32>
    %1297 = arith.mulf %1296, %1220 : vector<8x8xf32>
    %1298 = arith.addf %1274, %1297 : vector<8x8xf32>
    %c222 = arith.constant 222 : index
    %1299 = memref.load %arg1[%c222] : memref<270xf32, #tpu.memory_space<smem>>
    %1300 = vector.broadcast %1299 : f32 to vector<8x8xf32>
    %1301 = arith.mulf %1300, %1230 : vector<8x8xf32>
    %1302 = arith.addf %1298, %1301 : vector<8x8xf32>
    %c218 = arith.constant 218 : index
    %1303 = memref.load %arg1[%c218] : memref<270xf32, #tpu.memory_space<smem>>
    %1304 = vector.broadcast %1303 : f32 to vector<8x8xf32>
    %1305 = arith.mulf %1304, %1231 : vector<8x8xf32>
    %1306 = arith.addf %1302, %1305 : vector<8x8xf32>
    %c216 = arith.constant 216 : index
    %1307 = memref.load %arg1[%c216] : memref<270xf32, #tpu.memory_space<smem>>
    %1308 = vector.broadcast %1307 : f32 to vector<8x8xf32>
    %1309 = arith.mulf %1308, %1232 : vector<8x8xf32>
    %1310 = arith.addf %1306, %1309 : vector<8x8xf32>
    %c229 = arith.constant 229 : index
    %1311 = memref.load %arg1[%c229] : memref<270xf32, #tpu.memory_space<smem>>
    %1312 = vector.broadcast %1311 : f32 to vector<8x8xf32>
    %1313 = arith.mulf %1312, %1225 : vector<8x8xf32>
    %1314 = arith.addf %1278, %1313 : vector<8x8xf32>
    %c230 = arith.constant 230 : index
    %1315 = memref.load %arg1[%c230] : memref<270xf32, #tpu.memory_space<smem>>
    %1316 = vector.broadcast %1315 : f32 to vector<8x8xf32>
    %1317 = arith.mulf %1316, %1225 : vector<8x8xf32>
    %1318 = arith.addf %1286, %1317 : vector<8x8xf32>
    %c228 = arith.constant 228 : index
    %1319 = memref.load %arg1[%c228] : memref<270xf32, #tpu.memory_space<smem>>
    %1320 = vector.broadcast %1319 : f32 to vector<8x8xf32>
    %1321 = arith.mulf %1320, %1235 : vector<8x8xf32>
    %1322 = arith.addf %1318, %1321 : vector<8x8xf32>
    %c232 = arith.constant 232 : index
    %1323 = memref.load %arg1[%c232] : memref<270xf32, #tpu.memory_space<smem>>
    %1324 = vector.broadcast %1323 : f32 to vector<8x8xf32>
    %1325 = arith.mulf %1324, %1225 : vector<8x8xf32>
    %1326 = arith.addf %1294, %1325 : vector<8x8xf32>
    %c226 = arith.constant 226 : index
    %1327 = memref.load %arg1[%c226] : memref<270xf32, #tpu.memory_space<smem>>
    %1328 = vector.broadcast %1327 : f32 to vector<8x8xf32>
    %1329 = arith.mulf %1328, %1236 : vector<8x8xf32>
    %1330 = arith.addf %1326, %1329 : vector<8x8xf32>
    %c233 = arith.constant 233 : index
    %1331 = memref.load %arg1[%c233] : memref<270xf32, #tpu.memory_space<smem>>
    %1332 = vector.broadcast %1331 : f32 to vector<8x8xf32>
    %1333 = arith.mulf %1332, %1225 : vector<8x8xf32>
    %1334 = arith.addf %1310, %1333 : vector<8x8xf32>
    %c231 = arith.constant 231 : index
    %1335 = memref.load %arg1[%c231] : memref<270xf32, #tpu.memory_space<smem>>
    %1336 = vector.broadcast %1335 : f32 to vector<8x8xf32>
    %1337 = arith.mulf %1336, %1235 : vector<8x8xf32>
    %1338 = arith.addf %1334, %1337 : vector<8x8xf32>
    %c227 = arith.constant 227 : index
    %1339 = memref.load %arg1[%c227] : memref<270xf32, #tpu.memory_space<smem>>
    %1340 = vector.broadcast %1339 : f32 to vector<8x8xf32>
    %1341 = arith.mulf %1340, %1236 : vector<8x8xf32>
    %1342 = arith.addf %1338, %1341 : vector<8x8xf32>
    %c225 = arith.constant 225 : index
    %1343 = memref.load %arg1[%c225] : memref<270xf32, #tpu.memory_space<smem>>
    %1344 = vector.broadcast %1343 : f32 to vector<8x8xf32>
    %1345 = arith.mulf %1344, %1237 : vector<8x8xf32>
    %1346 = arith.addf %1342, %1345 : vector<8x8xf32>
    %cst_110 = arith.constant dense<0.000000e+00> : vector<8x16xf32>
    %1347 = tpu.matmul %1314, %1260, %cst_110 {dimension_numbers = #tpu.dot_dimension_numbers<[1], [0], [0], [1], [0, 0, 1, 1], [], []>} : vector<8x8xf32>, vector<8x16xf32>, vector<8x16xf32> -> vector<8x16xf32>
    %cst_111 = arith.constant dense<0.000000e+00> : vector<8x16xf32>
    %1348 = tpu.matmul %1322, %1269, %cst_111 {dimension_numbers = #tpu.dot_dimension_numbers<[1], [0], [0], [1], [0, 0, 1, 1], [], []>} : vector<8x8xf32>, vector<8x16xf32>, vector<8x16xf32> -> vector<8x16xf32>
    %1349 = arith.addf %1347, %1348 : vector<8x16xf32>
    %cst_112 = arith.constant dense<0.000000e+00> : vector<8x16xf32>
    %1350 = tpu.matmul %1330, %1260, %cst_112 {dimension_numbers = #tpu.dot_dimension_numbers<[1], [0], [0], [1], [0, 0, 1, 1], [], []>} : vector<8x8xf32>, vector<8x16xf32>, vector<8x16xf32> -> vector<8x16xf32>
    %cst_113 = arith.constant dense<0.000000e+00> : vector<8x16xf32>
    %1351 = tpu.matmul %1346, %1269, %cst_113 {dimension_numbers = #tpu.dot_dimension_numbers<[1], [0], [0], [1], [0, 0, 1, 1], [], []>} : vector<8x8xf32>, vector<8x16xf32>, vector<8x16xf32> -> vector<8x16xf32>
    %1352 = arith.addf %1350, %1351 : vector<8x16xf32>
    %cst_114 = arith.constant dense<0.000000e+00> : vector<16x16xf32>
    %1353 = tpu.matmul %1244, %1349, %cst_114 {dimension_numbers = #tpu.dot_dimension_numbers<[1], [0], [0], [1], [0, 0, 1, 1], [], []>} : vector<16x8xf32>, vector<8x16xf32>, vector<16x16xf32> -> vector<16x16xf32>
    %cst_115 = arith.constant dense<0.000000e+00> : vector<16x16xf32>
    %1354 = tpu.matmul %1253, %1352, %cst_115 {dimension_numbers = #tpu.dot_dimension_numbers<[1], [0], [0], [1], [0, 0, 1, 1], [], []>} : vector<16x8xf32>, vector<8x16xf32>, vector<16x16xf32> -> vector<16x16xf32>
    %1355 = arith.addf %1353, %1354 : vector<16x16xf32>
    %cst_116 = arith.constant 0.000000e+00 : f32
    %1356 = vector.broadcast %cst_116 : f32 to vector<16x16xf32>
    %1357 = arith.cmpf oge, %1355, %1356 : vector<16x16xf32>
    %cst_117 = arith.constant 0.00999999977 : f32
    %1358 = vector.broadcast %cst_117 : f32 to vector<16x16xf32>
    %1359 = arith.mulf %1358, %1355 : vector<16x16xf32>
    %1360 = arith.select %1357, %1355, %1359 : vector<16x16xi1>, vector<16x16xf32>
    %cst_118 = arith.constant 0.000000e+00 : f32
    %1361 = vector.broadcast %cst_118 : f32 to vector<16x1xf32>
    %cst_119 = arith.constant 0.000000e+00 : f32
    %1362 = vector.broadcast %cst_119 : f32 to vector<1x18xf32>
    %1363 = tpu.concatenate %1361, %1360, %1361 in 1 : vector<16x1xf32>, vector<16x16xf32>, vector<16x1xf32> -> vector<16x18xf32>
    %1364 = tpu.concatenate %1362, %1363, %1362 in 0 : vector<1x18xf32>, vector<16x18xf32>, vector<1x18xf32> -> vector<18x18xf32>
    %c9_120 = arith.constant 9 : index
    %1365 = memref.load %arg2[%c9_120] : memref<13xf32, #tpu.memory_space<smem>>
    %1366 = vector.broadcast %1365 : f32 to vector<16x16xf32>
    %c234 = arith.constant 234 : index
    %1367 = memref.load %arg1[%c234] : memref<270xf32, #tpu.memory_space<smem>>
    %1368 = vector.extract_strided_slice %1364 {offsets = [0, 0], sizes = [16, 16], strides = [1, 1]} : vector<18x18xf32> to vector<16x16xf32>
    %1369 = vector.broadcast %1367 : f32 to vector<16x16xf32>
    %1370 = arith.mulf %1369, %1368 : vector<16x16xf32>
    %1371 = arith.addf %1366, %1370 : vector<16x16xf32>
    %c235 = arith.constant 235 : index
    %1372 = memref.load %arg1[%c235] : memref<270xf32, #tpu.memory_space<smem>>
    %1373 = vector.extract_strided_slice %1364 {offsets = [0, 1], sizes = [16, 16], strides = [1, 1]} : vector<18x18xf32> to vector<16x16xf32>
    %1374 = vector.broadcast %1372 : f32 to vector<16x16xf32>
    %1375 = arith.mulf %1374, %1373 : vector<16x16xf32>
    %1376 = arith.addf %1371, %1375 : vector<16x16xf32>
    %c236 = arith.constant 236 : index
    %1377 = memref.load %arg1[%c236] : memref<270xf32, #tpu.memory_space<smem>>
    %1378 = vector.extract_strided_slice %1364 {offsets = [0, 2], sizes = [16, 16], strides = [1, 1]} : vector<18x18xf32> to vector<16x16xf32>
    %1379 = vector.broadcast %1377 : f32 to vector<16x16xf32>
    %1380 = arith.mulf %1379, %1378 : vector<16x16xf32>
    %1381 = arith.addf %1376, %1380 : vector<16x16xf32>
    %c237 = arith.constant 237 : index
    %1382 = memref.load %arg1[%c237] : memref<270xf32, #tpu.memory_space<smem>>
    %1383 = vector.extract_strided_slice %1364 {offsets = [1, 0], sizes = [16, 16], strides = [1, 1]} : vector<18x18xf32> to vector<16x16xf32>
    %1384 = vector.broadcast %1382 : f32 to vector<16x16xf32>
    %1385 = arith.mulf %1384, %1383 : vector<16x16xf32>
    %1386 = arith.addf %1381, %1385 : vector<16x16xf32>
    %c238 = arith.constant 238 : index
    %1387 = memref.load %arg1[%c238] : memref<270xf32, #tpu.memory_space<smem>>
    %1388 = vector.extract_strided_slice %1364 {offsets = [1, 1], sizes = [16, 16], strides = [1, 1]} : vector<18x18xf32> to vector<16x16xf32>
    %1389 = vector.broadcast %1387 : f32 to vector<16x16xf32>
    %1390 = arith.mulf %1389, %1388 : vector<16x16xf32>
    %1391 = arith.addf %1386, %1390 : vector<16x16xf32>
    %c239 = arith.constant 239 : index
    %1392 = memref.load %arg1[%c239] : memref<270xf32, #tpu.memory_space<smem>>
    %1393 = vector.extract_strided_slice %1364 {offsets = [1, 2], sizes = [16, 16], strides = [1, 1]} : vector<18x18xf32> to vector<16x16xf32>
    %1394 = vector.broadcast %1392 : f32 to vector<16x16xf32>
    %1395 = arith.mulf %1394, %1393 : vector<16x16xf32>
    %1396 = arith.addf %1391, %1395 : vector<16x16xf32>
    %c240 = arith.constant 240 : index
    %1397 = memref.load %arg1[%c240] : memref<270xf32, #tpu.memory_space<smem>>
    %1398 = vector.extract_strided_slice %1364 {offsets = [2, 0], sizes = [16, 16], strides = [1, 1]} : vector<18x18xf32> to vector<16x16xf32>
    %1399 = vector.broadcast %1397 : f32 to vector<16x16xf32>
    %1400 = arith.mulf %1399, %1398 : vector<16x16xf32>
    %1401 = arith.addf %1396, %1400 : vector<16x16xf32>
    %c241 = arith.constant 241 : index
    %1402 = memref.load %arg1[%c241] : memref<270xf32, #tpu.memory_space<smem>>
    %1403 = vector.extract_strided_slice %1364 {offsets = [2, 1], sizes = [16, 16], strides = [1, 1]} : vector<18x18xf32> to vector<16x16xf32>
    %1404 = vector.broadcast %1402 : f32 to vector<16x16xf32>
    %1405 = arith.mulf %1404, %1403 : vector<16x16xf32>
    %1406 = arith.addf %1401, %1405 : vector<16x16xf32>
    %c242 = arith.constant 242 : index
    %1407 = memref.load %arg1[%c242] : memref<270xf32, #tpu.memory_space<smem>>
    %1408 = vector.extract_strided_slice %1364 {offsets = [2, 2], sizes = [16, 16], strides = [1, 1]} : vector<18x18xf32> to vector<16x16xf32>
    %1409 = vector.broadcast %1407 : f32 to vector<16x16xf32>
    %1410 = arith.mulf %1409, %1408 : vector<16x16xf32>
    %1411 = arith.addf %1406, %1410 : vector<16x16xf32>
    %c10_121 = arith.constant 10 : index
    %1412 = memref.load %arg2[%c10_121] : memref<13xf32, #tpu.memory_space<smem>>
    %1413 = vector.broadcast %1412 : f32 to vector<16x16xf32>
    %c243 = arith.constant 243 : index
    %1414 = memref.load %arg1[%c243] : memref<270xf32, #tpu.memory_space<smem>>
    %1415 = vector.extract_strided_slice %1364 {offsets = [0, 0], sizes = [16, 16], strides = [1, 1]} : vector<18x18xf32> to vector<16x16xf32>
    %1416 = vector.broadcast %1414 : f32 to vector<16x16xf32>
    %1417 = arith.mulf %1416, %1415 : vector<16x16xf32>
    %1418 = arith.addf %1413, %1417 : vector<16x16xf32>
    %c244 = arith.constant 244 : index
    %1419 = memref.load %arg1[%c244] : memref<270xf32, #tpu.memory_space<smem>>
    %1420 = vector.extract_strided_slice %1364 {offsets = [0, 1], sizes = [16, 16], strides = [1, 1]} : vector<18x18xf32> to vector<16x16xf32>
    %1421 = vector.broadcast %1419 : f32 to vector<16x16xf32>
    %1422 = arith.mulf %1421, %1420 : vector<16x16xf32>
    %1423 = arith.addf %1418, %1422 : vector<16x16xf32>
    %c245 = arith.constant 245 : index
    %1424 = memref.load %arg1[%c245] : memref<270xf32, #tpu.memory_space<smem>>
    %1425 = vector.extract_strided_slice %1364 {offsets = [0, 2], sizes = [16, 16], strides = [1, 1]} : vector<18x18xf32> to vector<16x16xf32>
    %1426 = vector.broadcast %1424 : f32 to vector<16x16xf32>
    %1427 = arith.mulf %1426, %1425 : vector<16x16xf32>
    %1428 = arith.addf %1423, %1427 : vector<16x16xf32>
    %c246 = arith.constant 246 : index
    %1429 = memref.load %arg1[%c246] : memref<270xf32, #tpu.memory_space<smem>>
    %1430 = vector.extract_strided_slice %1364 {offsets = [1, 0], sizes = [16, 16], strides = [1, 1]} : vector<18x18xf32> to vector<16x16xf32>
    %1431 = vector.broadcast %1429 : f32 to vector<16x16xf32>
    %1432 = arith.mulf %1431, %1430 : vector<16x16xf32>
    %1433 = arith.addf %1428, %1432 : vector<16x16xf32>
    %c247 = arith.constant 247 : index
    %1434 = memref.load %arg1[%c247] : memref<270xf32, #tpu.memory_space<smem>>
    %1435 = vector.extract_strided_slice %1364 {offsets = [1, 1], sizes = [16, 16], strides = [1, 1]} : vector<18x18xf32> to vector<16x16xf32>
    %1436 = vector.broadcast %1434 : f32 to vector<16x16xf32>
    %1437 = arith.mulf %1436, %1435 : vector<16x16xf32>
    %1438 = arith.addf %1433, %1437 : vector<16x16xf32>
    %c248 = arith.constant 248 : index
    %1439 = memref.load %arg1[%c248] : memref<270xf32, #tpu.memory_space<smem>>
    %1440 = vector.extract_strided_slice %1364 {offsets = [1, 2], sizes = [16, 16], strides = [1, 1]} : vector<18x18xf32> to vector<16x16xf32>
    %1441 = vector.broadcast %1439 : f32 to vector<16x16xf32>
    %1442 = arith.mulf %1441, %1440 : vector<16x16xf32>
    %1443 = arith.addf %1438, %1442 : vector<16x16xf32>
    %c249 = arith.constant 249 : index
    %1444 = memref.load %arg1[%c249] : memref<270xf32, #tpu.memory_space<smem>>
    %1445 = vector.extract_strided_slice %1364 {offsets = [2, 0], sizes = [16, 16], strides = [1, 1]} : vector<18x18xf32> to vector<16x16xf32>
    %1446 = vector.broadcast %1444 : f32 to vector<16x16xf32>
    %1447 = arith.mulf %1446, %1445 : vector<16x16xf32>
    %1448 = arith.addf %1443, %1447 : vector<16x16xf32>
    %c250 = arith.constant 250 : index
    %1449 = memref.load %arg1[%c250] : memref<270xf32, #tpu.memory_space<smem>>
    %1450 = vector.extract_strided_slice %1364 {offsets = [2, 1], sizes = [16, 16], strides = [1, 1]} : vector<18x18xf32> to vector<16x16xf32>
    %1451 = vector.broadcast %1449 : f32 to vector<16x16xf32>
    %1452 = arith.mulf %1451, %1450 : vector<16x16xf32>
    %1453 = arith.addf %1448, %1452 : vector<16x16xf32>
    %c251 = arith.constant 251 : index
    %1454 = memref.load %arg1[%c251] : memref<270xf32, #tpu.memory_space<smem>>
    %1455 = vector.extract_strided_slice %1364 {offsets = [2, 2], sizes = [16, 16], strides = [1, 1]} : vector<18x18xf32> to vector<16x16xf32>
    %1456 = vector.broadcast %1454 : f32 to vector<16x16xf32>
    %1457 = arith.mulf %1456, %1455 : vector<16x16xf32>
    %1458 = arith.addf %1453, %1457 : vector<16x16xf32>
    %c11_122 = arith.constant 11 : index
    %1459 = memref.load %arg2[%c11_122] : memref<13xf32, #tpu.memory_space<smem>>
    %1460 = vector.broadcast %1459 : f32 to vector<16x16xf32>
    %c252 = arith.constant 252 : index
    %1461 = memref.load %arg1[%c252] : memref<270xf32, #tpu.memory_space<smem>>
    %1462 = vector.extract_strided_slice %1364 {offsets = [0, 0], sizes = [16, 16], strides = [1, 1]} : vector<18x18xf32> to vector<16x16xf32>
    %1463 = vector.broadcast %1461 : f32 to vector<16x16xf32>
    %1464 = arith.mulf %1463, %1462 : vector<16x16xf32>
    %1465 = arith.addf %1460, %1464 : vector<16x16xf32>
    %c253 = arith.constant 253 : index
    %1466 = memref.load %arg1[%c253] : memref<270xf32, #tpu.memory_space<smem>>
    %1467 = vector.extract_strided_slice %1364 {offsets = [0, 1], sizes = [16, 16], strides = [1, 1]} : vector<18x18xf32> to vector<16x16xf32>
    %1468 = vector.broadcast %1466 : f32 to vector<16x16xf32>
    %1469 = arith.mulf %1468, %1467 : vector<16x16xf32>
    %1470 = arith.addf %1465, %1469 : vector<16x16xf32>
    %c254 = arith.constant 254 : index
    %1471 = memref.load %arg1[%c254] : memref<270xf32, #tpu.memory_space<smem>>
    %1472 = vector.extract_strided_slice %1364 {offsets = [0, 2], sizes = [16, 16], strides = [1, 1]} : vector<18x18xf32> to vector<16x16xf32>
    %1473 = vector.broadcast %1471 : f32 to vector<16x16xf32>
    %1474 = arith.mulf %1473, %1472 : vector<16x16xf32>
    %1475 = arith.addf %1470, %1474 : vector<16x16xf32>
    %c255 = arith.constant 255 : index
    %1476 = memref.load %arg1[%c255] : memref<270xf32, #tpu.memory_space<smem>>
    %1477 = vector.extract_strided_slice %1364 {offsets = [1, 0], sizes = [16, 16], strides = [1, 1]} : vector<18x18xf32> to vector<16x16xf32>
    %1478 = vector.broadcast %1476 : f32 to vector<16x16xf32>
    %1479 = arith.mulf %1478, %1477 : vector<16x16xf32>
    %1480 = arith.addf %1475, %1479 : vector<16x16xf32>
    %c256 = arith.constant 256 : index
    %1481 = memref.load %arg1[%c256] : memref<270xf32, #tpu.memory_space<smem>>
    %1482 = vector.extract_strided_slice %1364 {offsets = [1, 1], sizes = [16, 16], strides = [1, 1]} : vector<18x18xf32> to vector<16x16xf32>
    %1483 = vector.broadcast %1481 : f32 to vector<16x16xf32>
    %1484 = arith.mulf %1483, %1482 : vector<16x16xf32>
    %1485 = arith.addf %1480, %1484 : vector<16x16xf32>
    %c257 = arith.constant 257 : index
    %1486 = memref.load %arg1[%c257] : memref<270xf32, #tpu.memory_space<smem>>
    %1487 = vector.extract_strided_slice %1364 {offsets = [1, 2], sizes = [16, 16], strides = [1, 1]} : vector<18x18xf32> to vector<16x16xf32>
    %1488 = vector.broadcast %1486 : f32 to vector<16x16xf32>
    %1489 = arith.mulf %1488, %1487 : vector<16x16xf32>
    %1490 = arith.addf %1485, %1489 : vector<16x16xf32>
    %c258 = arith.constant 258 : index
    %1491 = memref.load %arg1[%c258] : memref<270xf32, #tpu.memory_space<smem>>
    %1492 = vector.extract_strided_slice %1364 {offsets = [2, 0], sizes = [16, 16], strides = [1, 1]} : vector<18x18xf32> to vector<16x16xf32>
    %1493 = vector.broadcast %1491 : f32 to vector<16x16xf32>
    %1494 = arith.mulf %1493, %1492 : vector<16x16xf32>
    %1495 = arith.addf %1490, %1494 : vector<16x16xf32>
    %c259 = arith.constant 259 : index
    %1496 = memref.load %arg1[%c259] : memref<270xf32, #tpu.memory_space<smem>>
    %1497 = vector.extract_strided_slice %1364 {offsets = [2, 1], sizes = [16, 16], strides = [1, 1]} : vector<18x18xf32> to vector<16x16xf32>
    %1498 = vector.broadcast %1496 : f32 to vector<16x16xf32>
    %1499 = arith.mulf %1498, %1497 : vector<16x16xf32>
    %1500 = arith.addf %1495, %1499 : vector<16x16xf32>
    %c260 = arith.constant 260 : index
    %1501 = memref.load %arg1[%c260] : memref<270xf32, #tpu.memory_space<smem>>
    %1502 = vector.extract_strided_slice %1364 {offsets = [2, 2], sizes = [16, 16], strides = [1, 1]} : vector<18x18xf32> to vector<16x16xf32>
    %1503 = vector.broadcast %1501 : f32 to vector<16x16xf32>
    %1504 = arith.mulf %1503, %1502 : vector<16x16xf32>
    %1505 = arith.addf %1500, %1504 : vector<16x16xf32>
    %c12_123 = arith.constant 12 : index
    %1506 = memref.load %arg2[%c12_123] : memref<13xf32, #tpu.memory_space<smem>>
    %1507 = vector.broadcast %1506 : f32 to vector<16x16xf32>
    %c261 = arith.constant 261 : index
    %1508 = memref.load %arg1[%c261] : memref<270xf32, #tpu.memory_space<smem>>
    %1509 = vector.extract_strided_slice %1364 {offsets = [0, 0], sizes = [16, 16], strides = [1, 1]} : vector<18x18xf32> to vector<16x16xf32>
    %1510 = vector.broadcast %1508 : f32 to vector<16x16xf32>
    %1511 = arith.mulf %1510, %1509 : vector<16x16xf32>
    %1512 = arith.addf %1507, %1511 : vector<16x16xf32>
    %c262 = arith.constant 262 : index
    %1513 = memref.load %arg1[%c262] : memref<270xf32, #tpu.memory_space<smem>>
    %1514 = vector.extract_strided_slice %1364 {offsets = [0, 1], sizes = [16, 16], strides = [1, 1]} : vector<18x18xf32> to vector<16x16xf32>
    %1515 = vector.broadcast %1513 : f32 to vector<16x16xf32>
    %1516 = arith.mulf %1515, %1514 : vector<16x16xf32>
    %1517 = arith.addf %1512, %1516 : vector<16x16xf32>
    %c263 = arith.constant 263 : index
    %1518 = memref.load %arg1[%c263] : memref<270xf32, #tpu.memory_space<smem>>
    %1519 = vector.extract_strided_slice %1364 {offsets = [0, 2], sizes = [16, 16], strides = [1, 1]} : vector<18x18xf32> to vector<16x16xf32>
    %1520 = vector.broadcast %1518 : f32 to vector<16x16xf32>
    %1521 = arith.mulf %1520, %1519 : vector<16x16xf32>
    %1522 = arith.addf %1517, %1521 : vector<16x16xf32>
    %c264 = arith.constant 264 : index
    %1523 = memref.load %arg1[%c264] : memref<270xf32, #tpu.memory_space<smem>>
    %1524 = vector.extract_strided_slice %1364 {offsets = [1, 0], sizes = [16, 16], strides = [1, 1]} : vector<18x18xf32> to vector<16x16xf32>
    %1525 = vector.broadcast %1523 : f32 to vector<16x16xf32>
    %1526 = arith.mulf %1525, %1524 : vector<16x16xf32>
    %1527 = arith.addf %1522, %1526 : vector<16x16xf32>
    %c265 = arith.constant 265 : index
    %1528 = memref.load %arg1[%c265] : memref<270xf32, #tpu.memory_space<smem>>
    %1529 = vector.extract_strided_slice %1364 {offsets = [1, 1], sizes = [16, 16], strides = [1, 1]} : vector<18x18xf32> to vector<16x16xf32>
    %1530 = vector.broadcast %1528 : f32 to vector<16x16xf32>
    %1531 = arith.mulf %1530, %1529 : vector<16x16xf32>
    %1532 = arith.addf %1527, %1531 : vector<16x16xf32>
    %c266 = arith.constant 266 : index
    %1533 = memref.load %arg1[%c266] : memref<270xf32, #tpu.memory_space<smem>>
    %1534 = vector.extract_strided_slice %1364 {offsets = [1, 2], sizes = [16, 16], strides = [1, 1]} : vector<18x18xf32> to vector<16x16xf32>
    %1535 = vector.broadcast %1533 : f32 to vector<16x16xf32>
    %1536 = arith.mulf %1535, %1534 : vector<16x16xf32>
    %1537 = arith.addf %1532, %1536 : vector<16x16xf32>
    %c267 = arith.constant 267 : index
    %1538 = memref.load %arg1[%c267] : memref<270xf32, #tpu.memory_space<smem>>
    %1539 = vector.extract_strided_slice %1364 {offsets = [2, 0], sizes = [16, 16], strides = [1, 1]} : vector<18x18xf32> to vector<16x16xf32>
    %1540 = vector.broadcast %1538 : f32 to vector<16x16xf32>
    %1541 = arith.mulf %1540, %1539 : vector<16x16xf32>
    %1542 = arith.addf %1537, %1541 : vector<16x16xf32>
    %c268 = arith.constant 268 : index
    %1543 = memref.load %arg1[%c268] : memref<270xf32, #tpu.memory_space<smem>>
    %1544 = vector.extract_strided_slice %1364 {offsets = [2, 1], sizes = [16, 16], strides = [1, 1]} : vector<18x18xf32> to vector<16x16xf32>
    %1545 = vector.broadcast %1543 : f32 to vector<16x16xf32>
    %1546 = arith.mulf %1545, %1544 : vector<16x16xf32>
    %1547 = arith.addf %1542, %1546 : vector<16x16xf32>
    %c269 = arith.constant 269 : index
    %1548 = memref.load %arg1[%c269] : memref<270xf32, #tpu.memory_space<smem>>
    %1549 = vector.extract_strided_slice %1364 {offsets = [2, 2], sizes = [16, 16], strides = [1, 1]} : vector<18x18xf32> to vector<16x16xf32>
    %1550 = vector.broadcast %1548 : f32 to vector<16x16xf32>
    %1551 = arith.mulf %1550, %1549 : vector<16x16xf32>
    %1552 = arith.addf %1547, %1551 : vector<16x16xf32>
    %1553 = math.tanh %1411 : vector<16x16xf32>
    %c0_124 = arith.constant 0 : index
    %c0_125 = arith.constant 0 : index
    %c0_126 = arith.constant 0 : index
    %c0_127 = arith.constant 0 : index
    %1554 = vector.load %arg4[%c0_124, %c0_125, %c0_126, %c0_127] : memref<1x4x16x16xf32, #tpu.memory_space<vmem>>, vector<1x1x16x16xf32>
    %1555 = vector.shape_cast %1554 : vector<1x1x16x16xf32> to vector<16x16xf32>
    %1556 = vector.shape_cast %1553 : vector<16x16xf32> to vector<1x1x16x16xf32>
    tpu.vector_store %arg4[%c0_124, %c0_125, %c0_126, %c0_127], %1556 {strides = array<i32>} : memref<1x4x16x16xf32, #tpu.memory_space<vmem>>, vector<1x1x16x16xf32>,
    %1557 = math.tanh %1458 : vector<16x16xf32>
    %c0_128 = arith.constant 0 : index
    %c1_129 = arith.constant 1 : index
    %c0_130 = arith.constant 0 : index
    %c0_131 = arith.constant 0 : index
    %1558 = vector.load %arg4[%c0_128, %c1_129, %c0_130, %c0_131] : memref<1x4x16x16xf32, #tpu.memory_space<vmem>>, vector<1x1x16x16xf32>
    %1559 = vector.shape_cast %1558 : vector<1x1x16x16xf32> to vector<16x16xf32>
    %1560 = vector.shape_cast %1557 : vector<16x16xf32> to vector<1x1x16x16xf32>
    tpu.vector_store %arg4[%c0_128, %c1_129, %c0_130, %c0_131], %1560 {strides = array<i32>} : memref<1x4x16x16xf32, #tpu.memory_space<vmem>>, vector<1x1x16x16xf32>,
    %1561 = math.tanh %1505 : vector<16x16xf32>
    %c0_132 = arith.constant 0 : index
    %c2_133 = arith.constant 2 : index
    %c0_134 = arith.constant 0 : index
    %c0_135 = arith.constant 0 : index
    %1562 = vector.load %arg4[%c0_132, %c2_133, %c0_134, %c0_135] : memref<1x4x16x16xf32, #tpu.memory_space<vmem>>, vector<1x1x16x16xf32>
    %1563 = vector.shape_cast %1562 : vector<1x1x16x16xf32> to vector<16x16xf32>
    %1564 = vector.shape_cast %1561 : vector<16x16xf32> to vector<1x1x16x16xf32>
    tpu.vector_store %arg4[%c0_132, %c2_133, %c0_134, %c0_135], %1564 {strides = array<i32>} : memref<1x4x16x16xf32, #tpu.memory_space<vmem>>, vector<1x1x16x16xf32>,
    %1565 = math.tanh %1552 : vector<16x16xf32>
    %c0_136 = arith.constant 0 : index
    %c3_137 = arith.constant 3 : index
    %c0_138 = arith.constant 0 : index
    %c0_139 = arith.constant 0 : index
    %1566 = vector.load %arg4[%c0_136, %c3_137, %c0_138, %c0_139] : memref<1x4x16x16xf32, #tpu.memory_space<vmem>>, vector<1x1x16x16xf32>
    %1567 = vector.shape_cast %1566 : vector<1x1x16x16xf32> to vector<16x16xf32>
    %1568 = vector.shape_cast %1565 : vector<16x16xf32> to vector<1x1x16x16xf32>
    tpu.vector_store %arg4[%c0_136, %c3_137, %c0_138, %c0_139], %1568 {strides = array<i32>} : memref<1x4x16x16xf32, #tpu.memory_space<vmem>>, vector<1x1x16x16xf32>,
    return
  }
  func.func @transform_0(%arg0: i32) -> i32 {
    %c0_i32 = arith.constant 0 : i32
    %c0_i32_0 = arith.constant 0 : i32
    return %c0_i32 : i32
  }
  func.func @transform_1(%arg0: i32) -> i32 {
    %c0_i32 = arith.constant 0 : i32
    %c0_i32_0 = arith.constant 0 : i32
    return %c0_i32 : i32
  }
  func.func @transform_2(%arg0: i32) -> (i32, i32, i32, i32) {
    %c0_i32 = arith.constant 0 : i32
    %c0_i32_0 = arith.constant 0 : i32
    %c0_i32_1 = arith.constant 0 : i32
    %c0_i32_2 = arith.constant 0 : i32
    return %arg0, %c0_i32, %c0_i32_0, %c0_i32_1 : i32, i32, i32, i32
  }
  func.func @transform_3(%arg0: i32) -> (i32, i32, i32, i32) {
    %c0_i32 = arith.constant 0 : i32
    %c0_i32_0 = arith.constant 0 : i32
    %c0_i32_1 = arith.constant 0 : i32
    %c0_i32_2 = arith.constant 0 : i32
    return %arg0, %c0_i32, %c0_i32_0, %c0_i32_1 : i32, i32, i32, i32
  }
  func.func @transform_4(%arg0: i32) -> (i32, i32, i32, i32) {
    %c0_i32 = arith.constant 0 : i32
    %c0_i32_0 = arith.constant 0 : i32
    %c0_i32_1 = arith.constant 0 : i32
    %c0_i32_2 = arith.constant 0 : i32
    return %arg0, %c0_i32, %c0_i32_0, %c0_i32_1 : i32, i32, i32, i32
  }
}

</mosaic_0001>

<llo_original>
// kernel: _lambda_.1
$region0: #{_lambda_.1}
  #allocation0 [shape = 'u32[]', space=smem, size = 0x4, offset = 0x4, fixed_abs, tag = 'smem constant byte address 0x4 - core index']
  #allocation1 [shape = 'u32[144,128]{1,0:T(1,128)}', space=vmem, size = 0x12000, scoped, tag = 'internal scratch']
  %s0 = inlined_call_operand.hbm [shape: f32[270], index: 0, kind: input, shape index: {}]
  %s1 = inlined_call_operand.vmem [shape: f32[13], index: 1, kind: input, shape index: {}]
  %s2 = inlined_call_operand.hbm [shape: f32[2,4,16,16], index: 2, kind: input, shape index: {}]
  %s3 = inlined_call_operand.hbm [shape: f32[2,4,16,16], index: 3, kind: output, shape index: {0}]
  %s4 = inlined_call_operand.hbm [shape: f32[2,4,4,4], index: 4, kind: output, shape index: {1}]
  %5 = xla_tuple %s3, %s4
  %s6 = sld [smem:[#allocation0]]
  $region65: #{_lambda_.1} parent=0
    _
  %s8 = ssub.s32 1, %s6
  %s9 = scalar_select 0, %s8, %s6
  $region1: #{_lambda_.1} parent=0
    #allocation2 [shape = 'u8[1536]{0}', space=smem, size = 0x600, scoped, tag = 'input window, operand 0, single buffered']
    #allocation3 [shape = 's32[2]{0}', space=sflag, size = 0x8, scoped, tag = 'scoped memory for _lambda_.1']
    #allocation4 [shape = 's32[2]{0}', space=sflag, size = 0x8, scoped, tag = 'scoped memory for _lambda_.1']
    #allocation5 [shape = 's32[2]{0}', space=sflag, size = 0x8, scoped, tag = 'scoped memory for _lambda_.1']
    #allocation6 [shape = 's32[2]{0}', space=sflag, size = 0x8, scoped, tag = 'scoped memory for _lambda_.1']
    #allocation7 [shape = 'u8[512]{0}', space=smem, size = 0x200, scoped, tag = 'input window, operand 1, single buffered']
    #allocation8 [shape = 'u8[65536]{0}', space=vmem, size = 0x10000, scoped, tag = 'input window, operand 2']
    #allocation9 [shape = 'u8[65536]{0}', space=vmem, size = 0x10000, scoped, tag = 'output window, operand 0']
    #allocation10 [shape = 'u8[16384]{0}', space=vmem, size = 0x4000, scoped, tag = 'output window, operand 1']
    #allocation11 [shape = 's32[2]{0}', space=sflag, size = 0x8, scoped, tag = 'scoped memory for _lambda_.1']
    %10 = vsyncpa [#allocation5], 0
    %11 = vsyncpa [#allocation6], 0
    %12 = vsyncpa [#allocation3], 0
    %s13 = scalar_lea.sflag [#allocation3], 1
    %14 = vsyncpa %s13, 0
    %15 = vsyncpa [#allocation4], 0
    %s16 = scalar_lea.sflag [#allocation4], 1
    %17 = vsyncpa %s16, 0
    %18 = vsyncpa [#allocation11], 0
    %s19 = scalar_lea.sflag [#allocation11], 1
    %20 = vsyncpa %s19, 0
    loop: start=0, step=1, limit=4
    $region2: #{_lambda_.1} parent=1 // loop_pre_header
      _
    $region3: #{_lambda_.1} parent=1 // loop_header
      %s22 = sphi 0, %s26
      %p23 = scmp.ge.s32.totalorder %s22, 4
      %s30 = sphi 0, %s30
      %s32 = sphi 0, %s30
      %s33 = sphi 0, %s32
      %s47 = sphi 0, %s33
      %s51 = sphi 0, %s51
      %s53 = sphi 0, %s51
      %s54 = sphi 0, %s53
      %s68 = sphi 0, %s54
      %s74 = sphi 0, %s76
      %s77 = sphi 0, %s74
      %s78 = sphi 0, %s77
      %s94 = sphi 0, %s78
      %s100 = sphi 0, %s102
      %s103 = sphi 0, %s100
      %s104 = sphi 0, %s103
      %s120 = sphi 0, %s104
      %s126 = sphi 0, %s128
      %s129 = sphi 0, %s126
      %s130 = sphi 0, %s129
      %s146 = sphi 0, %s130
    $region4: #{_lambda_.1} parent=1 // loop_header_branch
      %25 = sbr.rel (%p23) target = $region8
    $region5: #{_lambda_.1} parent=1 // loop_body
      %s27 = ssub.s32 %s22, 1
      %s28 = ssub.s32 %s22, 2
      %s29 = sadd.s32 %s22, 1
      %s31 = sadd.s32 %s30, 1
      %p34 = scmp.eq.s32.totalorder %s22, 1
      %p35 = scmp.ne.s32.totalorder %s30, %s32
      %p36 = scmp.eq.s32.totalorder %s22, 0
      %p37 = por %p35, %p36
      %p38 = scmp.ne.s32.totalorder %s30, %s32
      %p39 = scmp.eq.s32.totalorder %s27, 1
      %p40 = por %p38, %p39
      %p41 = scmp.ne.s32.totalorder %s32, %s33
      %p42 = scmp.eq.s32.totalorder %s27, 0
      %p43 = por %p41, %p42
      %p44 = scmp.ne.s32.totalorder %s32, %s33
      %p45 = scmp.eq.s32.totalorder %s28, 1
      %p46 = por %p44, %p45
      %p48 = scmp.ne.s32.totalorder %s33, %s47
      %p49 = scmp.eq.s32.totalorder %s28, 0
      %p50 = por %p48, %p49
      %s52 = sadd.s32 %s51, 1
      %p55 = scmp.eq.s32.totalorder %s22, 1
      %p56 = scmp.ne.s32.totalorder %s51, %s53
      %p57 = scmp.eq.s32.totalorder %s22, 0
      %p58 = por %p56, %p57
      %p59 = scmp.ne.s32.totalorder %s51, %s53
      %p60 = scmp.eq.s32.totalorder %s27, 1
      %p61 = por %p59, %p60
      %p62 = scmp.ne.s32.totalorder %s53, %s54
      %p63 = scmp.eq.s32.totalorder %s27, 0
      %p64 = por %p62, %p63
      %p65 = scmp.ne.s32.totalorder %s53, %s54
      %p66 = scmp.eq.s32.totalorder %s28, 1
      %p67 = por %p65, %p66
      %p69 = scmp.ne.s32.totalorder %s54, %s68
      %p70 = scmp.eq.s32.totalorder %s28, 0
      %p71 = por %p69, %p70
      %s72 = ssub.s32 %s22, %s29
      %p73 = scmp.eq.s32.totalorder %s72, 0
      %s75 = sadd.s32 %s74, 1
      %s76 = scalar_select %p73, %s74, %s75
      %p79 = pneg %p73
      %p80 = scmp.eq.s32.totalorder %s22, 1
      %p81 = por %p79, %p80
      %p82 = scmp.ne.s32.totalorder %s74, %s77
      %p83 = scmp.eq.s32.totalorder %s22, 0
      %p84 = por %p82, %p83
      %p85 = scmp.ne.s32.totalorder %s74, %s77
      %p86 = scmp.eq.s32.totalorder %s27, 1
      %p87 = por %p85, %p86
      %p88 = scmp.ne.s32.totalorder %s77, %s78
      %p89 = scmp.eq.s32.totalorder %s27, 0
      %p90 = por %p88, %p89
      %p91 = scmp.ne.s32.totalorder %s77, %s78
      %p92 = scmp.eq.s32.totalorder %s28, 1
      %p93 = por %p91, %p92
      %p95 = scmp.ne.s32.totalorder %s78, %s94
      %p96 = scmp.eq.s32.totalorder %s28, 0
      %p97 = por %p95, %p96
      %s98 = ssub.s32 %s22, %s29
      %p99 = scmp.eq.s32.totalorder %s98, 0
      %s101 = sadd.s32 %s100, 1
      %s102 = scalar_select %p99, %s100, %s101
      %p105 = pneg %p99
      %p106 = scmp.eq.s32.totalorder %s22, 1
      %p107 = por %p105, %p106
      %p108 = scmp.ne.s32.totalorder %s100, %s103
      %p109 = scmp.eq.s32.totalorder %s22, 0
      %p110 = por %p108, %p109
      %p111 = scmp.ne.s32.totalorder %s100, %s103
      %p112 = scmp.eq.s32.totalorder %s27, 1
      %p113 = por %p111, %p112
      %p114 = scmp.ne.s32.totalorder %s103, %s104
      %p115 = scmp.eq.s32.totalorder %s27, 0
      %p116 = por %p114, %p115
      %p117 = scmp.ne.s32.totalorder %s103, %s104
      %p118 = scmp.eq.s32.totalorder %s28, 1
      %p119 = por %p117, %p118
      %p121 = scmp.ne.s32.totalorder %s104, %s120
      %p122 = scmp.eq.s32.totalorder %s28, 0
      %p123 = por %p121, %p122
      %s124 = ssub.s32 %s22, %s29
      %p125 = scmp.eq.s32.totalorder %s124, 0
      %s127 = sadd.s32 %s126, 1
      %s128 = scalar_select %p125, %s126, %s127
      %p131 = pneg %p125
      %p132 = scmp.eq.s32.totalorder %s22, 1
      %p133 = por %p131, %p132
      %p134 = scmp.ne.s32.totalorder %s126, %s129
      %p135 = scmp.eq.s32.totalorder %s22, 0
      %p136 = por %p134, %p135
      %p137 = scmp.ne.s32.totalorder %s126, %s129
      %p138 = scmp.eq.s32.totalorder %s27, 1
      %p139 = por %p137, %p138
      %p140 = scmp.ne.s32.totalorder %s129, %s130
      %p141 = scmp.eq.s32.totalorder %s27, 0
      %p142 = por %p140, %p141
      %p143 = scmp.ne.s32.totalorder %s129, %s130
      %p144 = scmp.eq.s32.totalorder %s28, 1
      %p145 = por %p143, %p144
      %p147 = scmp.ne.s32.totalorder %s130, %s146
      %p148 = scmp.eq.s32.totalorder %s28, 0
      %p149 = por %p147, %p148
      %p150 = scmp.le.s32.totalorder 1, %s22
      %p151 = scmp.lt.s32.totalorder %s22, 3
      %p152 = pnand %p150, %p151
      %p153 = pneg %p152
      // Predicated region
      $region9: #{_lambda_.1} parent=5 // pred_check
        _
      $region10: #{_lambda_.1} parent=5 // pred_check_branch
        %155 = sbr.rel (%p152) target = $region12
      $region11: #{_lambda_.1} parent=5 // pred_region
        %s156 = ssub.s32 %s22, 1
        // Predicated region
        $region13: #{_lambda_.1} parent=11 // pred_check
          %p157 = pneg %p43
        $region14: #{_lambda_.1} parent=11 // pred_check_branch
          %159 = sbr.rel (%p157) target = $region16
        $region15: #{_lambda_.1} parent=11 // pred_region
          %s161 = ssub.s32 48, 48
          %162 = vsyncadd [#allocation5], %s161
          %165 = dma.hbm_to_smem %s0, 48, [#allocation2], [#allocation5]
        $region16: #{_lambda_.1} parent=11 // pred_fallthru
          _
        // Predicated region
        $region17: #{_lambda_.1} parent=11 // pred_check
          %p166 = pneg %p64
        $region18: #{_lambda_.1} parent=11 // pred_check_branch
          %168 = sbr.rel (%p166) target = $region20
        $region19: #{_lambda_.1} parent=11 // pred_region
          %s170 = ssub.s32 16, 16
          %171 = vsyncadd [#allocation6], %s170
          %s173 = sshll.u32 %s1, 4
          %s174 = int_to_ptr.vmem [resolvable:$true] %s173
          %176 = dma.vmem_to_smem %s174, 16, [#allocation7], [#allocation6]
        $region20: #{_lambda_.1} parent=11 // pred_fallthru
          _
      $region12: #{_lambda_.1} parent=5 // pred_fallthru
        _
      %p177 = scmp.lt.s32.totalorder %s22, 2
      // Predicated region
      $region21: #{_lambda_.1} parent=5 // pred_check
        %p178 = pneg %p177
      $region22: #{_lambda_.1} parent=5 // pred_check_branch
        %180 = sbr.rel (%p178) target = $region24
      $region23: #{_lambda_.1} parent=5 // pred_region
        // Predicated region
        $region25: #{_lambda_.1} parent=23 // pred_check
          %p181 = pneg %p84
        $region26: #{_lambda_.1} parent=23 // pred_check_branch
          %183 = sbr.rel (%p181) target = $region28
        $region27: #{_lambda_.1} parent=23 // pred_region
          %s184 = sand.u32 %s74, 1
          %s185 = scalar_lea.sflag [#allocation3], %s184
          %s186 = sand.u32 %s74, 1
          %s187 = smul.addr %s186, 64
          %s188 = scalar_lea.vmem [#allocation8], %s187
          %s190 = ssub.s32 1024, 1024
          %191 = vsyncadd %s185, %s190
          %s192 = smul.addr %s22, 8
          %s193 = smul.addr %s192, 128
          %s194 = scalar_lea.hbm %s2, %s193
          %s195 = sshll.u32 %s188, 4
          %s196 = int_to_ptr.vmem [resolvable:$true] %s195
          %201 = dma.hbm_to_vmem [thread:$0]  %s194, 1024, %s196, %s185, 128, 128, 8
        $region28: #{_lambda_.1} parent=23 // pred_fallthru
          _
      $region24: #{_lambda_.1} parent=5 // pred_fallthru
        _
      %p202 = scmp.le.s32.totalorder 1, %s22
      %p203 = scmp.lt.s32.totalorder %s22, 3
      %p204 = pnand %p202, %p203
      %p205 = pneg %p204
      // Predicated region
      $region29: #{_lambda_.1} parent=5 // pred_check
        _
      $region30: #{_lambda_.1} parent=5 // pred_check_branch
        %207 = sbr.rel (%p204) target = $region32
      $region31: #{_lambda_.1} parent=5 // pred_region
        %s208 = ssub.s32 %s22, 1
        // Predicated region
        $region33: #{_lambda_.1} parent=31 // pred_check
          %p209 = pneg %p43
        $region34: #{_lambda_.1} parent=31 // pred_check_branch
          %211 = sbr.rel (%p209) target = $region36
        $region35: #{_lambda_.1} parent=31 // pred_region
          %212 = dma.done [#allocation5], 48
        $region36: #{_lambda_.1} parent=31 // pred_fallthru
          _
        // Predicated region
        $region37: #{_lambda_.1} parent=31 // pred_check
          %p213 = pneg %p64
        $region38: #{_lambda_.1} parent=31 // pred_check_branch
          %215 = sbr.rel (%p213) target = $region40
        $region39: #{_lambda_.1} parent=31 // pred_region
          %216 = dma.done [#allocation6], 16
        $region40: #{_lambda_.1} parent=31 // pred_fallthru
          _
        %s217 = sand.u32 %s77, 1
        %s218 = scalar_lea.sflag [#allocation3], %s217
        %s219 = sand.u32 %s77, 1
        %s220 = smul.addr %s219, 64
        %s221 = scalar_lea.vmem [#allocation8], %s220
        // Predicated region
        $region41: #{_lambda_.1} parent=31 // pred_check
          %p222 = pneg %p90
        $region42: #{_lambda_.1} parent=31 // pred_check_branch
          %224 = sbr.rel (%p222) target = $region44
        $region43: #{_lambda_.1} parent=31 // pred_region
          %225 = dma.done %s218, 1024
        $region44: #{_lambda_.1} parent=31 // pred_fallthru
          _
        %226 = sfence
        %p227 = pneg %p43
        %p228 = pneg %p40
        %p229 = pneg %p64
        %p230 = pneg %p61
        %s231 = sand.u32 %s77, 1
        %s232 = scalar_lea.sflag [#allocation3], %s231
        %s233 = sand.u32 %s77, 1
        %s234 = smul.addr %s233, 64
        %s235 = scalar_lea.vmem [#allocation8], %s234
        %p236 = pneg %p90
        %p237 = pneg %p87
        %p238 = pneg %p116
        %p239 = pneg %p113
        %s240 = sand.u32 %s103, 1
        %s241 = scalar_lea.sflag [#allocation4], %s240
        %s242 = sand.u32 %s103, 1
        %s243 = smul.addr %s242, 64
        %s244 = scalar_lea.vmem [#allocation9], %s243
        %p245 = pneg %p142
        %p246 = pneg %p139
        %s247 = sand.u32 %s129, 1
        %s248 = scalar_lea.sflag [#allocation11], %s247
        %s249 = sand.u32 %s129, 1
        %s250 = smul.addr %s249, 16
        %s251 = scalar_lea.vmem [#allocation10], %s250
        %v252 = vld [vmem:[%s221] sm:$0xff]
        %v253 = vld [vmem:[%s221 + $0x8] sm:$0xff]
        %s254 = scalar_lea.vmem %s221, 16 [#allocation8]
        %v255 = vld [vmem:[%s254] sm:$0xff]
        %v256 = vld [vmem:[%s254 + $0x8] sm:$0xff]
        %s257 = scalar_lea.vmem %s221, 32 [#allocation8]
        %v258 = vld [vmem:[%s257] sm:$0xff]
        %v259 = vld [vmem:[%s257 + $0x8] sm:$0xff]
        %s260 = scalar_lea.vmem %s221, 48 [#allocation8]
        %v261 = vld [vmem:[%s260] sm:$0xff]
        %v262 = vld [vmem:[%s260 + $0x8] sm:$0xff]
        %265 = vrot.lane.b32.xlu0 %v252, 1
        %v266 = vpop.permute.xlu0 %265
        %267 = vrot.lane.b32.xlu0 %v253, 1
        %v268 = vpop.permute.xlu0 %267
        %vm271 = vcmask 7168
        %v272 = vsel %vm271, 0.0, %v266
        %v273 = vsel %vm271, 0.0, %v268
        %vm274 = vcmask 138240
        %v275 = vsel %vm274, %v272, 0.0
        %v276 = vsel %vm274, %v273, 0.0
        %vm279 = vcmask 1040384
        %v280 = vrot.slane %v275, 7
        %v281 = vrot.slane %v276, 7
        %v282 = vsel %vm279, %v280, %v281
        %v286 = vsel %vm279, 0.0, %v280
        %v287 = vsel %vm279, %v281, 0.0
        %290 = vrot.lane.b32.xlu0 %v255, 1
        %v291 = vpop.permute.xlu0 %290
        %292 = vrot.lane.b32.xlu0 %v256, 1
        %v293 = vpop.permute.xlu0 %292
        %v296 = vsel %vm271, 0.0, %v291
        %v297 = vsel %vm271, 0.0, %v293
        %v298 = vsel %vm274, %v296, 0.0
        %v299 = vsel %vm274, %v297, 0.0
        %v302 = vrot.slane %v298, 7
        %v303 = vrot.slane %v299, 7
        %v304 = vsel %vm279, %v302, %v303
        %v308 = vsel %vm279, 0.0, %v302
        %v309 = vsel %vm279, %v303, 0.0
        %312 = vrot.lane.b32.xlu0 %v258, 1
        %v313 = vpop.permute.xlu0 %312
        %314 = vrot.lane.b32.xlu0 %v259, 1
        %v315 = vpop.permute.xlu0 %314
        %v318 = vsel %vm271, 0.0, %v313
        %v319 = vsel %vm271, 0.0, %v315
        %v320 = vsel %vm274, %v318, 0.0
        %v321 = vsel %vm274, %v319, 0.0
        %v324 = vrot.slane %v320, 7
        %v325 = vrot.slane %v321, 7
        %v326 = vsel %vm279, %v324, %v325
        %v330 = vsel %vm279, 0.0, %v324
        %v331 = vsel %vm279, %v325, 0.0
        %334 = vrot.lane.b32.xlu0 %v261, 1
        %v335 = vpop.permute.xlu0 %334
        %336 = vrot.lane.b32.xlu0 %v262, 1
        %v337 = vpop.permute.xlu0 %336
        %v340 = vsel %vm271, 0.0, %v335
        %v341 = vsel %vm271, 0.0, %v337
        %v342 = vsel %vm274, %v340, 0.0
        %v343 = vsel %vm274, %v341, 0.0
        %v346 = vrot.slane %v342, 7
        %v347 = vrot.slane %v343, 7
        %v348 = vsel %vm279, %v346, %v347
        %v352 = vsel %vm279, 0.0, %v346
        %v353 = vsel %vm279, %v347, 0.0
        %s354 = sld [smem:[#allocation7]]
        %v355 = vstv %s354
        %s356 = sld [smem:[#allocation2]]
        %v357 = vstv %s356
        %v358 = vmul.f32 %v357, %v286
        %v359 = vmul.f32 %v357, %v282
        %v360 = vadd.f32 %v355, %v358
        %v361 = vadd.f32 %v355, %v359
        %s362 = sld [smem:[#allocation2 + $0x1]]
        %v363 = vstv %s362
        %v364 = vmul.f32 %v363, %v286
        %v365 = vmul.f32 %v363, %v282
        %368 = vrot.lane.b32.xlu0 %v364, 127
        %v369 = vpop.permute.xlu0 %368
        %370 = vrot.lane.b32.xlu0 %v365, 127
        %v371 = vpop.permute.xlu0 %370
        %v374 = vadd.f32 %v360, %v369
        %v375 = vadd.f32 %v361, %v371
        %s376 = sld [smem:[#allocation2 + $0x2]]
        %v377 = vstv %s376
        %v378 = vmul.f32 %v377, %v286
        %v379 = vmul.f32 %v377, %v282
        %382 = vrot.lane.b32.xlu0 %v378, 126
        %v383 = vpop.permute.xlu0 %382
        %384 = vrot.lane.b32.xlu0 %v379, 126
        %v385 = vpop.permute.xlu0 %384
        %v388 = vadd.f32 %v374, %v383
        %v389 = vadd.f32 %v375, %v385
        %s390 = sld [smem:[#allocation2 + $0x3]]
        %v391 = vstv %s390
        %v392 = vmul.f32 %v391, %v286
        %v393 = vmul.f32 %v391, %v282
        %v394 = vmul.f32 %v391, %v287
        %vm398 = vcmask 1046528
        %v399 = vrot.slane %v392, 1
        %v400 = vrot.slane %v393, 1
        %v401 = vsel %vm398, %v399, %v400
        %v402 = vrot.slane %v394, 1
        %v403 = vsel %vm398, %v400, %v402
        %v406 = vadd.f32 %v388, %v401
        %v407 = vadd.f32 %v389, %v403
        %s408 = sld [smem:[#allocation2 + $0x4]]
        %v409 = vstv %s408
        %v410 = vmul.f32 %v409, %v286
        %v411 = vmul.f32 %v409, %v282
        %v412 = vmul.f32 %v409, %v287
        %v416 = vrot.slane %v410, 1
        %v417 = vrot.slane %v411, 1
        %v418 = vsel %vm398, %v416, %v417
        %v419 = vrot.slane %v412, 1
        %v420 = vsel %vm398, %v417, %v419
        %421 = vrot.lane.b32.xlu0 %v418, 127
        %v422 = vpop.permute.xlu0 %421
        %423 = vrot.lane.b32.xlu0 %v420, 127
        %v424 = vpop.permute.xlu0 %423
        %v427 = vadd.f32 %v406, %v422
        %v428 = vadd.f32 %v407, %v424
        %s429 = sld [smem:[#allocation2 + $0x5]]
        %v430 = vstv %s429
        %v431 = vmul.f32 %v430, %v286
        %v432 = vmul.f32 %v430, %v282
        %v433 = vmul.f32 %v430, %v287
        %v437 = vrot.slane %v431, 1
        %v438 = vrot.slane %v432, 1
        %v439 = vsel %vm398, %v437, %v438
        %v440 = vrot.slane %v433, 1
        %v441 = vsel %vm398, %v438, %v440
        %442 = vrot.lane.b32.xlu0 %v439, 126
        %v443 = vpop.permute.xlu0 %442
        %444 = vrot.lane.b32.xlu0 %v441, 126
        %v445 = vpop.permute.xlu0 %444
        %v448 = vadd.f32 %v427, %v443
        %v449 = vadd.f32 %v428, %v445
        %s450 = sld [smem:[#allocation2 + $0x6]]
        %v451 = vstv %s450
        %v452 = vmul.f32 %v451, %v286
        %v453 = vmul.f32 %v451, %v282
        %v454 = vmul.f32 %v451, %v287
        %vm458 = vcmask 1045504
        %v459 = vrot.slane %v452, 2
        %v460 = vrot.slane %v453, 2
        %v461 = vsel %vm458, %v459, %v460
        %v462 = vrot.slane %v454, 2
        %v463 = vsel %vm458, %v460, %v462
        %v466 = vadd.f32 %v448, %v461
        %v467 = vadd.f32 %v449, %v463
        %s468 = sld [smem:[#allocation2 + $0x7]]
        %v469 = vstv %s468
        %v470 = vmul.f32 %v469, %v286
        %v471 = vmul.f32 %v469, %v282
        %v472 = vmul.f32 %v469, %v287
        %v476 = vrot.slane %v470, 2
        %v477 = vrot.slane %v471, 2
        %v478 = vsel %vm458, %v476, %v477
        %v479 = vrot.slane %v472, 2
        %v480 = vsel %vm458, %v477, %v479
        %481 = vrot.lane.b32.xlu0 %v478, 127
        %v482 = vpop.permute.xlu0 %481
        %483 = vrot.lane.b32.xlu0 %v480, 127
        %v484 = vpop.permute.xlu0 %483
        %v487 = vadd.f32 %v466, %v482
        %v488 = vadd.f32 %v467, %v484
        %s489 = sld [smem:[#allocation2 + $0x8]]
        %v490 = vstv %s489
        %v491 = vmul.f32 %v490, %v286
        %v492 = vmul.f32 %v490, %v282
        %v493 = vmul.f32 %v490, %v287
        %v497 = vrot.slane %v491, 2
        %v498 = vrot.slane %v492, 2
        %v499 = vsel %vm458, %v497, %v498
        %v500 = vrot.slane %v493, 2
        %v501 = vsel %vm458, %v498, %v500
        %502 = vrot.lane.b32.xlu0 %v499, 126
        %v503 = vpop.permute.xlu0 %502
        %504 = vrot.lane.b32.xlu0 %v501, 126
        %v505 = vpop.permute.xlu0 %504
        %v508 = vadd.f32 %v487, %v503
        %v509 = vadd.f32 %v488, %v505
        %s510 = sld [smem:[#allocation2 + $0x9]]
        %v511 = vstv %s510
        %v512 = vmul.f32 %v511, %v308
        %v513 = vmul.f32 %v511, %v304
        %v514 = vadd.f32 %v508, %v512
        %v515 = vadd.f32 %v509, %v513
        %s516 = sld [smem:[#allocation2 + $0xa]]
        %v517 = vstv %s516
        %v518 = vmul.f32 %v517, %v308
        %v519 = vmul.f32 %v517, %v304
        %522 = vrot.lane.b32.xlu0 %v518, 127
        %v523 = vpop.permute.xlu0 %522
        %524 = vrot.lane.b32.xlu0 %v519, 127
        %v525 = vpop.permute.xlu0 %524
        %v528 = vadd.f32 %v514, %v523
        %v529 = vadd.f32 %v515, %v525
        %s530 = sld [smem:[#allocation2 + $0xb]]
        %v531 = vstv %s530
        %v532 = vmul.f32 %v531, %v308
        %v533 = vmul.f32 %v531, %v304
        %536 = vrot.lane.b32.xlu0 %v532, 126
        %v537 = vpop.permute.xlu0 %536
        %538 = vrot.lane.b32.xlu0 %v533, 126
        %v539 = vpop.permute.xlu0 %538
        %v542 = vadd.f32 %v528, %v537
        %v543 = vadd.f32 %v529, %v539
        %s544 = sld [smem:[#allocation2 + $0xc]]
        %v545 = vstv %s544
        %v546 = vmul.f32 %v545, %v308
        %v547 = vmul.f32 %v545, %v304
        %v548 = vmul.f32 %v545, %v309
        %v552 = vrot.slane %v546, 1
        %v553 = vrot.slane %v547, 1
        %v554 = vsel %vm398, %v552, %v553
        %v555 = vrot.slane %v548, 1
        %v556 = vsel %vm398, %v553, %v555
        %v559 = vadd.f32 %v542, %v554
        %v560 = vadd.f32 %v543, %v556
        %s561 = sld [smem:[#allocation2 + $0xd]]
        %v562 = vstv %s561
        %v563 = vmul.f32 %v562, %v308
        %v564 = vmul.f32 %v562, %v304
        %v565 = vmul.f32 %v562, %v309
        %v569 = vrot.slane %v563, 1
        %v570 = vrot.slane %v564, 1
        %v571 = vsel %vm398, %v569, %v570
        %v572 = vrot.slane %v565, 1
        %v573 = vsel %vm398, %v570, %v572
        %574 = vrot.lane.b32.xlu0 %v571, 127
        %v575 = vpop.permute.xlu0 %574
        %576 = vrot.lane.b32.xlu0 %v573, 127
        %v577 = vpop.permute.xlu0 %576
        %v580 = vadd.f32 %v559, %v575
        %v581 = vadd.f32 %v560, %v577
        %s582 = sld [smem:[#allocation2 + $0xe]]
        %v583 = vstv %s582
        %v584 = vmul.f32 %v583, %v308
        %v585 = vmul.f32 %v583, %v304
        %v586 = vmul.f32 %v583, %v309
        %v590 = vrot.slane %v584, 1
        %v591 = vrot.slane %v585, 1
        %v592 = vsel %vm398, %v590, %v591
        %v593 = vrot.slane %v586, 1
        %v594 = vsel %vm398, %v591, %v593
        %595 = vrot.lane.b32.xlu0 %v592, 126
        %v596 = vpop.permute.xlu0 %595
        %597 = vrot.lane.b32.xlu0 %v594, 126
        %v598 = vpop.permute.xlu0 %597
        %v601 = vadd.f32 %v580, %v596
        %v602 = vadd.f32 %v581, %v598
        %s603 = sld [smem:[#allocation2 + $0xf]]
        %v604 = vstv %s603
        %v605 = vmul.f32 %v604, %v308
        %v606 = vmul.f32 %v604, %v304
        %v607 = vmul.f32 %v604, %v309
        %v611 = vrot.slane %v605, 2
        %v612 = vrot.slane %v606, 2
        %v613 = vsel %vm458, %v611, %v612
        %v614 = vrot.slane %v607, 2
        %v615 = vsel %vm458, %v612, %v614
        %v618 = vadd.f32 %v601, %v613
        %v619 = vadd.f32 %v602, %v615
        %s620 = sld [smem:[#allocation2 + $0x10]]
        %v621 = vstv %s620
        %v622 = vmul.f32 %v621, %v308
        %v623 = vmul.f32 %v621, %v304
        %v624 = vmul.f32 %v621, %v309
        %v628 = vrot.slane %v622, 2
        %v629 = vrot.slane %v623, 2
        %v630 = vsel %vm458, %v628, %v629
        %v631 = vrot.slane %v624, 2
        %v632 = vsel %vm458, %v629, %v631
        %633 = vrot.lane.b32.xlu0 %v630, 127
        %v634 = vpop.permute.xlu0 %633
        %635 = vrot.lane.b32.xlu0 %v632, 127
        %v636 = vpop.permute.xlu0 %635
        %v639 = vadd.f32 %v618, %v634
        %v640 = vadd.f32 %v619, %v636
        %s641 = sld [smem:[#allocation2 + $0x11]]
        %v642 = vstv %s641
        %v643 = vmul.f32 %v642, %v308
        %v644 = vmul.f32 %v642, %v304
        %v645 = vmul.f32 %v642, %v309
        %v649 = vrot.slane %v643, 2
        %v650 = vrot.slane %v644, 2
        %v651 = vsel %vm458, %v649, %v650
        %v652 = vrot.slane %v645, 2
        %v653 = vsel %vm458, %v650, %v652
        %654 = vrot.lane.b32.xlu0 %v651, 126
        %v655 = vpop.permute.xlu0 %654
        %656 = vrot.lane.b32.xlu0 %v653, 126
        %v657 = vpop.permute.xlu0 %656
        %v660 = vadd.f32 %v639, %v655
        %v661 = vadd.f32 %v640, %v657
        %s662 = sld [smem:[#allocation2 + $0x12]]
        %v663 = vstv %s662
        %v664 = vmul.f32 %v663, %v330
        %v665 = vmul.f32 %v663, %v326
        %v666 = vadd.f32 %v660, %v664
        %v667 = vadd.f32 %v661, %v665
        %s668 = sld [smem:[#allocation2 + $0x13]]
        %v669 = vstv %s668
        %v670 = vmul.f32 %v669, %v330
        %v671 = vmul.f32 %v669, %v326
        %674 = vrot.lane.b32.xlu0 %v670, 127
        %v675 = vpop.permute.xlu0 %674
        %676 = vrot.lane.b32.xlu0 %v671, 127
        %v677 = vpop.permute.xlu0 %676
        %v680 = vadd.f32 %v666, %v675
        %v681 = vadd.f32 %v667, %v677
        %s682 = sld [smem:[#allocation2 + $0x14]]
        %v683 = vstv %s682
        %v684 = vmul.f32 %v683, %v330
        %v685 = vmul.f32 %v683, %v326
        %688 = vrot.lane.b32.xlu0 %v684, 126
        %v689 = vpop.permute.xlu0 %688
        %690 = vrot.lane.b32.xlu0 %v685, 126
        %v691 = vpop.permute.xlu0 %690
        %v694 = vadd.f32 %v680, %v689
        %v695 = vadd.f32 %v681, %v691
        %s696 = sld [smem:[#allocation2 + $0x15]]
        %v697 = vstv %s696
        %v698 = vmul.f32 %v697, %v330
        %v699 = vmul.f32 %v697, %v326
        %v700 = vmul.f32 %v697, %v331
        %v704 = vrot.slane %v698, 1
        %v705 = vrot.slane %v699, 1
        %v706 = vsel %vm398, %v704, %v705
        %v707 = vrot.slane %v700, 1
        %v708 = vsel %vm398, %v705, %v707
        %v711 = vadd.f32 %v694, %v706
        %v712 = vadd.f32 %v695, %v708
        %s713 = sld [smem:[#allocation2 + $0x16]]
        %v714 = vstv %s713
        %v715 = vmul.f32 %v714, %v330
        %v716 = vmul.f32 %v714, %v326
        %v717 = vmul.f32 %v714, %v331
        %v721 = vrot.slane %v715, 1
        %v722 = vrot.slane %v716, 1
        %v723 = vsel %vm398, %v721, %v722
        %v724 = vrot.slane %v717, 1
        %v725 = vsel %vm398, %v722, %v724
        %726 = vrot.lane.b32.xlu0 %v723, 127
        %v727 = vpop.permute.xlu0 %726
        %728 = vrot.lane.b32.xlu0 %v725, 127
        %v729 = vpop.permute.xlu0 %728
        %v732 = vadd.f32 %v711, %v727
        %v733 = vadd.f32 %v712, %v729
        %s734 = sld [smem:[#allocation2 + $0x17]]
        %v735 = vstv %s734
        %v736 = vmul.f32 %v735, %v330
        %v737 = vmul.f32 %v735, %v326
        %v738 = vmul.f32 %v735, %v331
        %v742 = vrot.slane %v736, 1
        %v743 = vrot.slane %v737, 1
        %v744 = vsel %vm398, %v742, %v743
        %v745 = vrot.slane %v738, 1
        %v746 = vsel %vm398, %v743, %v745
        %747 = vrot.lane.b32.xlu0 %v744, 126
        %v748 = vpop.permute.xlu0 %747
        %749 = vrot.lane.b32.xlu0 %v746, 126
        %v750 = vpop.permute.xlu0 %749
        %v753 = vadd.f32 %v732, %v748
        %v754 = vadd.f32 %v733, %v750
        %s755 = sld [smem:[#allocation2 + $0x18]]
        %v756 = vstv %s755
        %v757 = vmul.f32 %v756, %v330
        %v758 = vmul.f32 %v756, %v326
        %v759 = vmul.f32 %v756, %v331
        %v763 = vrot.slane %v757, 2
        %v764 = vrot.slane %v758, 2
        %v765 = vsel %vm458, %v763, %v764
        %v766 = vrot.slane %v759, 2
        %v767 = vsel %vm458, %v764, %v766
        %v770 = vadd.f32 %v753, %v765
        %v771 = vadd.f32 %v754, %v767
        %s772 = sld [smem:[#allocation2 + $0x19]]
        %v773 = vstv %s772
        %v774 = vmul.f32 %v773, %v330
        %v775 = vmul.f32 %v773, %v326
        %v776 = vmul.f32 %v773, %v331
        %v780 = vrot.slane %v774, 2
        %v781 = vrot.slane %v775, 2
        %v782 = vsel %vm458, %v780, %v781
        %v783 = vrot.slane %v776, 2
        %v784 = vsel %vm458, %v781, %v783
        %785 = vrot.lane.b32.xlu0 %v782, 127
        %v786 = vpop.permute.xlu0 %785
        %787 = vrot.lane.b32.xlu0 %v784, 127
        %v788 = vpop.permute.xlu0 %787
        %v791 = vadd.f32 %v770, %v786
        %v792 = vadd.f32 %v771, %v788
        %s793 = sld [smem:[#allocation2 + $0x1a]]
        %v794 = vstv %s793
        %v795 = vmul.f32 %v794, %v330
        %v796 = vmul.f32 %v794, %v326
        %v797 = vmul.f32 %v794, %v331
        %v801 = vrot.slane %v795, 2
        %v802 = vrot.slane %v796, 2
        %v803 = vsel %vm458, %v801, %v802
        %v804 = vrot.slane %v797, 2
        %v805 = vsel %vm458, %v802, %v804
        %806 = vrot.lane.b32.xlu0 %v803, 126
        %v807 = vpop.permute.xlu0 %806
        %808 = vrot.lane.b32.xlu0 %v805, 126
        %v809 = vpop.permute.xlu0 %808
        %v812 = vadd.f32 %v791, %v807
        %v813 = vadd.f32 %v792, %v809
        %s814 = sld [smem:[#allocation2 + $0x1b]]
        %v815 = vstv %s814
        %v816 = vmul.f32 %v815, %v352
        %v817 = vmul.f32 %v815, %v348
        %v818 = vadd.f32 %v812, %v816
        %v819 = vadd.f32 %v813, %v817
        %s820 = sld [smem:[#allocation2 + $0x1c]]
        %v821 = vstv %s820
        %v822 = vmul.f32 %v821, %v352
        %v823 = vmul.f32 %v821, %v348
        %826 = vrot.lane.b32.xlu0 %v822, 127
        %v827 = vpop.permute.xlu0 %826
        %828 = vrot.lane.b32.xlu0 %v823, 127
        %v829 = vpop.permute.xlu0 %828
        %v832 = vadd.f32 %v818, %v827
        %v833 = vadd.f32 %v819, %v829
        %s834 = sld [smem:[#allocation2 + $0x1d]]
        %v835 = vstv %s834
        %v836 = vmul.f32 %v835, %v352
        %v837 = vmul.f32 %v835, %v348
        %840 = vrot.lane.b32.xlu0 %v836, 126
        %v841 = vpop.permute.xlu0 %840
        %842 = vrot.lane.b32.xlu0 %v837, 126
        %v843 = vpop.permute.xlu0 %842
        %v846 = vadd.f32 %v832, %v841
        %v847 = vadd.f32 %v833, %v843
        %s848 = sld [smem:[#allocation2 + $0x1e]]
        %v849 = vstv %s848
        %v850 = vmul.f32 %v849, %v352
        %v851 = vmul.f32 %v849, %v348
        %v852 = vmul.f32 %v849, %v353
        %v856 = vrot.slane %v850, 1
        %v857 = vrot.slane %v851, 1
        %v858 = vsel %vm398, %v856, %v857
        %v859 = vrot.slane %v852, 1
        %v860 = vsel %vm398, %v857, %v859
        %v863 = vadd.f32 %v846, %v858
        %v864 = vadd.f32 %v847, %v860
        %s865 = sld [smem:[#allocation2 + $0x1f]]
        %v866 = vstv %s865
        %v867 = vmul.f32 %v866, %v352
        %v868 = vmul.f32 %v866, %v348
        %v869 = vmul.f32 %v866, %v353
        %v873 = vrot.slane %v867, 1
        %v874 = vrot.slane %v868, 1
        %v875 = vsel %vm398, %v873, %v874
        %v876 = vrot.slane %v869, 1
        %v877 = vsel %vm398, %v874, %v876
        %878 = vrot.lane.b32.xlu0 %v875, 127
        %v879 = vpop.permute.xlu0 %878
        %880 = vrot.lane.b32.xlu0 %v877, 127
        %v881 = vpop.permute.xlu0 %880
        %v884 = vadd.f32 %v863, %v879
        %v885 = vadd.f32 %v864, %v881
        %s886 = sld [smem:[#allocation2 + $0x20]]
        %v887 = vstv %s886
        %v888 = vmul.f32 %v887, %v352
        %v889 = vmul.f32 %v887, %v348
        %v890 = vmul.f32 %v887, %v353
        %v894 = vrot.slane %v888, 1
        %v895 = vrot.slane %v889, 1
        %v896 = vsel %vm398, %v894, %v895
        %v897 = vrot.slane %v890, 1
        %v898 = vsel %vm398, %v895, %v897
        %899 = vrot.lane.b32.xlu0 %v896, 126
        %v900 = vpop.permute.xlu0 %899
        %901 = vrot.lane.b32.xlu0 %v898, 126
        %v902 = vpop.permute.xlu0 %901
        %v905 = vadd.f32 %v884, %v900
        %v906 = vadd.f32 %v885, %v902
        %s907 = sld [smem:[#allocation2 + $0x21]]
        %v908 = vstv %s907
        %v909 = vmul.f32 %v908, %v352
        %v910 = vmul.f32 %v908, %v348
        %v911 = vmul.f32 %v908, %v353
        %v915 = vrot.slane %v909, 2
        %v916 = vrot.slane %v910, 2
        %v917 = vsel %vm458, %v915, %v916
        %v918 = vrot.slane %v911, 2
        %v919 = vsel %vm458, %v916, %v918
        %v922 = vadd.f32 %v905, %v917
        %v923 = vadd.f32 %v906, %v919
        %s924 = sld [smem:[#allocation2 + $0x22]]
        %v925 = vstv %s924
        %v926 = vmul.f32 %v925, %v352
        %v927 = vmul.f32 %v925, %v348
        %v928 = vmul.f32 %v925, %v353
        %v932 = vrot.slane %v926, 2
        %v933 = vrot.slane %v927, 2
        %v934 = vsel %vm458, %v932, %v933
        %v935 = vrot.slane %v928, 2
        %v936 = vsel %vm458, %v933, %v935
        %937 = vrot.lane.b32.xlu0 %v934, 127
        %v938 = vpop.permute.xlu0 %937
        %939 = vrot.lane.b32.xlu0 %v936, 127
        %v940 = vpop.permute.xlu0 %939
        %v943 = vadd.f32 %v922, %v938
        %v944 = vadd.f32 %v923, %v940
        %s945 = sld [smem:[#allocation2 + $0x23]]
        %v946 = vstv %s945
        %v947 = vmul.f32 %v946, %v352
        %v948 = vmul.f32 %v946, %v348
        %v949 = vmul.f32 %v946, %v353
        %v953 = vrot.slane %v947, 2
        %v954 = vrot.slane %v948, 2
        %v955 = vsel %vm458, %v953, %v954
        %v956 = vrot.slane %v949, 2
        %v957 = vsel %vm458, %v954, %v956
        %958 = vrot.lane.b32.xlu0 %v955, 126
        %v959 = vpop.permute.xlu0 %958
        %960 = vrot.lane.b32.xlu0 %v957, 126
        %v961 = vpop.permute.xlu0 %960
        %v964 = vadd.f32 %v943, %v959
        %v965 = vadd.f32 %v944, %v961
        %s966 = sld [smem:[#allocation7 + $0x1]]
        %v967 = vstv %s966
        %s968 = sld [smem:[#allocation2 + $0x24]]
        %v969 = vstv %s968
        %v970 = vmul.f32 %v969, %v286
        %v971 = vmul.f32 %v969, %v282
        %v972 = vadd.f32 %v967, %v970
        %v973 = vadd.f32 %v967, %v971
        %s974 = sld [smem:[#allocation2 + $0x25]]
        %v975 = vstv %s974
        %v976 = vmul.f32 %v975, %v286
        %v977 = vmul.f32 %v975, %v282
        %980 = vrot.lane.b32.xlu0 %v976, 127
        %v981 = vpop.permute.xlu0 %980
        %982 = vrot.lane.b32.xlu0 %v977, 127
        %v983 = vpop.permute.xlu0 %982
        %v986 = vadd.f32 %v972, %v981
        %v987 = vadd.f32 %v973, %v983
        %s988 = sld [smem:[#allocation2 + $0x26]]
        %v989 = vstv %s988
        %v990 = vmul.f32 %v989, %v286
        %v991 = vmul.f32 %v989, %v282
        %994 = vrot.lane.b32.xlu0 %v990, 126
        %v995 = vpop.permute.xlu0 %994
        %996 = vrot.lane.b32.xlu0 %v991, 126
        %v997 = vpop.permute.xlu0 %996
        %v1000 = vadd.f32 %v986, %v995
        %v1001 = vadd.f32 %v987, %v997
        %s1002 = sld [smem:[#allocation2 + $0x27]]
        %v1003 = vstv %s1002
        %v1004 = vmul.f32 %v1003, %v286
        %v1005 = vmul.f32 %v1003, %v282
        %v1006 = vmul.f32 %v1003, %v287
        %v1010 = vrot.slane %v1004, 1
        %v1011 = vrot.slane %v1005, 1
        %v1012 = vsel %vm398, %v1010, %v1011
        %v1013 = vrot.slane %v1006, 1
        %v1014 = vsel %vm398, %v1011, %v1013
        %v1017 = vadd.f32 %v1000, %v1012
        %v1018 = vadd.f32 %v1001, %v1014
        %s1019 = sld [smem:[#allocation2 + $0x28]]
        %v1020 = vstv %s1019
        %v1021 = vmul.f32 %v1020, %v286
        %v1022 = vmul.f32 %v1020, %v282
        %v1023 = vmul.f32 %v1020, %v287
        %v1027 = vrot.slane %v1021, 1
        %v1028 = vrot.slane %v1022, 1
        %v1029 = vsel %vm398, %v1027, %v1028
        %v1030 = vrot.slane %v1023, 1
        %v1031 = vsel %vm398, %v1028, %v1030
        %1032 = vrot.lane.b32.xlu0 %v1029, 127
        %v1033 = vpop.permute.xlu0 %1032
        %1034 = vrot.lane.b32.xlu0 %v1031, 127
        %v1035 = vpop.permute.xlu0 %1034
        %v1038 = vadd.f32 %v1017, %v1033
        %v1039 = vadd.f32 %v1018, %v1035
        %s1040 = sld [smem:[#allocation2 + $0x29]]
        %v1041 = vstv %s1040
        %v1042 = vmul.f32 %v1041, %v286
        %v1043 = vmul.f32 %v1041, %v282
        %v1044 = vmul.f32 %v1041, %v287
        %v1048 = vrot.slane %v1042, 1
        %v1049 = vrot.slane %v1043, 1
        %v1050 = vsel %vm398, %v1048, %v1049
        %v1051 = vrot.slane %v1044, 1
        %v1052 = vsel %vm398, %v1049, %v1051
        %1053 = vrot.lane.b32.xlu0 %v1050, 126
        %v1054 = vpop.permute.xlu0 %1053
        %1055 = vrot.lane.b32.xlu0 %v1052, 126
        %v1056 = vpop.permute.xlu0 %1055
        %v1059 = vadd.f32 %v1038, %v1054
        %v1060 = vadd.f32 %v1039, %v1056
        %s1061 = sld [smem:[#allocation2 + $0x2a]]
        %v1062 = vstv %s1061
        %v1063 = vmul.f32 %v1062, %v286
        %v1064 = vmul.f32 %v1062, %v282
        %v1065 = vmul.f32 %v1062, %v287
        %v1069 = vrot.slane %v1063, 2
        %v1070 = vrot.slane %v1064, 2
        %v1071 = vsel %vm458, %v1069, %v1070
        %v1072 = vrot.slane %v1065, 2
        %v1073 = vsel %vm458, %v1070, %v1072
        %v1076 = vadd.f32 %v1059, %v1071
        %v1077 = vadd.f32 %v1060, %v1073
        %s1078 = sld [smem:[#allocation2 + $0x2b]]
        %v1079 = vstv %s1078
        %v1080 = vmul.f32 %v1079, %v286
        %v1081 = vmul.f32 %v1079, %v282
        %v1082 = vmul.f32 %v1079, %v287
        %v1086 = vrot.slane %v1080, 2
        %v1087 = vrot.slane %v1081, 2
        %v1088 = vsel %vm458, %v1086, %v1087
        %v1089 = vrot.slane %v1082, 2
        %v1090 = vsel %vm458, %v1087, %v1089
        %1091 = vrot.lane.b32.xlu0 %v1088, 127
        %v1092 = vpop.permute.xlu0 %1091
        %1093 = vrot.lane.b32.xlu0 %v1090, 127
        %v1094 = vpop.permute.xlu0 %1093
        %v1097 = vadd.f32 %v1076, %v1092
        %v1098 = vadd.f32 %v1077, %v1094
        %s1099 = sld [smem:[#allocation2 + $0x2c]]
        %v1100 = vstv %s1099
        %v1101 = vmul.f32 %v1100, %v286
        %v1102 = vmul.f32 %v1100, %v282
        %v1103 = vmul.f32 %v1100, %v287
        %v1107 = vrot.slane %v1101, 2
        %v1108 = vrot.slane %v1102, 2
        %v1109 = vsel %vm458, %v1107, %v1108
        %v1110 = vrot.slane %v1103, 2
        %v1111 = vsel %vm458, %v1108, %v1110
        %1112 = vrot.lane.b32.xlu0 %v1109, 126
        %v1113 = vpop.permute.xlu0 %1112
        %1114 = vrot.lane.b32.xlu0 %v1111, 126
        %v1115 = vpop.permute.xlu0 %1114
        %v1118 = vadd.f32 %v1097, %v1113
        %v1119 = vadd.f32 %v1098, %v1115
        %s1120 = sld [smem:[#allocation2 + $0x2d]]
        %v1121 = vstv %s1120
        %v1122 = vmul.f32 %v1121, %v308
        %v1123 = vmul.f32 %v1121, %v304
        %v1124 = vadd.f32 %v1118, %v1122
        %v1125 = vadd.f32 %v1119, %v1123
        %s1126 = sld [smem:[#allocation2 + $0x2e]]
        %v1127 = vstv %s1126
        %v1128 = vmul.f32 %v1127, %v308
        %v1129 = vmul.f32 %v1127, %v304
        %1132 = vrot.lane.b32.xlu0 %v1128, 127
        %v1133 = vpop.permute.xlu0 %1132
        %1134 = vrot.lane.b32.xlu0 %v1129, 127
        %v1135 = vpop.permute.xlu0 %1134
        %v1138 = vadd.f32 %v1124, %v1133
        %v1139 = vadd.f32 %v1125, %v1135
        %s1140 = sld [smem:[#allocation2 + $0x2f]]
        %v1141 = vstv %s1140
        %v1142 = vmul.f32 %v1141, %v308
        %v1143 = vmul.f32 %v1141, %v304
        %1146 = vrot.lane.b32.xlu0 %v1142, 126
        %v1147 = vpop.permute.xlu0 %1146
        %1148 = vrot.lane.b32.xlu0 %v1143, 126
        %v1149 = vpop.permute.xlu0 %1148
        %v1152 = vadd.f32 %v1138, %v1147
        %v1153 = vadd.f32 %v1139, %v1149
        %s1154 = sld [smem:[#allocation2 + $0x30]]
        %v1155 = vstv %s1154
        %v1156 = vmul.f32 %v1155, %v308
        %v1157 = vmul.f32 %v1155, %v304
        %v1158 = vmul.f32 %v1155, %v309
        %v1162 = vrot.slane %v1156, 1
        %v1163 = vrot.slane %v1157, 1
        %v1164 = vsel %vm398, %v1162, %v1163
        %v1165 = vrot.slane %v1158, 1
        %v1166 = vsel %vm398, %v1163, %v1165
        %v1169 = vadd.f32 %v1152, %v1164
        %v1170 = vadd.f32 %v1153, %v1166
        %s1171 = sld [smem:[#allocation2 + $0x31]]
        %v1172 = vstv %s1171
        %v1173 = vmul.f32 %v1172, %v308
        %v1174 = vmul.f32 %v1172, %v304
        %v1175 = vmul.f32 %v1172, %v309
        %v1179 = vrot.slane %v1173, 1
        %v1180 = vrot.slane %v1174, 1
        %v1181 = vsel %vm398, %v1179, %v1180
        %v1182 = vrot.slane %v1175, 1
        %v1183 = vsel %vm398, %v1180, %v1182
        %1184 = vrot.lane.b32.xlu0 %v1181, 127
        %v1185 = vpop.permute.xlu0 %1184
        %1186 = vrot.lane.b32.xlu0 %v1183, 127
        %v1187 = vpop.permute.xlu0 %1186
        %v1190 = vadd.f32 %v1169, %v1185
        %v1191 = vadd.f32 %v1170, %v1187
        %s1192 = sld [smem:[#allocation2 + $0x32]]
        %v1193 = vstv %s1192
        %v1194 = vmul.f32 %v1193, %v308
        %v1195 = vmul.f32 %v1193, %v304
        %v1196 = vmul.f32 %v1193, %v309
        %v1200 = vrot.slane %v1194, 1
        %v1201 = vrot.slane %v1195, 1
        %v1202 = vsel %vm398, %v1200, %v1201
        %v1203 = vrot.slane %v1196, 1
        %v1204 = vsel %vm398, %v1201, %v1203
        %1205 = vrot.lane.b32.xlu0 %v1202, 126
        %v1206 = vpop.permute.xlu0 %1205
        %1207 = vrot.lane.b32.xlu0 %v1204, 126
        %v1208 = vpop.permute.xlu0 %1207
        %v1211 = vadd.f32 %v1190, %v1206
        %v1212 = vadd.f32 %v1191, %v1208
        %s1213 = sld [smem:[#allocation2 + $0x33]]
        %v1214 = vstv %s1213
        %v1215 = vmul.f32 %v1214, %v308
        %v1216 = vmul.f32 %v1214, %v304
        %v1217 = vmul.f32 %v1214, %v309
        %v1221 = vrot.slane %v1215, 2
        %v1222 = vrot.slane %v1216, 2
        %v1223 = vsel %vm458, %v1221, %v1222
        %v1224 = vrot.slane %v1217, 2
        %v1225 = vsel %vm458, %v1222, %v1224
        %v1228 = vadd.f32 %v1211, %v1223
        %v1229 = vadd.f32 %v1212, %v1225
        %s1230 = sld [smem:[#allocation2 + $0x34]]
        %v1231 = vstv %s1230
        %v1232 = vmul.f32 %v1231, %v308
        %v1233 = vmul.f32 %v1231, %v304
        %v1234 = vmul.f32 %v1231, %v309
        %v1238 = vrot.slane %v1232, 2
        %v1239 = vrot.slane %v1233, 2
        %v1240 = vsel %vm458, %v1238, %v1239
        %v1241 = vrot.slane %v1234, 2
        %v1242 = vsel %vm458, %v1239, %v1241
        %1243 = vrot.lane.b32.xlu0 %v1240, 127
        %v1244 = vpop.permute.xlu0 %1243
        %1245 = vrot.lane.b32.xlu0 %v1242, 127
        %v1246 = vpop.permute.xlu0 %1245
        %v1249 = vadd.f32 %v1228, %v1244
        %v1250 = vadd.f32 %v1229, %v1246
        %s1251 = sld [smem:[#allocation2 + $0x35]]
        %v1252 = vstv %s1251
        %v1253 = vmul.f32 %v1252, %v308
        %v1254 = vmul.f32 %v1252, %v304
        %v1255 = vmul.f32 %v1252, %v309
        %v1259 = vrot.slane %v1253, 2
        %v1260 = vrot.slane %v1254, 2
        %v1261 = vsel %vm458, %v1259, %v1260
        %v1262 = vrot.slane %v1255, 2
        %v1263 = vsel %vm458, %v1260, %v1262
        %1264 = vrot.lane.b32.xlu0 %v1261, 126
        %v1265 = vpop.permute.xlu0 %1264
        %1266 = vrot.lane.b32.xlu0 %v1263, 126
        %v1267 = vpop.permute.xlu0 %1266
        %v1270 = vadd.f32 %v1249, %v1265
        %v1271 = vadd.f32 %v1250, %v1267
        %s1272 = sld [smem:[#allocation2 + $0x36]]
        %v1273 = vstv %s1272
        %v1274 = vmul.f32 %v1273, %v330
        %v1275 = vmul.f32 %v1273, %v326
        %v1276 = vadd.f32 %v1270, %v1274
        %v1277 = vadd.f32 %v1271, %v1275
        %s1278 = sld [smem:[#allocation2 + $0x37]]
        %v1279 = vstv %s1278
        %v1280 = vmul.f32 %v1279, %v330
        %v1281 = vmul.f32 %v1279, %v326
        %1284 = vrot.lane.b32.xlu0 %v1280, 127
        %v1285 = vpop.permute.xlu0 %1284
        %1286 = vrot.lane.b32.xlu0 %v1281, 127
        %v1287 = vpop.permute.xlu0 %1286
        %v1290 = vadd.f32 %v1276, %v1285
        %v1291 = vadd.f32 %v1277, %v1287
        %s1292 = sld [smem:[#allocation2 + $0x38]]
        %v1293 = vstv %s1292
        %v1294 = vmul.f32 %v1293, %v330
        %v1295 = vmul.f32 %v1293, %v326
        %1298 = vrot.lane.b32.xlu0 %v1294, 126
        %v1299 = vpop.permute.xlu0 %1298
        %1300 = vrot.lane.b32.xlu0 %v1295, 126
        %v1301 = vpop.permute.xlu0 %1300
        %v1304 = vadd.f32 %v1290, %v1299
        %v1305 = vadd.f32 %v1291, %v1301
        %s1306 = sld [smem:[#allocation2 + $0x39]]
        %v1307 = vstv %s1306
        %v1308 = vmul.f32 %v1307, %v330
        %v1309 = vmul.f32 %v1307, %v326
        %v1310 = vmul.f32 %v1307, %v331
        %v1314 = vrot.slane %v1308, 1
        %v1315 = vrot.slane %v1309, 1
        %v1316 = vsel %vm398, %v1314, %v1315
        %v1317 = vrot.slane %v1310, 1
        %v1318 = vsel %vm398, %v1315, %v1317
        %v1321 = vadd.f32 %v1304, %v1316
        %v1322 = vadd.f32 %v1305, %v1318
        %s1323 = sld [smem:[#allocation2 + $0x3a]]
        %v1324 = vstv %s1323
        %v1325 = vmul.f32 %v1324, %v330
        %v1326 = vmul.f32 %v1324, %v326
        %v1327 = vmul.f32 %v1324, %v331
        %v1331 = vrot.slane %v1325, 1
        %v1332 = vrot.slane %v1326, 1
        %v1333 = vsel %vm398, %v1331, %v1332
        %v1334 = vrot.slane %v1327, 1
        %v1335 = vsel %vm398, %v1332, %v1334
        %1336 = vrot.lane.b32.xlu0 %v1333, 127
        %v1337 = vpop.permute.xlu0 %1336
        %1338 = vrot.lane.b32.xlu0 %v1335, 127
        %v1339 = vpop.permute.xlu0 %1338
        %v1342 = vadd.f32 %v1321, %v1337
        %v1343 = vadd.f32 %v1322, %v1339
        %s1344 = sld [smem:[#allocation2 + $0x3b]]
        %v1345 = vstv %s1344
        %v1346 = vmul.f32 %v1345, %v330
        %v1347 = vmul.f32 %v1345, %v326
        %v1348 = vmul.f32 %v1345, %v331
        %v1352 = vrot.slane %v1346, 1
        %v1353 = vrot.slane %v1347, 1
        %v1354 = vsel %vm398, %v1352, %v1353
        %v1355 = vrot.slane %v1348, 1
        %v1356 = vsel %vm398, %v1353, %v1355
        %1357 = vrot.lane.b32.xlu0 %v1354, 126
        %v1358 = vpop.permute.xlu0 %1357
        %1359 = vrot.lane.b32.xlu0 %v1356, 126
        %v1360 = vpop.permute.xlu0 %1359
        %v1363 = vadd.f32 %v1342, %v1358
        %v1364 = vadd.f32 %v1343, %v1360
        %s1365 = sld [smem:[#allocation2 + $0x3c]]
        %v1366 = vstv %s1365
        %v1367 = vmul.f32 %v1366, %v330
        %v1368 = vmul.f32 %v1366, %v326
        %v1369 = vmul.f32 %v1366, %v331
        %v1373 = vrot.slane %v1367, 2
        %v1374 = vrot.slane %v1368, 2
        %v1375 = vsel %vm458, %v1373, %v1374
        %v1376 = vrot.slane %v1369, 2
        %v1377 = vsel %vm458, %v1374, %v1376
        %v1380 = vadd.f32 %v1363, %v1375
        %v1381 = vadd.f32 %v1364, %v1377
        %s1382 = sld [smem:[#allocation2 + $0x3d]]
        %v1383 = vstv %s1382
        %v1384 = vmul.f32 %v1383, %v330
        %v1385 = vmul.f32 %v1383, %v326
        %v1386 = vmul.f32 %v1383, %v331
        %v1390 = vrot.slane %v1384, 2
        %v1391 = vrot.slane %v1385, 2
        %v1392 = vsel %vm458, %v1390, %v1391
        %v1393 = vrot.slane %v1386, 2
        %v1394 = vsel %vm458, %v1391, %v1393
        %1395 = vrot.lane.b32.xlu0 %v1392, 127
        %v1396 = vpop.permute.xlu0 %1395
        %1397 = vrot.lane.b32.xlu0 %v1394, 127
        %v1398 = vpop.permute.xlu0 %1397
        %v1401 = vadd.f32 %v1380, %v1396
        %v1402 = vadd.f32 %v1381, %v1398
        %s1403 = sld [smem:[#allocation2 + $0x3e]]
        %v1404 = vstv %s1403
        %v1405 = vmul.f32 %v1404, %v330
        %v1406 = vmul.f32 %v1404, %v326
        %v1407 = vmul.f32 %v1404, %v331
        %v1411 = vrot.slane %v1405, 2
        %v1412 = vrot.slane %v1406, 2
        %v1413 = vsel %vm458, %v1411, %v1412
        %v1414 = vrot.slane %v1407, 2
        %v1415 = vsel %vm458, %v1412, %v1414
        %1416 = vrot.lane.b32.xlu0 %v1413, 126
        %v1417 = vpop.permute.xlu0 %1416
        %1418 = vrot.lane.b32.xlu0 %v1415, 126
        %v1419 = vpop.permute.xlu0 %1418
        %v1422 = vadd.f32 %v1401, %v1417
        %v1423 = vadd.f32 %v1402, %v1419
        %s1424 = sld [smem:[#allocation2 + $0x3f]]
        %v1425 = vstv %s1424
        %v1426 = vmul.f32 %v1425, %v352
        %v1427 = vmul.f32 %v1425, %v348
        %v1428 = vadd.f32 %v1422, %v1426
        %v1429 = vadd.f32 %v1423, %v1427
        %s1430 = sld [smem:[#allocation2 + $0x40]]
        %v1431 = vstv %s1430
        %v1432 = vmul.f32 %v1431, %v352
        %v1433 = vmul.f32 %v1431, %v348
        %1436 = vrot.lane.b32.xlu0 %v1432, 127
        %v1437 = vpop.permute.xlu0 %1436
        %1438 = vrot.lane.b32.xlu0 %v1433, 127
        %v1439 = vpop.permute.xlu0 %1438
        %v1442 = vadd.f32 %v1428, %v1437
        %v1443 = vadd.f32 %v1429, %v1439
        %s1444 = sld [smem:[#allocation2 + $0x41]]
        %v1445 = vstv %s1444
        %v1446 = vmul.f32 %v1445, %v352
        %v1447 = vmul.f32 %v1445, %v348
        %1450 = vrot.lane.b32.xlu0 %v1446, 126
        %v1451 = vpop.permute.xlu0 %1450
        %1452 = vrot.lane.b32.xlu0 %v1447, 126
        %v1453 = vpop.permute.xlu0 %1452
        %v1456 = vadd.f32 %v1442, %v1451
        %v1457 = vadd.f32 %v1443, %v1453
        %s1458 = sld [smem:[#allocation2 + $0x42]]
        %v1459 = vstv %s1458
        %v1460 = vmul.f32 %v1459, %v352
        %v1461 = vmul.f32 %v1459, %v348
        %v1462 = vmul.f32 %v1459, %v353
        %v1466 = vrot.slane %v1460, 1
        %v1467 = vrot.slane %v1461, 1
        %v1468 = vsel %vm398, %v1466, %v1467
        %v1469 = vrot.slane %v1462, 1
        %v1470 = vsel %vm398, %v1467, %v1469
        %v1473 = vadd.f32 %v1456, %v1468
        %v1474 = vadd.f32 %v1457, %v1470
        %s1475 = sld [smem:[#allocation2 + $0x43]]
        %v1476 = vstv %s1475
        %v1477 = vmul.f32 %v1476, %v352
        %v1478 = vmul.f32 %v1476, %v348
        %v1479 = vmul.f32 %v1476, %v353
        %v1483 = vrot.slane %v1477, 1
        %v1484 = vrot.slane %v1478, 1
        %v1485 = vsel %vm398, %v1483, %v1484
        %v1486 = vrot.slane %v1479, 1
        %v1487 = vsel %vm398, %v1484, %v1486
        %1488 = vrot.lane.b32.xlu0 %v1485, 127
        %v1489 = vpop.permute.xlu0 %1488
        %1490 = vrot.lane.b32.xlu0 %v1487, 127
        %v1491 = vpop.permute.xlu0 %1490
        %v1494 = vadd.f32 %v1473, %v1489
        %v1495 = vadd.f32 %v1474, %v1491
        %s1496 = sld [smem:[#allocation2 + $0x44]]
        %v1497 = vstv %s1496
        %v1498 = vmul.f32 %v1497, %v352
        %v1499 = vmul.f32 %v1497, %v348
        %v1500 = vmul.f32 %v1497, %v353
        %v1504 = vrot.slane %v1498, 1
        %v1505 = vrot.slane %v1499, 1
        %v1506 = vsel %vm398, %v1504, %v1505
        %v1507 = vrot.slane %v1500, 1
        %v1508 = vsel %vm398, %v1505, %v1507
        %1509 = vrot.lane.b32.xlu0 %v1506, 126
        %v1510 = vpop.permute.xlu0 %1509
        %1511 = vrot.lane.b32.xlu0 %v1508, 126
        %v1512 = vpop.permute.xlu0 %1511
        %v1515 = vadd.f32 %v1494, %v1510
        %v1516 = vadd.f32 %v1495, %v1512
        %s1517 = sld [smem:[#allocation2 + $0x45]]
        %v1518 = vstv %s1517
        %v1519 = vmul.f32 %v1518, %v352
        %v1520 = vmul.f32 %v1518, %v348
        %v1521 = vmul.f32 %v1518, %v353
        %v1525 = vrot.slane %v1519, 2
        %v1526 = vrot.slane %v1520, 2
        %v1527 = vsel %vm458, %v1525, %v1526
        %v1528 = vrot.slane %v1521, 2
        %v1529 = vsel %vm458, %v1526, %v1528
        %v1532 = vadd.f32 %v1515, %v1527
        %v1533 = vadd.f32 %v1516, %v1529
        %s1534 = sld [smem:[#allocation2 + $0x46]]
        %v1535 = vstv %s1534
        %v1536 = vmul.f32 %v1535, %v352
        %v1537 = vmul.f32 %v1535, %v348
        %v1538 = vmul.f32 %v1535, %v353
        %v1542 = vrot.slane %v1536, 2
        %v1543 = vrot.slane %v1537, 2
        %v1544 = vsel %vm458, %v1542, %v1543
        %v1545 = vrot.slane %v1538, 2
        %v1546 = vsel %vm458, %v1543, %v1545
        %1547 = vrot.lane.b32.xlu0 %v1544, 127
        %v1548 = vpop.permute.xlu0 %1547
        %1549 = vrot.lane.b32.xlu0 %v1546, 127
        %v1550 = vpop.permute.xlu0 %1549
        %v1553 = vadd.f32 %v1532, %v1548
        %v1554 = vadd.f32 %v1533, %v1550
        %s1555 = sld [smem:[#allocation2 + $0x47]]
        %v1556 = vstv %s1555
        %v1557 = vmul.f32 %v1556, %v352
        %v1558 = vmul.f32 %v1556, %v348
        %v1559 = vmul.f32 %v1556, %v353
        %v1563 = vrot.slane %v1557, 2
        %v1564 = vrot.slane %v1558, 2
        %v1565 = vsel %vm458, %v1563, %v1564
        %v1566 = vrot.slane %v1559, 2
        %v1567 = vsel %vm458, %v1564, %v1566
        %1568 = vrot.lane.b32.xlu0 %v1565, 126
        %v1569 = vpop.permute.xlu0 %1568
        %1570 = vrot.lane.b32.xlu0 %v1567, 126
        %v1571 = vpop.permute.xlu0 %1570
        %v1574 = vadd.f32 %v1553, %v1569
        %v1575 = vadd.f32 %v1554, %v1571
        %v1576 = vlaneseq
        %v1577 = vshrl.u32 %v1576, 7
        %v1578 = vlaneseq
        %v1579 = vand.u32 %v1578, 127
        %v1580 = vmul.u32 %v1577, 2
        %vm1581 = vcmp.eq.s32.totalorder %v1579, %v1580
        %v1582 = vsel %vm1581, 1, 0
        %v1583 = vcvt.s32.f32 %v1582
        %v1584 = vadd.s32 %v1577, 8
        %v1585 = vmul.u32 %v1579, 2
        %vm1586 = vcmp.eq.s32.totalorder %v1577, %v1585
        %vm1587 = vcmp.eq.s32.totalorder %v1584, %v1585
        %v1588 = vsel %vm1586, 1, 0
        %v1589 = vsel %vm1587, 1, 0
        %v1590 = vcvt.s32.f32 %v1588
        %v1591 = vcvt.s32.f32 %v1589
        %vm1592 = vcmask 130048
        %v1594 = vsel %vm1592, %v1583, 0
        %1596 = vmatprep.subr.mxu0 0.0
        %1597 = vmatpush1.msra.mxu0 %v964
        %1598 = vmatprep.subr.mxu0 0.0
        %1599 = vmatpush1.msra.mxu0 %v965
        %1600 = vmatprep.subr.mxu0 0.0
        %1601 = vmatpush1.msra.mxu0 0.0
        %1602 = vmatprep.subr.mxu0 0.0
        %1603 = vmatpush1.msra.mxu0 0.0
        %1604 = vmatprep.subr.mxu0 0.0
        %1605 = vmatpush1.msra.mxu0 0.0
        %1606 = vmatprep.subr.mxu0 0.0
        %1607 = vmatpush1.msra.mxu0 0.0
        %1608 = vmatprep.subr.mxu0 0.0
        %1609 = vmatpush1.msra.mxu0 0.0
        %1610 = vmatprep.subr.mxu0 0.0
        %1611 = vmatpush1.msra.mxu0 0.0
        %1612 = vmatprep.subr.mxu0 0.0
        %1613 = vmatpush1.msra.mxu0 0.0
        %1614 = vmatprep.subr.mxu0 0.0
        %1615 = vmatpush1.msra.mxu0 0.0
        %1616 = vmatprep.subr.mxu0 0.0
        %1617 = vmatpush1.msra.mxu0 0.0
        %1618 = vmatprep.subr.mxu0 0.0
        %1619 = vmatpush1.msra.mxu0 0.0
        %1620 = vmatprep.subr.mxu0 0.0
        %1621 = vmatpush1.msra.mxu0 0.0
        %1622 = vmatprep.subr.mxu0 0.0
        %1623 = vmatpush1.msra.mxu0 0.0
        %1624 = vmatprep.subr.mxu0 0.0
        %1625 = vmatpush1.msra.mxu0 0.0
        %1626 = vmatprep.subr.mxu0 0.0
        %1627 = vmatpush1.msra.mxu0 0.0
        %1628 = vmatprep.subr.mxu0 0.0
        %1629 = vmatpush1.msra.mxu0 0.0
        %1630 = vmatprep.subr.mxu0 0.0
        %1631 = vmatpush1.msra.mxu0 0.0
        %1632 = vmatprep.subr.mxu0 0.0
        %1633 = vmatpush1.msra.mxu0 0.0
        %1634 = vmatprep.subr.mxu0 0.0
        %1635 = vmatpush1.msra.mxu0 0.0
        %1636 = vmatprep.subr.mxu0 0.0
        %1637 = vmatpush1.msra.mxu0 0.0
        %1638 = vmatprep.subr.mxu0 0.0
        %1639 = vmatpush1.msra.mxu0 0.0
        %1640 = vmatprep.subr.mxu0 0.0
        %1641 = vmatpush1.msra.mxu0 0.0
        %1642 = vmatprep.subr.mxu0 0.0
        %1643 = vmatpush1.msra.mxu0 0.0
        %1644 = vmatprep.subr.mxu0 0.0
        %1645 = vmatpush1.msra.mxu0 0.0
        %1646 = vmatprep.subr.mxu0 0.0
        %1647 = vmatpush1.msra.mxu0 0.0
        %1648 = vmatprep.subr.mxu0 0.0
        %1649 = vmatpush1.msra.mxu0 0.0
        %1650 = vmatprep.subr.mxu0 0.0
        %1651 = vmatpush1.msra.mxu0 0.0
        %1652 = vmatprep.subr.mxu0 0.0
        %1653 = vmatpush1.msra.mxu0 0.0
        %1654 = vmatprep.subr.mxu0 0.0
        %1655 = vmatpush1.msra.mxu0 0.0
        %1656 = vmatprep.subr.mxu0 0.0
        %1657 = vmatpush1.msra.mxu0 0.0
        %1658 = vmatprep.subr.mxu0 0.0
        %1659 = vmatpush1.msra.mxu0 0.0
        %1660 = vmatprep.mubr.f32.mxu0 0.0
        %1661 = vmatmul.mubr.f32.gmra.mrb[0].mxu0 %v1594
        %v1662 = vpop.f32.mrb[0].mxu0
        %v1663 = vadd.f32 0.0, %v1662
        %v1664 = vpop.f32.mrb[0].mxu0
        %1665 = vdwg.mxu0
        %v1667 = vsel %vm1592, %v1663, 0
        %1669 = vmatprep.subr.mxu0 0.0
        %1670 = vmatpush1.msra.mxu0 %v1590
        %1671 = vmatprep.subr.mxu0 0.0
        %1672 = vmatpush1.msra.mxu0 %v1591
        %1673 = vmatprep.subr.mxu0 0.0
        %1674 = vmatpush1.msra.mxu0 0.0
        %1675 = vmatprep.subr.mxu0 0.0
        %1676 = vmatpush1.msra.mxu0 0.0
        %1677 = vmatprep.subr.mxu0 0.0
        %1678 = vmatpush1.msra.mxu0 0.0
        %1679 = vmatprep.subr.mxu0 0.0
        %1680 = vmatpush1.msra.mxu0 0.0
        %1681 = vmatprep.subr.mxu0 0.0
        %1682 = vmatpush1.msra.mxu0 0.0
        %1683 = vmatprep.subr.mxu0 0.0
        %1684 = vmatpush1.msra.mxu0 0.0
        %1685 = vmatprep.subr.mxu0 0.0
        %1686 = vmatpush1.msra.mxu0 0.0
        %1687 = vmatprep.subr.mxu0 0.0
        %1688 = vmatpush1.msra.mxu0 0.0
        %1689 = vmatprep.subr.mxu0 0.0
        %1690 = vmatpush1.msra.mxu0 0.0
        %1691 = vmatprep.subr.mxu0 0.0
        %1692 = vmatpush1.msra.mxu0 0.0
        %1693 = vmatprep.subr.mxu0 0.0
        %1694 = vmatpush1.msra.mxu0 0.0
        %1695 = vmatprep.subr.mxu0 0.0
        %1696 = vmatpush1.msra.mxu0 0.0
        %1697 = vmatprep.subr.mxu0 0.0
        %1698 = vmatpush1.msra.mxu0 0.0
        %1699 = vmatprep.subr.mxu0 0.0
        %1700 = vmatpush1.msra.mxu0 0.0
        %1701 = vmatprep.subr.mxu0 0.0
        %1702 = vmatpush1.msra.mxu0 0.0
        %1703 = vmatprep.subr.mxu0 0.0
        %1704 = vmatpush1.msra.mxu0 0.0
        %1705 = vmatprep.subr.mxu0 0.0
        %1706 = vmatpush1.msra.mxu0 0.0
        %1707 = vmatprep.subr.mxu0 0.0
        %1708 = vmatpush1.msra.mxu0 0.0
        %1709 = vmatprep.subr.mxu0 0.0
        %1710 = vmatpush1.msra.mxu0 0.0
        %1711 = vmatprep.subr.mxu0 0.0
        %1712 = vmatpush1.msra.mxu0 0.0
        %1713 = vmatprep.subr.mxu0 0.0
        %1714 = vmatpush1.msra.mxu0 0.0
        %1715 = vmatprep.subr.mxu0 0.0
        %1716 = vmatpush1.msra.mxu0 0.0
        %1717 = vmatprep.subr.mxu0 0.0
        %1718 = vmatpush1.msra.mxu0 0.0
        %1719 = vmatprep.subr.mxu0 0.0
        %1720 = vmatpush1.msra.mxu0 0.0
        %1721 = vmatprep.subr.mxu0 0.0
        %1722 = vmatpush1.msra.mxu0 0.0
        %1723 = vmatprep.subr.mxu0 0.0
        %1724 = vmatpush1.msra.mxu0 0.0
        %1725 = vmatprep.subr.mxu0 0.0
        %1726 = vmatpush1.msra.mxu0 0.0
        %1727 = vmatprep.subr.mxu0 0.0
        %1728 = vmatpush1.msra.mxu0 0.0
        %1729 = vmatprep.subr.mxu0 0.0
        %1730 = vmatpush1.msra.mxu0 0.0
        %1731 = vmatprep.subr.mxu0 0.0
        %1732 = vmatpush1.msra.mxu0 0.0
        %1733 = vmatprep.mubr.f32.mxu0 0.0
        %1734 = vmatmul.mubr.f32.gmra.mrb[0].mxu0 %v1667
        %v1735 = vpop.f32.mrb[0].mxu0
        %v1736 = vadd.f32 0.0, %v1735
        %v1737 = vpop.f32.mrb[0].mxu0
        %1738 = vdwg.mxu0
        %1739 = vmatprep.subr.mxu0 0.0
        %1740 = vmatpush1.msra.mxu0 %v1574
        %1741 = vmatprep.subr.mxu0 0.0
        %1742 = vmatpush1.msra.mxu0 %v1575
        %1743 = vmatprep.subr.mxu0 0.0
        %1744 = vmatpush1.msra.mxu0 0.0
        %1745 = vmatprep.subr.mxu0 0.0
        %1746 = vmatpush1.msra.mxu0 0.0
        %1747 = vmatprep.subr.mxu0 0.0
        %1748 = vmatpush1.msra.mxu0 0.0
        %1749 = vmatprep.subr.mxu0 0.0
        %1750 = vmatpush1.msra.mxu0 0.0
        %1751 = vmatprep.subr.mxu0 0.0
        %1752 = vmatpush1.msra.mxu0 0.0
        %1753 = vmatprep.subr.mxu0 0.0
        %1754 = vmatpush1.msra.mxu0 0.0
        %1755 = vmatprep.subr.mxu0 0.0
        %1756 = vmatpush1.msra.mxu0 0.0
        %1757 = vmatprep.subr.mxu0 0.0
        %1758 = vmatpush1.msra.mxu0 0.0
        %1759 = vmatprep.subr.mxu0 0.0
        %1760 = vmatpush1.msra.mxu0 0.0
        %1761 = vmatprep.subr.mxu0 0.0
        %1762 = vmatpush1.msra.mxu0 0.0
        %1763 = vmatprep.subr.mxu0 0.0
        %1764 = vmatpush1.msra.mxu0 0.0
        %1765 = vmatprep.subr.mxu0 0.0
        %1766 = vmatpush1.msra.mxu0 0.0
        %1767 = vmatprep.subr.mxu0 0.0
        %1768 = vmatpush1.msra.mxu0 0.0
        %1769 = vmatprep.subr.mxu0 0.0
        %1770 = vmatpush1.msra.mxu0 0.0
        %1771 = vmatprep.subr.mxu0 0.0
        %1772 = vmatpush1.msra.mxu0 0.0
        %1773 = vmatprep.subr.mxu0 0.0
        %1774 = vmatpush1.msra.mxu0 0.0
        %1775 = vmatprep.subr.mxu0 0.0
        %1776 = vmatpush1.msra.mxu0 0.0
        %1777 = vmatprep.subr.mxu0 0.0
        %1778 = vmatpush1.msra.mxu0 0.0
        %1779 = vmatprep.subr.mxu0 0.0
        %1780 = vmatpush1.msra.mxu0 0.0
        %1781 = vmatprep.subr.mxu0 0.0
        %1782 = vmatpush1.msra.mxu0 0.0
        %1783 = vmatprep.subr.mxu0 0.0
        %1784 = vmatpush1.msra.mxu0 0.0
        %1785 = vmatprep.subr.mxu0 0.0
        %1786 = vmatpush1.msra.mxu0 0.0
        %1787 = vmatprep.subr.mxu0 0.0
        %1788 = vmatpush1.msra.mxu0 0.0
        %1789 = vmatprep.subr.mxu0 0.0
        %1790 = vmatpush1.msra.mxu0 0.0
        %1791 = vmatprep.subr.mxu0 0.0
        %1792 = vmatpush1.msra.mxu0 0.0
        %1793 = vmatprep.subr.mxu0 0.0
        %1794 = vmatpush1.msra.mxu0 0.0
        %1795 = vmatprep.subr.mxu0 0.0
        %1796 = vmatpush1.msra.mxu0 0.0
        %1797 = vmatprep.subr.mxu0 0.0
        %1798 = vmatpush1.msra.mxu0 0.0
        %1799 = vmatprep.subr.mxu0 0.0
        %1800 = vmatpush1.msra.mxu0 0.0
        %1801 = vmatprep.subr.mxu0 0.0
        %1802 = vmatpush1.msra.mxu0 0.0
        %1803 = vmatprep.mubr.f32.mxu0 0.0
        %1804 = vmatmul.mubr.f32.gmra.mrb[0].mxu0 %v1594
        %v1805 = vpop.f32.mrb[0].mxu0
        %v1806 = vadd.f32 0.0, %v1805
        %v1807 = vpop.f32.mrb[0].mxu0
        %1808 = vdwg.mxu0
        %v1810 = vsel %vm1592, %v1806, 0
        %1812 = vmatprep.subr.mxu0 0.0
        %1813 = vmatpush1.msra.mxu0 %v1590
        %1814 = vmatprep.subr.mxu0 0.0
        %1815 = vmatpush1.msra.mxu0 %v1591
        %1816 = vmatprep.subr.mxu0 0.0
        %1817 = vmatpush1.msra.mxu0 0.0
        %1818 = vmatprep.subr.mxu0 0.0
        %1819 = vmatpush1.msra.mxu0 0.0
        %1820 = vmatprep.subr.mxu0 0.0
        %1821 = vmatpush1.msra.mxu0 0.0
        %1822 = vmatprep.subr.mxu0 0.0
        %1823 = vmatpush1.msra.mxu0 0.0
        %1824 = vmatprep.subr.mxu0 0.0
        %1825 = vmatpush1.msra.mxu0 0.0
        %1826 = vmatprep.subr.mxu0 0.0
        %1827 = vmatpush1.msra.mxu0 0.0
        %1828 = vmatprep.subr.mxu0 0.0
        %1829 = vmatpush1.msra.mxu0 0.0
        %1830 = vmatprep.subr.mxu0 0.0
        %1831 = vmatpush1.msra.mxu0 0.0
        %1832 = vmatprep.subr.mxu0 0.0
        %1833 = vmatpush1.msra.mxu0 0.0
        %1834 = vmatprep.subr.mxu0 0.0
        %1835 = vmatpush1.msra.mxu0 0.0
        %1836 = vmatprep.subr.mxu0 0.0
        %1837 = vmatpush1.msra.mxu0 0.0
        %1838 = vmatprep.subr.mxu0 0.0
        %1839 = vmatpush1.msra.mxu0 0.0
        %1840 = vmatprep.subr.mxu0 0.0
        %1841 = vmatpush1.msra.mxu0 0.0
        %1842 = vmatprep.subr.mxu0 0.0
        %1843 = vmatpush1.msra.mxu0 0.0
        %1844 = vmatprep.subr.mxu0 0.0
        %1845 = vmatpush1.msra.mxu0 0.0
        %1846 = vmatprep.subr.mxu0 0.0
        %1847 = vmatpush1.msra.mxu0 0.0
        %1848 = vmatprep.subr.mxu0 0.0
        %1849 = vmatpush1.msra.mxu0 0.0
        %1850 = vmatprep.subr.mxu0 0.0
        %1851 = vmatpush1.msra.mxu0 0.0
        %1852 = vmatprep.subr.mxu0 0.0
        %1853 = vmatpush1.msra.mxu0 0.0
        %1854 = vmatprep.subr.mxu0 0.0
        %1855 = vmatpush1.msra.mxu0 0.0
        %1856 = vmatprep.subr.mxu0 0.0
        %1857 = vmatpush1.msra.mxu0 0.0
        %1858 = vmatprep.subr.mxu0 0.0
        %1859 = vmatpush1.msra.mxu0 0.0
        %1860 = vmatprep.subr.mxu0 0.0
        %1861 = vmatpush1.msra.mxu0 0.0
        %1862 = vmatprep.subr.mxu0 0.0
        %1863 = vmatpush1.msra.mxu0 0.0
        %1864 = vmatprep.subr.mxu0 0.0
        %1865 = vmatpush1.msra.mxu0 0.0
        %1866 = vmatprep.subr.mxu0 0.0
        %1867 = vmatpush1.msra.mxu0 0.0
        %1868 = vmatprep.subr.mxu0 0.0
        %1869 = vmatpush1.msra.mxu0 0.0
        %1870 = vmatprep.subr.mxu0 0.0
        %1871 = vmatpush1.msra.mxu0 0.0
        %1872 = vmatprep.subr.mxu0 0.0
        %1873 = vmatpush1.msra.mxu0 0.0
        %1874 = vmatprep.subr.mxu0 0.0
        %1875 = vmatpush1.msra.mxu0 0.0
        %1876 = vmatprep.mubr.f32.mxu0 0.0
        %1877 = vmatmul.mubr.f32.gmra.mrb[0].mxu0 %v1810
        %v1878 = vpop.f32.mrb[0].mxu0
        %v1879 = vadd.f32 0.0, %v1878
        %v1880 = vpop.f32.mrb[0].mxu0
        %1881 = vdwg.mxu0
        %vm1882 = vcmp.ge.f32.partialorder %v1736, 0.0
        %v1883 = vmul.f32 %v1736, 0.01
        %v1884 = vsel %vm1882, %v1736, %v1883
        %vm1885 = vcmp.ge.f32.partialorder %v1879, 0.0
        %v1886 = vmul.f32 %v1879, 0.01
        %v1887 = vsel %vm1885, %v1879, %v1886
        %1889 = vrot.lane.b32.xlu0 %v1884, 1
        %v1890 = vpop.permute.xlu0 %1889
        %v1892 = vsel %vm271, 0.0, %v1890
        %vm1893 = vcmask 72704
        %v1894 = vsel %vm1893, %v1892, 0.0
        %v1896 = vrot.slane %v1894, 7
        %v1898 = vsel %vm279, 0.0, %v1896
        %v1899 = vsel %vm279, %v1896, 0.0
        %1901 = vrot.lane.b32.xlu0 %v1887, 1
        %v1902 = vpop.permute.xlu0 %1901
        %v1904 = vsel %vm271, 0.0, %v1902
        %v1905 = vsel %vm1893, %v1904, 0.0
        %v1907 = vrot.slane %v1905, 7
        %v1909 = vsel %vm279, 0.0, %v1907
        %v1910 = vsel %vm279, %v1907, 0.0
        %s1911 = sld [smem:[#allocation7 + $0x2]]
        %v1912 = vstv %s1911
        %s1913 = sld [smem:[#allocation2 + $0x48]]
        %v1914 = vstv %s1913
        %v1915 = vmul.f32 %v1914, %v1898
        %v1916 = vadd.f32 %v1912, %v1915
        %s1917 = sld [smem:[#allocation2 + $0x49]]
        %v1918 = vstv %s1917
        %v1919 = vmul.f32 %v1918, %v1898
        %1921 = vrot.lane.b32.xlu0 %v1919, 127
        %v1922 = vpop.permute.xlu0 %1921
        %v1924 = vadd.f32 %v1916, %v1922
        %s1925 = sld [smem:[#allocation2 + $0x4a]]
        %v1926 = vstv %s1925
        %v1927 = vmul.f32 %v1926, %v1898
        %1929 = vrot.lane.b32.xlu0 %v1927, 126
        %v1930 = vpop.permute.xlu0 %1929
        %v1932 = vadd.f32 %v1924, %v1930
        %s1933 = sld [smem:[#allocation2 + $0x4b]]
        %v1934 = vstv %s1933
        %v1935 = vmul.f32 %v1934, %v1898
        %v1936 = vmul.f32 %v1934, %v1899
        %v1939 = vrot.slane %v1935, 1
        %v1940 = vrot.slane %v1936, 1
        %v1941 = vsel %vm398, %v1939, %v1940
        %v1943 = vadd.f32 %v1932, %v1941
        %s1944 = sld [smem:[#allocation2 + $0x4c]]
        %v1945 = vstv %s1944
        %v1946 = vmul.f32 %v1945, %v1898
        %v1947 = vmul.f32 %v1945, %v1899
        %v1950 = vrot.slane %v1946, 1
        %v1951 = vrot.slane %v1947, 1
        %v1952 = vsel %vm398, %v1950, %v1951
        %1953 = vrot.lane.b32.xlu0 %v1952, 127
        %v1954 = vpop.permute.xlu0 %1953
        %v1956 = vadd.f32 %v1943, %v1954
        %s1957 = sld [smem:[#allocation2 + $0x4d]]
        %v1958 = vstv %s1957
        %v1959 = vmul.f32 %v1958, %v1898
        %v1960 = vmul.f32 %v1958, %v1899
        %v1963 = vrot.slane %v1959, 1
        %v1964 = vrot.slane %v1960, 1
        %v1965 = vsel %vm398, %v1963, %v1964
        %1966 = vrot.lane.b32.xlu0 %v1965, 126
        %v1967 = vpop.permute.xlu0 %1966
        %v1969 = vadd.f32 %v1956, %v1967
        %s1970 = sld [smem:[#allocation2 + $0x4e]]
        %v1971 = vstv %s1970
        %v1972 = vmul.f32 %v1971, %v1898
        %v1973 = vmul.f32 %v1971, %v1899
        %v1976 = vrot.slane %v1972, 2
        %v1977 = vrot.slane %v1973, 2
        %v1978 = vsel %vm458, %v1976, %v1977
        %v1980 = vadd.f32 %v1969, %v1978
        %s1981 = sld [smem:[#allocation2 + $0x4f]]
        %v1982 = vstv %s1981
        %v1983 = vmul.f32 %v1982, %v1898
        %v1984 = vmul.f32 %v1982, %v1899
        %v1987 = vrot.slane %v1983, 2
        %v1988 = vrot.slane %v1984, 2
        %v1989 = vsel %vm458, %v1987, %v1988
        %1990 = vrot.lane.b32.xlu0 %v1989, 127
        %v1991 = vpop.permute.xlu0 %1990
        %v1993 = vadd.f32 %v1980, %v1991
        %s1994 = sld [smem:[#allocation2 + $0x50]]
        %v1995 = vstv %s1994
        %v1996 = vmul.f32 %v1995, %v1898
        %v1997 = vmul.f32 %v1995, %v1899
        %v2000 = vrot.slane %v1996, 2
        %v2001 = vrot.slane %v1997, 2
        %v2002 = vsel %vm458, %v2000, %v2001
        %2003 = vrot.lane.b32.xlu0 %v2002, 126
        %v2004 = vpop.permute.xlu0 %2003
        %v2006 = vadd.f32 %v1993, %v2004
        %s2007 = sld [smem:[#allocation2 + $0x51]]
        %v2008 = vstv %s2007
        %v2009 = vmul.f32 %v2008, %v1909
        %v2010 = vadd.f32 %v2006, %v2009
        %s2011 = sld [smem:[#allocation2 + $0x52]]
        %v2012 = vstv %s2011
        %v2013 = vmul.f32 %v2012, %v1909
        %2015 = vrot.lane.b32.xlu0 %v2013, 127
        %v2016 = vpop.permute.xlu0 %2015
        %v2018 = vadd.f32 %v2010, %v2016
        %s2019 = sld [smem:[#allocation2 + $0x53]]
        %v2020 = vstv %s2019
        %v2021 = vmul.f32 %v2020, %v1909
        %2023 = vrot.lane.b32.xlu0 %v2021, 126
        %v2024 = vpop.permute.xlu0 %2023
        %v2026 = vadd.f32 %v2018, %v2024
        %s2027 = sld [smem:[#allocation2 + $0x54]]
        %v2028 = vstv %s2027
        %v2029 = vmul.f32 %v2028, %v1909
        %v2030 = vmul.f32 %v2028, %v1910
        %v2033 = vrot.slane %v2029, 1
        %v2034 = vrot.slane %v2030, 1
        %v2035 = vsel %vm398, %v2033, %v2034
        %v2037 = vadd.f32 %v2026, %v2035
        %s2038 = sld [smem:[#allocation2 + $0x55]]
        %v2039 = vstv %s2038
        %v2040 = vmul.f32 %v2039, %v1909
        %v2041 = vmul.f32 %v2039, %v1910
        %v2044 = vrot.slane %v2040, 1
        %v2045 = vrot.slane %v2041, 1
        %v2046 = vsel %vm398, %v2044, %v2045
        %2047 = vrot.lane.b32.xlu0 %v2046, 127
        %v2048 = vpop.permute.xlu0 %2047
        %v2050 = vadd.f32 %v2037, %v2048
        %s2051 = sld [smem:[#allocation2 + $0x56]]
        %v2052 = vstv %s2051
        %v2053 = vmul.f32 %v2052, %v1909
        %v2054 = vmul.f32 %v2052, %v1910
        %v2057 = vrot.slane %v2053, 1
        %v2058 = vrot.slane %v2054, 1
        %v2059 = vsel %vm398, %v2057, %v2058
        %2060 = vrot.lane.b32.xlu0 %v2059, 126
        %v2061 = vpop.permute.xlu0 %2060
        %v2063 = vadd.f32 %v2050, %v2061
        %s2064 = sld [smem:[#allocation2 + $0x57]]
        %v2065 = vstv %s2064
        %v2066 = vmul.f32 %v2065, %v1909
        %v2067 = vmul.f32 %v2065, %v1910
        %v2070 = vrot.slane %v2066, 2
        %v2071 = vrot.slane %v2067, 2
        %v2072 = vsel %vm458, %v2070, %v2071
        %v2074 = vadd.f32 %v2063, %v2072
        %s2075 = sld [smem:[#allocation2 + $0x58]]
        %v2076 = vstv %s2075
        %v2077 = vmul.f32 %v2076, %v1909
        %v2078 = vmul.f32 %v2076, %v1910
        %v2081 = vrot.slane %v2077, 2
        %v2082 = vrot.slane %v2078, 2
        %v2083 = vsel %vm458, %v2081, %v2082
        %2084 = vrot.lane.b32.xlu0 %v2083, 127
        %v2085 = vpop.permute.xlu0 %2084
        %v2087 = vadd.f32 %v2074, %v2085
        %s2088 = sld [smem:[#allocation2 + $0x59]]
        %v2089 = vstv %s2088
        %v2090 = vmul.f32 %v2089, %v1909
        %v2091 = vmul.f32 %v2089, %v1910
        %v2094 = vrot.slane %v2090, 2
        %v2095 = vrot.slane %v2091, 2
        %v2096 = vsel %vm458, %v2094, %v2095
        %2097 = vrot.lane.b32.xlu0 %v2096, 126
        %v2098 = vpop.permute.xlu0 %2097
        %v2100 = vadd.f32 %v2087, %v2098
        %s2101 = sld [smem:[#allocation7 + $0x3]]
        %v2102 = vstv %s2101
        %s2103 = sld [smem:[#allocation2 + $0x5a]]
        %v2104 = vstv %s2103
        %v2105 = vmul.f32 %v2104, %v1898
        %v2106 = vadd.f32 %v2102, %v2105
        %s2107 = sld [smem:[#allocation2 + $0x5b]]
        %v2108 = vstv %s2107
        %v2109 = vmul.f32 %v2108, %v1898
        %2111 = vrot.lane.b32.xlu0 %v2109, 127
        %v2112 = vpop.permute.xlu0 %2111
        %v2114 = vadd.f32 %v2106, %v2112
        %s2115 = sld [smem:[#allocation2 + $0x5c]]
        %v2116 = vstv %s2115
        %v2117 = vmul.f32 %v2116, %v1898
        %2119 = vrot.lane.b32.xlu0 %v2117, 126
        %v2120 = vpop.permute.xlu0 %2119
        %v2122 = vadd.f32 %v2114, %v2120
        %s2123 = sld [smem:[#allocation2 + $0x5d]]
        %v2124 = vstv %s2123
        %v2125 = vmul.f32 %v2124, %v1898
        %v2126 = vmul.f32 %v2124, %v1899
        %v2129 = vrot.slane %v2125, 1
        %v2130 = vrot.slane %v2126, 1
        %v2131 = vsel %vm398, %v2129, %v2130
        %v2133 = vadd.f32 %v2122, %v2131
        %s2134 = sld [smem:[#allocation2 + $0x5e]]
        %v2135 = vstv %s2134
        %v2136 = vmul.f32 %v2135, %v1898
        %v2137 = vmul.f32 %v2135, %v1899
        %v2140 = vrot.slane %v2136, 1
        %v2141 = vrot.slane %v2137, 1
        %v2142 = vsel %vm398, %v2140, %v2141
        %2143 = vrot.lane.b32.xlu0 %v2142, 127
        %v2144 = vpop.permute.xlu0 %2143
        %v2146 = vadd.f32 %v2133, %v2144
        %s2147 = sld [smem:[#allocation2 + $0x5f]]
        %v2148 = vstv %s2147
        %v2149 = vmul.f32 %v2148, %v1898
        %v2150 = vmul.f32 %v2148, %v1899
        %v2153 = vrot.slane %v2149, 1
        %v2154 = vrot.slane %v2150, 1
        %v2155 = vsel %vm398, %v2153, %v2154
        %2156 = vrot.lane.b32.xlu0 %v2155, 126
        %v2157 = vpop.permute.xlu0 %2156
        %v2159 = vadd.f32 %v2146, %v2157
        %s2160 = sld [smem:[#allocation2 + $0x60]]
        %v2161 = vstv %s2160
        %v2162 = vmul.f32 %v2161, %v1898
        %v2163 = vmul.f32 %v2161, %v1899
        %v2166 = vrot.slane %v2162, 2
        %v2167 = vrot.slane %v2163, 2
        %v2168 = vsel %vm458, %v2166, %v2167
        %v2170 = vadd.f32 %v2159, %v2168
        %s2171 = sld [smem:[#allocation2 + $0x61]]
        %v2172 = vstv %s2171
        %v2173 = vmul.f32 %v2172, %v1898
        %v2174 = vmul.f32 %v2172, %v1899
        %v2177 = vrot.slane %v2173, 2
        %v2178 = vrot.slane %v2174, 2
        %v2179 = vsel %vm458, %v2177, %v2178
        %2180 = vrot.lane.b32.xlu0 %v2179, 127
        %v2181 = vpop.permute.xlu0 %2180
        %v2183 = vadd.f32 %v2170, %v2181
        %s2184 = sld [smem:[#allocation2 + $0x62]]
        %v2185 = vstv %s2184
        %v2186 = vmul.f32 %v2185, %v1898
        %v2187 = vmul.f32 %v2185, %v1899
        %v2190 = vrot.slane %v2186, 2
        %v2191 = vrot.slane %v2187, 2
        %v2192 = vsel %vm458, %v2190, %v2191
        %2193 = vrot.lane.b32.xlu0 %v2192, 126
        %v2194 = vpop.permute.xlu0 %2193
        %v2196 = vadd.f32 %v2183, %v2194
        %s2197 = sld [smem:[#allocation2 + $0x63]]
        %v2198 = vstv %s2197
        %v2199 = vmul.f32 %v2198, %v1909
        %v2200 = vadd.f32 %v2196, %v2199
        %s2201 = sld [smem:[#allocation2 + $0x64]]
        %v2202 = vstv %s2201
        %v2203 = vmul.f32 %v2202, %v1909
        %2205 = vrot.lane.b32.xlu0 %v2203, 127
        %v2206 = vpop.permute.xlu0 %2205
        %v2208 = vadd.f32 %v2200, %v2206
        %s2209 = sld [smem:[#allocation2 + $0x65]]
        %v2210 = vstv %s2209
        %v2211 = vmul.f32 %v2210, %v1909
        %2213 = vrot.lane.b32.xlu0 %v2211, 126
        %v2214 = vpop.permute.xlu0 %2213
        %v2216 = vadd.f32 %v2208, %v2214
        %s2217 = sld [smem:[#allocation2 + $0x66]]
        %v2218 = vstv %s2217
        %v2219 = vmul.f32 %v2218, %v1909
        %v2220 = vmul.f32 %v2218, %v1910
        %v2223 = vrot.slane %v2219, 1
        %v2224 = vrot.slane %v2220, 1
        %v2225 = vsel %vm398, %v2223, %v2224
        %v2227 = vadd.f32 %v2216, %v2225
        %s2228 = sld [smem:[#allocation2 + $0x67]]
        %v2229 = vstv %s2228
        %v2230 = vmul.f32 %v2229, %v1909
        %v2231 = vmul.f32 %v2229, %v1910
        %v2234 = vrot.slane %v2230, 1
        %v2235 = vrot.slane %v2231, 1
        %v2236 = vsel %vm398, %v2234, %v2235
        %2237 = vrot.lane.b32.xlu0 %v2236, 127
        %v2238 = vpop.permute.xlu0 %2237
        %v2240 = vadd.f32 %v2227, %v2238
        %s2241 = sld [smem:[#allocation2 + $0x68]]
        %v2242 = vstv %s2241
        %v2243 = vmul.f32 %v2242, %v1909
        %v2244 = vmul.f32 %v2242, %v1910
        %v2247 = vrot.slane %v2243, 1
        %v2248 = vrot.slane %v2244, 1
        %v2249 = vsel %vm398, %v2247, %v2248
        %2250 = vrot.lane.b32.xlu0 %v2249, 126
        %v2251 = vpop.permute.xlu0 %2250
        %v2253 = vadd.f32 %v2240, %v2251
        %s2254 = sld [smem:[#allocation2 + $0x69]]
        %v2255 = vstv %s2254
        %v2256 = vmul.f32 %v2255, %v1909
        %v2257 = vmul.f32 %v2255, %v1910
        %v2260 = vrot.slane %v2256, 2
        %v2261 = vrot.slane %v2257, 2
        %v2262 = vsel %vm458, %v2260, %v2261
        %v2264 = vadd.f32 %v2253, %v2262
        %s2265 = sld [smem:[#allocation2 + $0x6a]]
        %v2266 = vstv %s2265
        %v2267 = vmul.f32 %v2266, %v1909
        %v2268 = vmul.f32 %v2266, %v1910
        %v2271 = vrot.slane %v2267, 2
        %v2272 = vrot.slane %v2268, 2
        %v2273 = vsel %vm458, %v2271, %v2272
        %2274 = vrot.lane.b32.xlu0 %v2273, 127
        %v2275 = vpop.permute.xlu0 %2274
        %v2277 = vadd.f32 %v2264, %v2275
        %s2278 = sld [smem:[#allocation2 + $0x6b]]
        %v2279 = vstv %s2278
        %v2280 = vmul.f32 %v2279, %v1909
        %v2281 = vmul.f32 %v2279, %v1910
        %v2284 = vrot.slane %v2280, 2
        %v2285 = vrot.slane %v2281, 2
        %v2286 = vsel %vm458, %v2284, %v2285
        %2287 = vrot.lane.b32.xlu0 %v2286, 126
        %v2288 = vpop.permute.xlu0 %2287
        %v2290 = vadd.f32 %v2277, %v2288
        %s2291 = sld [smem:[#allocation7 + $0x4]]
        %v2292 = vstv %s2291
        %s2293 = sld [smem:[#allocation2 + $0x6c]]
        %v2294 = vstv %s2293
        %v2295 = vmul.f32 %v2294, %v1898
        %v2296 = vadd.f32 %v2292, %v2295
        %s2297 = sld [smem:[#allocation2 + $0x6d]]
        %v2298 = vstv %s2297
        %v2299 = vmul.f32 %v2298, %v1898
        %2301 = vrot.lane.b32.xlu0 %v2299, 127
        %v2302 = vpop.permute.xlu0 %2301
        %v2304 = vadd.f32 %v2296, %v2302
        %s2305 = sld [smem:[#allocation2 + $0x6e]]
        %v2306 = vstv %s2305
        %v2307 = vmul.f32 %v2306, %v1898
        %2309 = vrot.lane.b32.xlu0 %v2307, 126
        %v2310 = vpop.permute.xlu0 %2309
        %v2312 = vadd.f32 %v2304, %v2310
        %s2313 = sld [smem:[#allocation2 + $0x6f]]
        %v2314 = vstv %s2313
        %v2315 = vmul.f32 %v2314, %v1898
        %v2316 = vmul.f32 %v2314, %v1899
        %v2319 = vrot.slane %v2315, 1
        %v2320 = vrot.slane %v2316, 1
        %v2321 = vsel %vm398, %v2319, %v2320
        %v2323 = vadd.f32 %v2312, %v2321
        %s2324 = sld [smem:[#allocation2 + $0x70]]
        %v2325 = vstv %s2324
        %v2326 = vmul.f32 %v2325, %v1898
        %v2327 = vmul.f32 %v2325, %v1899
        %v2330 = vrot.slane %v2326, 1
        %v2331 = vrot.slane %v2327, 1
        %v2332 = vsel %vm398, %v2330, %v2331
        %2333 = vrot.lane.b32.xlu0 %v2332, 127
        %v2334 = vpop.permute.xlu0 %2333
        %v2336 = vadd.f32 %v2323, %v2334
        %s2337 = sld [smem:[#allocation2 + $0x71]]
        %v2338 = vstv %s2337
        %v2339 = vmul.f32 %v2338, %v1898
        %v2340 = vmul.f32 %v2338, %v1899
        %v2343 = vrot.slane %v2339, 1
        %v2344 = vrot.slane %v2340, 1
        %v2345 = vsel %vm398, %v2343, %v2344
        %2346 = vrot.lane.b32.xlu0 %v2345, 126
        %v2347 = vpop.permute.xlu0 %2346
        %v2349 = vadd.f32 %v2336, %v2347
        %s2350 = sld [smem:[#allocation2 + $0x72]]
        %v2351 = vstv %s2350
        %v2352 = vmul.f32 %v2351, %v1898
        %v2353 = vmul.f32 %v2351, %v1899
        %v2356 = vrot.slane %v2352, 2
        %v2357 = vrot.slane %v2353, 2
        %v2358 = vsel %vm458, %v2356, %v2357
        %v2360 = vadd.f32 %v2349, %v2358
        %s2361 = sld [smem:[#allocation2 + $0x73]]
        %v2362 = vstv %s2361
        %v2363 = vmul.f32 %v2362, %v1898
        %v2364 = vmul.f32 %v2362, %v1899
        %v2367 = vrot.slane %v2363, 2
        %v2368 = vrot.slane %v2364, 2
        %v2369 = vsel %vm458, %v2367, %v2368
        %2370 = vrot.lane.b32.xlu0 %v2369, 127
        %v2371 = vpop.permute.xlu0 %2370
        %v2373 = vadd.f32 %v2360, %v2371
        %s2374 = sld [smem:[#allocation2 + $0x74]]
        %v2375 = vstv %s2374
        %v2376 = vmul.f32 %v2375, %v1898
        %v2377 = vmul.f32 %v2375, %v1899
        %v2380 = vrot.slane %v2376, 2
        %v2381 = vrot.slane %v2377, 2
        %v2382 = vsel %vm458, %v2380, %v2381
        %2383 = vrot.lane.b32.xlu0 %v2382, 126
        %v2384 = vpop.permute.xlu0 %2383
        %v2386 = vadd.f32 %v2373, %v2384
        %s2387 = sld [smem:[#allocation2 + $0x75]]
        %v2388 = vstv %s2387
        %v2389 = vmul.f32 %v2388, %v1909
        %v2390 = vadd.f32 %v2386, %v2389
        %s2391 = sld [smem:[#allocation2 + $0x76]]
        %v2392 = vstv %s2391
        %v2393 = vmul.f32 %v2392, %v1909
        %2395 = vrot.lane.b32.xlu0 %v2393, 127
        %v2396 = vpop.permute.xlu0 %2395
        %v2398 = vadd.f32 %v2390, %v2396
        %s2399 = sld [smem:[#allocation2 + $0x77]]
        %v2400 = vstv %s2399
        %v2401 = vmul.f32 %v2400, %v1909
        %2403 = vrot.lane.b32.xlu0 %v2401, 126
        %v2404 = vpop.permute.xlu0 %2403
        %v2406 = vadd.f32 %v2398, %v2404
        %s2407 = sld [smem:[#allocation2 + $0x78]]
        %v2408 = vstv %s2407
        %v2409 = vmul.f32 %v2408, %v1909
        %v2410 = vmul.f32 %v2408, %v1910
        %v2413 = vrot.slane %v2409, 1
        %v2414 = vrot.slane %v2410, 1
        %v2415 = vsel %vm398, %v2413, %v2414
        %v2417 = vadd.f32 %v2406, %v2415
        %s2418 = sld [smem:[#allocation2 + $0x79]]
        %v2419 = vstv %s2418
        %v2420 = vmul.f32 %v2419, %v1909
        %v2421 = vmul.f32 %v2419, %v1910
        %v2424 = vrot.slane %v2420, 1
        %v2425 = vrot.slane %v2421, 1
        %v2426 = vsel %vm398, %v2424, %v2425
        %2427 = vrot.lane.b32.xlu0 %v2426, 127
        %v2428 = vpop.permute.xlu0 %2427
        %v2430 = vadd.f32 %v2417, %v2428
        %s2431 = sld [smem:[#allocation2 + $0x7a]]
        %v2432 = vstv %s2431
        %v2433 = vmul.f32 %v2432, %v1909
        %v2434 = vmul.f32 %v2432, %v1910
        %v2437 = vrot.slane %v2433, 1
        %v2438 = vrot.slane %v2434, 1
        %v2439 = vsel %vm398, %v2437, %v2438
        %2440 = vrot.lane.b32.xlu0 %v2439, 126
        %v2441 = vpop.permute.xlu0 %2440
        %v2443 = vadd.f32 %v2430, %v2441
        %s2444 = sld [smem:[#allocation2 + $0x7b]]
        %v2445 = vstv %s2444
        %v2446 = vmul.f32 %v2445, %v1909
        %v2447 = vmul.f32 %v2445, %v1910
        %v2450 = vrot.slane %v2446, 2
        %v2451 = vrot.slane %v2447, 2
        %v2452 = vsel %vm458, %v2450, %v2451
        %v2454 = vadd.f32 %v2443, %v2452
        %s2455 = sld [smem:[#allocation2 + $0x7c]]
        %v2456 = vstv %s2455
        %v2457 = vmul.f32 %v2456, %v1909
        %v2458 = vmul.f32 %v2456, %v1910
        %v2461 = vrot.slane %v2457, 2
        %v2462 = vrot.slane %v2458, 2
        %v2463 = vsel %vm458, %v2461, %v2462
        %2464 = vrot.lane.b32.xlu0 %v2463, 127
        %v2465 = vpop.permute.xlu0 %2464
        %v2467 = vadd.f32 %v2454, %v2465
        %s2468 = sld [smem:[#allocation2 + $0x7d]]
        %v2469 = vstv %s2468
        %v2470 = vmul.f32 %v2469, %v1909
        %v2471 = vmul.f32 %v2469, %v1910
        %v2474 = vrot.slane %v2470, 2
        %v2475 = vrot.slane %v2471, 2
        %v2476 = vsel %vm458, %v2474, %v2475
        %2477 = vrot.lane.b32.xlu0 %v2476, 126
        %v2478 = vpop.permute.xlu0 %2477
        %v2480 = vadd.f32 %v2467, %v2478
        %s2481 = sld [smem:[#allocation7 + $0x5]]
        %v2482 = vstv %s2481
        %s2483 = sld [smem:[#allocation2 + $0x7e]]
        %v2484 = vstv %s2483
        %v2485 = vmul.f32 %v2484, %v1898
        %v2486 = vadd.f32 %v2482, %v2485
        %s2487 = sld [smem:[#allocation2 + $0x7f]]
        %v2488 = vstv %s2487
        %v2489 = vmul.f32 %v2488, %v1898
        %2491 = vrot.lane.b32.xlu0 %v2489, 127
        %v2492 = vpop.permute.xlu0 %2491
        %v2494 = vadd.f32 %v2486, %v2492
        %s2495 = sld [smem:[#allocation2 + $0x80]]
        %v2496 = vstv %s2495
        %v2497 = vmul.f32 %v2496, %v1898
        %2499 = vrot.lane.b32.xlu0 %v2497, 126
        %v2500 = vpop.permute.xlu0 %2499
        %v2502 = vadd.f32 %v2494, %v2500
        %s2503 = sld [smem:[#allocation2 + $0x81]]
        %v2504 = vstv %s2503
        %v2505 = vmul.f32 %v2504, %v1898
        %v2506 = vmul.f32 %v2504, %v1899
        %v2509 = vrot.slane %v2505, 1
        %v2510 = vrot.slane %v2506, 1
        %v2511 = vsel %vm398, %v2509, %v2510
        %v2513 = vadd.f32 %v2502, %v2511
        %s2514 = sld [smem:[#allocation2 + $0x82]]
        %v2515 = vstv %s2514
        %v2516 = vmul.f32 %v2515, %v1898
        %v2517 = vmul.f32 %v2515, %v1899
        %v2520 = vrot.slane %v2516, 1
        %v2521 = vrot.slane %v2517, 1
        %v2522 = vsel %vm398, %v2520, %v2521
        %2523 = vrot.lane.b32.xlu0 %v2522, 127
        %v2524 = vpop.permute.xlu0 %2523
        %v2526 = vadd.f32 %v2513, %v2524
        %s2527 = sld [smem:[#allocation2 + $0x83]]
        %v2528 = vstv %s2527
        %v2529 = vmul.f32 %v2528, %v1898
        %v2530 = vmul.f32 %v2528, %v1899
        %v2533 = vrot.slane %v2529, 1
        %v2534 = vrot.slane %v2530, 1
        %v2535 = vsel %vm398, %v2533, %v2534
        %2536 = vrot.lane.b32.xlu0 %v2535, 126
        %v2537 = vpop.permute.xlu0 %2536
        %v2539 = vadd.f32 %v2526, %v2537
        %s2540 = sld [smem:[#allocation2 + $0x84]]
        %v2541 = vstv %s2540
        %v2542 = vmul.f32 %v2541, %v1898
        %v2543 = vmul.f32 %v2541, %v1899
        %v2546 = vrot.slane %v2542, 2
        %v2547 = vrot.slane %v2543, 2
        %v2548 = vsel %vm458, %v2546, %v2547
        %v2550 = vadd.f32 %v2539, %v2548
        %s2551 = sld [smem:[#allocation2 + $0x85]]
        %v2552 = vstv %s2551
        %v2553 = vmul.f32 %v2552, %v1898
        %v2554 = vmul.f32 %v2552, %v1899
        %v2557 = vrot.slane %v2553, 2
        %v2558 = vrot.slane %v2554, 2
        %v2559 = vsel %vm458, %v2557, %v2558
        %2560 = vrot.lane.b32.xlu0 %v2559, 127
        %v2561 = vpop.permute.xlu0 %2560
        %v2563 = vadd.f32 %v2550, %v2561
        %s2564 = sld [smem:[#allocation2 + $0x86]]
        %v2565 = vstv %s2564
        %v2566 = vmul.f32 %v2565, %v1898
        %v2567 = vmul.f32 %v2565, %v1899
        %v2570 = vrot.slane %v2566, 2
        %v2571 = vrot.slane %v2567, 2
        %v2572 = vsel %vm458, %v2570, %v2571
        %2573 = vrot.lane.b32.xlu0 %v2572, 126
        %v2574 = vpop.permute.xlu0 %2573
        %v2576 = vadd.f32 %v2563, %v2574
        %s2577 = sld [smem:[#allocation2 + $0x87]]
        %v2578 = vstv %s2577
        %v2579 = vmul.f32 %v2578, %v1909
        %v2580 = vadd.f32 %v2576, %v2579
        %s2581 = sld [smem:[#allocation2 + $0x88]]
        %v2582 = vstv %s2581
        %v2583 = vmul.f32 %v2582, %v1909
        %2585 = vrot.lane.b32.xlu0 %v2583, 127
        %v2586 = vpop.permute.xlu0 %2585
        %v2588 = vadd.f32 %v2580, %v2586
        %s2589 = sld [smem:[#allocation2 + $0x89]]
        %v2590 = vstv %s2589
        %v2591 = vmul.f32 %v2590, %v1909
        %2593 = vrot.lane.b32.xlu0 %v2591, 126
        %v2594 = vpop.permute.xlu0 %2593
        %v2596 = vadd.f32 %v2588, %v2594
        %s2597 = sld [smem:[#allocation2 + $0x8a]]
        %v2598 = vstv %s2597
        %v2599 = vmul.f32 %v2598, %v1909
        %v2600 = vmul.f32 %v2598, %v1910
        %v2603 = vrot.slane %v2599, 1
        %v2604 = vrot.slane %v2600, 1
        %v2605 = vsel %vm398, %v2603, %v2604
        %v2607 = vadd.f32 %v2596, %v2605
        %s2608 = sld [smem:[#allocation2 + $0x8b]]
        %v2609 = vstv %s2608
        %v2610 = vmul.f32 %v2609, %v1909
        %v2611 = vmul.f32 %v2609, %v1910
        %v2614 = vrot.slane %v2610, 1
        %v2615 = vrot.slane %v2611, 1
        %v2616 = vsel %vm398, %v2614, %v2615
        %2617 = vrot.lane.b32.xlu0 %v2616, 127
        %v2618 = vpop.permute.xlu0 %2617
        %v2620 = vadd.f32 %v2607, %v2618
        %s2621 = sld [smem:[#allocation2 + $0x8c]]
        %v2622 = vstv %s2621
        %v2623 = vmul.f32 %v2622, %v1909
        %v2624 = vmul.f32 %v2622, %v1910
        %v2627 = vrot.slane %v2623, 1
        %v2628 = vrot.slane %v2624, 1
        %v2629 = vsel %vm398, %v2627, %v2628
        %2630 = vrot.lane.b32.xlu0 %v2629, 126
        %v2631 = vpop.permute.xlu0 %2630
        %v2633 = vadd.f32 %v2620, %v2631
        %s2634 = sld [smem:[#allocation2 + $0x8d]]
        %v2635 = vstv %s2634
        %v2636 = vmul.f32 %v2635, %v1909
        %v2637 = vmul.f32 %v2635, %v1910
        %v2640 = vrot.slane %v2636, 2
        %v2641 = vrot.slane %v2637, 2
        %v2642 = vsel %vm458, %v2640, %v2641
        %v2644 = vadd.f32 %v2633, %v2642
        %s2645 = sld [smem:[#allocation2 + $0x8e]]
        %v2646 = vstv %s2645
        %v2647 = vmul.f32 %v2646, %v1909
        %v2648 = vmul.f32 %v2646, %v1910
        %v2651 = vrot.slane %v2647, 2
        %v2652 = vrot.slane %v2648, 2
        %v2653 = vsel %vm458, %v2651, %v2652
        %2654 = vrot.lane.b32.xlu0 %v2653, 127
        %v2655 = vpop.permute.xlu0 %2654
        %v2657 = vadd.f32 %v2644, %v2655
        %s2658 = sld [smem:[#allocation2 + $0x8f]]
        %v2659 = vstv %s2658
        %v2660 = vmul.f32 %v2659, %v1909
        %v2661 = vmul.f32 %v2659, %v1910
        %v2664 = vrot.slane %v2660, 2
        %v2665 = vrot.slane %v2661, 2
        %v2666 = vsel %vm458, %v2664, %v2665
        %2667 = vrot.lane.b32.xlu0 %v2666, 126
        %v2668 = vpop.permute.xlu0 %2667
        %v2670 = vadd.f32 %v2657, %v2668
        %vm2671 = vcmask 64512
        %v2672 = vsel %vm2671, %v1583, 0
        %2674 = vmatprep.subr.mxu0 0.0
        %2675 = vmatpush1.msra.mxu0 %v2100
        %2676 = vmatprep.subr.mxu0 0.0
        %2677 = vmatpush1.msra.mxu0 0.0
        %2678 = vmatprep.subr.mxu0 0.0
        %2679 = vmatpush1.msra.mxu0 0.0
        %2680 = vmatprep.subr.mxu0 0.0
        %2681 = vmatpush1.msra.mxu0 0.0
        %2682 = vmatprep.subr.mxu0 0.0
        %2683 = vmatpush1.msra.mxu0 0.0
        %2684 = vmatprep.subr.mxu0 0.0
        %2685 = vmatpush1.msra.mxu0 0.0
        %2686 = vmatprep.subr.mxu0 0.0
        %2687 = vmatpush1.msra.mxu0 0.0
        %2688 = vmatprep.subr.mxu0 0.0
        %2689 = vmatpush1.msra.mxu0 0.0
        %2690 = vmatprep.subr.mxu0 0.0
        %2691 = vmatpush1.msra.mxu0 0.0
        %2692 = vmatprep.subr.mxu0 0.0
        %2693 = vmatpush1.msra.mxu0 0.0
        %2694 = vmatprep.subr.mxu0 0.0
        %2695 = vmatpush1.msra.mxu0 0.0
        %2696 = vmatprep.subr.mxu0 0.0
        %2697 = vmatpush1.msra.mxu0 0.0
        %2698 = vmatprep.subr.mxu0 0.0
        %2699 = vmatpush1.msra.mxu0 0.0
        %2700 = vmatprep.subr.mxu0 0.0
        %2701 = vmatpush1.msra.mxu0 0.0
        %2702 = vmatprep.subr.mxu0 0.0
        %2703 = vmatpush1.msra.mxu0 0.0
        %2704 = vmatprep.subr.mxu0 0.0
        %2705 = vmatpush1.msra.mxu0 0.0
        %2706 = vmatprep.subr.mxu0 0.0
        %2707 = vmatpush1.msra.mxu0 0.0
        %2708 = vmatprep.subr.mxu0 0.0
        %2709 = vmatpush1.msra.mxu0 0.0
        %2710 = vmatprep.subr.mxu0 0.0
        %2711 = vmatpush1.msra.mxu0 0.0
        %2712 = vmatprep.subr.mxu0 0.0
        %2713 = vmatpush1.msra.mxu0 0.0
        %2714 = vmatprep.subr.mxu0 0.0
        %2715 = vmatpush1.msra.mxu0 0.0
        %2716 = vmatprep.subr.mxu0 0.0
        %2717 = vmatpush1.msra.mxu0 0.0
        %2718 = vmatprep.subr.mxu0 0.0
        %2719 = vmatpush1.msra.mxu0 0.0
        %2720 = vmatprep.subr.mxu0 0.0
        %2721 = vmatpush1.msra.mxu0 0.0
        %2722 = vmatprep.subr.mxu0 0.0
        %2723 = vmatpush1.msra.mxu0 0.0
        %2724 = vmatprep.subr.mxu0 0.0
        %2725 = vmatpush1.msra.mxu0 0.0
        %2726 = vmatprep.subr.mxu0 0.0
        %2727 = vmatpush1.msra.mxu0 0.0
        %2728 = vmatprep.subr.mxu0 0.0
        %2729 = vmatpush1.msra.mxu0 0.0
        %2730 = vmatprep.subr.mxu0 0.0
        %2731 = vmatpush1.msra.mxu0 0.0
        %2732 = vmatprep.subr.mxu0 0.0
        %2733 = vmatpush1.msra.mxu0 0.0
        %2734 = vmatprep.subr.mxu0 0.0
        %2735 = vmatpush1.msra.mxu0 0.0
        %2736 = vmatprep.subr.mxu0 0.0
        %2737 = vmatpush1.msra.mxu0 0.0
        %2738 = vmatprep.mubr.f32.mxu0 0.0
        %2739 = vmatmul.mubr.f32.gmra.mrb[0].mxu0 %v2672
        %v2740 = vpop.f32.mrb[0].mxu0
        %v2741 = vadd.f32 0.0, %v2740
        %v2742 = vpop.f32.mrb[0].mxu0
        %2743 = vdwg.mxu0
        %v2745 = vsel %vm2671, %v2741, 0
        %2747 = vmatprep.subr.mxu0 0.0
        %2748 = vmatpush1.msra.mxu0 %v1590
        %2749 = vmatprep.subr.mxu0 0.0
        %2750 = vmatpush1.msra.mxu0 0.0
        %2751 = vmatprep.subr.mxu0 0.0
        %2752 = vmatpush1.msra.mxu0 0.0
        %2753 = vmatprep.subr.mxu0 0.0
        %2754 = vmatpush1.msra.mxu0 0.0
        %2755 = vmatprep.subr.mxu0 0.0
        %2756 = vmatpush1.msra.mxu0 0.0
        %2757 = vmatprep.subr.mxu0 0.0
        %2758 = vmatpush1.msra.mxu0 0.0
        %2759 = vmatprep.subr.mxu0 0.0
        %2760 = vmatpush1.msra.mxu0 0.0
        %2761 = vmatprep.subr.mxu0 0.0
        %2762 = vmatpush1.msra.mxu0 0.0
        %2763 = vmatprep.subr.mxu0 0.0
        %2764 = vmatpush1.msra.mxu0 0.0
        %2765 = vmatprep.subr.mxu0 0.0
        %2766 = vmatpush1.msra.mxu0 0.0
        %2767 = vmatprep.subr.mxu0 0.0
        %2768 = vmatpush1.msra.mxu0 0.0
        %2769 = vmatprep.subr.mxu0 0.0
        %2770 = vmatpush1.msra.mxu0 0.0
        %2771 = vmatprep.subr.mxu0 0.0
        %2772 = vmatpush1.msra.mxu0 0.0
        %2773 = vmatprep.subr.mxu0 0.0
        %2774 = vmatpush1.msra.mxu0 0.0
        %2775 = vmatprep.subr.mxu0 0.0
        %2776 = vmatpush1.msra.mxu0 0.0
        %2777 = vmatprep.subr.mxu0 0.0
        %2778 = vmatpush1.msra.mxu0 0.0
        %2779 = vmatprep.subr.mxu0 0.0
        %2780 = vmatpush1.msra.mxu0 0.0
        %2781 = vmatprep.subr.mxu0 0.0
        %2782 = vmatpush1.msra.mxu0 0.0
        %2783 = vmatprep.subr.mxu0 0.0
        %2784 = vmatpush1.msra.mxu0 0.0
        %2785 = vmatprep.subr.mxu0 0.0
        %2786 = vmatpush1.msra.mxu0 0.0
        %2787 = vmatprep.subr.mxu0 0.0
        %2788 = vmatpush1.msra.mxu0 0.0
        %2789 = vmatprep.subr.mxu0 0.0
        %2790 = vmatpush1.msra.mxu0 0.0
        %2791 = vmatprep.subr.mxu0 0.0
        %2792 = vmatpush1.msra.mxu0 0.0
        %2793 = vmatprep.subr.mxu0 0.0
        %2794 = vmatpush1.msra.mxu0 0.0
        %2795 = vmatprep.subr.mxu0 0.0
        %2796 = vmatpush1.msra.mxu0 0.0
        %2797 = vmatprep.subr.mxu0 0.0
        %2798 = vmatpush1.msra.mxu0 0.0
        %2799 = vmatprep.subr.mxu0 0.0
        %2800 = vmatpush1.msra.mxu0 0.0
        %2801 = vmatprep.subr.mxu0 0.0
        %2802 = vmatpush1.msra.mxu0 0.0
        %2803 = vmatprep.subr.mxu0 0.0
        %2804 = vmatpush1.msra.mxu0 0.0
        %2805 = vmatprep.subr.mxu0 0.0
        %2806 = vmatpush1.msra.mxu0 0.0
        %2807 = vmatprep.subr.mxu0 0.0
        %2808 = vmatpush1.msra.mxu0 0.0
        %2809 = vmatprep.subr.mxu0 0.0
        %2810 = vmatpush1.msra.mxu0 0.0
        %2811 = vmatprep.mubr.f32.mxu0 0.0
        %2812 = vmatmul.mubr.f32.gmra.mrb[0].mxu0 %v2745
        %v2813 = vpop.f32.mrb[0].mxu0
        %v2814 = vadd.f32 0.0, %v2813
        %v2815 = vpop.f32.mrb[0].mxu0
        %2816 = vdwg.mxu0
        %2817 = vmatprep.subr.mxu0 0.0
        %2818 = vmatpush1.msra.mxu0 %v2290
        %2819 = vmatprep.subr.mxu0 0.0
        %2820 = vmatpush1.msra.mxu0 0.0
        %2821 = vmatprep.subr.mxu0 0.0
        %2822 = vmatpush1.msra.mxu0 0.0
        %2823 = vmatprep.subr.mxu0 0.0
        %2824 = vmatpush1.msra.mxu0 0.0
        %2825 = vmatprep.subr.mxu0 0.0
        %2826 = vmatpush1.msra.mxu0 0.0
        %2827 = vmatprep.subr.mxu0 0.0
        %2828 = vmatpush1.msra.mxu0 0.0
        %2829 = vmatprep.subr.mxu0 0.0
        %2830 = vmatpush1.msra.mxu0 0.0
        %2831 = vmatprep.subr.mxu0 0.0
        %2832 = vmatpush1.msra.mxu0 0.0
        %2833 = vmatprep.subr.mxu0 0.0
        %2834 = vmatpush1.msra.mxu0 0.0
        %2835 = vmatprep.subr.mxu0 0.0
        %2836 = vmatpush1.msra.mxu0 0.0
        %2837 = vmatprep.subr.mxu0 0.0
        %2838 = vmatpush1.msra.mxu0 0.0
        %2839 = vmatprep.subr.mxu0 0.0
        %2840 = vmatpush1.msra.mxu0 0.0
        %2841 = vmatprep.subr.mxu0 0.0
        %2842 = vmatpush1.msra.mxu0 0.0
        %2843 = vmatprep.subr.mxu0 0.0
        %2844 = vmatpush1.msra.mxu0 0.0
        %2845 = vmatprep.subr.mxu0 0.0
        %2846 = vmatpush1.msra.mxu0 0.0
        %2847 = vmatprep.subr.mxu0 0.0
        %2848 = vmatpush1.msra.mxu0 0.0
        %2849 = vmatprep.subr.mxu0 0.0
        %2850 = vmatpush1.msra.mxu0 0.0
        %2851 = vmatprep.subr.mxu0 0.0
        %2852 = vmatpush1.msra.mxu0 0.0
        %2853 = vmatprep.subr.mxu0 0.0
        %2854 = vmatpush1.msra.mxu0 0.0
        %2855 = vmatprep.subr.mxu0 0.0
        %2856 = vmatpush1.msra.mxu0 0.0
        %2857 = vmatprep.subr.mxu0 0.0
        %2858 = vmatpush1.msra.mxu0 0.0
        %2859 = vmatprep.subr.mxu0 0.0
        %2860 = vmatpush1.msra.mxu0 0.0
        %2861 = vmatprep.subr.mxu0 0.0
        %2862 = vmatpush1.msra.mxu0 0.0
        %2863 = vmatprep.subr.mxu0 0.0
        %2864 = vmatpush1.msra.mxu0 0.0
        %2865 = vmatprep.subr.mxu0 0.0
        %2866 = vmatpush1.msra.mxu0 0.0
        %2867 = vmatprep.subr.mxu0 0.0
        %2868 = vmatpush1.msra.mxu0 0.0
        %2869 = vmatprep.subr.mxu0 0.0
        %2870 = vmatpush1.msra.mxu0 0.0
        %2871 = vmatprep.subr.mxu0 0.0
        %2872 = vmatpush1.msra.mxu0 0.0
        %2873 = vmatprep.subr.mxu0 0.0
        %2874 = vmatpush1.msra.mxu0 0.0
        %2875 = vmatprep.subr.mxu0 0.0
        %2876 = vmatpush1.msra.mxu0 0.0
        %2877 = vmatprep.subr.mxu0 0.0
        %2878 = vmatpush1.msra.mxu0 0.0
        %2879 = vmatprep.subr.mxu0 0.0
        %2880 = vmatpush1.msra.mxu0 0.0
        %2881 = vmatprep.mubr.f32.mxu0 0.0
        %2882 = vmatmul.mubr.f32.gmra.mrb[0].mxu0 %v2672
        %v2883 = vpop.f32.mrb[0].mxu0
        %v2884 = vadd.f32 0.0, %v2883
        %v2885 = vpop.f32.mrb[0].mxu0
        %2886 = vdwg.mxu0
        %v2888 = vsel %vm2671, %v2884, 0
        %2890 = vmatprep.subr.mxu0 0.0
        %2891 = vmatpush1.msra.mxu0 %v1590
        %2892 = vmatprep.subr.mxu0 0.0
        %2893 = vmatpush1.msra.mxu0 0.0
        %2894 = vmatprep.subr.mxu0 0.0
        %2895 = vmatpush1.msra.mxu0 0.0
        %2896 = vmatprep.subr.mxu0 0.0
        %2897 = vmatpush1.msra.mxu0 0.0
        %2898 = vmatprep.subr.mxu0 0.0
        %2899 = vmatpush1.msra.mxu0 0.0
        %2900 = vmatprep.subr.mxu0 0.0
        %2901 = vmatpush1.msra.mxu0 0.0
        %2902 = vmatprep.subr.mxu0 0.0
        %2903 = vmatpush1.msra.mxu0 0.0
        %2904 = vmatprep.subr.mxu0 0.0
        %2905 = vmatpush1.msra.mxu0 0.0
        %2906 = vmatprep.subr.mxu0 0.0
        %2907 = vmatpush1.msra.mxu0 0.0
        %2908 = vmatprep.subr.mxu0 0.0
        %2909 = vmatpush1.msra.mxu0 0.0
        %2910 = vmatprep.subr.mxu0 0.0
        %2911 = vmatpush1.msra.mxu0 0.0
        %2912 = vmatprep.subr.mxu0 0.0
        %2913 = vmatpush1.msra.mxu0 0.0
        %2914 = vmatprep.subr.mxu0 0.0
        %2915 = vmatpush1.msra.mxu0 0.0
        %2916 = vmatprep.subr.mxu0 0.0
        %2917 = vmatpush1.msra.mxu0 0.0
        %2918 = vmatprep.subr.mxu0 0.0
        %2919 = vmatpush1.msra.mxu0 0.0
        %2920 = vmatprep.subr.mxu0 0.0
        %2921 = vmatpush1.msra.mxu0 0.0
        %2922 = vmatprep.subr.mxu0 0.0
        %2923 = vmatpush1.msra.mxu0 0.0
        %2924 = vmatprep.subr.mxu0 0.0
        %2925 = vmatpush1.msra.mxu0 0.0
        %2926 = vmatprep.subr.mxu0 0.0
        %2927 = vmatpush1.msra.mxu0 0.0
        %2928 = vmatprep.subr.mxu0 0.0
        %2929 = vmatpush1.msra.mxu0 0.0
        %2930 = vmatprep.subr.mxu0 0.0
        %2931 = vmatpush1.msra.mxu0 0.0
        %2932 = vmatprep.subr.mxu0 0.0
        %2933 = vmatpush1.msra.mxu0 0.0
        %2934 = vmatprep.subr.mxu0 0.0
        %2935 = vmatpush1.msra.mxu0 0.0
        %2936 = vmatprep.subr.mxu0 0.0
        %2937 = vmatpush1.msra.mxu0 0.0
        %2938 = vmatprep.subr.mxu0 0.0
        %2939 = vmatpush1.msra.mxu0 0.0
        %2940 = vmatprep.subr.mxu0 0.0
        %2941 = vmatpush1.msra.mxu0 0.0
        %2942 = vmatprep.subr.mxu0 0.0
        %2943 = vmatpush1.msra.mxu0 0.0
        %2944 = vmatprep.subr.mxu0 0.0
        %2945 = vmatpush1.msra.mxu0 0.0
        %2946 = vmatprep.subr.mxu0 0.0
        %2947 = vmatpush1.msra.mxu0 0.0
        %2948 = vmatprep.subr.mxu0 0.0
        %2949 = vmatpush1.msra.mxu0 0.0
        %2950 = vmatprep.subr.mxu0 0.0
        %2951 = vmatpush1.msra.mxu0 0.0
        %2952 = vmatprep.subr.mxu0 0.0
        %2953 = vmatpush1.msra.mxu0 0.0
        %2954 = vmatprep.mubr.f32.mxu0 0.0
        %2955 = vmatmul.mubr.f32.gmra.mrb[0].mxu0 %v2888
        %v2956 = vpop.f32.mrb[0].mxu0
        %v2957 = vadd.f32 0.0, %v2956
        %v2958 = vpop.f32.mrb[0].mxu0
        %2959 = vdwg.mxu0
        %2960 = vmatprep.subr.mxu0 0.0
        %2961 = vmatpush1.msra.mxu0 %v2480
        %2962 = vmatprep.subr.mxu0 0.0
        %2963 = vmatpush1.msra.mxu0 0.0
        %2964 = vmatprep.subr.mxu0 0.0
        %2965 = vmatpush1.msra.mxu0 0.0
        %2966 = vmatprep.subr.mxu0 0.0
        %2967 = vmatpush1.msra.mxu0 0.0
        %2968 = vmatprep.subr.mxu0 0.0
        %2969 = vmatpush1.msra.mxu0 0.0
        %2970 = vmatprep.subr.mxu0 0.0
        %2971 = vmatpush1.msra.mxu0 0.0
        %2972 = vmatprep.subr.mxu0 0.0
        %2973 = vmatpush1.msra.mxu0 0.0
        %2974 = vmatprep.subr.mxu0 0.0
        %2975 = vmatpush1.msra.mxu0 0.0
        %2976 = vmatprep.subr.mxu0 0.0
        %2977 = vmatpush1.msra.mxu0 0.0
        %2978 = vmatprep.subr.mxu0 0.0
        %2979 = vmatpush1.msra.mxu0 0.0
        %2980 = vmatprep.subr.mxu0 0.0
        %2981 = vmatpush1.msra.mxu0 0.0
        %2982 = vmatprep.subr.mxu0 0.0
        %2983 = vmatpush1.msra.mxu0 0.0
        %2984 = vmatprep.subr.mxu0 0.0
        %2985 = vmatpush1.msra.mxu0 0.0
        %2986 = vmatprep.subr.mxu0 0.0
        %2987 = vmatpush1.msra.mxu0 0.0
        %2988 = vmatprep.subr.mxu0 0.0
        %2989 = vmatpush1.msra.mxu0 0.0
        %2990 = vmatprep.subr.mxu0 0.0
        %2991 = vmatpush1.msra.mxu0 0.0
        %2992 = vmatprep.subr.mxu0 0.0
        %2993 = vmatpush1.msra.mxu0 0.0
        %2994 = vmatprep.subr.mxu0 0.0
        %2995 = vmatpush1.msra.mxu0 0.0
        %2996 = vmatprep.subr.mxu0 0.0
        %2997 = vmatpush1.msra.mxu0 0.0
        %2998 = vmatprep.subr.mxu0 0.0
        %2999 = vmatpush1.msra.mxu0 0.0
        %3000 = vmatprep.subr.mxu0 0.0
        %3001 = vmatpush1.msra.mxu0 0.0
        %3002 = vmatprep.subr.mxu0 0.0
        %3003 = vmatpush1.msra.mxu0 0.0
        %3004 = vmatprep.subr.mxu0 0.0
        %3005 = vmatpush1.msra.mxu0 0.0
        %3006 = vmatprep.subr.mxu0 0.0
        %3007 = vmatpush1.msra.mxu0 0.0
        %3008 = vmatprep.subr.mxu0 0.0
        %3009 = vmatpush1.msra.mxu0 0.0
        %3010 = vmatprep.subr.mxu0 0.0
        %3011 = vmatpush1.msra.mxu0 0.0
        %3012 = vmatprep.subr.mxu0 0.0
        %3013 = vmatpush1.msra.mxu0 0.0
        %3014 = vmatprep.subr.mxu0 0.0
        %3015 = vmatpush1.msra.mxu0 0.0
        %3016 = vmatprep.subr.mxu0 0.0
        %3017 = vmatpush1.msra.mxu0 0.0
        %3018 = vmatprep.subr.mxu0 0.0
        %3019 = vmatpush1.msra.mxu0 0.0
        %3020 = vmatprep.subr.mxu0 0.0
        %3021 = vmatpush1.msra.mxu0 0.0
        %3022 = vmatprep.subr.mxu0 0.0
        %3023 = vmatpush1.msra.mxu0 0.0
        %3024 = vmatprep.mubr.f32.mxu0 0.0
        %3025 = vmatmul.mubr.f32.gmra.mrb[0].mxu0 %v2672
        %v3026 = vpop.f32.mrb[0].mxu0
        %v3027 = vadd.f32 0.0, %v3026
        %v3028 = vpop.f32.mrb[0].mxu0
        %3029 = vdwg.mxu0
        %v3031 = vsel %vm2671, %v3027, 0
        %3033 = vmatprep.subr.mxu0 0.0
        %3034 = vmatpush1.msra.mxu0 %v1590
        %3035 = vmatprep.subr.mxu0 0.0
        %3036 = vmatpush1.msra.mxu0 0.0
        %3037 = vmatprep.subr.mxu0 0.0
        %3038 = vmatpush1.msra.mxu0 0.0
        %3039 = vmatprep.subr.mxu0 0.0
        %3040 = vmatpush1.msra.mxu0 0.0
        %3041 = vmatprep.subr.mxu0 0.0
        %3042 = vmatpush1.msra.mxu0 0.0
        %3043 = vmatprep.subr.mxu0 0.0
        %3044 = vmatpush1.msra.mxu0 0.0
        %3045 = vmatprep.subr.mxu0 0.0
        %3046 = vmatpush1.msra.mxu0 0.0
        %3047 = vmatprep.subr.mxu0 0.0
        %3048 = vmatpush1.msra.mxu0 0.0
        %3049 = vmatprep.subr.mxu0 0.0
        %3050 = vmatpush1.msra.mxu0 0.0
        %3051 = vmatprep.subr.mxu0 0.0
        %3052 = vmatpush1.msra.mxu0 0.0
        %3053 = vmatprep.subr.mxu0 0.0
        %3054 = vmatpush1.msra.mxu0 0.0
        %3055 = vmatprep.subr.mxu0 0.0
        %3056 = vmatpush1.msra.mxu0 0.0
        %3057 = vmatprep.subr.mxu0 0.0
        %3058 = vmatpush1.msra.mxu0 0.0
        %3059 = vmatprep.subr.mxu0 0.0
        %3060 = vmatpush1.msra.mxu0 0.0
        %3061 = vmatprep.subr.mxu0 0.0
        %3062 = vmatpush1.msra.mxu0 0.0
        %3063 = vmatprep.subr.mxu0 0.0
        %3064 = vmatpush1.msra.mxu0 0.0
        %3065 = vmatprep.subr.mxu0 0.0
        %3066 = vmatpush1.msra.mxu0 0.0
        %3067 = vmatprep.subr.mxu0 0.0
        %3068 = vmatpush1.msra.mxu0 0.0
        %3069 = vmatprep.subr.mxu0 0.0
        %3070 = vmatpush1.msra.mxu0 0.0
        %3071 = vmatprep.subr.mxu0 0.0
        %3072 = vmatpush1.msra.mxu0 0.0
        %3073 = vmatprep.subr.mxu0 0.0
        %3074 = vmatpush1.msra.mxu0 0.0
        %3075 = vmatprep.subr.mxu0 0.0
        %3076 = vmatpush1.msra.mxu0 0.0
        %3077 = vmatprep.subr.mxu0 0.0
        %3078 = vmatpush1.msra.mxu0 0.0
        %3079 = vmatprep.subr.mxu0 0.0
        %3080 = vmatpush1.msra.mxu0 0.0
        %3081 = vmatprep.subr.mxu0 0.0
        %3082 = vmatpush1.msra.mxu0 0.0
        %3083 = vmatprep.subr.mxu0 0.0
        %3084 = vmatpush1.msra.mxu0 0.0
        %3085 = vmatprep.subr.mxu0 0.0
        %3086 = vmatpush1.msra.mxu0 0.0
        %3087 = vmatprep.subr.mxu0 0.0
        %3088 = vmatpush1.msra.mxu0 0.0
        %3089 = vmatprep.subr.mxu0 0.0
        %3090 = vmatpush1.msra.mxu0 0.0
        %3091 = vmatprep.subr.mxu0 0.0
        %3092 = vmatpush1.msra.mxu0 0.0
        %3093 = vmatprep.subr.mxu0 0.0
        %3094 = vmatpush1.msra.mxu0 0.0
        %3095 = vmatprep.subr.mxu0 0.0
        %3096 = vmatpush1.msra.mxu0 0.0
        %3097 = vmatprep.mubr.f32.mxu0 0.0
        %3098 = vmatmul.mubr.f32.gmra.mrb[0].mxu0 %v3031
        %v3099 = vpop.f32.mrb[0].mxu0
        %v3100 = vadd.f32 0.0, %v3099
        %v3101 = vpop.f32.mrb[0].mxu0
        %3102 = vdwg.mxu0
        %3103 = vmatprep.subr.mxu0 0.0
        %3104 = vmatpush1.msra.mxu0 %v2670
        %3105 = vmatprep.subr.mxu0 0.0
        %3106 = vmatpush1.msra.mxu0 0.0
        %3107 = vmatprep.subr.mxu0 0.0
        %3108 = vmatpush1.msra.mxu0 0.0
        %3109 = vmatprep.subr.mxu0 0.0
        %3110 = vmatpush1.msra.mxu0 0.0
        %3111 = vmatprep.subr.mxu0 0.0
        %3112 = vmatpush1.msra.mxu0 0.0
        %3113 = vmatprep.subr.mxu0 0.0
        %3114 = vmatpush1.msra.mxu0 0.0
        %3115 = vmatprep.subr.mxu0 0.0
        %3116 = vmatpush1.msra.mxu0 0.0
        %3117 = vmatprep.subr.mxu0 0.0
        %3118 = vmatpush1.msra.mxu0 0.0
        %3119 = vmatprep.subr.mxu0 0.0
        %3120 = vmatpush1.msra.mxu0 0.0
        %3121 = vmatprep.subr.mxu0 0.0
        %3122 = vmatpush1.msra.mxu0 0.0
        %3123 = vmatprep.subr.mxu0 0.0
        %3124 = vmatpush1.msra.mxu0 0.0
        %3125 = vmatprep.subr.mxu0 0.0
        %3126 = vmatpush1.msra.mxu0 0.0
        %3127 = vmatprep.subr.mxu0 0.0
        %3128 = vmatpush1.msra.mxu0 0.0
        %3129 = vmatprep.subr.mxu0 0.0
        %3130 = vmatpush1.msra.mxu0 0.0
        %3131 = vmatprep.subr.mxu0 0.0
        %3132 = vmatpush1.msra.mxu0 0.0
        %3133 = vmatprep.subr.mxu0 0.0
        %3134 = vmatpush1.msra.mxu0 0.0
        %3135 = vmatprep.subr.mxu0 0.0
        %3136 = vmatpush1.msra.mxu0 0.0
        %3137 = vmatprep.subr.mxu0 0.0
        %3138 = vmatpush1.msra.mxu0 0.0
        %3139 = vmatprep.subr.mxu0 0.0
        %3140 = vmatpush1.msra.mxu0 0.0
        %3141 = vmatprep.subr.mxu0 0.0
        %3142 = vmatpush1.msra.mxu0 0.0
        %3143 = vmatprep.subr.mxu0 0.0
        %3144 = vmatpush1.msra.mxu0 0.0
        %3145 = vmatprep.subr.mxu0 0.0
        %3146 = vmatpush1.msra.mxu0 0.0
        %3147 = vmatprep.subr.mxu0 0.0
        %3148 = vmatpush1.msra.mxu0 0.0
        %3149 = vmatprep.subr.mxu0 0.0
        %3150 = vmatpush1.msra.mxu0 0.0
        %3151 = vmatprep.subr.mxu0 0.0
        %3152 = vmatpush1.msra.mxu0 0.0
        %3153 = vmatprep.subr.mxu0 0.0
        %3154 = vmatpush1.msra.mxu0 0.0
        %3155 = vmatprep.subr.mxu0 0.0
        %3156 = vmatpush1.msra.mxu0 0.0
        %3157 = vmatprep.subr.mxu0 0.0
        %3158 = vmatpush1.msra.mxu0 0.0
        %3159 = vmatprep.subr.mxu0 0.0
        %3160 = vmatpush1.msra.mxu0 0.0
        %3161 = vmatprep.subr.mxu0 0.0
        %3162 = vmatpush1.msra.mxu0 0.0
        %3163 = vmatprep.subr.mxu0 0.0
        %3164 = vmatpush1.msra.mxu0 0.0
        %3165 = vmatprep.subr.mxu0 0.0
        %3166 = vmatpush1.msra.mxu0 0.0
        %3167 = vmatprep.mubr.f32.mxu0 0.0
        %3168 = vmatmul.mubr.f32.gmra.mrb[0].mxu0 %v2672
        %v3169 = vpop.f32.mrb[0].mxu0
        %v3170 = vadd.f32 0.0, %v3169
        %v3171 = vpop.f32.mrb[0].mxu0
        %3172 = vdwg.mxu0
        %v3174 = vsel %vm2671, %v3170, 0
        %3176 = vmatprep.subr.mxu0 0.0
        %3177 = vmatpush1.msra.mxu0 %v1590
        %3178 = vmatprep.subr.mxu0 0.0
        %3179 = vmatpush1.msra.mxu0 0.0
        %3180 = vmatprep.subr.mxu0 0.0
        %3181 = vmatpush1.msra.mxu0 0.0
        %3182 = vmatprep.subr.mxu0 0.0
        %3183 = vmatpush1.msra.mxu0 0.0
        %3184 = vmatprep.subr.mxu0 0.0
        %3185 = vmatpush1.msra.mxu0 0.0
        %3186 = vmatprep.subr.mxu0 0.0
        %3187 = vmatpush1.msra.mxu0 0.0
        %3188 = vmatprep.subr.mxu0 0.0
        %3189 = vmatpush1.msra.mxu0 0.0
        %3190 = vmatprep.subr.mxu0 0.0
        %3191 = vmatpush1.msra.mxu0 0.0
        %3192 = vmatprep.subr.mxu0 0.0
        %3193 = vmatpush1.msra.mxu0 0.0
        %3194 = vmatprep.subr.mxu0 0.0
        %3195 = vmatpush1.msra.mxu0 0.0
        %3196 = vmatprep.subr.mxu0 0.0
        %3197 = vmatpush1.msra.mxu0 0.0
        %3198 = vmatprep.subr.mxu0 0.0
        %3199 = vmatpush1.msra.mxu0 0.0
        %3200 = vmatprep.subr.mxu0 0.0
        %3201 = vmatpush1.msra.mxu0 0.0
        %3202 = vmatprep.subr.mxu0 0.0
        %3203 = vmatpush1.msra.mxu0 0.0
        %3204 = vmatprep.subr.mxu0 0.0
        %3205 = vmatpush1.msra.mxu0 0.0
        %3206 = vmatprep.subr.mxu0 0.0
        %3207 = vmatpush1.msra.mxu0 0.0
        %3208 = vmatprep.subr.mxu0 0.0
        %3209 = vmatpush1.msra.mxu0 0.0
        %3210 = vmatprep.subr.mxu0 0.0
        %3211 = vmatpush1.msra.mxu0 0.0
        %3212 = vmatprep.subr.mxu0 0.0
        %3213 = vmatpush1.msra.mxu0 0.0
        %3214 = vmatprep.subr.mxu0 0.0
        %3215 = vmatpush1.msra.mxu0 0.0
        %3216 = vmatprep.subr.mxu0 0.0
        %3217 = vmatpush1.msra.mxu0 0.0
        %3218 = vmatprep.subr.mxu0 0.0
        %3219 = vmatpush1.msra.mxu0 0.0
        %3220 = vmatprep.subr.mxu0 0.0
        %3221 = vmatpush1.msra.mxu0 0.0
        %3222 = vmatprep.subr.mxu0 0.0
        %3223 = vmatpush1.msra.mxu0 0.0
        %3224 = vmatprep.subr.mxu0 0.0
        %3225 = vmatpush1.msra.mxu0 0.0
        %3226 = vmatprep.subr.mxu0 0.0
        %3227 = vmatpush1.msra.mxu0 0.0
        %3228 = vmatprep.subr.mxu0 0.0
        %3229 = vmatpush1.msra.mxu0 0.0
        %3230 = vmatprep.subr.mxu0 0.0
        %3231 = vmatpush1.msra.mxu0 0.0
        %3232 = vmatprep.subr.mxu0 0.0
        %3233 = vmatpush1.msra.mxu0 0.0
        %3234 = vmatprep.subr.mxu0 0.0
        %3235 = vmatpush1.msra.mxu0 0.0
        %3236 = vmatprep.subr.mxu0 0.0
        %3237 = vmatpush1.msra.mxu0 0.0
        %3238 = vmatprep.subr.mxu0 0.0
        %3239 = vmatpush1.msra.mxu0 0.0
        %3240 = vmatprep.mubr.f32.mxu0 0.0
        %3241 = vmatmul.mubr.f32.gmra.mrb[0].mxu0 %v3174
        %v3242 = vpop.f32.mrb[0].mxu0
        %v3243 = vadd.f32 0.0, %v3242
        %v3244 = vpop.f32.mrb[0].mxu0
        %3245 = vdwg.mxu0
        %vm3246 = vcmp.ge.f32.partialorder %v2814, 0.0
        %v3247 = vmul.f32 %v2814, 0.01
        %v3248 = vsel %vm3246, %v2814, %v3247
        %vm3249 = vcmp.ge.f32.partialorder %v2957, 0.0
        %v3250 = vmul.f32 %v2957, 0.01
        %v3251 = vsel %vm3249, %v2957, %v3250
        %vm3252 = vcmp.ge.f32.partialorder %v3100, 0.0
        %v3253 = vmul.f32 %v3100, 0.01
        %v3254 = vsel %vm3252, %v3100, %v3253
        %vm3255 = vcmp.ge.f32.partialorder %v3243, 0.0
        %v3256 = vmul.f32 %v3243, 0.01
        %v3257 = vsel %vm3255, %v3243, %v3256
        %vm3258 = vcmask 27648
        %3259 = vst.msk [vmem:[%s251] sm:$0xf] %vm3258, %v3248
        %s3260 = scalar_lea.vmem %s251, 4 [#allocation10]
        %3261 = vst.msk [vmem:[%s3260] sm:$0xf] %vm3258, %v3251
        %s3262 = scalar_lea.vmem %s251, 8 [#allocation10]
        %3263 = vst.msk [vmem:[%s3262] sm:$0xf] %vm3258, %v3254
        %s3264 = scalar_lea.vmem %s251, 12 [#allocation10]
        %3265 = vst.msk [vmem:[%s3264] sm:$0xf] %vm3258, %v3257
        %vm3266 = vcmask 31744
        %v3267 = vsel %vm3266, %v3248, 0.0
        %vm3268 = vcmask 1043456
        %v3269 = vsel %vm3268, %v3267, 0.0
        %v3270 = vsel %vm3266, %v3251, 0.0
        %v3271 = vsel %vm3268, %v3270, 0.0
        %v3272 = vsel %vm3266, %v3254, 0.0
        %v3273 = vsel %vm3268, %v3272, 0.0
        %v3274 = vsel %vm3266, %v3257, 0.0
        %v3275 = vsel %vm3268, %v3274, 0.0
        %v3276 = vadd.s32 %v1585, 1
        %vm3277 = vcmp.eq.s32.totalorder %v1577, %v3276
        %v3278 = vsel %vm3277, 1, 0
        %v3279 = vcvt.s32.f32 %v3278
        %v3280 = vadd.s32 %v1580, 1
        %vm3281 = vcmp.eq.s32.totalorder %v1579, %v3280
        %v3282 = vsel %vm3281, 1, 0
        %v3283 = vcvt.s32.f32 %v3282
        %s3284 = sld [smem:[#allocation7 + $0x6]]
        %v3285 = vstv %s3284
        %s3286 = sld [smem:[#allocation2 + $0x94]]
        %v3287 = vstv %s3286
        %v3288 = vmul.f32 %v3287, %v3248
        %v3289 = vadd.f32 %v3285, %v3288
        %s3290 = sld [smem:[#allocation2 + $0x95]]
        %v3291 = vstv %s3290
        %v3292 = vmul.f32 %v3291, %v3248
        %v3293 = vadd.f32 %v3285, %v3292
        %s3294 = sld [smem:[#allocation2 + $0x93]]
        %v3295 = vstv %s3294
        %v3296 = vmul.f32 %v3295, %v3269
        %3298 = vrot.lane.b32.xlu0 %v3296, 127
        %v3299 = vpop.permute.xlu0 %3298
        %v3301 = vadd.f32 %v3293, %v3299
        %s3302 = sld [smem:[#allocation2 + $0x97]]
        %v3303 = vstv %s3302
        %v3304 = vmul.f32 %v3303, %v3248
        %v3305 = vadd.f32 %v3285, %v3304
        %s3306 = sld [smem:[#allocation2 + $0x91]]
        %v3307 = vstv %s3306
        %v3308 = vmul.f32 %v3307, %v3269
        %v3310 = vrot.slane %v3308, 1
        %v3312 = vadd.f32 %v3305, %v3310
        %s3313 = sld [smem:[#allocation2 + $0x98]]
        %v3314 = vstv %s3313
        %v3315 = vmul.f32 %v3314, %v3248
        %v3316 = vadd.f32 %v3285, %v3315
        %s3317 = sld [smem:[#allocation2 + $0x96]]
        %v3318 = vstv %s3317
        %v3319 = vmul.f32 %v3318, %v3269
        %3321 = vrot.lane.b32.xlu0 %v3319, 127
        %v3322 = vpop.permute.xlu0 %3321
        %v3324 = vadd.f32 %v3316, %v3322
        %s3325 = sld [smem:[#allocation2 + $0x92]]
        %v3326 = vstv %s3325
        %v3327 = vmul.f32 %v3326, %v3269
        %v3329 = vrot.slane %v3327, 1
        %v3331 = vadd.f32 %v3324, %v3329
        %s3332 = sld [smem:[#allocation2 + $0x90]]
        %v3333 = vstv %s3332
        %v3334 = vmul.f32 %v3333, %v3269
        %v3336 = vrot.slane %v3334, 1
        %3337 = vrot.lane.b32.xlu0 %v3336, 127
        %v3338 = vpop.permute.xlu0 %3337
        %v3340 = vadd.f32 %v3331, %v3338
        %s3341 = sld [smem:[#allocation2 + $0xa6]]
        %v3342 = vstv %s3341
        %v3343 = vmul.f32 %v3342, %v3251
        %v3344 = vadd.f32 %v3289, %v3343
        %s3345 = sld [smem:[#allocation2 + $0xa7]]
        %v3346 = vstv %s3345
        %v3347 = vmul.f32 %v3346, %v3251
        %v3348 = vadd.f32 %v3301, %v3347
        %s3349 = sld [smem:[#allocation2 + $0xa5]]
        %v3350 = vstv %s3349
        %v3351 = vmul.f32 %v3350, %v3271
        %3353 = vrot.lane.b32.xlu0 %v3351, 127
        %v3354 = vpop.permute.xlu0 %3353
        %v3356 = vadd.f32 %v3348, %v3354
        %s3357 = sld [smem:[#allocation2 + $0xa9]]
        %v3358 = vstv %s3357
        %v3359 = vmul.f32 %v3358, %v3251
        %v3360 = vadd.f32 %v3312, %v3359
        %s3361 = sld [smem:[#allocation2 + $0xa3]]
        %v3362 = vstv %s3361
        %v3363 = vmul.f32 %v3362, %v3271
        %v3365 = vrot.slane %v3363, 1
        %v3367 = vadd.f32 %v3360, %v3365
        %s3368 = sld [smem:[#allocation2 + $0xaa]]
        %v3369 = vstv %s3368
        %v3370 = vmul.f32 %v3369, %v3251
        %v3371 = vadd.f32 %v3340, %v3370
        %s3372 = sld [smem:[#allocation2 + $0xa8]]
        %v3373 = vstv %s3372
        %v3374 = vmul.f32 %v3373, %v3271
        %3376 = vrot.lane.b32.xlu0 %v3374, 127
        %v3377 = vpop.permute.xlu0 %3376
        %v3379 = vadd.f32 %v3371, %v3377
        %s3380 = sld [smem:[#allocation2 + $0xa4]]
        %v3381 = vstv %s3380
        %v3382 = vmul.f32 %v3381, %v3271
        %v3384 = vrot.slane %v3382, 1
        %v3386 = vadd.f32 %v3379, %v3384
        %s3387 = sld [smem:[#allocation2 + $0xa2]]
        %v3388 = vstv %s3387
        %v3389 = vmul.f32 %v3388, %v3271
        %v3391 = vrot.slane %v3389, 1
        %3392 = vrot.lane.b32.xlu0 %v3391, 127
        %v3393 = vpop.permute.xlu0 %3392
        %v3395 = vadd.f32 %v3386, %v3393
        %s3396 = sld [smem:[#allocation2 + $0xb8]]
        %v3397 = vstv %s3396
        %v3398 = vmul.f32 %v3397, %v3254
        %v3399 = vadd.f32 %v3344, %v3398
        %s3400 = sld [smem:[#allocation2 + $0xb9]]
        %v3401 = vstv %s3400
        %v3402 = vmul.f32 %v3401, %v3254
        %v3403 = vadd.f32 %v3356, %v3402
        %s3404 = sld [smem:[#allocation2 + $0xb7]]
        %v3405 = vstv %s3404
        %v3406 = vmul.f32 %v3405, %v3273
        %3408 = vrot.lane.b32.xlu0 %v3406, 127
        %v3409 = vpop.permute.xlu0 %3408
        %v3411 = vadd.f32 %v3403, %v3409
        %s3412 = sld [smem:[#allocation2 + $0xbb]]
        %v3413 = vstv %s3412
        %v3414 = vmul.f32 %v3413, %v3254
        %v3415 = vadd.f32 %v3367, %v3414
        %s3416 = sld [smem:[#allocation2 + $0xb5]]
        %v3417 = vstv %s3416
        %v3418 = vmul.f32 %v3417, %v3273
        %v3420 = vrot.slane %v3418, 1
        %v3422 = vadd.f32 %v3415, %v3420
        %s3423 = sld [smem:[#allocation2 + $0xbc]]
        %v3424 = vstv %s3423
        %v3425 = vmul.f32 %v3424, %v3254
        %v3426 = vadd.f32 %v3395, %v3425
        %s3427 = sld [smem:[#allocation2 + $0xba]]
        %v3428 = vstv %s3427
        %v3429 = vmul.f32 %v3428, %v3273
        %3431 = vrot.lane.b32.xlu0 %v3429, 127
        %v3432 = vpop.permute.xlu0 %3431
        %v3434 = vadd.f32 %v3426, %v3432
        %s3435 = sld [smem:[#allocation2 + $0xb6]]
        %v3436 = vstv %s3435
        %v3437 = vmul.f32 %v3436, %v3273
        %v3439 = vrot.slane %v3437, 1
        %v3441 = vadd.f32 %v3434, %v3439
        %s3442 = sld [smem:[#allocation2 + $0xb4]]
        %v3443 = vstv %s3442
        %v3444 = vmul.f32 %v3443, %v3273
        %v3446 = vrot.slane %v3444, 1
        %3447 = vrot.lane.b32.xlu0 %v3446, 127
        %v3448 = vpop.permute.xlu0 %3447
        %v3450 = vadd.f32 %v3441, %v3448
        %s3451 = sld [smem:[#allocation2 + $0xca]]
        %v3452 = vstv %s3451
        %v3453 = vmul.f32 %v3452, %v3257
        %v3454 = vadd.f32 %v3399, %v3453
        %s3455 = sld [smem:[#allocation2 + $0xcb]]
        %v3456 = vstv %s3455
        %v3457 = vmul.f32 %v3456, %v3257
        %v3458 = vadd.f32 %v3411, %v3457
        %s3459 = sld [smem:[#allocation2 + $0xc9]]
        %v3460 = vstv %s3459
        %v3461 = vmul.f32 %v3460, %v3275
        %3463 = vrot.lane.b32.xlu0 %v3461, 127
        %v3464 = vpop.permute.xlu0 %3463
        %v3466 = vadd.f32 %v3458, %v3464
        %s3467 = sld [smem:[#allocation2 + $0xcd]]
        %v3468 = vstv %s3467
        %v3469 = vmul.f32 %v3468, %v3257
        %v3470 = vadd.f32 %v3422, %v3469
        %s3471 = sld [smem:[#allocation2 + $0xc7]]
        %v3472 = vstv %s3471
        %v3473 = vmul.f32 %v3472, %v3275
        %v3475 = vrot.slane %v3473, 1
        %v3477 = vadd.f32 %v3470, %v3475
        %s3478 = sld [smem:[#allocation2 + $0xce]]
        %v3479 = vstv %s3478
        %v3480 = vmul.f32 %v3479, %v3257
        %v3481 = vadd.f32 %v3450, %v3480
        %s3482 = sld [smem:[#allocation2 + $0xcc]]
        %v3483 = vstv %s3482
        %v3484 = vmul.f32 %v3483, %v3275
        %3486 = vrot.lane.b32.xlu0 %v3484, 127
        %v3487 = vpop.permute.xlu0 %3486
        %v3489 = vadd.f32 %v3481, %v3487
        %s3490 = sld [smem:[#allocation2 + $0xc8]]
        %v3491 = vstv %s3490
        %v3492 = vmul.f32 %v3491, %v3275
        %v3494 = vrot.slane %v3492, 1
        %v3496 = vadd.f32 %v3489, %v3494
        %s3497 = sld [smem:[#allocation2 + $0xc6]]
        %v3498 = vstv %s3497
        %v3499 = vmul.f32 %v3498, %v3275
        %v3501 = vrot.slane %v3499, 1
        %3502 = vrot.lane.b32.xlu0 %v3501, 127
        %v3503 = vpop.permute.xlu0 %3502
        %v3505 = vadd.f32 %v3496, %v3503
        %v3507 = vsel %vm3266, %v3466, 0
        %v3510 = vsel %vm3268, %v3283, 0
        %3512 = vmatprep.subr.mxu0 0.0
        %3513 = vmatpush1.msra.mxu0 %v3510
        %3514 = vmatprep.subr.mxu0 0.0
        %3515 = vmatpush1.msra.mxu0 0.0
        %3516 = vmatprep.subr.mxu0 0.0
        %3517 = vmatpush1.msra.mxu0 0.0
        %3518 = vmatprep.subr.mxu0 0.0
        %3519 = vmatpush1.msra.mxu0 0.0
        %3520 = vmatprep.subr.mxu0 0.0
        %3521 = vmatpush1.msra.mxu0 0.0
        %3522 = vmatprep.subr.mxu0 0.0
        %3523 = vmatpush1.msra.mxu0 0.0
        %3524 = vmatprep.subr.mxu0 0.0
        %3525 = vmatpush1.msra.mxu0 0.0
        %3526 = vmatprep.subr.mxu0 0.0
        %3527 = vmatpush1.msra.mxu0 0.0
        %3528 = vmatprep.subr.mxu0 0.0
        %3529 = vmatpush1.msra.mxu0 0.0
        %3530 = vmatprep.subr.mxu0 0.0
        %3531 = vmatpush1.msra.mxu0 0.0
        %3532 = vmatprep.subr.mxu0 0.0
        %3533 = vmatpush1.msra.mxu0 0.0
        %3534 = vmatprep.subr.mxu0 0.0
        %3535 = vmatpush1.msra.mxu0 0.0
        %3536 = vmatprep.subr.mxu0 0.0
        %3537 = vmatpush1.msra.mxu0 0.0
        %3538 = vmatprep.subr.mxu0 0.0
        %3539 = vmatpush1.msra.mxu0 0.0
        %3540 = vmatprep.subr.mxu0 0.0
        %3541 = vmatpush1.msra.mxu0 0.0
        %3542 = vmatprep.subr.mxu0 0.0
        %3543 = vmatpush1.msra.mxu0 0.0
        %3544 = vmatprep.subr.mxu0 0.0
        %3545 = vmatpush1.msra.mxu0 0.0
        %3546 = vmatprep.subr.mxu0 0.0
        %3547 = vmatpush1.msra.mxu0 0.0
        %3548 = vmatprep.subr.mxu0 0.0
        %3549 = vmatpush1.msra.mxu0 0.0
        %3550 = vmatprep.subr.mxu0 0.0
        %3551 = vmatpush1.msra.mxu0 0.0
        %3552 = vmatprep.subr.mxu0 0.0
        %3553 = vmatpush1.msra.mxu0 0.0
        %3554 = vmatprep.subr.mxu0 0.0
        %3555 = vmatpush1.msra.mxu0 0.0
        %3556 = vmatprep.subr.mxu0 0.0
        %3557 = vmatpush1.msra.mxu0 0.0
        %3558 = vmatprep.subr.mxu0 0.0
        %3559 = vmatpush1.msra.mxu0 0.0
        %3560 = vmatprep.subr.mxu0 0.0
        %3561 = vmatpush1.msra.mxu0 0.0
        %3562 = vmatprep.subr.mxu0 0.0
        %3563 = vmatpush1.msra.mxu0 0.0
        %3564 = vmatprep.subr.mxu0 0.0
        %3565 = vmatpush1.msra.mxu0 0.0
        %3566 = vmatprep.subr.mxu0 0.0
        %3567 = vmatpush1.msra.mxu0 0.0
        %3568 = vmatprep.subr.mxu0 0.0
        %3569 = vmatpush1.msra.mxu0 0.0
        %3570 = vmatprep.subr.mxu0 0.0
        %3571 = vmatpush1.msra.mxu0 0.0
        %3572 = vmatprep.subr.mxu0 0.0
        %3573 = vmatpush1.msra.mxu0 0.0
        %3574 = vmatprep.subr.mxu0 0.0
        %3575 = vmatpush1.msra.mxu0 0.0
        %3576 = vmatprep.mubr.f32.mxu0 0.0
        %3577 = vmatmul.mubr.f32.gmra.mrb[0].mxu0 %v3507
        %v3578 = vpop.f32.mrb[0].mxu0
        %v3579 = vadd.f32 0.0, %v3578
        %v3580 = vpop.f32.mrb[0].mxu0
        %3581 = vdwg.mxu0
        %v3583 = vsel %vm3266, %v3454, 0
        %v3585 = vsel %vm3268, %v1583, 0
        %3587 = vmatprep.subr.mxu0 0.0
        %3588 = vmatpush1.msra.mxu0 %v3585
        %3589 = vmatprep.subr.mxu0 0.0
        %3590 = vmatpush1.msra.mxu0 0.0
        %3591 = vmatprep.subr.mxu0 0.0
        %3592 = vmatpush1.msra.mxu0 0.0
        %3593 = vmatprep.subr.mxu0 0.0
        %3594 = vmatpush1.msra.mxu0 0.0
        %3595 = vmatprep.subr.mxu0 0.0
        %3596 = vmatpush1.msra.mxu0 0.0
        %3597 = vmatprep.subr.mxu0 0.0
        %3598 = vmatpush1.msra.mxu0 0.0
        %3599 = vmatprep.subr.mxu0 0.0
        %3600 = vmatpush1.msra.mxu0 0.0
        %3601 = vmatprep.subr.mxu0 0.0
        %3602 = vmatpush1.msra.mxu0 0.0
        %3603 = vmatprep.subr.mxu0 0.0
        %3604 = vmatpush1.msra.mxu0 0.0
        %3605 = vmatprep.subr.mxu0 0.0
        %3606 = vmatpush1.msra.mxu0 0.0
        %3607 = vmatprep.subr.mxu0 0.0
        %3608 = vmatpush1.msra.mxu0 0.0
        %3609 = vmatprep.subr.mxu0 0.0
        %3610 = vmatpush1.msra.mxu0 0.0
        %3611 = vmatprep.subr.mxu0 0.0
        %3612 = vmatpush1.msra.mxu0 0.0
        %3613 = vmatprep.subr.mxu0 0.0
        %3614 = vmatpush1.msra.mxu0 0.0
        %3615 = vmatprep.subr.mxu0 0.0
        %3616 = vmatpush1.msra.mxu0 0.0
        %3617 = vmatprep.subr.mxu0 0.0
        %3618 = vmatpush1.msra.mxu0 0.0
        %3619 = vmatprep.subr.mxu0 0.0
        %3620 = vmatpush1.msra.mxu0 0.0
        %3621 = vmatprep.subr.mxu0 0.0
        %3622 = vmatpush1.msra.mxu0 0.0
        %3623 = vmatprep.subr.mxu0 0.0
        %3624 = vmatpush1.msra.mxu0 0.0
        %3625 = vmatprep.subr.mxu0 0.0
        %3626 = vmatpush1.msra.mxu0 0.0
        %3627 = vmatprep.subr.mxu0 0.0
        %3628 = vmatpush1.msra.mxu0 0.0
        %3629 = vmatprep.subr.mxu0 0.0
        %3630 = vmatpush1.msra.mxu0 0.0
        %3631 = vmatprep.subr.mxu0 0.0
        %3632 = vmatpush1.msra.mxu0 0.0
        %3633 = vmatprep.subr.mxu0 0.0
        %3634 = vmatpush1.msra.mxu0 0.0
        %3635 = vmatprep.subr.mxu0 0.0
        %3636 = vmatpush1.msra.mxu0 0.0
        %3637 = vmatprep.subr.mxu0 0.0
        %3638 = vmatpush1.msra.mxu0 0.0
        %3639 = vmatprep.subr.mxu0 0.0
        %3640 = vmatpush1.msra.mxu0 0.0
        %3641 = vmatprep.subr.mxu0 0.0
        %3642 = vmatpush1.msra.mxu0 0.0
        %3643 = vmatprep.subr.mxu0 0.0
        %3644 = vmatpush1.msra.mxu0 0.0
        %3645 = vmatprep.subr.mxu0 0.0
        %3646 = vmatpush1.msra.mxu0 0.0
        %3647 = vmatprep.subr.mxu0 0.0
        %3648 = vmatpush1.msra.mxu0 0.0
        %3649 = vmatprep.subr.mxu0 0.0
        %3650 = vmatpush1.msra.mxu0 0.0
        %3651 = vmatprep.mubr.f32.mxu0 0.0
        %3652 = vmatmul.mubr.f32.gmra.mrb[0].mxu0 %v3583
        %v3653 = vpop.f32.mrb[0].mxu0
        %v3654 = vadd.f32 %v3579, %v3653
        %v3655 = vpop.f32.mrb[0].mxu0
        %3656 = vdwg.mxu0
        %v3658 = vsel %vm3266, %v3505, 0
        %3660 = vmatprep.subr.mxu0 0.0
        %3661 = vmatpush1.msra.mxu0 %v3510
        %3662 = vmatprep.subr.mxu0 0.0
        %3663 = vmatpush1.msra.mxu0 0.0
        %3664 = vmatprep.subr.mxu0 0.0
        %3665 = vmatpush1.msra.mxu0 0.0
        %3666 = vmatprep.subr.mxu0 0.0
        %3667 = vmatpush1.msra.mxu0 0.0
        %3668 = vmatprep.subr.mxu0 0.0
        %3669 = vmatpush1.msra.mxu0 0.0
        %3670 = vmatprep.subr.mxu0 0.0
        %3671 = vmatpush1.msra.mxu0 0.0
        %3672 = vmatprep.subr.mxu0 0.0
        %3673 = vmatpush1.msra.mxu0 0.0
        %3674 = vmatprep.subr.mxu0 0.0
        %3675 = vmatpush1.msra.mxu0 0.0
        %3676 = vmatprep.subr.mxu0 0.0
        %3677 = vmatpush1.msra.mxu0 0.0
        %3678 = vmatprep.subr.mxu0 0.0
        %3679 = vmatpush1.msra.mxu0 0.0
        %3680 = vmatprep.subr.mxu0 0.0
        %3681 = vmatpush1.msra.mxu0 0.0
        %3682 = vmatprep.subr.mxu0 0.0
        %3683 = vmatpush1.msra.mxu0 0.0
        %3684 = vmatprep.subr.mxu0 0.0
        %3685 = vmatpush1.msra.mxu0 0.0
        %3686 = vmatprep.subr.mxu0 0.0
        %3687 = vmatpush1.msra.mxu0 0.0
        %3688 = vmatprep.subr.mxu0 0.0
        %3689 = vmatpush1.msra.mxu0 0.0
        %3690 = vmatprep.subr.mxu0 0.0
        %3691 = vmatpush1.msra.mxu0 0.0
        %3692 = vmatprep.subr.mxu0 0.0
        %3693 = vmatpush1.msra.mxu0 0.0
        %3694 = vmatprep.subr.mxu0 0.0
        %3695 = vmatpush1.msra.mxu0 0.0
        %3696 = vmatprep.subr.mxu0 0.0
        %3697 = vmatpush1.msra.mxu0 0.0
        %3698 = vmatprep.subr.mxu0 0.0
        %3699 = vmatpush1.msra.mxu0 0.0
        %3700 = vmatprep.subr.mxu0 0.0
        %3701 = vmatpush1.msra.mxu0 0.0
        %3702 = vmatprep.subr.mxu0 0.0
        %3703 = vmatpush1.msra.mxu0 0.0
        %3704 = vmatprep.subr.mxu0 0.0
        %3705 = vmatpush1.msra.mxu0 0.0
        %3706 = vmatprep.subr.mxu0 0.0
        %3707 = vmatpush1.msra.mxu0 0.0
        %3708 = vmatprep.subr.mxu0 0.0
        %3709 = vmatpush1.msra.mxu0 0.0
        %3710 = vmatprep.subr.mxu0 0.0
        %3711 = vmatpush1.msra.mxu0 0.0
        %3712 = vmatprep.subr.mxu0 0.0
        %3713 = vmatpush1.msra.mxu0 0.0
        %3714 = vmatprep.subr.mxu0 0.0
        %3715 = vmatpush1.msra.mxu0 0.0
        %3716 = vmatprep.subr.mxu0 0.0
        %3717 = vmatpush1.msra.mxu0 0.0
        %3718 = vmatprep.subr.mxu0 0.0
        %3719 = vmatpush1.msra.mxu0 0.0
        %3720 = vmatprep.subr.mxu0 0.0
        %3721 = vmatpush1.msra.mxu0 0.0
        %3722 = vmatprep.subr.mxu0 0.0
        %3723 = vmatpush1.msra.mxu0 0.0
        %3724 = vmatprep.mubr.f32.mxu0 0.0
        %3725 = vmatmul.mubr.f32.gmra.mrb[0].mxu0 %v3658
        %v3726 = vpop.f32.mrb[0].mxu0
        %v3727 = vadd.f32 0.0, %v3726
        %v3728 = vpop.f32.mrb[0].mxu0
        %3729 = vdwg.mxu0
        %v3731 = vsel %vm3266, %v3477, 0
        %3733 = vmatprep.subr.mxu0 0.0
        %3734 = vmatpush1.msra.mxu0 %v3585
        %3735 = vmatprep.subr.mxu0 0.0
        %3736 = vmatpush1.msra.mxu0 0.0
        %3737 = vmatprep.subr.mxu0 0.0
        %3738 = vmatpush1.msra.mxu0 0.0
        %3739 = vmatprep.subr.mxu0 0.0
        %3740 = vmatpush1.msra.mxu0 0.0
        %3741 = vmatprep.subr.mxu0 0.0
        %3742 = vmatpush1.msra.mxu0 0.0
        %3743 = vmatprep.subr.mxu0 0.0
        %3744 = vmatpush1.msra.mxu0 0.0
        %3745 = vmatprep.subr.mxu0 0.0
        %3746 = vmatpush1.msra.mxu0 0.0
        %3747 = vmatprep.subr.mxu0 0.0
        %3748 = vmatpush1.msra.mxu0 0.0
        %3749 = vmatprep.subr.mxu0 0.0
        %3750 = vmatpush1.msra.mxu0 0.0
        %3751 = vmatprep.subr.mxu0 0.0
        %3752 = vmatpush1.msra.mxu0 0.0
        %3753 = vmatprep.subr.mxu0 0.0
        %3754 = vmatpush1.msra.mxu0 0.0
        %3755 = vmatprep.subr.mxu0 0.0
        %3756 = vmatpush1.msra.mxu0 0.0
        %3757 = vmatprep.subr.mxu0 0.0
        %3758 = vmatpush1.msra.mxu0 0.0
        %3759 = vmatprep.subr.mxu0 0.0
        %3760 = vmatpush1.msra.mxu0 0.0
        %3761 = vmatprep.subr.mxu0 0.0
        %3762 = vmatpush1.msra.mxu0 0.0
        %3763 = vmatprep.subr.mxu0 0.0
        %3764 = vmatpush1.msra.mxu0 0.0
        %3765 = vmatprep.subr.mxu0 0.0
        %3766 = vmatpush1.msra.mxu0 0.0
        %3767 = vmatprep.subr.mxu0 0.0
        %3768 = vmatpush1.msra.mxu0 0.0
        %3769 = vmatprep.subr.mxu0 0.0
        %3770 = vmatpush1.msra.mxu0 0.0
        %3771 = vmatprep.subr.mxu0 0.0
        %3772 = vmatpush1.msra.mxu0 0.0
        %3773 = vmatprep.subr.mxu0 0.0
        %3774 = vmatpush1.msra.mxu0 0.0
        %3775 = vmatprep.subr.mxu0 0.0
        %3776 = vmatpush1.msra.mxu0 0.0
        %3777 = vmatprep.subr.mxu0 0.0
        %3778 = vmatpush1.msra.mxu0 0.0
        %3779 = vmatprep.subr.mxu0 0.0
        %3780 = vmatpush1.msra.mxu0 0.0
        %3781 = vmatprep.subr.mxu0 0.0
        %3782 = vmatpush1.msra.mxu0 0.0
        %3783 = vmatprep.subr.mxu0 0.0
        %3784 = vmatpush1.msra.mxu0 0.0
        %3785 = vmatprep.subr.mxu0 0.0
        %3786 = vmatpush1.msra.mxu0 0.0
        %3787 = vmatprep.subr.mxu0 0.0
        %3788 = vmatpush1.msra.mxu0 0.0
        %3789 = vmatprep.subr.mxu0 0.0
        %3790 = vmatpush1.msra.mxu0 0.0
        %3791 = vmatprep.subr.mxu0 0.0
        %3792 = vmatpush1.msra.mxu0 0.0
        %3793 = vmatprep.subr.mxu0 0.0
        %3794 = vmatpush1.msra.mxu0 0.0
        %3795 = vmatprep.subr.mxu0 0.0
        %3796 = vmatpush1.msra.mxu0 0.0
        %3797 = vmatprep.mubr.f32.mxu0 0.0
        %3798 = vmatmul.mubr.f32.gmra.mrb[0].mxu0 %v3731
        %v3799 = vpop.f32.mrb[0].mxu0
        %v3800 = vadd.f32 %v3727, %v3799
        %v3801 = vpop.f32.mrb[0].mxu0
        %3802 = vdwg.mxu0
        %v3804 = vsel %vm3266, %v3279, 0
        %v3807 = vsel %vm3268, %v3800, 0
        %3809 = vmatprep.subr.mxu0 0.0
        %3810 = vmatpush1.msra.mxu0 %v3807
        %3811 = vmatprep.subr.mxu0 0.0
        %3812 = vmatpush1.msra.mxu0 0.0
        %3813 = vmatprep.subr.mxu0 0.0
        %3814 = vmatpush1.msra.mxu0 0.0
        %3815 = vmatprep.subr.mxu0 0.0
        %3816 = vmatpush1.msra.mxu0 0.0
        %3817 = vmatprep.subr.mxu0 0.0
        %3818 = vmatpush1.msra.mxu0 0.0
        %3819 = vmatprep.subr.mxu0 0.0
        %3820 = vmatpush1.msra.mxu0 0.0
        %3821 = vmatprep.subr.mxu0 0.0
        %3822 = vmatpush1.msra.mxu0 0.0
        %3823 = vmatprep.subr.mxu0 0.0
        %3824 = vmatpush1.msra.mxu0 0.0
        %3825 = vmatprep.subr.mxu0 0.0
        %3826 = vmatpush1.msra.mxu0 0.0
        %3827 = vmatprep.subr.mxu0 0.0
        %3828 = vmatpush1.msra.mxu0 0.0
        %3829 = vmatprep.subr.mxu0 0.0
        %3830 = vmatpush1.msra.mxu0 0.0
        %3831 = vmatprep.subr.mxu0 0.0
        %3832 = vmatpush1.msra.mxu0 0.0
        %3833 = vmatprep.subr.mxu0 0.0
        %3834 = vmatpush1.msra.mxu0 0.0
        %3835 = vmatprep.subr.mxu0 0.0
        %3836 = vmatpush1.msra.mxu0 0.0
        %3837 = vmatprep.subr.mxu0 0.0
        %3838 = vmatpush1.msra.mxu0 0.0
        %3839 = vmatprep.subr.mxu0 0.0
        %3840 = vmatpush1.msra.mxu0 0.0
        %3841 = vmatprep.subr.mxu0 0.0
        %3842 = vmatpush1.msra.mxu0 0.0
        %3843 = vmatprep.subr.mxu0 0.0
        %3844 = vmatpush1.msra.mxu0 0.0
        %3845 = vmatprep.subr.mxu0 0.0
        %3846 = vmatpush1.msra.mxu0 0.0
        %3847 = vmatprep.subr.mxu0 0.0
        %3848 = vmatpush1.msra.mxu0 0.0
        %3849 = vmatprep.subr.mxu0 0.0
        %3850 = vmatpush1.msra.mxu0 0.0
        %3851 = vmatprep.subr.mxu0 0.0
        %3852 = vmatpush1.msra.mxu0 0.0
        %3853 = vmatprep.subr.mxu0 0.0
        %3854 = vmatpush1.msra.mxu0 0.0
        %3855 = vmatprep.subr.mxu0 0.0
        %3856 = vmatpush1.msra.mxu0 0.0
        %3857 = vmatprep.subr.mxu0 0.0
        %3858 = vmatpush1.msra.mxu0 0.0
        %3859 = vmatprep.subr.mxu0 0.0
        %3860 = vmatpush1.msra.mxu0 0.0
        %3861 = vmatprep.subr.mxu0 0.0
        %3862 = vmatpush1.msra.mxu0 0.0
        %3863 = vmatprep.subr.mxu0 0.0
        %3864 = vmatpush1.msra.mxu0 0.0
        %3865 = vmatprep.subr.mxu0 0.0
        %3866 = vmatpush1.msra.mxu0 0.0
        %3867 = vmatprep.subr.mxu0 0.0
        %3868 = vmatpush1.msra.mxu0 0.0
        %3869 = vmatprep.subr.mxu0 0.0
        %3870 = vmatpush1.msra.mxu0 0.0
        %3871 = vmatprep.subr.mxu0 0.0
        %3872 = vmatpush1.msra.mxu0 0.0
        %3873 = vmatprep.mubr.f32.mxu0 0.0
        %3874 = vmatmul.mubr.f32.gmra.mrb[0].mxu0 %v3804
        %v3875 = vpop.f32.mrb[0].mxu0
        %v3876 = vadd.f32 0.0, %v3875
        %v3877 = vpop.f32.mrb[0].mxu0
        %3878 = vdwg.mxu0
        %v3880 = vsel %vm3266, %v1590, 0
        %v3883 = vsel %vm3268, %v3654, 0
        %3885 = vmatprep.subr.mxu0 0.0
        %3886 = vmatpush1.msra.mxu0 %v3883
        %3887 = vmatprep.subr.mxu0 0.0
        %3888 = vmatpush1.msra.mxu0 0.0
        %3889 = vmatprep.subr.mxu0 0.0
        %3890 = vmatpush1.msra.mxu0 0.0
        %3891 = vmatprep.subr.mxu0 0.0
        %3892 = vmatpush1.msra.mxu0 0.0
        %3893 = vmatprep.subr.mxu0 0.0
        %3894 = vmatpush1.msra.mxu0 0.0
        %3895 = vmatprep.subr.mxu0 0.0
        %3896 = vmatpush1.msra.mxu0 0.0
        %3897 = vmatprep.subr.mxu0 0.0
        %3898 = vmatpush1.msra.mxu0 0.0
        %3899 = vmatprep.subr.mxu0 0.0
        %3900 = vmatpush1.msra.mxu0 0.0
        %3901 = vmatprep.subr.mxu0 0.0
        %3902 = vmatpush1.msra.mxu0 0.0
        %3903 = vmatprep.subr.mxu0 0.0
        %3904 = vmatpush1.msra.mxu0 0.0
        %3905 = vmatprep.subr.mxu0 0.0
        %3906 = vmatpush1.msra.mxu0 0.0
        %3907 = vmatprep.subr.mxu0 0.0
        %3908 = vmatpush1.msra.mxu0 0.0
        %3909 = vmatprep.subr.mxu0 0.0
        %3910 = vmatpush1.msra.mxu0 0.0
        %3911 = vmatprep.subr.mxu0 0.0
        %3912 = vmatpush1.msra.mxu0 0.0
        %3913 = vmatprep.subr.mxu0 0.0
        %3914 = vmatpush1.msra.mxu0 0.0
        %3915 = vmatprep.subr.mxu0 0.0
        %3916 = vmatpush1.msra.mxu0 0.0
        %3917 = vmatprep.subr.mxu0 0.0
        %3918 = vmatpush1.msra.mxu0 0.0
        %3919 = vmatprep.subr.mxu0 0.0
        %3920 = vmatpush1.msra.mxu0 0.0
        %3921 = vmatprep.subr.mxu0 0.0
        %3922 = vmatpush1.msra.mxu0 0.0
        %3923 = vmatprep.subr.mxu0 0.0
        %3924 = vmatpush1.msra.mxu0 0.0
        %3925 = vmatprep.subr.mxu0 0.0
        %3926 = vmatpush1.msra.mxu0 0.0
        %3927 = vmatprep.subr.mxu0 0.0
        %3928 = vmatpush1.msra.mxu0 0.0
        %3929 = vmatprep.subr.mxu0 0.0
        %3930 = vmatpush1.msra.mxu0 0.0
        %3931 = vmatprep.subr.mxu0 0.0
        %3932 = vmatpush1.msra.mxu0 0.0
        %3933 = vmatprep.subr.mxu0 0.0
        %3934 = vmatpush1.msra.mxu0 0.0
        %3935 = vmatprep.subr.mxu0 0.0
        %3936 = vmatpush1.msra.mxu0 0.0
        %3937 = vmatprep.subr.mxu0 0.0
        %3938 = vmatpush1.msra.mxu0 0.0
        %3939 = vmatprep.subr.mxu0 0.0
        %3940 = vmatpush1.msra.mxu0 0.0
        %3941 = vmatprep.subr.mxu0 0.0
        %3942 = vmatpush1.msra.mxu0 0.0
        %3943 = vmatprep.subr.mxu0 0.0
        %3944 = vmatpush1.msra.mxu0 0.0
        %3945 = vmatprep.subr.mxu0 0.0
        %3946 = vmatpush1.msra.mxu0 0.0
        %3947 = vmatprep.subr.mxu0 0.0
        %3948 = vmatpush1.msra.mxu0 0.0
        %3949 = vmatprep.mubr.f32.mxu0 0.0
        %3950 = vmatmul.mubr.f32.gmra.mrb[0].mxu0 %v3880
        %v3951 = vpop.f32.mrb[0].mxu0
        %v3952 = vadd.f32 %v3876, %v3951
        %v3953 = vpop.f32.mrb[0].mxu0
        %3954 = vdwg.mxu0
        %s3955 = sld [smem:[#allocation7 + $0x7]]
        %v3956 = vstv %s3955
        %s3957 = sld [smem:[#allocation2 + $0x9d]]
        %v3958 = vstv %s3957
        %v3959 = vmul.f32 %v3958, %v3248
        %v3960 = vadd.f32 %v3956, %v3959
        %s3961 = sld [smem:[#allocation2 + $0x9e]]
        %v3962 = vstv %s3961
        %v3963 = vmul.f32 %v3962, %v3248
        %v3964 = vadd.f32 %v3956, %v3963
        %s3965 = sld [smem:[#allocation2 + $0x9c]]
        %v3966 = vstv %s3965
        %v3967 = vmul.f32 %v3966, %v3269
        %3969 = vrot.lane.b32.xlu0 %v3967, 127
        %v3970 = vpop.permute.xlu0 %3969
        %v3972 = vadd.f32 %v3964, %v3970
        %s3973 = sld [smem:[#allocation2 + $0xa0]]
        %v3974 = vstv %s3973
        %v3975 = vmul.f32 %v3974, %v3248
        %v3976 = vadd.f32 %v3956, %v3975
        %s3977 = sld [smem:[#allocation2 + $0x9a]]
        %v3978 = vstv %s3977
        %v3979 = vmul.f32 %v3978, %v3269
        %v3981 = vrot.slane %v3979, 1
        %v3983 = vadd.f32 %v3976, %v3981
        %s3984 = sld [smem:[#allocation2 + $0xa1]]
        %v3985 = vstv %s3984
        %v3986 = vmul.f32 %v3985, %v3248
        %v3987 = vadd.f32 %v3956, %v3986
        %s3988 = sld [smem:[#allocation2 + $0x9f]]
        %v3989 = vstv %s3988
        %v3990 = vmul.f32 %v3989, %v3269
        %3992 = vrot.lane.b32.xlu0 %v3990, 127
        %v3993 = vpop.permute.xlu0 %3992
        %v3995 = vadd.f32 %v3987, %v3993
        %s3996 = sld [smem:[#allocation2 + $0x9b]]
        %v3997 = vstv %s3996
        %v3998 = vmul.f32 %v3997, %v3269
        %v4000 = vrot.slane %v3998, 1
        %v4002 = vadd.f32 %v3995, %v4000
        %s4003 = sld [smem:[#allocation2 + $0x99]]
        %v4004 = vstv %s4003
        %v4005 = vmul.f32 %v4004, %v3269
        %v4007 = vrot.slane %v4005, 1
        %4008 = vrot.lane.b32.xlu0 %v4007, 127
        %v4009 = vpop.permute.xlu0 %4008
        %v4011 = vadd.f32 %v4002, %v4009
        %s4012 = sld [smem:[#allocation2 + $0xaf]]
        %v4013 = vstv %s4012
        %v4014 = vmul.f32 %v4013, %v3251
        %v4015 = vadd.f32 %v3960, %v4014
        %s4016 = sld [smem:[#allocation2 + $0xb0]]
        %v4017 = vstv %s4016
        %v4018 = vmul.f32 %v4017, %v3251
        %v4019 = vadd.f32 %v3972, %v4018
        %s4020 = sld [smem:[#allocation2 + $0xae]]
        %v4021 = vstv %s4020
        %v4022 = vmul.f32 %v4021, %v3271
        %4024 = vrot.lane.b32.xlu0 %v4022, 127
        %v4025 = vpop.permute.xlu0 %4024
        %v4027 = vadd.f32 %v4019, %v4025
        %s4028 = sld [smem:[#allocation2 + $0xb2]]
        %v4029 = vstv %s4028
        %v4030 = vmul.f32 %v4029, %v3251
        %v4031 = vadd.f32 %v3983, %v4030
        %s4032 = sld [smem:[#allocation2 + $0xac]]
        %v4033 = vstv %s4032
        %v4034 = vmul.f32 %v4033, %v3271
        %v4036 = vrot.slane %v4034, 1
        %v4038 = vadd.f32 %v4031, %v4036
        %s4039 = sld [smem:[#allocation2 + $0xb3]]
        %v4040 = vstv %s4039
        %v4041 = vmul.f32 %v4040, %v3251
        %v4042 = vadd.f32 %v4011, %v4041
        %s4043 = sld [smem:[#allocation2 + $0xb1]]
        %v4044 = vstv %s4043
        %v4045 = vmul.f32 %v4044, %v3271
        %4047 = vrot.lane.b32.xlu0 %v4045, 127
        %v4048 = vpop.permute.xlu0 %4047
        %v4050 = vadd.f32 %v4042, %v4048
        %s4051 = sld [smem:[#allocation2 + $0xad]]
        %v4052 = vstv %s4051
        %v4053 = vmul.f32 %v4052, %v3271
        %v4055 = vrot.slane %v4053, 1
        %v4057 = vadd.f32 %v4050, %v4055
        %s4058 = sld [smem:[#allocation2 + $0xab]]
        %v4059 = vstv %s4058
        %v4060 = vmul.f32 %v4059, %v3271
        %v4062 = vrot.slane %v4060, 1
        %4063 = vrot.lane.b32.xlu0 %v4062, 127
        %v4064 = vpop.permute.xlu0 %4063
        %v4066 = vadd.f32 %v4057, %v4064
        %s4067 = sld [smem:[#allocation2 + $0xc1]]
        %v4068 = vstv %s4067
        %v4069 = vmul.f32 %v4068, %v3254
        %v4070 = vadd.f32 %v4015, %v4069
        %s4071 = sld [smem:[#allocation2 + $0xc2]]
        %v4072 = vstv %s4071
        %v4073 = vmul.f32 %v4072, %v3254
        %v4074 = vadd.f32 %v4027, %v4073
        %s4075 = sld [smem:[#allocation2 + $0xc0]]
        %v4076 = vstv %s4075
        %v4077 = vmul.f32 %v4076, %v3273
        %4079 = vrot.lane.b32.xlu0 %v4077, 127
        %v4080 = vpop.permute.xlu0 %4079
        %v4082 = vadd.f32 %v4074, %v4080
        %s4083 = sld [smem:[#allocation2 + $0xc4]]
        %v4084 = vstv %s4083
        %v4085 = vmul.f32 %v4084, %v3254
        %v4086 = vadd.f32 %v4038, %v4085
        %s4087 = sld [smem:[#allocation2 + $0xbe]]
        %v4088 = vstv %s4087
        %v4089 = vmul.f32 %v4088, %v3273
        %v4091 = vrot.slane %v4089, 1
        %v4093 = vadd.f32 %v4086, %v4091
        %s4094 = sld [smem:[#allocation2 + $0xc5]]
        %v4095 = vstv %s4094
        %v4096 = vmul.f32 %v4095, %v3254
        %v4097 = vadd.f32 %v4066, %v4096
        %s4098 = sld [smem:[#allocation2 + $0xc3]]
        %v4099 = vstv %s4098
        %v4100 = vmul.f32 %v4099, %v3273
        %4102 = vrot.lane.b32.xlu0 %v4100, 127
        %v4103 = vpop.permute.xlu0 %4102
        %v4105 = vadd.f32 %v4097, %v4103
        %s4106 = sld [smem:[#allocation2 + $0xbf]]
        %v4107 = vstv %s4106
        %v4108 = vmul.f32 %v4107, %v3273
        %v4110 = vrot.slane %v4108, 1
        %v4112 = vadd.f32 %v4105, %v4110
        %s4113 = sld [smem:[#allocation2 + $0xbd]]
        %v4114 = vstv %s4113
        %v4115 = vmul.f32 %v4114, %v3273
        %v4117 = vrot.slane %v4115, 1
        %4118 = vrot.lane.b32.xlu0 %v4117, 127
        %v4119 = vpop.permute.xlu0 %4118
        %v4121 = vadd.f32 %v4112, %v4119
        %s4122 = sld [smem:[#allocation2 + $0xd3]]
        %v4123 = vstv %s4122
        %v4124 = vmul.f32 %v4123, %v3257
        %v4125 = vadd.f32 %v4070, %v4124
        %s4126 = sld [smem:[#allocation2 + $0xd4]]
        %v4127 = vstv %s4126
        %v4128 = vmul.f32 %v4127, %v3257
        %v4129 = vadd.f32 %v4082, %v4128
        %s4130 = sld [smem:[#allocation2 + $0xd2]]
        %v4131 = vstv %s4130
        %v4132 = vmul.f32 %v4131, %v3275
        %4134 = vrot.lane.b32.xlu0 %v4132, 127
        %v4135 = vpop.permute.xlu0 %4134
        %v4137 = vadd.f32 %v4129, %v4135
        %s4138 = sld [smem:[#allocation2 + $0xd6]]
        %v4139 = vstv %s4138
        %v4140 = vmul.f32 %v4139, %v3257
        %v4141 = vadd.f32 %v4093, %v4140
        %s4142 = sld [smem:[#allocation2 + $0xd0]]
        %v4143 = vstv %s4142
        %v4144 = vmul.f32 %v4143, %v3275
        %v4146 = vrot.slane %v4144, 1
        %v4148 = vadd.f32 %v4141, %v4146
        %s4149 = sld [smem:[#allocation2 + $0xd7]]
        %v4150 = vstv %s4149
        %v4151 = vmul.f32 %v4150, %v3257
        %v4152 = vadd.f32 %v4121, %v4151
        %s4153 = sld [smem:[#allocation2 + $0xd5]]
        %v4154 = vstv %s4153
        %v4155 = vmul.f32 %v4154, %v3275
        %4157 = vrot.lane.b32.xlu0 %v4155, 127
        %v4158 = vpop.permute.xlu0 %4157
        %v4160 = vadd.f32 %v4152, %v4158
        %s4161 = sld [smem:[#allocation2 + $0xd1]]
        %v4162 = vstv %s4161
        %v4163 = vmul.f32 %v4162, %v3275
        %v4165 = vrot.slane %v4163, 1
        %v4167 = vadd.f32 %v4160, %v4165
        %s4168 = sld [smem:[#allocation2 + $0xcf]]
        %v4169 = vstv %s4168
        %v4170 = vmul.f32 %v4169, %v3275
        %v4172 = vrot.slane %v4170, 1
        %4173 = vrot.lane.b32.xlu0 %v4172, 127
        %v4174 = vpop.permute.xlu0 %4173
        %v4176 = vadd.f32 %v4167, %v4174
        %v4178 = vsel %vm3266, %v4137, 0
        %4180 = vmatprep.subr.mxu0 0.0
        %4181 = vmatpush1.msra.mxu0 %v3510
        %4182 = vmatprep.subr.mxu0 0.0
        %4183 = vmatpush1.msra.mxu0 0.0
        %4184 = vmatprep.subr.mxu0 0.0
        %4185 = vmatpush1.msra.mxu0 0.0
        %4186 = vmatprep.subr.mxu0 0.0
        %4187 = vmatpush1.msra.mxu0 0.0
        %4188 = vmatprep.subr.mxu0 0.0
        %4189 = vmatpush1.msra.mxu0 0.0
        %4190 = vmatprep.subr.mxu0 0.0
        %4191 = vmatpush1.msra.mxu0 0.0
        %4192 = vmatprep.subr.mxu0 0.0
        %4193 = vmatpush1.msra.mxu0 0.0
        %4194 = vmatprep.subr.mxu0 0.0
        %4195 = vmatpush1.msra.mxu0 0.0
        %4196 = vmatprep.subr.mxu0 0.0
        %4197 = vmatpush1.msra.mxu0 0.0
        %4198 = vmatprep.subr.mxu0 0.0
        %4199 = vmatpush1.msra.mxu0 0.0
        %4200 = vmatprep.subr.mxu0 0.0
        %4201 = vmatpush1.msra.mxu0 0.0
        %4202 = vmatprep.subr.mxu0 0.0
        %4203 = vmatpush1.msra.mxu0 0.0
        %4204 = vmatprep.subr.mxu0 0.0
        %4205 = vmatpush1.msra.mxu0 0.0
        %4206 = vmatprep.subr.mxu0 0.0
        %4207 = vmatpush1.msra.mxu0 0.0
        %4208 = vmatprep.subr.mxu0 0.0
        %4209 = vmatpush1.msra.mxu0 0.0
        %4210 = vmatprep.subr.mxu0 0.0
        %4211 = vmatpush1.msra.mxu0 0.0
        %4212 = vmatprep.subr.mxu0 0.0
        %4213 = vmatpush1.msra.mxu0 0.0
        %4214 = vmatprep.subr.mxu0 0.0
        %4215 = vmatpush1.msra.mxu0 0.0
        %4216 = vmatprep.subr.mxu0 0.0
        %4217 = vmatpush1.msra.mxu0 0.0
        %4218 = vmatprep.subr.mxu0 0.0
        %4219 = vmatpush1.msra.mxu0 0.0
        %4220 = vmatprep.subr.mxu0 0.0
        %4221 = vmatpush1.msra.mxu0 0.0
        %4222 = vmatprep.subr.mxu0 0.0
        %4223 = vmatpush1.msra.mxu0 0.0
        %4224 = vmatprep.subr.mxu0 0.0
        %4225 = vmatpush1.msra.mxu0 0.0
        %4226 = vmatprep.subr.mxu0 0.0
        %4227 = vmatpush1.msra.mxu0 0.0
        %4228 = vmatprep.subr.mxu0 0.0
        %4229 = vmatpush1.msra.mxu0 0.0
        %4230 = vmatprep.subr.mxu0 0.0
        %4231 = vmatpush1.msra.mxu0 0.0
        %4232 = vmatprep.subr.mxu0 0.0
        %4233 = vmatpush1.msra.mxu0 0.0
        %4234 = vmatprep.subr.mxu0 0.0
        %4235 = vmatpush1.msra.mxu0 0.0
        %4236 = vmatprep.subr.mxu0 0.0
        %4237 = vmatpush1.msra.mxu0 0.0
        %4238 = vmatprep.subr.mxu0 0.0
        %4239 = vmatpush1.msra.mxu0 0.0
        %4240 = vmatprep.subr.mxu0 0.0
        %4241 = vmatpush1.msra.mxu0 0.0
        %4242 = vmatprep.subr.mxu0 0.0
        %4243 = vmatpush1.msra.mxu0 0.0
        %4244 = vmatprep.mubr.f32.mxu0 0.0
        %4245 = vmatmul.mubr.f32.gmra.mrb[0].mxu0 %v4178
        %v4246 = vpop.f32.mrb[0].mxu0
        %v4247 = vadd.f32 0.0, %v4246
        %v4248 = vpop.f32.mrb[0].mxu0
        %4249 = vdwg.mxu0
        %v4251 = vsel %vm3266, %v4125, 0
        %4253 = vmatprep.subr.mxu0 0.0
        %4254 = vmatpush1.msra.mxu0 %v3585
        %4255 = vmatprep.subr.mxu0 0.0
        %4256 = vmatpush1.msra.mxu0 0.0
        %4257 = vmatprep.subr.mxu0 0.0
        %4258 = vmatpush1.msra.mxu0 0.0
        %4259 = vmatprep.subr.mxu0 0.0
        %4260 = vmatpush1.msra.mxu0 0.0
        %4261 = vmatprep.subr.mxu0 0.0
        %4262 = vmatpush1.msra.mxu0 0.0
        %4263 = vmatprep.subr.mxu0 0.0
        %4264 = vmatpush1.msra.mxu0 0.0
        %4265 = vmatprep.subr.mxu0 0.0
        %4266 = vmatpush1.msra.mxu0 0.0
        %4267 = vmatprep.subr.mxu0 0.0
        %4268 = vmatpush1.msra.mxu0 0.0
        %4269 = vmatprep.subr.mxu0 0.0
        %4270 = vmatpush1.msra.mxu0 0.0
        %4271 = vmatprep.subr.mxu0 0.0
        %4272 = vmatpush1.msra.mxu0 0.0
        %4273 = vmatprep.subr.mxu0 0.0
        %4274 = vmatpush1.msra.mxu0 0.0
        %4275 = vmatprep.subr.mxu0 0.0
        %4276 = vmatpush1.msra.mxu0 0.0
        %4277 = vmatprep.subr.mxu0 0.0
        %4278 = vmatpush1.msra.mxu0 0.0
        %4279 = vmatprep.subr.mxu0 0.0
        %4280 = vmatpush1.msra.mxu0 0.0
        %4281 = vmatprep.subr.mxu0 0.0
        %4282 = vmatpush1.msra.mxu0 0.0
        %4283 = vmatprep.subr.mxu0 0.0
        %4284 = vmatpush1.msra.mxu0 0.0
        %4285 = vmatprep.subr.mxu0 0.0
        %4286 = vmatpush1.msra.mxu0 0.0
        %4287 = vmatprep.subr.mxu0 0.0
        %4288 = vmatpush1.msra.mxu0 0.0
        %4289 = vmatprep.subr.mxu0 0.0
        %4290 = vmatpush1.msra.mxu0 0.0
        %4291 = vmatprep.subr.mxu0 0.0
        %4292 = vmatpush1.msra.mxu0 0.0
        %4293 = vmatprep.subr.mxu0 0.0
        %4294 = vmatpush1.msra.mxu0 0.0
        %4295 = vmatprep.subr.mxu0 0.0
        %4296 = vmatpush1.msra.mxu0 0.0
        %4297 = vmatprep.subr.mxu0 0.0
        %4298 = vmatpush1.msra.mxu0 0.0
        %4299 = vmatprep.subr.mxu0 0.0
        %4300 = vmatpush1.msra.mxu0 0.0
        %4301 = vmatprep.subr.mxu0 0.0
        %4302 = vmatpush1.msra.mxu0 0.0
        %4303 = vmatprep.subr.mxu0 0.0
        %4304 = vmatpush1.msra.mxu0 0.0
        %4305 = vmatprep.subr.mxu0 0.0
        %4306 = vmatpush1.msra.mxu0 0.0
        %4307 = vmatprep.subr.mxu0 0.0
        %4308 = vmatpush1.msra.mxu0 0.0
        %4309 = vmatprep.subr.mxu0 0.0
        %4310 = vmatpush1.msra.mxu0 0.0
        %4311 = vmatprep.subr.mxu0 0.0
        %4312 = vmatpush1.msra.mxu0 0.0
        %4313 = vmatprep.subr.mxu0 0.0
        %4314 = vmatpush1.msra.mxu0 0.0
        %4315 = vmatprep.subr.mxu0 0.0
        %4316 = vmatpush1.msra.mxu0 0.0
        %4317 = vmatprep.mubr.f32.mxu0 0.0
        %4318 = vmatmul.mubr.f32.gmra.mrb[0].mxu0 %v4251
        %v4319 = vpop.f32.mrb[0].mxu0
        %v4320 = vadd.f32 %v4247, %v4319
        %v4321 = vpop.f32.mrb[0].mxu0
        %4322 = vdwg.mxu0
        %v4324 = vsel %vm3266, %v4176, 0
        %4326 = vmatprep.subr.mxu0 0.0
        %4327 = vmatpush1.msra.mxu0 %v3510
        %4328 = vmatprep.subr.mxu0 0.0
        %4329 = vmatpush1.msra.mxu0 0.0
        %4330 = vmatprep.subr.mxu0 0.0
        %4331 = vmatpush1.msra.mxu0 0.0
        %4332 = vmatprep.subr.mxu0 0.0
        %4333 = vmatpush1.msra.mxu0 0.0
        %4334 = vmatprep.subr.mxu0 0.0
        %4335 = vmatpush1.msra.mxu0 0.0
        %4336 = vmatprep.subr.mxu0 0.0
        %4337 = vmatpush1.msra.mxu0 0.0
        %4338 = vmatprep.subr.mxu0 0.0
        %4339 = vmatpush1.msra.mxu0 0.0
        %4340 = vmatprep.subr.mxu0 0.0
        %4341 = vmatpush1.msra.mxu0 0.0
        %4342 = vmatprep.subr.mxu0 0.0
        %4343 = vmatpush1.msra.mxu0 0.0
        %4344 = vmatprep.subr.mxu0 0.0
        %4345 = vmatpush1.msra.mxu0 0.0
        %4346 = vmatprep.subr.mxu0 0.0
        %4347 = vmatpush1.msra.mxu0 0.0
        %4348 = vmatprep.subr.mxu0 0.0
        %4349 = vmatpush1.msra.mxu0 0.0
        %4350 = vmatprep.subr.mxu0 0.0
        %4351 = vmatpush1.msra.mxu0 0.0
        %4352 = vmatprep.subr.mxu0 0.0
        %4353 = vmatpush1.msra.mxu0 0.0
        %4354 = vmatprep.subr.mxu0 0.0
        %4355 = vmatpush1.msra.mxu0 0.0
        %4356 = vmatprep.subr.mxu0 0.0
        %4357 = vmatpush1.msra.mxu0 0.0
        %4358 = vmatprep.subr.mxu0 0.0
        %4359 = vmatpush1.msra.mxu0 0.0
        %4360 = vmatprep.subr.mxu0 0.0
        %4361 = vmatpush1.msra.mxu0 0.0
        %4362 = vmatprep.subr.mxu0 0.0
        %4363 = vmatpush1.msra.mxu0 0.0
        %4364 = vmatprep.subr.mxu0 0.0
        %4365 = vmatpush1.msra.mxu0 0.0
        %4366 = vmatprep.subr.mxu0 0.0
        %4367 = vmatpush1.msra.mxu0 0.0
        %4368 = vmatprep.subr.mxu0 0.0
        %4369 = vmatpush1.msra.mxu0 0.0
        %4370 = vmatprep.subr.mxu0 0.0
        %4371 = vmatpush1.msra.mxu0 0.0
        %4372 = vmatprep.subr.mxu0 0.0
        %4373 = vmatpush1.msra.mxu0 0.0
        %4374 = vmatprep.subr.mxu0 0.0
        %4375 = vmatpush1.msra.mxu0 0.0
        %4376 = vmatprep.subr.mxu0 0.0
        %4377 = vmatpush1.msra.mxu0 0.0
        %4378 = vmatprep.subr.mxu0 0.0
        %4379 = vmatpush1.msra.mxu0 0.0
        %4380 = vmatprep.subr.mxu0 0.0
        %4381 = vmatpush1.msra.mxu0 0.0
        %4382 = vmatprep.subr.mxu0 0.0
        %4383 = vmatpush1.msra.mxu0 0.0
        %4384 = vmatprep.subr.mxu0 0.0
        %4385 = vmatpush1.msra.mxu0 0.0
        %4386 = vmatprep.subr.mxu0 0.0
        %4387 = vmatpush1.msra.mxu0 0.0
        %4388 = vmatprep.subr.mxu0 0.0
        %4389 = vmatpush1.msra.mxu0 0.0
        %4390 = vmatprep.mubr.f32.mxu0 0.0
        %4391 = vmatmul.mubr.f32.gmra.mrb[0].mxu0 %v4324
        %v4392 = vpop.f32.mrb[0].mxu0
        %v4393 = vadd.f32 0.0, %v4392
        %v4394 = vpop.f32.mrb[0].mxu0
        %4395 = vdwg.mxu0
        %v4397 = vsel %vm3266, %v4148, 0
        %4399 = vmatprep.subr.mxu0 0.0
        %4400 = vmatpush1.msra.mxu0 %v3585
        %4401 = vmatprep.subr.mxu0 0.0
        %4402 = vmatpush1.msra.mxu0 0.0
        %4403 = vmatprep.subr.mxu0 0.0
        %4404 = vmatpush1.msra.mxu0 0.0
        %4405 = vmatprep.subr.mxu0 0.0
        %4406 = vmatpush1.msra.mxu0 0.0
        %4407 = vmatprep.subr.mxu0 0.0
        %4408 = vmatpush1.msra.mxu0 0.0
        %4409 = vmatprep.subr.mxu0 0.0
        %4410 = vmatpush1.msra.mxu0 0.0
        %4411 = vmatprep.subr.mxu0 0.0
        %4412 = vmatpush1.msra.mxu0 0.0
        %4413 = vmatprep.subr.mxu0 0.0
        %4414 = vmatpush1.msra.mxu0 0.0
        %4415 = vmatprep.subr.mxu0 0.0
        %4416 = vmatpush1.msra.mxu0 0.0
        %4417 = vmatprep.subr.mxu0 0.0
        %4418 = vmatpush1.msra.mxu0 0.0
        %4419 = vmatprep.subr.mxu0 0.0
        %4420 = vmatpush1.msra.mxu0 0.0
        %4421 = vmatprep.subr.mxu0 0.0
        %4422 = vmatpush1.msra.mxu0 0.0
        %4423 = vmatprep.subr.mxu0 0.0
        %4424 = vmatpush1.msra.mxu0 0.0
        %4425 = vmatprep.subr.mxu0 0.0
        %4426 = vmatpush1.msra.mxu0 0.0
        %4427 = vmatprep.subr.mxu0 0.0
        %4428 = vmatpush1.msra.mxu0 0.0
        %4429 = vmatprep.subr.mxu0 0.0
        %4430 = vmatpush1.msra.mxu0 0.0
        %4431 = vmatprep.subr.mxu0 0.0
        %4432 = vmatpush1.msra.mxu0 0.0
        %4433 = vmatprep.subr.mxu0 0.0
        %4434 = vmatpush1.msra.mxu0 0.0
        %4435 = vmatprep.subr.mxu0 0.0
        %4436 = vmatpush1.msra.mxu0 0.0
        %4437 = vmatprep.subr.mxu0 0.0
        %4438 = vmatpush1.msra.mxu0 0.0
        %4439 = vmatprep.subr.mxu0 0.0
        %4440 = vmatpush1.msra.mxu0 0.0
        %4441 = vmatprep.subr.mxu0 0.0
        %4442 = vmatpush1.msra.mxu0 0.0
        %4443 = vmatprep.subr.mxu0 0.0
        %4444 = vmatpush1.msra.mxu0 0.0
        %4445 = vmatprep.subr.mxu0 0.0
        %4446 = vmatpush1.msra.mxu0 0.0
        %4447 = vmatprep.subr.mxu0 0.0
        %4448 = vmatpush1.msra.mxu0 0.0
        %4449 = vmatprep.subr.mxu0 0.0
        %4450 = vmatpush1.msra.mxu0 0.0
        %4451 = vmatprep.subr.mxu0 0.0
        %4452 = vmatpush1.msra.mxu0 0.0
        %4453 = vmatprep.subr.mxu0 0.0
        %4454 = vmatpush1.msra.mxu0 0.0
        %4455 = vmatprep.subr.mxu0 0.0
        %4456 = vmatpush1.msra.mxu0 0.0
        %4457 = vmatprep.subr.mxu0 0.0
        %4458 = vmatpush1.msra.mxu0 0.0
        %4459 = vmatprep.subr.mxu0 0.0
        %4460 = vmatpush1.msra.mxu0 0.0
        %4461 = vmatprep.subr.mxu0 0.0
        %4462 = vmatpush1.msra.mxu0 0.0
        %4463 = vmatprep.mubr.f32.mxu0 0.0
        %4464 = vmatmul.mubr.f32.gmra.mrb[0].mxu0 %v4397
        %v4465 = vpop.f32.mrb[0].mxu0
        %v4466 = vadd.f32 %v4393, %v4465
        %v4467 = vpop.f32.mrb[0].mxu0
        %4468 = vdwg.mxu0
        %v4470 = vsel %vm3268, %v4466, 0
        %4472 = vmatprep.subr.mxu0 0.0
        %4473 = vmatpush1.msra.mxu0 %v4470
        %4474 = vmatprep.subr.mxu0 0.0
        %4475 = vmatpush1.msra.mxu0 0.0
        %4476 = vmatprep.subr.mxu0 0.0
        %4477 = vmatpush1.msra.mxu0 0.0
        %4478 = vmatprep.subr.mxu0 0.0
        %4479 = vmatpush1.msra.mxu0 0.0
        %4480 = vmatprep.subr.mxu0 0.0
        %4481 = vmatpush1.msra.mxu0 0.0
        %4482 = vmatprep.subr.mxu0 0.0
        %4483 = vmatpush1.msra.mxu0 0.0
        %4484 = vmatprep.subr.mxu0 0.0
        %4485 = vmatpush1.msra.mxu0 0.0
        %4486 = vmatprep.subr.mxu0 0.0
        %4487 = vmatpush1.msra.mxu0 0.0
        %4488 = vmatprep.subr.mxu0 0.0
        %4489 = vmatpush1.msra.mxu0 0.0
        %4490 = vmatprep.subr.mxu0 0.0
        %4491 = vmatpush1.msra.mxu0 0.0
        %4492 = vmatprep.subr.mxu0 0.0
        %4493 = vmatpush1.msra.mxu0 0.0
        %4494 = vmatprep.subr.mxu0 0.0
        %4495 = vmatpush1.msra.mxu0 0.0
        %4496 = vmatprep.subr.mxu0 0.0
        %4497 = vmatpush1.msra.mxu0 0.0
        %4498 = vmatprep.subr.mxu0 0.0
        %4499 = vmatpush1.msra.mxu0 0.0
        %4500 = vmatprep.subr.mxu0 0.0
        %4501 = vmatpush1.msra.mxu0 0.0
        %4502 = vmatprep.subr.mxu0 0.0
        %4503 = vmatpush1.msra.mxu0 0.0
        %4504 = vmatprep.subr.mxu0 0.0
        %4505 = vmatpush1.msra.mxu0 0.0
        %4506 = vmatprep.subr.mxu0 0.0
        %4507 = vmatpush1.msra.mxu0 0.0
        %4508 = vmatprep.subr.mxu0 0.0
        %4509 = vmatpush1.msra.mxu0 0.0
        %4510 = vmatprep.subr.mxu0 0.0
        %4511 = vmatpush1.msra.mxu0 0.0
        %4512 = vmatprep.subr.mxu0 0.0
        %4513 = vmatpush1.msra.mxu0 0.0
        %4514 = vmatprep.subr.mxu0 0.0
        %4515 = vmatpush1.msra.mxu0 0.0
        %4516 = vmatprep.subr.mxu0 0.0
        %4517 = vmatpush1.msra.mxu0 0.0
        %4518 = vmatprep.subr.mxu0 0.0
        %4519 = vmatpush1.msra.mxu0 0.0
        %4520 = vmatprep.subr.mxu0 0.0
        %4521 = vmatpush1.msra.mxu0 0.0
        %4522 = vmatprep.subr.mxu0 0.0
        %4523 = vmatpush1.msra.mxu0 0.0
        %4524 = vmatprep.subr.mxu0 0.0
        %4525 = vmatpush1.msra.mxu0 0.0
        %4526 = vmatprep.subr.mxu0 0.0
        %4527 = vmatpush1.msra.mxu0 0.0
        %4528 = vmatprep.subr.mxu0 0.0
        %4529 = vmatpush1.msra.mxu0 0.0
        %4530 = vmatprep.subr.mxu0 0.0
        %4531 = vmatpush1.msra.mxu0 0.0
        %4532 = vmatprep.subr.mxu0 0.0
        %4533 = vmatpush1.msra.mxu0 0.0
        %4534 = vmatprep.subr.mxu0 0.0
        %4535 = vmatpush1.msra.mxu0 0.0
        %4536 = vmatprep.mubr.f32.mxu0 0.0
        %4537 = vmatmul.mubr.f32.gmra.mrb[0].mxu0 %v3804
        %v4538 = vpop.f32.mrb[0].mxu0
        %v4539 = vadd.f32 0.0, %v4538
        %v4540 = vpop.f32.mrb[0].mxu0
        %4541 = vdwg.mxu0
        %v4543 = vsel %vm3268, %v4320, 0
        %4545 = vmatprep.subr.mxu0 0.0
        %4546 = vmatpush1.msra.mxu0 %v4543
        %4547 = vmatprep.subr.mxu0 0.0
        %4548 = vmatpush1.msra.mxu0 0.0
        %4549 = vmatprep.subr.mxu0 0.0
        %4550 = vmatpush1.msra.mxu0 0.0
        %4551 = vmatprep.subr.mxu0 0.0
        %4552 = vmatpush1.msra.mxu0 0.0
        %4553 = vmatprep.subr.mxu0 0.0
        %4554 = vmatpush1.msra.mxu0 0.0
        %4555 = vmatprep.subr.mxu0 0.0
        %4556 = vmatpush1.msra.mxu0 0.0
        %4557 = vmatprep.subr.mxu0 0.0
        %4558 = vmatpush1.msra.mxu0 0.0
        %4559 = vmatprep.subr.mxu0 0.0
        %4560 = vmatpush1.msra.mxu0 0.0
        %4561 = vmatprep.subr.mxu0 0.0
        %4562 = vmatpush1.msra.mxu0 0.0
        %4563 = vmatprep.subr.mxu0 0.0
        %4564 = vmatpush1.msra.mxu0 0.0
        %4565 = vmatprep.subr.mxu0 0.0
        %4566 = vmatpush1.msra.mxu0 0.0
        %4567 = vmatprep.subr.mxu0 0.0
        %4568 = vmatpush1.msra.mxu0 0.0
        %4569 = vmatprep.subr.mxu0 0.0
        %4570 = vmatpush1.msra.mxu0 0.0
        %4571 = vmatprep.subr.mxu0 0.0
        %4572 = vmatpush1.msra.mxu0 0.0
        %4573 = vmatprep.subr.mxu0 0.0
        %4574 = vmatpush1.msra.mxu0 0.0
        %4575 = vmatprep.subr.mxu0 0.0
        %4576 = vmatpush1.msra.mxu0 0.0
        %4577 = vmatprep.subr.mxu0 0.0
        %4578 = vmatpush1.msra.mxu0 0.0
        %4579 = vmatprep.subr.mxu0 0.0
        %4580 = vmatpush1.msra.mxu0 0.0
        %4581 = vmatprep.subr.mxu0 0.0
        %4582 = vmatpush1.msra.mxu0 0.0
        %4583 = vmatprep.subr.mxu0 0.0
        %4584 = vmatpush1.msra.mxu0 0.0
        %4585 = vmatprep.subr.mxu0 0.0
        %4586 = vmatpush1.msra.mxu0 0.0
        %4587 = vmatprep.subr.mxu0 0.0
        %4588 = vmatpush1.msra.mxu0 0.0
        %4589 = vmatprep.subr.mxu0 0.0
        %4590 = vmatpush1.msra.mxu0 0.0
        %4591 = vmatprep.subr.mxu0 0.0
        %4592 = vmatpush1.msra.mxu0 0.0
        %4593 = vmatprep.subr.mxu0 0.0
        %4594 = vmatpush1.msra.mxu0 0.0
        %4595 = vmatprep.subr.mxu0 0.0
        %4596 = vmatpush1.msra.mxu0 0.0
        %4597 = vmatprep.subr.mxu0 0.0
        %4598 = vmatpush1.msra.mxu0 0.0
        %4599 = vmatprep.subr.mxu0 0.0
        %4600 = vmatpush1.msra.mxu0 0.0
        %4601 = vmatprep.subr.mxu0 0.0
        %4602 = vmatpush1.msra.mxu0 0.0
        %4603 = vmatprep.subr.mxu0 0.0
        %4604 = vmatpush1.msra.mxu0 0.0
        %4605 = vmatprep.subr.mxu0 0.0
        %4606 = vmatpush1.msra.mxu0 0.0
        %4607 = vmatprep.subr.mxu0 0.0
        %4608 = vmatpush1.msra.mxu0 0.0
        %4609 = vmatprep.mubr.f32.mxu0 0.0
        %4610 = vmatmul.mubr.f32.gmra.mrb[0].mxu0 %v3880
        %v4611 = vpop.f32.mrb[0].mxu0
        %v4612 = vadd.f32 %v4539, %v4611
        %v4613 = vpop.f32.mrb[0].mxu0
        %4614 = vdwg.mxu0
        %vm4615 = vcmp.ge.f32.partialorder %v3952, 0.0
        %v4616 = vmul.f32 %v3952, 0.01
        %v4617 = vsel %vm4615, %v3952, %v4616
        %vm4618 = vcmp.ge.f32.partialorder %v4612, 0.0
        %v4619 = vmul.f32 %v4612, 0.01
        %v4620 = vsel %vm4618, %v4612, %v4619
        %v4621 = vsel %vm2671, %v4617, 0.0
        %v4622 = vsel %vm2671, %v4620, 0.0
        %vm4623 = vcmp.eq.s32.totalorder %v1584, %v3276
        %v4624 = vsel %vm4623, 1, 0
        %v4625 = vcvt.s32.f32 %v4624
        %s4626 = sld [smem:[#allocation7 + $0x8]]
        %v4627 = vstv %s4626
        %s4628 = sld [smem:[#allocation2 + $0xdc]]
        %v4629 = vstv %s4628
        %v4630 = vmul.f32 %v4629, %v4617
        %v4631 = vadd.f32 %v4627, %v4630
        %s4632 = sld [smem:[#allocation2 + $0xdd]]
        %v4633 = vstv %s4632
        %v4634 = vmul.f32 %v4633, %v4617
        %v4635 = vadd.f32 %v4627, %v4634
        %s4636 = sld [smem:[#allocation2 + $0xdb]]
        %v4637 = vstv %s4636
        %v4638 = vmul.f32 %v4637, %v4621
        %4640 = vrot.lane.b32.xlu0 %v4638, 127
        %v4641 = vpop.permute.xlu0 %4640
        %v4643 = vadd.f32 %v4635, %v4641
        %s4644 = sld [smem:[#allocation2 + $0xdf]]
        %v4645 = vstv %s4644
        %v4646 = vmul.f32 %v4645, %v4617
        %v4647 = vadd.f32 %v4627, %v4646
        %s4648 = sld [smem:[#allocation2 + $0xd9]]
        %v4649 = vstv %s4648
        %v4650 = vmul.f32 %v4649, %v4621
        %v4651 = vmul.f32 %v4649, 0.0
        %v4654 = vrot.slane %v4650, 1
        %v4655 = vrot.slane %v4651, 1
        %v4656 = vsel %vm398, %v4654, %v4655
        %v4658 = vadd.f32 %v4647, %v4656
        %s4659 = sld [smem:[#allocation2 + $0xe0]]
        %v4660 = vstv %s4659
        %v4661 = vmul.f32 %v4660, %v4617
        %v4662 = vadd.f32 %v4627, %v4661
        %s4663 = sld [smem:[#allocation2 + $0xde]]
        %v4664 = vstv %s4663
        %v4665 = vmul.f32 %v4664, %v4621
        %4667 = vrot.lane.b32.xlu0 %v4665, 127
        %v4668 = vpop.permute.xlu0 %4667
        %v4670 = vadd.f32 %v4662, %v4668
        %s4671 = sld [smem:[#allocation2 + $0xda]]
        %v4672 = vstv %s4671
        %v4673 = vmul.f32 %v4672, %v4621
        %v4674 = vmul.f32 %v4672, 0.0
        %v4677 = vrot.slane %v4673, 1
        %v4678 = vrot.slane %v4674, 1
        %v4679 = vsel %vm398, %v4677, %v4678
        %v4681 = vadd.f32 %v4670, %v4679
        %s4682 = sld [smem:[#allocation2 + $0xd8]]
        %v4683 = vstv %s4682
        %v4684 = vmul.f32 %v4683, %v4621
        %v4685 = vmul.f32 %v4683, 0.0
        %v4688 = vrot.slane %v4684, 1
        %v4689 = vrot.slane %v4685, 1
        %v4690 = vsel %vm398, %v4688, %v4689
        %4691 = vrot.lane.b32.xlu0 %v4690, 127
        %v4692 = vpop.permute.xlu0 %4691
        %v4694 = vadd.f32 %v4681, %v4692
        %s4695 = sld [smem:[#allocation2 + $0xe5]]
        %v4696 = vstv %s4695
        %v4697 = vmul.f32 %v4696, %v4620
        %v4698 = vadd.f32 %v4631, %v4697
        %s4699 = sld [smem:[#allocation2 + $0xe6]]
        %v4700 = vstv %s4699
        %v4701 = vmul.f32 %v4700, %v4620
        %v4702 = vadd.f32 %v4643, %v4701
        %s4703 = sld [smem:[#allocation2 + $0xe4]]
        %v4704 = vstv %s4703
        %v4705 = vmul.f32 %v4704, %v4622
        %4707 = vrot.lane.b32.xlu0 %v4705, 127
        %v4708 = vpop.permute.xlu0 %4707
        %v4710 = vadd.f32 %v4702, %v4708
        %s4711 = sld [smem:[#allocation2 + $0xe8]]
        %v4712 = vstv %s4711
        %v4713 = vmul.f32 %v4712, %v4620
        %v4714 = vadd.f32 %v4658, %v4713
        %s4715 = sld [smem:[#allocation2 + $0xe2]]
        %v4716 = vstv %s4715
        %v4717 = vmul.f32 %v4716, %v4622
        %v4718 = vmul.f32 %v4716, 0.0
        %v4721 = vrot.slane %v4717, 1
        %v4722 = vrot.slane %v4718, 1
        %v4723 = vsel %vm398, %v4721, %v4722
        %v4725 = vadd.f32 %v4714, %v4723
        %s4726 = sld [smem:[#allocation2 + $0xe9]]
        %v4727 = vstv %s4726
        %v4728 = vmul.f32 %v4727, %v4620
        %v4729 = vadd.f32 %v4694, %v4728
        %s4730 = sld [smem:[#allocation2 + $0xe7]]
        %v4731 = vstv %s4730
        %v4732 = vmul.f32 %v4731, %v4622
        %4734 = vrot.lane.b32.xlu0 %v4732, 127
        %v4735 = vpop.permute.xlu0 %4734
        %v4737 = vadd.f32 %v4729, %v4735
        %s4738 = sld [smem:[#allocation2 + $0xe3]]
        %v4739 = vstv %s4738
        %v4740 = vmul.f32 %v4739, %v4622
        %v4741 = vmul.f32 %v4739, 0.0
        %v4744 = vrot.slane %v4740, 1
        %v4745 = vrot.slane %v4741, 1
        %v4746 = vsel %vm398, %v4744, %v4745
        %v4748 = vadd.f32 %v4737, %v4746
        %s4749 = sld [smem:[#allocation2 + $0xe1]]
        %v4750 = vstv %s4749
        %v4751 = vmul.f32 %v4750, %v4622
        %v4752 = vmul.f32 %v4750, 0.0
        %v4755 = vrot.slane %v4751, 1
        %v4756 = vrot.slane %v4752, 1
        %v4757 = vsel %vm398, %v4755, %v4756
        %4758 = vrot.lane.b32.xlu0 %v4757, 127
        %v4759 = vpop.permute.xlu0 %4758
        %v4761 = vadd.f32 %v4748, %v4759
        %v4763 = vsel %vm2671, %v4710, 0
        %4765 = vmatprep.subr.mxu0 0.0
        %4766 = vmatpush1.msra.mxu0 %v3283
        %4767 = vmatprep.subr.mxu0 0.0
        %4768 = vmatpush1.msra.mxu0 0.0
        %4769 = vmatprep.subr.mxu0 0.0
        %4770 = vmatpush1.msra.mxu0 0.0
        %4771 = vmatprep.subr.mxu0 0.0
        %4772 = vmatpush1.msra.mxu0 0.0
        %4773 = vmatprep.subr.mxu0 0.0
        %4774 = vmatpush1.msra.mxu0 0.0
        %4775 = vmatprep.subr.mxu0 0.0
        %4776 = vmatpush1.msra.mxu0 0.0
        %4777 = vmatprep.subr.mxu0 0.0
        %4778 = vmatpush1.msra.mxu0 0.0
        %4779 = vmatprep.subr.mxu0 0.0
        %4780 = vmatpush1.msra.mxu0 0.0
        %4781 = vmatprep.subr.mxu0 0.0
        %4782 = vmatpush1.msra.mxu0 0.0
        %4783 = vmatprep.subr.mxu0 0.0
        %4784 = vmatpush1.msra.mxu0 0.0
        %4785 = vmatprep.subr.mxu0 0.0
        %4786 = vmatpush1.msra.mxu0 0.0
        %4787 = vmatprep.subr.mxu0 0.0
        %4788 = vmatpush1.msra.mxu0 0.0
        %4789 = vmatprep.subr.mxu0 0.0
        %4790 = vmatpush1.msra.mxu0 0.0
        %4791 = vmatprep.subr.mxu0 0.0
        %4792 = vmatpush1.msra.mxu0 0.0
        %4793 = vmatprep.subr.mxu0 0.0
        %4794 = vmatpush1.msra.mxu0 0.0
        %4795 = vmatprep.subr.mxu0 0.0
        %4796 = vmatpush1.msra.mxu0 0.0
        %4797 = vmatprep.subr.mxu0 0.0
        %4798 = vmatpush1.msra.mxu0 0.0
        %4799 = vmatprep.subr.mxu0 0.0
        %4800 = vmatpush1.msra.mxu0 0.0
        %4801 = vmatprep.subr.mxu0 0.0
        %4802 = vmatpush1.msra.mxu0 0.0
        %4803 = vmatprep.subr.mxu0 0.0
        %4804 = vmatpush1.msra.mxu0 0.0
        %4805 = vmatprep.subr.mxu0 0.0
        %4806 = vmatpush1.msra.mxu0 0.0
        %4807 = vmatprep.subr.mxu0 0.0
        %4808 = vmatpush1.msra.mxu0 0.0
        %4809 = vmatprep.subr.mxu0 0.0
        %4810 = vmatpush1.msra.mxu0 0.0
        %4811 = vmatprep.subr.mxu0 0.0
        %4812 = vmatpush1.msra.mxu0 0.0
        %4813 = vmatprep.subr.mxu0 0.0
        %4814 = vmatpush1.msra.mxu0 0.0
        %4815 = vmatprep.subr.mxu0 0.0
        %4816 = vmatpush1.msra.mxu0 0.0
        %4817 = vmatprep.subr.mxu0 0.0
        %4818 = vmatpush1.msra.mxu0 0.0
        %4819 = vmatprep.subr.mxu0 0.0
        %4820 = vmatpush1.msra.mxu0 0.0
        %4821 = vmatprep.subr.mxu0 0.0
        %4822 = vmatpush1.msra.mxu0 0.0
        %4823 = vmatprep.subr.mxu0 0.0
        %4824 = vmatpush1.msra.mxu0 0.0
        %4825 = vmatprep.subr.mxu0 0.0
        %4826 = vmatpush1.msra.mxu0 0.0
        %4827 = vmatprep.subr.mxu0 0.0
        %4828 = vmatpush1.msra.mxu0 0.0
        %4829 = vmatprep.mubr.f32.mxu0 0.0
        %4830 = vmatmul.mubr.f32.gmra.mrb[0].mxu0 %v4763
        %v4831 = vpop.f32.mrb[0].mxu0
        %v4832 = vadd.f32 0.0, %v4831
        %v4833 = vpop.f32.mrb[0].mxu0
        %4834 = vdwg.mxu0
        %v4836 = vsel %vm2671, %v4698, 0
        %4838 = vmatprep.subr.mxu0 0.0
        %4839 = vmatpush1.msra.mxu0 %v1583
        %4840 = vmatprep.subr.mxu0 0.0
        %4841 = vmatpush1.msra.mxu0 0.0
        %4842 = vmatprep.subr.mxu0 0.0
        %4843 = vmatpush1.msra.mxu0 0.0
        %4844 = vmatprep.subr.mxu0 0.0
        %4845 = vmatpush1.msra.mxu0 0.0
        %4846 = vmatprep.subr.mxu0 0.0
        %4847 = vmatpush1.msra.mxu0 0.0
        %4848 = vmatprep.subr.mxu0 0.0
        %4849 = vmatpush1.msra.mxu0 0.0
        %4850 = vmatprep.subr.mxu0 0.0
        %4851 = vmatpush1.msra.mxu0 0.0
        %4852 = vmatprep.subr.mxu0 0.0
        %4853 = vmatpush1.msra.mxu0 0.0
        %4854 = vmatprep.subr.mxu0 0.0
        %4855 = vmatpush1.msra.mxu0 0.0
        %4856 = vmatprep.subr.mxu0 0.0
        %4857 = vmatpush1.msra.mxu0 0.0
        %4858 = vmatprep.subr.mxu0 0.0
        %4859 = vmatpush1.msra.mxu0 0.0
        %4860 = vmatprep.subr.mxu0 0.0
        %4861 = vmatpush1.msra.mxu0 0.0
        %4862 = vmatprep.subr.mxu0 0.0
        %4863 = vmatpush1.msra.mxu0 0.0
        %4864 = vmatprep.subr.mxu0 0.0
        %4865 = vmatpush1.msra.mxu0 0.0
        %4866 = vmatprep.subr.mxu0 0.0
        %4867 = vmatpush1.msra.mxu0 0.0
        %4868 = vmatprep.subr.mxu0 0.0
        %4869 = vmatpush1.msra.mxu0 0.0
        %4870 = vmatprep.subr.mxu0 0.0
        %4871 = vmatpush1.msra.mxu0 0.0
        %4872 = vmatprep.subr.mxu0 0.0
        %4873 = vmatpush1.msra.mxu0 0.0
        %4874 = vmatprep.subr.mxu0 0.0
        %4875 = vmatpush1.msra.mxu0 0.0
        %4876 = vmatprep.subr.mxu0 0.0
        %4877 = vmatpush1.msra.mxu0 0.0
        %4878 = vmatprep.subr.mxu0 0.0
        %4879 = vmatpush1.msra.mxu0 0.0
        %4880 = vmatprep.subr.mxu0 0.0
        %4881 = vmatpush1.msra.mxu0 0.0
        %4882 = vmatprep.subr.mxu0 0.0
        %4883 = vmatpush1.msra.mxu0 0.0
        %4884 = vmatprep.subr.mxu0 0.0
        %4885 = vmatpush1.msra.mxu0 0.0
        %4886 = vmatprep.subr.mxu0 0.0
        %4887 = vmatpush1.msra.mxu0 0.0
        %4888 = vmatprep.subr.mxu0 0.0
        %4889 = vmatpush1.msra.mxu0 0.0
        %4890 = vmatprep.subr.mxu0 0.0
        %4891 = vmatpush1.msra.mxu0 0.0
        %4892 = vmatprep.subr.mxu0 0.0
        %4893 = vmatpush1.msra.mxu0 0.0
        %4894 = vmatprep.subr.mxu0 0.0
        %4895 = vmatpush1.msra.mxu0 0.0
        %4896 = vmatprep.subr.mxu0 0.0
        %4897 = vmatpush1.msra.mxu0 0.0
        %4898 = vmatprep.subr.mxu0 0.0
        %4899 = vmatpush1.msra.mxu0 0.0
        %4900 = vmatprep.subr.mxu0 0.0
        %4901 = vmatpush1.msra.mxu0 0.0
        %4902 = vmatprep.mubr.f32.mxu0 0.0
        %4903 = vmatmul.mubr.f32.gmra.mrb[0].mxu0 %v4836
        %v4904 = vpop.f32.mrb[0].mxu0
        %v4905 = vadd.f32 %v4832, %v4904
        %v4906 = vpop.f32.mrb[0].mxu0
        %4907 = vdwg.mxu0
        %v4909 = vsel %vm2671, %v4761, 0
        %4911 = vmatprep.subr.mxu0 0.0
        %4912 = vmatpush1.msra.mxu0 %v3283
        %4913 = vmatprep.subr.mxu0 0.0
        %4914 = vmatpush1.msra.mxu0 0.0
        %4915 = vmatprep.subr.mxu0 0.0
        %4916 = vmatpush1.msra.mxu0 0.0
        %4917 = vmatprep.subr.mxu0 0.0
        %4918 = vmatpush1.msra.mxu0 0.0
        %4919 = vmatprep.subr.mxu0 0.0
        %4920 = vmatpush1.msra.mxu0 0.0
        %4921 = vmatprep.subr.mxu0 0.0
        %4922 = vmatpush1.msra.mxu0 0.0
        %4923 = vmatprep.subr.mxu0 0.0
        %4924 = vmatpush1.msra.mxu0 0.0
        %4925 = vmatprep.subr.mxu0 0.0
        %4926 = vmatpush1.msra.mxu0 0.0
        %4927 = vmatprep.subr.mxu0 0.0
        %4928 = vmatpush1.msra.mxu0 0.0
        %4929 = vmatprep.subr.mxu0 0.0
        %4930 = vmatpush1.msra.mxu0 0.0
        %4931 = vmatprep.subr.mxu0 0.0
        %4932 = vmatpush1.msra.mxu0 0.0
        %4933 = vmatprep.subr.mxu0 0.0
        %4934 = vmatpush1.msra.mxu0 0.0
        %4935 = vmatprep.subr.mxu0 0.0
        %4936 = vmatpush1.msra.mxu0 0.0
        %4937 = vmatprep.subr.mxu0 0.0
        %4938 = vmatpush1.msra.mxu0 0.0
        %4939 = vmatprep.subr.mxu0 0.0
        %4940 = vmatpush1.msra.mxu0 0.0
        %4941 = vmatprep.subr.mxu0 0.0
        %4942 = vmatpush1.msra.mxu0 0.0
        %4943 = vmatprep.subr.mxu0 0.0
        %4944 = vmatpush1.msra.mxu0 0.0
        %4945 = vmatprep.subr.mxu0 0.0
        %4946 = vmatpush1.msra.mxu0 0.0
        %4947 = vmatprep.subr.mxu0 0.0
        %4948 = vmatpush1.msra.mxu0 0.0
        %4949 = vmatprep.subr.mxu0 0.0
        %4950 = vmatpush1.msra.mxu0 0.0
        %4951 = vmatprep.subr.mxu0 0.0
        %4952 = vmatpush1.msra.mxu0 0.0
        %4953 = vmatprep.subr.mxu0 0.0
        %4954 = vmatpush1.msra.mxu0 0.0
        %4955 = vmatprep.subr.mxu0 0.0
        %4956 = vmatpush1.msra.mxu0 0.0
        %4957 = vmatprep.subr.mxu0 0.0
        %4958 = vmatpush1.msra.mxu0 0.0
        %4959 = vmatprep.subr.mxu0 0.0
        %4960 = vmatpush1.msra.mxu0 0.0
        %4961 = vmatprep.subr.mxu0 0.0
        %4962 = vmatpush1.msra.mxu0 0.0
        %4963 = vmatprep.subr.mxu0 0.0
        %4964 = vmatpush1.msra.mxu0 0.0
        %4965 = vmatprep.subr.mxu0 0.0
        %4966 = vmatpush1.msra.mxu0 0.0
        %4967 = vmatprep.subr.mxu0 0.0
        %4968 = vmatpush1.msra.mxu0 0.0
        %4969 = vmatprep.subr.mxu0 0.0
        %4970 = vmatpush1.msra.mxu0 0.0
        %4971 = vmatprep.subr.mxu0 0.0
        %4972 = vmatpush1.msra.mxu0 0.0
        %4973 = vmatprep.subr.mxu0 0.0
        %4974 = vmatpush1.msra.mxu0 0.0
        %4975 = vmatprep.mubr.f32.mxu0 0.0
        %4976 = vmatmul.mubr.f32.gmra.mrb[0].mxu0 %v4909
        %v4977 = vpop.f32.mrb[0].mxu0
        %v4978 = vadd.f32 0.0, %v4977
        %v4979 = vpop.f32.mrb[0].mxu0
        %4980 = vdwg.mxu0
        %v4982 = vsel %vm2671, %v4725, 0
        %4984 = vmatprep.subr.mxu0 0.0
        %4985 = vmatpush1.msra.mxu0 %v1583
        %4986 = vmatprep.subr.mxu0 0.0
        %4987 = vmatpush1.msra.mxu0 0.0
        %4988 = vmatprep.subr.mxu0 0.0
        %4989 = vmatpush1.msra.mxu0 0.0
        %4990 = vmatprep.subr.mxu0 0.0
        %4991 = vmatpush1.msra.mxu0 0.0
        %4992 = vmatprep.subr.mxu0 0.0
        %4993 = vmatpush1.msra.mxu0 0.0
        %4994 = vmatprep.subr.mxu0 0.0
        %4995 = vmatpush1.msra.mxu0 0.0
        %4996 = vmatprep.subr.mxu0 0.0
        %4997 = vmatpush1.msra.mxu0 0.0
        %4998 = vmatprep.subr.mxu0 0.0
        %4999 = vmatpush1.msra.mxu0 0.0
        %5000 = vmatprep.subr.mxu0 0.0
        %5001 = vmatpush1.msra.mxu0 0.0
        %5002 = vmatprep.subr.mxu0 0.0
        %5003 = vmatpush1.msra.mxu0 0.0
        %5004 = vmatprep.subr.mxu0 0.0
        %5005 = vmatpush1.msra.mxu0 0.0
        %5006 = vmatprep.subr.mxu0 0.0
        %5007 = vmatpush1.msra.mxu0 0.0
        %5008 = vmatprep.subr.mxu0 0.0
        %5009 = vmatpush1.msra.mxu0 0.0
        %5010 = vmatprep.subr.mxu0 0.0
        %5011 = vmatpush1.msra.mxu0 0.0
        %5012 = vmatprep.subr.mxu0 0.0
        %5013 = vmatpush1.msra.mxu0 0.0
        %5014 = vmatprep.subr.mxu0 0.0
        %5015 = vmatpush1.msra.mxu0 0.0
        %5016 = vmatprep.subr.mxu0 0.0
        %5017 = vmatpush1.msra.mxu0 0.0
        %5018 = vmatprep.subr.mxu0 0.0
        %5019 = vmatpush1.msra.mxu0 0.0
        %5020 = vmatprep.subr.mxu0 0.0
        %5021 = vmatpush1.msra.mxu0 0.0
        %5022 = vmatprep.subr.mxu0 0.0
        %5023 = vmatpush1.msra.mxu0 0.0
        %5024 = vmatprep.subr.mxu0 0.0
        %5025 = vmatpush1.msra.mxu0 0.0
        %5026 = vmatprep.subr.mxu0 0.0
        %5027 = vmatpush1.msra.mxu0 0.0
        %5028 = vmatprep.subr.mxu0 0.0
        %5029 = vmatpush1.msra.mxu0 0.0
        %5030 = vmatprep.subr.mxu0 0.0
        %5031 = vmatpush1.msra.mxu0 0.0
        %5032 = vmatprep.subr.mxu0 0.0
        %5033 = vmatpush1.msra.mxu0 0.0
        %5034 = vmatprep.subr.mxu0 0.0
        %5035 = vmatpush1.msra.mxu0 0.0
        %5036 = vmatprep.subr.mxu0 0.0
        %5037 = vmatpush1.msra.mxu0 0.0
        %5038 = vmatprep.subr.mxu0 0.0
        %5039 = vmatpush1.msra.mxu0 0.0
        %5040 = vmatprep.subr.mxu0 0.0
        %5041 = vmatpush1.msra.mxu0 0.0
        %5042 = vmatprep.subr.mxu0 0.0
        %5043 = vmatpush1.msra.mxu0 0.0
        %5044 = vmatprep.subr.mxu0 0.0
        %5045 = vmatpush1.msra.mxu0 0.0
        %5046 = vmatprep.subr.mxu0 0.0
        %5047 = vmatpush1.msra.mxu0 0.0
        %5048 = vmatprep.mubr.f32.mxu0 0.0
        %5049 = vmatmul.mubr.f32.gmra.mrb[0].mxu0 %v4982
        %v5050 = vpop.f32.mrb[0].mxu0
        %v5051 = vadd.f32 %v4978, %v5050
        %v5052 = vpop.f32.mrb[0].mxu0
        %5053 = vdwg.mxu0
        %v5054 = vsel %vm2671, %v3279, 0
        %v5057 = vsel %vm2671, %v4625, 0
        %5059 = vmatprep.subr.mxu0 0.0
        %5060 = vmatpush1.msra.mxu0 %v5051
        %5061 = vmatprep.subr.mxu0 0.0
        %5062 = vmatpush1.msra.mxu0 0.0
        %5063 = vmatprep.subr.mxu0 0.0
        %5064 = vmatpush1.msra.mxu0 0.0
        %5065 = vmatprep.subr.mxu0 0.0
        %5066 = vmatpush1.msra.mxu0 0.0
        %5067 = vmatprep.subr.mxu0 0.0
        %5068 = vmatpush1.msra.mxu0 0.0
        %5069 = vmatprep.subr.mxu0 0.0
        %5070 = vmatpush1.msra.mxu0 0.0
        %5071 = vmatprep.subr.mxu0 0.0
        %5072 = vmatpush1.msra.mxu0 0.0
        %5073 = vmatprep.subr.mxu0 0.0
        %5074 = vmatpush1.msra.mxu0 0.0
        %5075 = vmatprep.subr.mxu0 0.0
        %5076 = vmatpush1.msra.mxu0 0.0
        %5077 = vmatprep.subr.mxu0 0.0
        %5078 = vmatpush1.msra.mxu0 0.0
        %5079 = vmatprep.subr.mxu0 0.0
        %5080 = vmatpush1.msra.mxu0 0.0
        %5081 = vmatprep.subr.mxu0 0.0
        %5082 = vmatpush1.msra.mxu0 0.0
        %5083 = vmatprep.subr.mxu0 0.0
        %5084 = vmatpush1.msra.mxu0 0.0
        %5085 = vmatprep.subr.mxu0 0.0
        %5086 = vmatpush1.msra.mxu0 0.0
        %5087 = vmatprep.subr.mxu0 0.0
        %5088 = vmatpush1.msra.mxu0 0.0
        %5089 = vmatprep.subr.mxu0 0.0
        %5090 = vmatpush1.msra.mxu0 0.0
        %5091 = vmatprep.subr.mxu0 0.0
        %5092 = vmatpush1.msra.mxu0 0.0
        %5093 = vmatprep.subr.mxu0 0.0
        %5094 = vmatpush1.msra.mxu0 0.0
        %5095 = vmatprep.subr.mxu0 0.0
        %5096 = vmatpush1.msra.mxu0 0.0
        %5097 = vmatprep.subr.mxu0 0.0
        %5098 = vmatpush1.msra.mxu0 0.0
        %5099 = vmatprep.subr.mxu0 0.0
        %5100 = vmatpush1.msra.mxu0 0.0
        %5101 = vmatprep.subr.mxu0 0.0
        %5102 = vmatpush1.msra.mxu0 0.0
        %5103 = vmatprep.subr.mxu0 0.0
        %5104 = vmatpush1.msra.mxu0 0.0
        %5105 = vmatprep.subr.mxu0 0.0
        %5106 = vmatpush1.msra.mxu0 0.0
        %5107 = vmatprep.subr.mxu0 0.0
        %5108 = vmatpush1.msra.mxu0 0.0
        %5109 = vmatprep.subr.mxu0 0.0
        %5110 = vmatpush1.msra.mxu0 0.0
        %5111 = vmatprep.subr.mxu0 0.0
        %5112 = vmatpush1.msra.mxu0 0.0
        %5113 = vmatprep.subr.mxu0 0.0
        %5114 = vmatpush1.msra.mxu0 0.0
        %5115 = vmatprep.subr.mxu0 0.0
        %5116 = vmatpush1.msra.mxu0 0.0
        %5117 = vmatprep.subr.mxu0 0.0
        %5118 = vmatpush1.msra.mxu0 0.0
        %5119 = vmatprep.subr.mxu0 0.0
        %5120 = vmatpush1.msra.mxu0 0.0
        %5121 = vmatprep.subr.mxu0 0.0
        %5122 = vmatpush1.msra.mxu0 0.0
        %5123 = vmatprep.mubr.f32.mxu0 0.0
        %5124 = vmatmul.mubr.f32.gmra.mrb[0].mxu0 %v5054
        %v5125 = vpop.f32.mrb[0].mxu0
        %v5126 = vadd.f32 0.0, %v5125
        %v5127 = vpop.f32.mrb[0].mxu0
        %5128 = vmatprep.mubr.f32.mxu0 0.0
        %5129 = vmatmul.mubr.f32.gmra.mrb[0].mxu0 %v5057
        %v5130 = vpop.f32.mrb[0].mxu0
        %v5131 = vadd.f32 0.0, %v5130
        %v5132 = vpop.f32.mrb[0].mxu0
        %5133 = vdwg.mxu0
        %v5134 = vsel %vm2671, %v1590, 0
        %v5137 = vsel %vm2671, %v1591, 0
        %5139 = vmatprep.subr.mxu0 0.0
        %5140 = vmatpush1.msra.mxu0 %v4905
        %5141 = vmatprep.subr.mxu0 0.0
        %5142 = vmatpush1.msra.mxu0 0.0
        %5143 = vmatprep.subr.mxu0 0.0
        %5144 = vmatpush1.msra.mxu0 0.0
        %5145 = vmatprep.subr.mxu0 0.0
        %5146 = vmatpush1.msra.mxu0 0.0
        %5147 = vmatprep.subr.mxu0 0.0
        %5148 = vmatpush1.msra.mxu0 0.0
        %5149 = vmatprep.subr.mxu0 0.0
        %5150 = vmatpush1.msra.mxu0 0.0
        %5151 = vmatprep.subr.mxu0 0.0
        %5152 = vmatpush1.msra.mxu0 0.0
        %5153 = vmatprep.subr.mxu0 0.0
        %5154 = vmatpush1.msra.mxu0 0.0
        %5155 = vmatprep.subr.mxu0 0.0
        %5156 = vmatpush1.msra.mxu0 0.0
        %5157 = vmatprep.subr.mxu0 0.0
        %5158 = vmatpush1.msra.mxu0 0.0
        %5159 = vmatprep.subr.mxu0 0.0
        %5160 = vmatpush1.msra.mxu0 0.0
        %5161 = vmatprep.subr.mxu0 0.0
        %5162 = vmatpush1.msra.mxu0 0.0
        %5163 = vmatprep.subr.mxu0 0.0
        %5164 = vmatpush1.msra.mxu0 0.0
        %5165 = vmatprep.subr.mxu0 0.0
        %5166 = vmatpush1.msra.mxu0 0.0
        %5167 = vmatprep.subr.mxu0 0.0
        %5168 = vmatpush1.msra.mxu0 0.0
        %5169 = vmatprep.subr.mxu0 0.0
        %5170 = vmatpush1.msra.mxu0 0.0
        %5171 = vmatprep.subr.mxu0 0.0
        %5172 = vmatpush1.msra.mxu0 0.0
        %5173 = vmatprep.subr.mxu0 0.0
        %5174 = vmatpush1.msra.mxu0 0.0
        %5175 = vmatprep.subr.mxu0 0.0
        %5176 = vmatpush1.msra.mxu0 0.0
        %5177 = vmatprep.subr.mxu0 0.0
        %5178 = vmatpush1.msra.mxu0 0.0
        %5179 = vmatprep.subr.mxu0 0.0
        %5180 = vmatpush1.msra.mxu0 0.0
        %5181 = vmatprep.subr.mxu0 0.0
        %5182 = vmatpush1.msra.mxu0 0.0
        %5183 = vmatprep.subr.mxu0 0.0
        %5184 = vmatpush1.msra.mxu0 0.0
        %5185 = vmatprep.subr.mxu0 0.0
        %5186 = vmatpush1.msra.mxu0 0.0
        %5187 = vmatprep.subr.mxu0 0.0
        %5188 = vmatpush1.msra.mxu0 0.0
        %5189 = vmatprep.subr.mxu0 0.0
        %5190 = vmatpush1.msra.mxu0 0.0
        %5191 = vmatprep.subr.mxu0 0.0
        %5192 = vmatpush1.msra.mxu0 0.0
        %5193 = vmatprep.subr.mxu0 0.0
        %5194 = vmatpush1.msra.mxu0 0.0
        %5195 = vmatprep.subr.mxu0 0.0
        %5196 = vmatpush1.msra.mxu0 0.0
        %5197 = vmatprep.subr.mxu0 0.0
        %5198 = vmatpush1.msra.mxu0 0.0
        %5199 = vmatprep.subr.mxu0 0.0
        %5200 = vmatpush1.msra.mxu0 0.0
        %5201 = vmatprep.subr.mxu0 0.0
        %5202 = vmatpush1.msra.mxu0 0.0
        %5203 = vmatprep.mubr.f32.mxu0 0.0
        %5204 = vmatmul.mubr.f32.gmra.mrb[0].mxu0 %v5134
        %v5205 = vpop.f32.mrb[0].mxu0
        %v5206 = vadd.f32 %v5126, %v5205
        %v5207 = vpop.f32.mrb[0].mxu0
        %5208 = vmatprep.mubr.f32.mxu0 0.0
        %5209 = vmatmul.mubr.f32.gmra.mrb[0].mxu0 %v5137
        %v5210 = vpop.f32.mrb[0].mxu0
        %v5211 = vadd.f32 %v5131, %v5210
        %v5212 = vpop.f32.mrb[0].mxu0
        %5213 = vdwg.mxu0
        %vm5214 = vcmp.ge.f32.partialorder %v5206, 0.0
        %vm5215 = vcmp.ge.f32.partialorder %v5211, 0.0
        %v5216 = vmul.f32 %v5206, 0.01
        %v5217 = vmul.f32 %v5211, 0.01
        %v5218 = vsel %vm5214, %v5206, %v5216
        %v5219 = vsel %vm5215, %v5211, %v5217
        %5222 = vrot.lane.b32.xlu0 %v5218, 1
        %v5223 = vpop.permute.xlu0 %5222
        %5224 = vrot.lane.b32.xlu0 %v5219, 1
        %v5225 = vpop.permute.xlu0 %5224
        %v5228 = vsel %vm271, 0.0, %v5223
        %v5229 = vsel %vm271, 0.0, %v5225
        %v5230 = vsel %vm274, %v5228, 0.0
        %v5231 = vsel %vm274, %v5229, 0.0
        %v5234 = vrot.slane %v5230, 7
        %v5235 = vrot.slane %v5231, 7
        %v5236 = vsel %vm279, %v5234, %v5235
        %v5240 = vsel %vm279, 0.0, %v5234
        %v5241 = vsel %vm279, %v5235, 0.0
        %s5242 = sld [smem:[#allocation7 + $0x9]]
        %v5243 = vstv %s5242
        %s5244 = sld [smem:[#allocation2 + $0xea]]
        %v5245 = vstv %s5244
        %v5246 = vmul.f32 %v5245, %v5240
        %v5247 = vmul.f32 %v5245, %v5236
        %v5248 = vadd.f32 %v5243, %v5246
        %v5249 = vadd.f32 %v5243, %v5247
        %s5250 = sld [smem:[#allocation2 + $0xeb]]
        %v5251 = vstv %s5250
        %v5252 = vmul.f32 %v5251, %v5240
        %v5253 = vmul.f32 %v5251, %v5236
        %5256 = vrot.lane.b32.xlu0 %v5252, 127
        %v5257 = vpop.permute.xlu0 %5256
        %5258 = vrot.lane.b32.xlu0 %v5253, 127
        %v5259 = vpop.permute.xlu0 %5258
        %v5262 = vadd.f32 %v5248, %v5257
        %v5263 = vadd.f32 %v5249, %v5259
        %s5264 = sld [smem:[#allocation2 + $0xec]]
        %v5265 = vstv %s5264
        %v5266 = vmul.f32 %v5265, %v5240
        %v5267 = vmul.f32 %v5265, %v5236
        %5270 = vrot.lane.b32.xlu0 %v5266, 126
        %v5271 = vpop.permute.xlu0 %5270
        %5272 = vrot.lane.b32.xlu0 %v5267, 126
        %v5273 = vpop.permute.xlu0 %5272
        %v5276 = vadd.f32 %v5262, %v5271
        %v5277 = vadd.f32 %v5263, %v5273
        %s5278 = sld [smem:[#allocation2 + $0xed]]
        %v5279 = vstv %s5278
        %v5280 = vmul.f32 %v5279, %v5240
        %v5281 = vmul.f32 %v5279, %v5236
        %v5282 = vmul.f32 %v5279, %v5241
        %v5286 = vrot.slane %v5280, 1
        %v5287 = vrot.slane %v5281, 1
        %v5288 = vsel %vm398, %v5286, %v5287
        %v5289 = vrot.slane %v5282, 1
        %v5290 = vsel %vm398, %v5287, %v5289
        %v5293 = vadd.f32 %v5276, %v5288
        %v5294 = vadd.f32 %v5277, %v5290
        %s5295 = sld [smem:[#allocation2 + $0xee]]
        %v5296 = vstv %s5295
        %v5297 = vmul.f32 %v5296, %v5240
        %v5298 = vmul.f32 %v5296, %v5236
        %v5299 = vmul.f32 %v5296, %v5241
        %v5303 = vrot.slane %v5297, 1
        %v5304 = vrot.slane %v5298, 1
        %v5305 = vsel %vm398, %v5303, %v5304
        %v5306 = vrot.slane %v5299, 1
        %v5307 = vsel %vm398, %v5304, %v5306
        %5308 = vrot.lane.b32.xlu0 %v5305, 127
        %v5309 = vpop.permute.xlu0 %5308
        %5310 = vrot.lane.b32.xlu0 %v5307, 127
        %v5311 = vpop.permute.xlu0 %5310
        %v5314 = vadd.f32 %v5293, %v5309
        %v5315 = vadd.f32 %v5294, %v5311
        %s5316 = sld [smem:[#allocation2 + $0xef]]
        %v5317 = vstv %s5316
        %v5318 = vmul.f32 %v5317, %v5240
        %v5319 = vmul.f32 %v5317, %v5236
        %v5320 = vmul.f32 %v5317, %v5241
        %v5324 = vrot.slane %v5318, 1
        %v5325 = vrot.slane %v5319, 1
        %v5326 = vsel %vm398, %v5324, %v5325
        %v5327 = vrot.slane %v5320, 1
        %v5328 = vsel %vm398, %v5325, %v5327
        %5329 = vrot.lane.b32.xlu0 %v5326, 126
        %v5330 = vpop.permute.xlu0 %5329
        %5331 = vrot.lane.b32.xlu0 %v5328, 126
        %v5332 = vpop.permute.xlu0 %5331
        %v5335 = vadd.f32 %v5314, %v5330
        %v5336 = vadd.f32 %v5315, %v5332
        %s5337 = sld [smem:[#allocation2 + $0xf0]]
        %v5338 = vstv %s5337
        %v5339 = vmul.f32 %v5338, %v5240
        %v5340 = vmul.f32 %v5338, %v5236
        %v5341 = vmul.f32 %v5338, %v5241
        %v5345 = vrot.slane %v5339, 2
        %v5346 = vrot.slane %v5340, 2
        %v5347 = vsel %vm458, %v5345, %v5346
        %v5348 = vrot.slane %v5341, 2
        %v5349 = vsel %vm458, %v5346, %v5348
        %v5352 = vadd.f32 %v5335, %v5347
        %v5353 = vadd.f32 %v5336, %v5349
        %s5354 = sld [smem:[#allocation2 + $0xf1]]
        %v5355 = vstv %s5354
        %v5356 = vmul.f32 %v5355, %v5240
        %v5357 = vmul.f32 %v5355, %v5236
        %v5358 = vmul.f32 %v5355, %v5241
        %v5362 = vrot.slane %v5356, 2
        %v5363 = vrot.slane %v5357, 2
        %v5364 = vsel %vm458, %v5362, %v5363
        %v5365 = vrot.slane %v5358, 2
        %v5366 = vsel %vm458, %v5363, %v5365
        %5367 = vrot.lane.b32.xlu0 %v5364, 127
        %v5368 = vpop.permute.xlu0 %5367
        %5369 = vrot.lane.b32.xlu0 %v5366, 127
        %v5370 = vpop.permute.xlu0 %5369
        %v5373 = vadd.f32 %v5352, %v5368
        %v5374 = vadd.f32 %v5353, %v5370
        %s5375 = sld [smem:[#allocation2 + $0xf2]]
        %v5376 = vstv %s5375
        %v5377 = vmul.f32 %v5376, %v5240
        %v5378 = vmul.f32 %v5376, %v5236
        %v5379 = vmul.f32 %v5376, %v5241
        %v5383 = vrot.slane %v5377, 2
        %v5384 = vrot.slane %v5378, 2
        %v5385 = vsel %vm458, %v5383, %v5384
        %v5386 = vrot.slane %v5379, 2
        %v5387 = vsel %vm458, %v5384, %v5386
        %5388 = vrot.lane.b32.xlu0 %v5385, 126
        %v5389 = vpop.permute.xlu0 %5388
        %5390 = vrot.lane.b32.xlu0 %v5387, 126
        %v5391 = vpop.permute.xlu0 %5390
        %v5394 = vadd.f32 %v5373, %v5389
        %v5395 = vadd.f32 %v5374, %v5391
        %s5396 = sld [smem:[#allocation7 + $0xa]]
        %v5397 = vstv %s5396
        %s5398 = sld [smem:[#allocation2 + $0xf3]]
        %v5399 = vstv %s5398
        %v5400 = vmul.f32 %v5399, %v5240
        %v5401 = vmul.f32 %v5399, %v5236
        %v5402 = vadd.f32 %v5397, %v5400
        %v5403 = vadd.f32 %v5397, %v5401
        %s5404 = sld [smem:[#allocation2 + $0xf4]]
        %v5405 = vstv %s5404
        %v5406 = vmul.f32 %v5405, %v5240
        %v5407 = vmul.f32 %v5405, %v5236
        %5410 = vrot.lane.b32.xlu0 %v5406, 127
        %v5411 = vpop.permute.xlu0 %5410
        %5412 = vrot.lane.b32.xlu0 %v5407, 127
        %v5413 = vpop.permute.xlu0 %5412
        %v5416 = vadd.f32 %v5402, %v5411
        %v5417 = vadd.f32 %v5403, %v5413
        %s5418 = sld [smem:[#allocation2 + $0xf5]]
        %v5419 = vstv %s5418
        %v5420 = vmul.f32 %v5419, %v5240
        %v5421 = vmul.f32 %v5419, %v5236
        %5424 = vrot.lane.b32.xlu0 %v5420, 126
        %v5425 = vpop.permute.xlu0 %5424
        %5426 = vrot.lane.b32.xlu0 %v5421, 126
        %v5427 = vpop.permute.xlu0 %5426
        %v5430 = vadd.f32 %v5416, %v5425
        %v5431 = vadd.f32 %v5417, %v5427
        %s5432 = sld [smem:[#allocation2 + $0xf6]]
        %v5433 = vstv %s5432
        %v5434 = vmul.f32 %v5433, %v5240
        %v5435 = vmul.f32 %v5433, %v5236
        %v5436 = vmul.f32 %v5433, %v5241
        %v5440 = vrot.slane %v5434, 1
        %v5441 = vrot.slane %v5435, 1
        %v5442 = vsel %vm398, %v5440, %v5441
        %v5443 = vrot.slane %v5436, 1
        %v5444 = vsel %vm398, %v5441, %v5443
        %v5447 = vadd.f32 %v5430, %v5442
        %v5448 = vadd.f32 %v5431, %v5444
        %s5449 = sld [smem:[#allocation2 + $0xf7]]
        %v5450 = vstv %s5449
        %v5451 = vmul.f32 %v5450, %v5240
        %v5452 = vmul.f32 %v5450, %v5236
        %v5453 = vmul.f32 %v5450, %v5241
        %v5457 = vrot.slane %v5451, 1
        %v5458 = vrot.slane %v5452, 1
        %v5459 = vsel %vm398, %v5457, %v5458
        %v5460 = vrot.slane %v5453, 1
        %v5461 = vsel %vm398, %v5458, %v5460
        %5462 = vrot.lane.b32.xlu0 %v5459, 127
        %v5463 = vpop.permute.xlu0 %5462
        %5464 = vrot.lane.b32.xlu0 %v5461, 127
        %v5465 = vpop.permute.xlu0 %5464
        %v5468 = vadd.f32 %v5447, %v5463
        %v5469 = vadd.f32 %v5448, %v5465
        %s5470 = sld [smem:[#allocation2 + $0xf8]]
        %v5471 = vstv %s5470
        %v5472 = vmul.f32 %v5471, %v5240
        %v5473 = vmul.f32 %v5471, %v5236
        %v5474 = vmul.f32 %v5471, %v5241
        %v5478 = vrot.slane %v5472, 1
        %v5479 = vrot.slane %v5473, 1
        %v5480 = vsel %vm398, %v5478, %v5479
        %v5481 = vrot.slane %v5474, 1
        %v5482 = vsel %vm398, %v5479, %v5481
        %5483 = vrot.lane.b32.xlu0 %v5480, 126
        %v5484 = vpop.permute.xlu0 %5483
        %5485 = vrot.lane.b32.xlu0 %v5482, 126
        %v5486 = vpop.permute.xlu0 %5485
        %v5489 = vadd.f32 %v5468, %v5484
        %v5490 = vadd.f32 %v5469, %v5486
        %s5491 = sld [smem:[#allocation2 + $0xf9]]
        %v5492 = vstv %s5491
        %v5493 = vmul.f32 %v5492, %v5240
        %v5494 = vmul.f32 %v5492, %v5236
        %v5495 = vmul.f32 %v5492, %v5241
        %v5499 = vrot.slane %v5493, 2
        %v5500 = vrot.slane %v5494, 2
        %v5501 = vsel %vm458, %v5499, %v5500
        %v5502 = vrot.slane %v5495, 2
        %v5503 = vsel %vm458, %v5500, %v5502
        %v5506 = vadd.f32 %v5489, %v5501
        %v5507 = vadd.f32 %v5490, %v5503
        %s5508 = sld [smem:[#allocation2 + $0xfa]]
        %v5509 = vstv %s5508
        %v5510 = vmul.f32 %v5509, %v5240
        %v5511 = vmul.f32 %v5509, %v5236
        %v5512 = vmul.f32 %v5509, %v5241
        %v5516 = vrot.slane %v5510, 2
        %v5517 = vrot.slane %v5511, 2
        %v5518 = vsel %vm458, %v5516, %v5517
        %v5519 = vrot.slane %v5512, 2
        %v5520 = vsel %vm458, %v5517, %v5519
        %5521 = vrot.lane.b32.xlu0 %v5518, 127
        %v5522 = vpop.permute.xlu0 %5521
        %5523 = vrot.lane.b32.xlu0 %v5520, 127
        %v5524 = vpop.permute.xlu0 %5523
        %v5527 = vadd.f32 %v5506, %v5522
        %v5528 = vadd.f32 %v5507, %v5524
        %s5529 = sld [smem:[#allocation2 + $0xfb]]
        %v5530 = vstv %s5529
        %v5531 = vmul.f32 %v5530, %v5240
        %v5532 = vmul.f32 %v5530, %v5236
        %v5533 = vmul.f32 %v5530, %v5241
        %v5537 = vrot.slane %v5531, 2
        %v5538 = vrot.slane %v5532, 2
        %v5539 = vsel %vm458, %v5537, %v5538
        %v5540 = vrot.slane %v5533, 2
        %v5541 = vsel %vm458, %v5538, %v5540
        %5542 = vrot.lane.b32.xlu0 %v5539, 126
        %v5543 = vpop.permute.xlu0 %5542
        %5544 = vrot.lane.b32.xlu0 %v5541, 126
        %v5545 = vpop.permute.xlu0 %5544
        %v5548 = vadd.f32 %v5527, %v5543
        %v5549 = vadd.f32 %v5528, %v5545
        %s5550 = sld [smem:[#allocation7 + $0xb]]
        %v5551 = vstv %s5550
        %s5552 = sld [smem:[#allocation2 + $0xfc]]
        %v5553 = vstv %s5552
        %v5554 = vmul.f32 %v5553, %v5240
        %v5555 = vmul.f32 %v5553, %v5236
        %v5556 = vadd.f32 %v5551, %v5554
        %v5557 = vadd.f32 %v5551, %v5555
        %s5558 = sld [smem:[#allocation2 + $0xfd]]
        %v5559 = vstv %s5558
        %v5560 = vmul.f32 %v5559, %v5240
        %v5561 = vmul.f32 %v5559, %v5236
        %5564 = vrot.lane.b32.xlu0 %v5560, 127
        %v5565 = vpop.permute.xlu0 %5564
        %5566 = vrot.lane.b32.xlu0 %v5561, 127
        %v5567 = vpop.permute.xlu0 %5566
        %v5570 = vadd.f32 %v5556, %v5565
        %v5571 = vadd.f32 %v5557, %v5567
        %s5572 = sld [smem:[#allocation2 + $0xfe]]
        %v5573 = vstv %s5572
        %v5574 = vmul.f32 %v5573, %v5240
        %v5575 = vmul.f32 %v5573, %v5236
        %5578 = vrot.lane.b32.xlu0 %v5574, 126
        %v5579 = vpop.permute.xlu0 %5578
        %5580 = vrot.lane.b32.xlu0 %v5575, 126
        %v5581 = vpop.permute.xlu0 %5580
        %v5584 = vadd.f32 %v5570, %v5579
        %v5585 = vadd.f32 %v5571, %v5581
        %s5586 = sld [smem:[#allocation2 + $0xff]]
        %v5587 = vstv %s5586
        %v5588 = vmul.f32 %v5587, %v5240
        %v5589 = vmul.f32 %v5587, %v5236
        %v5590 = vmul.f32 %v5587, %v5241
        %v5594 = vrot.slane %v5588, 1
        %v5595 = vrot.slane %v5589, 1
        %v5596 = vsel %vm398, %v5594, %v5595
        %v5597 = vrot.slane %v5590, 1
        %v5598 = vsel %vm398, %v5595, %v5597
        %v5601 = vadd.f32 %v5584, %v5596
        %v5602 = vadd.f32 %v5585, %v5598
        %s5603 = sld [smem:[#allocation2 + $0x100]]
        %v5604 = vstv %s5603
        %v5605 = vmul.f32 %v5604, %v5240
        %v5606 = vmul.f32 %v5604, %v5236
        %v5607 = vmul.f32 %v5604, %v5241
        %v5611 = vrot.slane %v5605, 1
        %v5612 = vrot.slane %v5606, 1
        %v5613 = vsel %vm398, %v5611, %v5612
        %v5614 = vrot.slane %v5607, 1
        %v5615 = vsel %vm398, %v5612, %v5614
        %5616 = vrot.lane.b32.xlu0 %v5613, 127
        %v5617 = vpop.permute.xlu0 %5616
        %5618 = vrot.lane.b32.xlu0 %v5615, 127
        %v5619 = vpop.permute.xlu0 %5618
        %v5622 = vadd.f32 %v5601, %v5617
        %v5623 = vadd.f32 %v5602, %v5619
        %s5624 = sld [smem:[#allocation2 + $0x101]]
        %v5625 = vstv %s5624
        %v5626 = vmul.f32 %v5625, %v5240
        %v5627 = vmul.f32 %v5625, %v5236
        %v5628 = vmul.f32 %v5625, %v5241
        %v5632 = vrot.slane %v5626, 1
        %v5633 = vrot.slane %v5627, 1
        %v5634 = vsel %vm398, %v5632, %v5633
        %v5635 = vrot.slane %v5628, 1
        %v5636 = vsel %vm398, %v5633, %v5635
        %5637 = vrot.lane.b32.xlu0 %v5634, 126
        %v5638 = vpop.permute.xlu0 %5637
        %5639 = vrot.lane.b32.xlu0 %v5636, 126
        %v5640 = vpop.permute.xlu0 %5639
        %v5643 = vadd.f32 %v5622, %v5638
        %v5644 = vadd.f32 %v5623, %v5640
        %s5645 = sld [smem:[#allocation2 + $0x102]]
        %v5646 = vstv %s5645
        %v5647 = vmul.f32 %v5646, %v5240
        %v5648 = vmul.f32 %v5646, %v5236
        %v5649 = vmul.f32 %v5646, %v5241
        %v5653 = vrot.slane %v5647, 2
        %v5654 = vrot.slane %v5648, 2
        %v5655 = vsel %vm458, %v5653, %v5654
        %v5656 = vrot.slane %v5649, 2
        %v5657 = vsel %vm458, %v5654, %v5656
        %v5660 = vadd.f32 %v5643, %v5655
        %v5661 = vadd.f32 %v5644, %v5657
        %s5662 = sld [smem:[#allocation2 + $0x103]]
        %v5663 = vstv %s5662
        %v5664 = vmul.f32 %v5663, %v5240
        %v5665 = vmul.f32 %v5663, %v5236
        %v5666 = vmul.f32 %v5663, %v5241
        %v5670 = vrot.slane %v5664, 2
        %v5671 = vrot.slane %v5665, 2
        %v5672 = vsel %vm458, %v5670, %v5671
        %v5673 = vrot.slane %v5666, 2
        %v5674 = vsel %vm458, %v5671, %v5673
        %5675 = vrot.lane.b32.xlu0 %v5672, 127
        %v5676 = vpop.permute.xlu0 %5675
        %5677 = vrot.lane.b32.xlu0 %v5674, 127
        %v5678 = vpop.permute.xlu0 %5677
        %v5681 = vadd.f32 %v5660, %v5676
        %v5682 = vadd.f32 %v5661, %v5678
        %s5683 = sld [smem:[#allocation2 + $0x104]]
        %v5684 = vstv %s5683
        %v5685 = vmul.f32 %v5684, %v5240
        %v5686 = vmul.f32 %v5684, %v5236
        %v5687 = vmul.f32 %v5684, %v5241
        %v5691 = vrot.slane %v5685, 2
        %v5692 = vrot.slane %v5686, 2
        %v5693 = vsel %vm458, %v5691, %v5692
        %v5694 = vrot.slane %v5687, 2
        %v5695 = vsel %vm458, %v5692, %v5694
        %5696 = vrot.lane.b32.xlu0 %v5693, 126
        %v5697 = vpop.permute.xlu0 %5696
        %5698 = vrot.lane.b32.xlu0 %v5695, 126
        %v5699 = vpop.permute.xlu0 %5698
        %v5702 = vadd.f32 %v5681, %v5697
        %v5703 = vadd.f32 %v5682, %v5699
        %s5704 = sld [smem:[#allocation7 + $0xc]]
        %v5705 = vstv %s5704
        %s5706 = sld [smem:[#allocation2 + $0x105]]
        %v5707 = vstv %s5706
        %v5708 = vmul.f32 %v5707, %v5240
        %v5709 = vmul.f32 %v5707, %v5236
        %v5710 = vadd.f32 %v5705, %v5708
        %v5711 = vadd.f32 %v5705, %v5709
        %s5712 = sld [smem:[#allocation2 + $0x106]]
        %v5713 = vstv %s5712
        %v5714 = vmul.f32 %v5713, %v5240
        %v5715 = vmul.f32 %v5713, %v5236
        %5718 = vrot.lane.b32.xlu0 %v5714, 127
        %v5719 = vpop.permute.xlu0 %5718
        %5720 = vrot.lane.b32.xlu0 %v5715, 127
        %v5721 = vpop.permute.xlu0 %5720
        %v5724 = vadd.f32 %v5710, %v5719
        %v5725 = vadd.f32 %v5711, %v5721
        %s5726 = sld [smem:[#allocation2 + $0x107]]
        %v5727 = vstv %s5726
        %v5728 = vmul.f32 %v5727, %v5240
        %v5729 = vmul.f32 %v5727, %v5236
        %5732 = vrot.lane.b32.xlu0 %v5728, 126
        %v5733 = vpop.permute.xlu0 %5732
        %5734 = vrot.lane.b32.xlu0 %v5729, 126
        %v5735 = vpop.permute.xlu0 %5734
        %v5738 = vadd.f32 %v5724, %v5733
        %v5739 = vadd.f32 %v5725, %v5735
        %s5740 = sld [smem:[#allocation2 + $0x108]]
        %v5741 = vstv %s5740
        %v5742 = vmul.f32 %v5741, %v5240
        %v5743 = vmul.f32 %v5741, %v5236
        %v5744 = vmul.f32 %v5741, %v5241
        %v5748 = vrot.slane %v5742, 1
        %v5749 = vrot.slane %v5743, 1
        %v5750 = vsel %vm398, %v5748, %v5749
        %v5751 = vrot.slane %v5744, 1
        %v5752 = vsel %vm398, %v5749, %v5751
        %v5755 = vadd.f32 %v5738, %v5750
        %v5756 = vadd.f32 %v5739, %v5752
        %s5757 = sld [smem:[#allocation2 + $0x109]]
        %v5758 = vstv %s5757
        %v5759 = vmul.f32 %v5758, %v5240
        %v5760 = vmul.f32 %v5758, %v5236
        %v5761 = vmul.f32 %v5758, %v5241
        %v5765 = vrot.slane %v5759, 1
        %v5766 = vrot.slane %v5760, 1
        %v5767 = vsel %vm398, %v5765, %v5766
        %v5768 = vrot.slane %v5761, 1
        %v5769 = vsel %vm398, %v5766, %v5768
        %5770 = vrot.lane.b32.xlu0 %v5767, 127
        %v5771 = vpop.permute.xlu0 %5770
        %5772 = vrot.lane.b32.xlu0 %v5769, 127
        %v5773 = vpop.permute.xlu0 %5772
        %v5776 = vadd.f32 %v5755, %v5771
        %v5777 = vadd.f32 %v5756, %v5773
        %s5778 = sld [smem:[#allocation2 + $0x10a]]
        %v5779 = vstv %s5778
        %v5780 = vmul.f32 %v5779, %v5240
        %v5781 = vmul.f32 %v5779, %v5236
        %v5782 = vmul.f32 %v5779, %v5241
        %v5786 = vrot.slane %v5780, 1
        %v5787 = vrot.slane %v5781, 1
        %v5788 = vsel %vm398, %v5786, %v5787
        %v5789 = vrot.slane %v5782, 1
        %v5790 = vsel %vm398, %v5787, %v5789
        %5791 = vrot.lane.b32.xlu0 %v5788, 126
        %v5792 = vpop.permute.xlu0 %5791
        %5793 = vrot.lane.b32.xlu0 %v5790, 126
        %v5794 = vpop.permute.xlu0 %5793
        %v5797 = vadd.f32 %v5776, %v5792
        %v5798 = vadd.f32 %v5777, %v5794
        %s5799 = sld [smem:[#allocation2 + $0x10b]]
        %v5800 = vstv %s5799
        %v5801 = vmul.f32 %v5800, %v5240
        %v5802 = vmul.f32 %v5800, %v5236
        %v5803 = vmul.f32 %v5800, %v5241
        %v5807 = vrot.slane %v5801, 2
        %v5808 = vrot.slane %v5802, 2
        %v5809 = vsel %vm458, %v5807, %v5808
        %v5810 = vrot.slane %v5803, 2
        %v5811 = vsel %vm458, %v5808, %v5810
        %v5814 = vadd.f32 %v5797, %v5809
        %v5815 = vadd.f32 %v5798, %v5811
        %s5816 = sld [smem:[#allocation2 + $0x10c]]
        %v5817 = vstv %s5816
        %v5818 = vmul.f32 %v5817, %v5240
        %v5819 = vmul.f32 %v5817, %v5236
        %v5820 = vmul.f32 %v5817, %v5241
        %v5824 = vrot.slane %v5818, 2
        %v5825 = vrot.slane %v5819, 2
        %v5826 = vsel %vm458, %v5824, %v5825
        %v5827 = vrot.slane %v5820, 2
        %v5828 = vsel %vm458, %v5825, %v5827
        %5829 = vrot.lane.b32.xlu0 %v5826, 127
        %v5830 = vpop.permute.xlu0 %5829
        %5831 = vrot.lane.b32.xlu0 %v5828, 127
        %v5832 = vpop.permute.xlu0 %5831
        %v5835 = vadd.f32 %v5814, %v5830
        %v5836 = vadd.f32 %v5815, %v5832
        %s5837 = sld [smem:[#allocation2 + $0x10d]]
        %v5838 = vstv %s5837
        %v5839 = vmul.f32 %v5838, %v5240
        %v5840 = vmul.f32 %v5838, %v5236
        %v5841 = vmul.f32 %v5838, %v5241
        %v5845 = vrot.slane %v5839, 2
        %v5846 = vrot.slane %v5840, 2
        %v5847 = vsel %vm458, %v5845, %v5846
        %v5848 = vrot.slane %v5841, 2
        %v5849 = vsel %vm458, %v5846, %v5848
        %5850 = vrot.lane.b32.xlu0 %v5847, 126
        %v5851 = vpop.permute.xlu0 %5850
        %5852 = vrot.lane.b32.xlu0 %v5849, 126
        %v5853 = vpop.permute.xlu0 %5852
        %v5856 = vadd.f32 %v5835, %v5851
        %v5857 = vadd.f32 %v5836, %v5853
        %v5858 = vtanh.pop %v5394
        %v5859 = vtanh.pop %v5395
        %5860 = vst.msk [vmem:[%s244] sm:$0xff] %vm1592, %v5858
        %5861 = vst.msk [vmem:[%s244 + $0x8] sm:$0xff] %vm1592, %v5859
        %v5862 = vtanh.pop %v5548
        %v5863 = vtanh.pop %v5549
        %s5864 = scalar_lea.vmem %s244, 16 [#allocation9]
        %5865 = vst.msk [vmem:[%s5864] sm:$0xff] %vm1592, %v5862
        %5866 = vst.msk [vmem:[%s5864 + $0x8] sm:$0xff] %vm1592, %v5863
        %v5867 = vtanh.pop %v5702
        %v5868 = vtanh.pop %v5703
        %s5869 = scalar_lea.vmem %s244, 32 [#allocation9]
        %5870 = vst.msk [vmem:[%s5869] sm:$0xff] %vm1592, %v5867
        %5871 = vst.msk [vmem:[%s5869 + $0x8] sm:$0xff] %vm1592, %v5868
        %v5872 = vtanh.pop %v5856
        %v5873 = vtanh.pop %v5857
        %s5874 = scalar_lea.vmem %s244, 48 [#allocation9]
        %5875 = vst.msk [vmem:[%s5874] sm:$0xff] %vm1592, %v5872
        %5876 = vst.msk [vmem:[%s5874 + $0x8] sm:$0xff] %vm1592, %v5873
        %s5877 = sand.u32 %s103, 1
        %s5878 = scalar_lea.sflag [#allocation4], %s5877
        %s5879 = sand.u32 %s103, 1
        %s5880 = smul.addr %s5879, 64
        %s5881 = scalar_lea.vmem [#allocation9], %s5880
        %s5882 = sand.u32 %s129, 1
        %s5883 = scalar_lea.sflag [#allocation11], %s5882
        %s5884 = sand.u32 %s129, 1
        %s5885 = smul.addr %s5884, 16
        %s5886 = scalar_lea.vmem [#allocation10], %s5885
        // Predicated region
        $region45: #{_lambda_.1} parent=31 // pred_check
          %p5887 = pneg %p113
        $region46: #{_lambda_.1} parent=31 // pred_check_branch
          %5889 = sbr.rel (%p5887) target = $region48
        $region47: #{_lambda_.1} parent=31 // pred_region
          %s5891 = ssub.s32 1024, 1024
          %5892 = vsyncadd %s5878, %s5891
          %s5893 = smul.addr %s27, 8
          %s5894 = smul.addr %s5893, 128
          %s5895 = scalar_lea.hbm %s3, %s5894
          %s5896 = sshll.u32 %s5881, 4
          %s5897 = int_to_ptr.vmem [resolvable:$true] %s5896
          %5902 = dma.vmem_to_hbm [thread:$0]  %s5897, 1024, %s5895, %s5878, 128, 128, 8
        $region48: #{_lambda_.1} parent=31 // pred_fallthru
          _
        // Predicated region
        $region49: #{_lambda_.1} parent=31 // pred_check
          %p5903 = pneg %p139
        $region50: #{_lambda_.1} parent=31 // pred_check_branch
          %5905 = sbr.rel (%p5903) target = $region52
        $region51: #{_lambda_.1} parent=31 // pred_region
          %s5907 = ssub.s32 256, 256
          %5908 = vsyncadd %s5883, %s5907
          %s5909 = smul.addr %s27, 4
          %s5910 = smul.addr %s5909, 64
          %s5911 = scalar_lea.hbm %s4, %s5910
          %s5912 = sshll.u32 %s5886, 4
          %s5913 = int_to_ptr.vmem [resolvable:$true] %s5912
          %5918 = dma.vmem_to_hbm [thread:$0]  %s5913, 256, %s5911, %s5883, 64, 64, 4
        $region52: #{_lambda_.1} parent=31 // pred_fallthru
          _
      $region32: #{_lambda_.1} parent=5 // pred_fallthru
        _
      %p5919 = scmp.le.s32.totalorder 2, %s22
      // Predicated region
      $region53: #{_lambda_.1} parent=5 // pred_check
        %p5920 = pneg %p5919
      $region54: #{_lambda_.1} parent=5 // pred_check_branch
        %5922 = sbr.rel (%p5920) target = $region56
      $region55: #{_lambda_.1} parent=5 // pred_region
        %s5923 = ssub.s32 %s22, 2
        // Predicated region
        $region57: #{_lambda_.1} parent=55 // pred_check
          %p5924 = pneg %p119
        $region58: #{_lambda_.1} parent=55 // pred_check_branch
          %5926 = sbr.rel (%p5924) target = $region60
        $region59: #{_lambda_.1} parent=55 // pred_region
          %s5927 = sand.u32 %s104, 1
          %s5928 = scalar_lea.sflag [#allocation4], %s5927
          %s5929 = sand.u32 %s104, 1
          %s5930 = smul.addr %s5929, 64
          %s5931 = scalar_lea.vmem [#allocation9], %s5930
          %5932 = dma.done %s5928, 1024
        $region60: #{_lambda_.1} parent=55 // pred_fallthru
          _
        // Predicated region
        $region61: #{_lambda_.1} parent=55 // pred_check
          %p5933 = pneg %p145
        $region62: #{_lambda_.1} parent=55 // pred_check_branch
          %5935 = sbr.rel (%p5933) target = $region64
        $region63: #{_lambda_.1} parent=55 // pred_region
          %s5936 = sand.u32 %s130, 1
          %s5937 = scalar_lea.sflag [#allocation11], %s5936
          %s5938 = sand.u32 %s130, 1
          %s5939 = smul.addr %s5938, 16
          %s5940 = scalar_lea.vmem [#allocation10], %s5939
          %5941 = dma.done %s5937, 256
        $region64: #{_lambda_.1} parent=55 // pred_fallthru
          _
      $region56: #{_lambda_.1} parent=5 // pred_fallthru
        _
    $region6: #{_lambda_.1} parent=1 // loop_footer
      %s26 = sadd.s32 1, %s22
    $region7: #{_lambda_.1} parent=1 // loop_footer_branch
      %21 = sbr.rel target = $region3
    $region8: #{_lambda_.1} parent=1 // loop_exit
      _
    %5942 = vsyncpa [#allocation3], 1
    %s5943 = scalar_lea.sflag [#allocation3], 1
    %5944 = vsyncpa %s5943, 1
    %5945 = vsyncpa [#allocation4], 1
    %s5946 = scalar_lea.sflag [#allocation4], 1
    %5947 = vsyncpa %s5946, 1
    %5948 = vsyncpa [#allocation11], 1
    %s5949 = scalar_lea.sflag [#allocation11], 1
    %5950 = vsyncpa %s5949, 1
    %5951 = vsyncpa [#allocation5], 1
    %s5952 = scalar_lea.sflag [#allocation5], 1
    %5953 = vsyncpa %s5952, 1
    %5954 = vsyncpa [#allocation6], 1
    %s5955 = scalar_lea.sflag [#allocation6], 1
    %5956 = vsyncpa %s5955, 1

</llo_original>
